<compile_context>
chip_gen: v5e
topology: v5e:2x2
jax: 0.10.0
libtpu: 0.0.40
codegen_flags: <defaults>
</compile_context>

<pallas_src>
import jax
import jax.numpy as jnp
from jax import lax
from jax.experimental import pallas as pl
from jax.experimental.pallas import tpu as pltpu

# ---- model config (small, consistent with the module defaults) ----
HIDDEN = 32
NUM_HEADS = 4
KEY_DIM = HIDDEN                 # expand_k = 1.0
VALUE_DIM = HIDDEN               # expand_v = 1.0
HEAD_K = KEY_DIM // NUM_HEADS    # 8
HEAD_V = VALUE_DIM // NUM_HEADS  # 8
CONV_SIZE = 4
NORM_EPS = 1e-5
L2_EPS = 1e-6                    # fla l2norm convention: rsqrt(sum(x^2) + eps)

# single state/GG layout requires these (true for the default config)
assert HEAD_K == HEAD_V and KEY_DIM == VALUE_DIM
HD = HEAD_K

MXU_DTYPE = jnp.bfloat16         # MXU operand dtype (f32 accumulate) on every TPU gen


def deltanet_kernel(x_ref, wproj_ref, wconv_ref, gg_ref, wout_ref, out_ref,
                    qkrep_ref, tv_ref, tb_ref, to_ref):
    T = x_ref.shape[0]
    Bb = x_ref.shape[1] // HIDDEN          # batch elements handled by this grid step
    L = Bb * KEY_DIM                       # lane width of q/k/v/beta/state (= Bb*NH*HD)
    CW = 3 * L                             # conv'd channels q|k|v, lane-dense

    # ---- fused block-diagonal projection: q|k|v|beta in ONE lane-full MXU matmul.
    # Output columns are already time-major / lane-dense (b, h, d) slabs.
    x = x_ref[...].astype(MXU_DTYPE)                                       # [T, Bb*H]
    proj = jnp.dot(x, wproj_ref[...], preferred_element_type=jnp.float32)  # [T, CW+L]

    # ---- causal depthwise short conv + SiLU over q|k|v (ShortConvolution) ----
    qkv = proj[:, :CW]
    w_conv = wconv_ref[...]                                                # [K, CW]
    acc = qkv * w_conv[CONV_SIZE - 1:CONV_SIZE, :]                         # zero-shift tap
    row_t = lax.broadcasted_iota(jnp.int32, (T, CW), 0)
    for i in range(CONV_SIZE - 1):
        s = CONV_SIZE - 1 - i                                              # time shift of tap i
        shifted = pltpu.roll(qkv, shift=s, axis=0)                         # sublane rotate
        shifted = jnp.where(row_t >= s, shifted, 0.0)                      # causal zero pad
        acc = acc + shifted * w_conv[i:i + 1, :]
    qkv_c = acc * jax.nn.sigmoid(acc)                                      # SiLU

    # beta arrives from the projection already broadcast over the head_v lanes
    tb_ref[...] = jax.nn.sigmoid(proj[:, CW:CW + L])                       # [T, L]
    tv_ref[...] = qkv_c[:, 2 * L:3 * L]                                    # v rows  [T, L]

    # ---- per-head L2 norm of q and k (stacked -> one GG matmul) ----
    gg = gg_ref[...]                                                       # [L, L] 0/1 group matrix
    qk = jnp.concatenate([qkv_c[:, 0:L], qkv_c[:, L:2 * L]], axis=0)       # [2T, L]
    ssq = jnp.dot(qk * qk, gg, preferred_element_type=jnp.float32)         # group sum-sq, lane-bcast
    qk_n = qk * lax.rsqrt(ssq + L2_EPS)
    row2 = lax.broadcasted_iota(jnp.int32, (2 * T, L), 0)
    qk_n = jnp.where(row2 < T, qk_n * (HD ** -0.5), qk_n)                  # delta-rule scale on q only

    # ---- expand dk -> sublanes (broadcast over dv lanes): one masked GG matmul.
    # qkrep rows are (s, t, dk) with s=0 -> q, s=1 -> k; cols are (b, h, dv).
    R = 2 * T * HD
    r_id = lax.broadcasted_iota(jnp.int32, (R, L), 0)
    c_id = lax.broadcasted_iota(jnp.int32, (R, L), 1)
    rows = jnp.broadcast_to(qk_n[:, None, :], (2 * T, HD, L)).reshape(R, L)
    sel = jnp.where((r_id % HD) == (c_id % HD), rows, 0.0)
    qkrep_ref[...] = jnp.dot(sel, gg, preferred_element_type=jnp.float32)  # [2T*HD, L]

    # ---- fused recurrent delta rule; state S is one [HD, L] slab (4 vregs) ----
    # per (b, h): v_old = S^T k ; delta = beta*(v - v_old) ; S += k delta^T ; o = S^T q
    def step(t, S):
        rq = pl.multiple_of(t * HD, HD)
        rk = pl.multiple_of((T + t) * HD, HD)
        q_t = qkrep_ref[pl.ds(rq, HD), :]                                  # [HD, L]
        k_t = qkrep_ref[pl.ds(rk, HD), :]                                  # [HD, L]
        v_t = tv_ref[pl.ds(t, 1), :]                                       # [1, L]
        b_t = tb_ref[pl.ds(t, 1), :]                                       # [1, L]
        v_old = jnp.sum(S * k_t, axis=0, keepdims=True)                    # [1, L]
        delta = (v_t - v_old) * b_t
        S = S + k_t * delta
        o_t = jnp.sum(S * q_t, axis=0, keepdims=True)                      # [1, L]
        to_ref[pl.ds(t, 1), :] = o_t                                       # row store (vst slot)
        return S

    _ = lax.fori_loop(0, T, step, jnp.zeros((HD, L), jnp.float32), unroll=True)

    # ---- output RMSNorm over head_v_dim (one GG matmul), then o_proj ----
    o = to_ref[...]                                                        # [T, L]
    ssq_o = jnp.dot(o * o, gg, preferred_element_type=jnp.float32)
    o_n = o * lax.rsqrt(ssq_o * (1.0 / HD) + NORM_EPS)                     # o_norm weight folded in wout
    out = jnp.dot(o_n.astype(MXU_DTYPE), wout_ref[...],
                  preferred_element_type=jnp.float32)                      # [T, Bb*H]
    out_ref[...] = out.astype(out_ref.dtype)                               # full-lane block store


def pack_params(wq, wk, wv, wb, cq, ck, cv, onorm_w, wo, block_b):
    """Pack module weights for a batch-block size `block_b`.

    Linear weights are stored pre-transposed (y = x @ W, W = torch_weight.T);
    conv taps are [CONV_SIZE, D] with c*[i, d] == torch Conv1d weight[d, 0, i].
    """
    Bb = block_b
    eye = jnp.eye(Bb, dtype=jnp.float32)
    # block-diagonal fused projection: q(all b) | k(all b) | v(all b) | beta(all b, repeated over dv)
    wb_exp = jnp.repeat(wb, HEAD_V, axis=1)                                # [H, NH*HD]
    w_proj = jnp.concatenate(
        [jnp.kron(eye, wq), jnp.kron(eye, wk), jnp.kron(eye, wv), jnp.kron(eye, wb_exp)],
        axis=1).astype(MXU_DTYPE)                                          # [Bb*H, 4*Bb*KEY_DIM]
    # conv taps tiled to the same lane-dense channel order
    w_conv = jnp.concatenate(
        [jnp.tile(cq, (1, Bb)), jnp.tile(ck, (1, Bb)), jnp.tile(cv, (1, Bb))], axis=1)
    # 0/1 group matrix: GG[c', c] = 1 iff lanes c' and c belong to the same (b, h) head group
    Lw = Bb * NUM_HEADS * HEAD_V
    gidx = jnp.arange(Lw) // HEAD_V
    gg = (gidx[:, None] == gidx[None, :]).astype(jnp.float32)              # [L, L]
    # fold the o_norm (RMSNorm) weight into the block-diagonal output projection
    wo_folded = jnp.tile(onorm_w, NUM_HEADS)[:, None] * wo                 # [VALUE_DIM, H]
    w_out = jnp.kron(eye, wo_folded).astype(MXU_DTYPE)                     # [Bb*VALUE_DIM, Bb*H]
    return w_proj, w_conv, gg, w_out


def deltanet_forward(x, params, block_b=16):
    """x: [B, T, H] float32.  params: pack_params(..., block_b)."""
    B, T, H = x.shape
    assert H == HIDDEN
    assert B % block_b == 0, "block_b must divide the batch size"
    w_proj, w_conv, gg, w_out = params
    bb = block_b

    # time-major with batch folded into lanes: [T, B*H]; lane-dense (bb*H = 512) blocks
    x2d = jnp.swapaxes(x, 0, 1).reshape(T, B * H)

    out2d = pl.pallas_call(
        deltanet_kernel,
        out_shape=jax.ShapeDtypeStruct((T, B * H), x.dtype),
        grid=(B // bb,),
        in_specs=[
            pl.BlockSpec((T, bb * H), lambda i: (0, i)),
            pl.BlockSpec(w_proj.shape, lambda i: (0, 0)),
            pl.BlockSpec(w_conv.shape, lambda i: (0, 0)),
            pl.BlockSpec(gg.shape, lambda i: (0, 0)),
            pl.BlockSpec(w_out.shape, lambda i: (0, 0)),
        ],
        out_specs=pl.BlockSpec((T, bb * H), lambda i: (0, i)),
        scratch_shapes=[
            pltpu.VMEM((2 * T * HEAD_K, bb * KEY_DIM), jnp.float32),   # expanded q | k
            pltpu.VMEM((T, bb * VALUE_DIM), jnp.float32),              # v rows
            pltpu.VMEM((T, bb * VALUE_DIM), jnp.float32),              # beta rows (dv-broadcast)
            pltpu.VMEM((T, bb * VALUE_DIM), jnp.float32),              # o rows
        ],
        compiler_params=pltpu.CompilerParams(
            dimension_semantics=("parallel",),     # grid multiple of 2 -> both v7x TCs busy
            vmem_limit_bytes=32 * 1024 * 1024,
        ),
    )(x2d, w_proj, w_conv, gg, w_out)

    return jnp.swapaxes(out2d.reshape(T, B, H), 0, 1)


def deltanet_reference(x, wq, wk, wv, wb, cq, ck, cv, onorm_w, wo):
    """Pure-JAX f32 reference of the same forward pass (for a tolerance check)."""
    B, T, H = x.shape

    def conv_silu(z, w):                      # z: [B, T, D], w: [K, D]
        K = w.shape[0]
        zp = jnp.pad(z, ((0, 0), (K - 1, 0), (0, 0)))
        y = sum(w[i][None, None, :] * zp[:, i:i + T, :] for i in range(K))
        return y * jax.nn.sigmoid(y)

    q = conv_silu(x @ wq, cq).reshape(B, T, NUM_HEADS, HD)
    k = conv_silu(x @ wk, ck).reshape(B, T, NUM_HEADS, HD)
    v = conv_silu(x @ wv, cv).reshape(B, T, NUM_HEADS, HD)
    beta = jax.nn.sigmoid(x @ wb)             # [B, T, NH]

    def l2n(z):
        return z * lax.rsqrt(jnp.sum(z * z, -1, keepdims=True) + L2_EPS)

    q = l2n(q) * (HD ** -0.5)
    k = l2n(k)

    S = jnp.zeros((B, NUM_HEADS, HD, HD), jnp.float32)   # state: [dk, dv]
    outs = []
    for t in range(T):
        kt, qt, vt, bt = k[:, t], q[:, t], v[:, t], beta[:, t]
        v_old = jnp.einsum('bhkd,bhk->bhd', S, kt)
        delta = (vt - v_old) * bt[..., None]
        S = S + jnp.einsum('bhk,bhd->bhkd', kt, delta)
        outs.append(jnp.einsum('bhkd,bhk->bhd', S, qt))
    o = jnp.stack(outs, axis=1)               # [B, T, NH, HD]
    o = o * lax.rsqrt(jnp.mean(o * o, -1, keepdims=True) + NORM_EPS) * onorm_w
    return o.reshape(B, T, VALUE_DIM) @ wo


if __name__ == "__main__":
    key = jax.random.PRNGKey(0)
    B, T = 32, 8          # T <= 64 => the PyTorch module picks the 'fused_recurrent' mode
    BLOCK_B = 16          # batch elements per grid step (review: 16-32); grid = 2
    keys = jax.random.split(key, 10)

    gain = 2.0 ** (-2.5)  # nn.init.xavier_uniform_ gain in _initialize_weights

    def xavier(k, shape):
        fan_in, fan_out = shape
        bound = gain * (6.0 / (fan_in + fan_out)) ** 0.5
        return jax.random.uniform(k, shape, jnp.float32, -bound, bound)

    x = jax.random.normal(keys[0], (B, T, HIDDEN), dtype=jnp.float32)

    wq = xavier(keys[1], (HIDDEN, KEY_DIM))
    wk = xavier(keys[2], (HIDDEN, KEY_DIM))
    wv = xavier(keys[3], (HIDDEN, VALUE_DIM))
    wb = xavier(keys[4], (HIDDEN, NUM_HEADS))
    cq = 0.1 * jax.random.normal(keys[5], (CONV_SIZE, KEY_DIM), dtype=jnp.float32)
    ck = 0.1 * jax.random.normal(keys[6], (CONV_SIZE, KEY_DIM), dtype=jnp.float32)
    cv = 0.1 * jax.random.normal(keys[7], (CONV_SIZE, VALUE_DIM), dtype=jnp.float32)
    onorm_w = jnp.ones((HEAD_V,), dtype=jnp.float32)   # RMSNorm weight (default ones)
    wo = xavier(keys[8], (VALUE_DIM, HIDDEN))

    params = pack_params(wq, wk, wv, wb, cq, ck, cv, onorm_w, wo, block_b=BLOCK_B)

    out = deltanet_forward(x, params, block_b=BLOCK_B)
    jax.block_until_ready(out)
    assert out.shape == (B, T, HIDDEN) and out.dtype == jnp.float32

    # loose tolerance: kernel uses bf16 MXU operands (f32 accumulate) for the projections
    ref = deltanet_reference(x, wq, wk, wv, wb, cq, ck, cv, onorm_w, wo)
    err = float(jnp.max(jnp.abs(out - ref)))
    assert err < 7.5e-2, f"kernel/reference mismatch: max abs err = {err}"
    print("KERNEL_OK")
</pallas_src>

<mosaic_0001>
module attributes {stable_mosaic.version = 11 : i64} {
  func.func @deltanet_kernel(%arg0: i32, %arg1: memref<8x512xf32, #tpu.memory_space<vmem>>, %arg2: memref<512x2048xbf16, #tpu.memory_space<vmem>>, %arg3: memref<4x1536xf32, #tpu.memory_space<vmem>>, %arg4: memref<512x512xf32, #tpu.memory_space<vmem>>, %arg5: memref<512x512xbf16, #tpu.memory_space<vmem>>, %arg6: memref<8x512xf32, #tpu.memory_space<vmem>>, %arg7: memref<128x512xf32, #tpu.memory_space<vmem>>, %arg8: memref<8x512xf32, #tpu.memory_space<vmem>>, %arg9: memref<8x512xf32, #tpu.memory_space<vmem>>, %arg10: memref<8x512xf32, #tpu.memory_space<vmem>>) attributes {dimension_semantics = [#tpu.dimension_semantics<parallel>], iteration_bounds = array<i64: 2>, scalar_prefetch = 0 : i64, scratch_operands = 4 : i64, tpu.core_type = #tpu.core_type<tc>, window_params = [{transform_indices = @transform_0, window_bounds = array<i64: 8, 512>}, {pipeline_mode = #tpu.pipeline_mode<synchronous>, transform_indices = @transform_1, window_bounds = array<i64: 512, 2048>}, {pipeline_mode = #tpu.pipeline_mode<synchronous>, transform_indices = @transform_2, window_bounds = array<i64: 4, 1536>}, {pipeline_mode = #tpu.pipeline_mode<synchronous>, transform_indices = @transform_3, window_bounds = array<i64: 512, 512>}, {pipeline_mode = #tpu.pipeline_mode<synchronous>, transform_indices = @transform_4, window_bounds = array<i64: 512, 512>}, {transform_indices = @transform_5, window_bounds = array<i64: 8, 512>}]} {
    %c0 = arith.constant 0 : index
    %c0_0 = arith.constant 0 : index
    %0 = vector.load %arg1[%c0, %c0_0] : memref<8x512xf32, #tpu.memory_space<vmem>>, vector<8x512xf32>
    %1 = arith.truncf %0 : vector<8x512xf32> to vector<8x512xbf16>
    %c0_1 = arith.constant 0 : index
    %c0_2 = arith.constant 0 : index
    %2 = vector.load %arg2[%c0_1, %c0_2] : memref<512x2048xbf16, #tpu.memory_space<vmem>>, vector<512x2048xbf16>
    %cst = arith.constant dense<0.000000e+00> : vector<8x2048xf32>
    %3 = tpu.matmul %1, %2, %cst {dimension_numbers = #tpu.dot_dimension_numbers<[1], [0], [0], [1], [0, 0, 1, 1], [], []>} : vector<8x512xbf16>, vector<512x2048xbf16>, vector<8x2048xf32> -> vector<8x2048xf32>
    %4 = vector.extract_strided_slice %3 {offsets = [0, 0], sizes = [8, 1536], strides = [1, 1]} : vector<8x2048xf32> to vector<8x1536xf32>
    %c0_3 = arith.constant 0 : index
    %c0_4 = arith.constant 0 : index
    %5 = vector.load %arg3[%c0_3, %c0_4] : memref<4x1536xf32, #tpu.memory_space<vmem>>, vector<4x1536xf32>
    %6 = vector.extract_strided_slice %5 {offsets = [3, 0], sizes = [1, 1536], strides = [1, 1]} : vector<4x1536xf32> to vector<1x1536xf32>
    %7 = vector.broadcast %6 : vector<1x1536xf32> to vector<8x1536xf32>
    %8 = arith.mulf %4, %7 : vector<8x1536xf32>
    %9 = tpu.iota {dimensions = array<i32: 0>} : vector<8x1536xi32>
    %c3_i32 = arith.constant 3 : i32
    %10 = tpu.dynamic_rotate %4 by %c3_i32 dim 0 : vector<8x1536xf32>, i32 -> vector<8x1536xf32>
    %c3_i32_5 = arith.constant 3 : i32
    %11 = vector.broadcast %c3_i32_5 : i32 to vector<8x1536xi32>
    %12 = arith.cmpi sge, %9, %11 : vector<8x1536xi32>
    %cst_6 = arith.constant 0.000000e+00 : f32
    %13 = vector.broadcast %cst_6 : f32 to vector<8x1536xf32>
    %14 = arith.select %12, %10, %13 : vector<8x1536xi1>, vector<8x1536xf32>
    %15 = vector.extract_strided_slice %5 {offsets = [0, 0], sizes = [1, 1536], strides = [1, 1]} : vector<4x1536xf32> to vector<1x1536xf32>
    %16 = vector.broadcast %15 : vector<1x1536xf32> to vector<8x1536xf32>
    %17 = arith.mulf %14, %16 : vector<8x1536xf32>
    %18 = arith.addf %8, %17 : vector<8x1536xf32>
    %c2_i32 = arith.constant 2 : i32
    %19 = tpu.dynamic_rotate %4 by %c2_i32 dim 0 : vector<8x1536xf32>, i32 -> vector<8x1536xf32>
    %c2_i32_7 = arith.constant 2 : i32
    %20 = vector.broadcast %c2_i32_7 : i32 to vector<8x1536xi32>
    %21 = arith.cmpi sge, %9, %20 : vector<8x1536xi32>
    %cst_8 = arith.constant 0.000000e+00 : f32
    %22 = vector.broadcast %cst_8 : f32 to vector<8x1536xf32>
    %23 = arith.select %21, %19, %22 : vector<8x1536xi1>, vector<8x1536xf32>
    %24 = vector.extract_strided_slice %5 {offsets = [1, 0], sizes = [1, 1536], strides = [1, 1]} : vector<4x1536xf32> to vector<1x1536xf32>
    %25 = vector.broadcast %24 : vector<1x1536xf32> to vector<8x1536xf32>
    %26 = arith.mulf %23, %25 : vector<8x1536xf32>
    %27 = arith.addf %18, %26 : vector<8x1536xf32>
    %c1_i32 = arith.constant 1 : i32
    %28 = tpu.dynamic_rotate %4 by %c1_i32 dim 0 : vector<8x1536xf32>, i32 -> vector<8x1536xf32>
    %c1_i32_9 = arith.constant 1 : i32
    %29 = vector.broadcast %c1_i32_9 : i32 to vector<8x1536xi32>
    %30 = arith.cmpi sge, %9, %29 : vector<8x1536xi32>
    %cst_10 = arith.constant 0.000000e+00 : f32
    %31 = vector.broadcast %cst_10 : f32 to vector<8x1536xf32>
    %32 = arith.select %30, %28, %31 : vector<8x1536xi1>, vector<8x1536xf32>
    %33 = vector.extract_strided_slice %5 {offsets = [2, 0], sizes = [1, 1536], strides = [1, 1]} : vector<4x1536xf32> to vector<1x1536xf32>
    %34 = vector.broadcast %33 : vector<1x1536xf32> to vector<8x1536xf32>
    %35 = arith.mulf %32, %34 : vector<8x1536xf32>
    %36 = arith.addf %27, %35 : vector<8x1536xf32>
    %37 = arith.negf %36 : vector<8x1536xf32>
    %38 = math.exp %37 : vector<8x1536xf32>
    %cst_11 = arith.constant 1.000000e+00 : f32
    %39 = vector.broadcast %cst_11 : f32 to vector<8x1536xf32>
    %40 = arith.addf %39, %38 : vector<8x1536xf32>
    %41 = arith.divf %39, %40 : vector<8x1536xf32>
    %42 = arith.mulf %36, %41 : vector<8x1536xf32>
    %43 = vector.extract_strided_slice %3 {offsets = [0, 1536], sizes = [8, 512], strides = [1, 1]} : vector<8x2048xf32> to vector<8x512xf32>
    %44 = arith.negf %43 : vector<8x512xf32>
    %45 = math.exp %44 : vector<8x512xf32>
    %cst_12 = arith.constant 1.000000e+00 : f32
    %46 = vector.broadcast %cst_12 : f32 to vector<8x512xf32>
    %47 = arith.addf %46, %45 : vector<8x512xf32>
    %48 = arith.divf %46, %47 : vector<8x512xf32>
    %c0_13 = arith.constant 0 : index
    %c0_14 = arith.constant 0 : index
    %49 = vector.load %arg9[%c0_13, %c0_14] : memref<8x512xf32, #tpu.memory_space<vmem>>, vector<8x512xf32>
    tpu.vector_store %arg9[%c0_13, %c0_14], %48 {strides = array<i32>} : memref<8x512xf32, #tpu.memory_space<vmem>>, vector<8x512xf32>,
    %50 = vector.extract_strided_slice %42 {offsets = [0, 1024], sizes = [8, 512], strides = [1, 1]} : vector<8x1536xf32> to vector<8x512xf32>
    %c0_15 = arith.constant 0 : index
    %c0_16 = arith.constant 0 : index
    %51 = vector.load %arg8[%c0_15, %c0_16] : memref<8x512xf32, #tpu.memory_space<vmem>>, vector<8x512xf32>
    tpu.vector_store %arg8[%c0_15, %c0_16], %50 {strides = array<i32>} : memref<8x512xf32, #tpu.memory_space<vmem>>, vector<8x512xf32>,
    %c0_17 = arith.constant 0 : index
    %c0_18 = arith.constant 0 : index
    %52 = vector.load %arg4[%c0_17, %c0_18] : memref<512x512xf32, #tpu.memory_space<vmem>>, vector<512x512xf32>
    %53 = vector.extract_strided_slice %42 {offsets = [0, 0], sizes = [8, 512], strides = [1, 1]} : vector<8x1536xf32> to vector<8x512xf32>
    %54 = vector.extract_strided_slice %42 {offsets = [0, 512], sizes = [8, 512], strides = [1, 1]} : vector<8x1536xf32> to vector<8x512xf32>
    %55 = tpu.concatenate %53, %54 in 0 : vector<8x512xf32>, vector<8x512xf32> -> vector<16x512xf32>
    %56 = arith.mulf %55, %55 : vector<16x512xf32>
    %cst_19 = arith.constant dense<0.000000e+00> : vector<16x512xf32>
    %57 = tpu.matmul %56, %52, %cst_19 {dimension_numbers = #tpu.dot_dimension_numbers<[1], [0], [0], [1], [0, 0, 1, 1], [], []>} : vector<16x512xf32>, vector<512x512xf32>, vector<16x512xf32> -> vector<16x512xf32>
    %cst_20 = arith.constant 9.99999997E-7 : f32
    %58 = vector.broadcast %cst_20 : f32 to vector<16x512xf32>
    %59 = arith.addf %57, %58 : vector<16x512xf32>
    %60 = math.rsqrt %59 : vector<16x512xf32>
    %61 = arith.mulf %55, %60 : vector<16x512xf32>
    %62 = tpu.iota {dimensions = array<i32: 0>} : vector<16x512xi32>
    %c8_i32 = arith.constant 8 : i32
    %63 = vector.broadcast %c8_i32 : i32 to vector<16x512xi32>
    %64 = arith.cmpi slt, %62, %63 : vector<16x512xi32>
    %cst_21 = arith.constant 0.353553385 : f32
    %65 = vector.broadcast %cst_21 : f32 to vector<16x512xf32>
    %66 = arith.mulf %61, %65 : vector<16x512xf32>
    %67 = arith.select %64, %66, %61 : vector<16x512xi1>, vector<16x512xf32>
    %68 = tpu.iota {dimensions = array<i32: 0>} : vector<128x512xi32>
    %69 = tpu.iota {dimensions = array<i32: 1>} : vector<128x512xi32>
    %70 = vector.shape_cast %67 : vector<16x512xf32> to vector<16x1x512xf32>
    %71 = vector.shape_cast %70 : vector<16x1x512xf32> to vector<16x1x512xf32>
    %72 = vector.broadcast %71 : vector<16x1x512xf32> to vector<16x8x512xf32>
    %73 = vector.shape_cast %72 : vector<16x8x512xf32> to vector<128x512xf32>
    %c8_i32_22 = arith.constant 8 : i32
    %c0_i32 = arith.constant 0 : i32
    %74 = arith.cmpi eq, %c8_i32_22, %c0_i32 : i32
    %c1_i32_23 = arith.constant 1 : i32
    %75 = arith.select %74, %c1_i32_23, %c8_i32_22 : i32
    %76 = vector.broadcast %75 : i32 to vector<128x512xi32>
    %77 = arith.remsi %68, %76 : vector<128x512xi32>
    %c0_i32_24 = arith.constant 0 : i32
    %78 = vector.broadcast %c0_i32_24 : i32 to vector<128x512xi32>
    %79 = arith.cmpi ne, %77, %78 : vector<128x512xi32>
    %c0_i32_25 = arith.constant 0 : i32
    %80 = vector.broadcast %c0_i32_25 : i32 to vector<128x512xi32>
    %81 = arith.cmpi slt, %77, %80 : vector<128x512xi32>
    %c0_i32_26 = arith.constant 0 : i32
    %82 = arith.cmpi slt, %75, %c0_i32_26 : i32
    %83 = vector.broadcast %82 : i1 to vector<128x512xi1>
    %84 = vector.broadcast %83 : vector<128x512xi1> to vector<128x512xi1>
    %85 = arith.xori %81, %84 : vector<128x512xi1>
    %86 = arith.andi %85, %79 : vector<128x512xi1>
    %87 = vector.broadcast %75 : i32 to vector<128x512xi32>
    %88 = arith.addi %77, %87 : vector<128x512xi32>
    %89 = arith.select %86, %88, %77 : vector<128x512xi1>, vector<128x512xi32>
    %c8_i32_27 = arith.constant 8 : i32
    %c0_i32_28 = arith.constant 0 : i32
    %90 = arith.cmpi eq, %c8_i32_27, %c0_i32_28 : i32
    %c1_i32_29 = arith.constant 1 : i32
    %91 = arith.select %90, %c1_i32_29, %c8_i32_27 : i32
    %92 = vector.broadcast %91 : i32 to vector<128x512xi32>
    %93 = arith.remsi %69, %92 : vector<128x512xi32>
    %c0_i32_30 = arith.constant 0 : i32
    %94 = vector.broadcast %c0_i32_30 : i32 to vector<128x512xi32>
    %95 = arith.cmpi ne, %93, %94 : vector<128x512xi32>
    %c0_i32_31 = arith.constant 0 : i32
    %96 = vector.broadcast %c0_i32_31 : i32 to vector<128x512xi32>
    %97 = arith.cmpi slt, %93, %96 : vector<128x512xi32>
    %c0_i32_32 = arith.constant 0 : i32
    %98 = arith.cmpi slt, %91, %c0_i32_32 : i32
    %99 = vector.broadcast %98 : i1 to vector<128x512xi1>
    %100 = vector.broadcast %99 : vector<128x512xi1> to vector<128x512xi1>
    %101 = arith.xori %97, %100 : vector<128x512xi1>
    %102 = arith.andi %101, %95 : vector<128x512xi1>
    %103 = vector.broadcast %91 : i32 to vector<128x512xi32>
    %104 = arith.addi %93, %103 : vector<128x512xi32>
    %105 = arith.select %102, %104, %93 : vector<128x512xi1>, vector<128x512xi32>
    %106 = arith.cmpi eq, %89, %105 : vector<128x512xi32>
    %cst_33 = arith.constant 0.000000e+00 : f32
    %107 = vector.broadcast %cst_33 : f32 to vector<128x512xf32>
    %108 = arith.select %106, %73, %107 : vector<128x512xi1>, vector<128x512xf32>
    %cst_34 = arith.constant dense<0.000000e+00> : vector<128x512xf32>
    %109 = tpu.matmul %108, %52, %cst_34 {dimension_numbers = #tpu.dot_dimension_numbers<[1], [0], [0], [1], [0, 0, 1, 1], [], []>} : vector<128x512xf32>, vector<512x512xf32>, vector<128x512xf32> -> vector<128x512xf32>
    %c0_35 = arith.constant 0 : index
    %c0_36 = arith.constant 0 : index
    %110 = vector.load %arg7[%c0_35, %c0_36] : memref<128x512xf32, #tpu.memory_space<vmem>>, vector<128x512xf32>
    tpu.vector_store %arg7[%c0_35, %c0_36], %109 {strides = array<i32>} : memref<128x512xf32, #tpu.memory_space<vmem>>, vector<128x512xf32>,
    %cst_37 = arith.constant 0.000000e+00 : f32
    %111 = vector.broadcast %cst_37 : f32 to vector<8x512xf32>
    %c0_i32_38 = arith.constant 0 : i32
    %c8_i32_39 = arith.constant 8 : i32
    %112 = arith.muli %c0_i32_38, %c8_i32_39 : i32
    %113 = tpu.assume_multiple %112, 8 : i32
    %c8_i32_40 = arith.constant 8 : i32
    %114 = arith.addi %c8_i32_40, %c0_i32_38 : i32
    %c8_i32_41 = arith.constant 8 : i32
    %115 = arith.muli %114, %c8_i32_41 : i32
    %116 = tpu.assume_multiple %115, 8 : i32
    %117 = arith.index_cast %113 : i32 to index
    %c0_42 = arith.constant 0 : index
    %118 = vector.load %arg7[%117, %c0_42] : memref<128x512xf32, #tpu.memory_space<vmem>>, vector<8x512xf32>
    %119 = arith.index_cast %116 : i32 to index
    %c0_43 = arith.constant 0 : index
    %120 = vector.load %arg7[%119, %c0_43] : memref<128x512xf32, #tpu.memory_space<vmem>>, vector<8x512xf32>
    %121 = arith.index_cast %c0_i32_38 : i32 to index
    %c0_44 = arith.constant 0 : index
    %122 = vector.load %arg8[%121, %c0_44] : memref<8x512xf32, #tpu.memory_space<vmem>>, vector<1x512xf32>
    %123 = arith.index_cast %c0_i32_38 : i32 to index
    %c0_45 = arith.constant 0 : index
    %124 = vector.load %arg9[%123, %c0_45] : memref<8x512xf32, #tpu.memory_space<vmem>>, vector<1x512xf32>
    %125 = arith.mulf %111, %120 : vector<8x512xf32>
    %cst_46 = arith.constant dense<0.000000e+00> : vector<512xf32>
    %126 = vector.multi_reduction <add>, %125, %cst_46 [0] : vector<8x512xf32> to vector<512xf32>
    %127 = vector.shape_cast %126 : vector<512xf32> to vector<1x512xf32>
    %128 = arith.subf %122, %127 : vector<1x512xf32>
    %129 = arith.mulf %128, %124 : vector<1x512xf32>
    %130 = vector.broadcast %129 : vector<1x512xf32> to vector<8x512xf32>
    %131 = arith.mulf %120, %130 : vector<8x512xf32>
    %132 = arith.addf %111, %131 : vector<8x512xf32>
    %133 = arith.mulf %132, %118 : vector<8x512xf32>
    %cst_47 = arith.constant dense<0.000000e+00> : vector<512xf32>
    %134 = vector.multi_reduction <add>, %133, %cst_47 [0] : vector<8x512xf32> to vector<512xf32>
    %135 = vector.shape_cast %134 : vector<512xf32> to vector<1x512xf32>
    %136 = arith.index_cast %c0_i32_38 : i32 to index
    %c0_48 = arith.constant 0 : index
    %137 = vector.load %arg10[%136, %c0_48] : memref<8x512xf32, #tpu.memory_space<vmem>>, vector<1x512xf32>
    tpu.vector_store %arg10[%136, %c0_48], %135 {strides = array<i32>} : memref<8x512xf32, #tpu.memory_space<vmem>>, vector<1x512xf32>,
    %c1_i32_49 = arith.constant 1 : i32
    %c8_i32_50 = arith.constant 8 : i32
    %138 = arith.muli %c1_i32_49, %c8_i32_50 : i32
    %139 = tpu.assume_multiple %138, 8 : i32
    %c8_i32_51 = arith.constant 8 : i32
    %140 = arith.addi %c8_i32_51, %c1_i32_49 : i32
    %c8_i32_52 = arith.constant 8 : i32
    %141 = arith.muli %140, %c8_i32_52 : i32
    %142 = tpu.assume_multiple %141, 8 : i32
    %143 = arith.index_cast %139 : i32 to index
    %c0_53 = arith.constant 0 : index
    %144 = vector.load %arg7[%143, %c0_53] : memref<128x512xf32, #tpu.memory_space<vmem>>, vector<8x512xf32>
    %145 = arith.index_cast %142 : i32 to index
    %c0_54 = arith.constant 0 : index
    %146 = vector.load %arg7[%145, %c0_54] : memref<128x512xf32, #tpu.memory_space<vmem>>, vector<8x512xf32>
    %147 = arith.index_cast %c1_i32_49 : i32 to index
    %c0_55 = arith.constant 0 : index
    %148 = vector.load %arg8[%147, %c0_55] : memref<8x512xf32, #tpu.memory_space<vmem>>, vector<1x512xf32>
    %149 = arith.index_cast %c1_i32_49 : i32 to index
    %c0_56 = arith.constant 0 : index
    %150 = vector.load %arg9[%149, %c0_56] : memref<8x512xf32, #tpu.memory_space<vmem>>, vector<1x512xf32>
    %151 = arith.mulf %132, %146 : vector<8x512xf32>
    %cst_57 = arith.constant dense<0.000000e+00> : vector<512xf32>
    %152 = vector.multi_reduction <add>, %151, %cst_57 [0] : vector<8x512xf32> to vector<512xf32>
    %153 = vector.shape_cast %152 : vector<512xf32> to vector<1x512xf32>
    %154 = arith.subf %148, %153 : vector<1x512xf32>
    %155 = arith.mulf %154, %150 : vector<1x512xf32>
    %156 = vector.broadcast %155 : vector<1x512xf32> to vector<8x512xf32>
    %157 = arith.mulf %146, %156 : vector<8x512xf32>
    %158 = arith.addf %132, %157 : vector<8x512xf32>
    %159 = arith.mulf %158, %144 : vector<8x512xf32>
    %cst_58 = arith.constant dense<0.000000e+00> : vector<512xf32>
    %160 = vector.multi_reduction <add>, %159, %cst_58 [0] : vector<8x512xf32> to vector<512xf32>
    %161 = vector.shape_cast %160 : vector<512xf32> to vector<1x512xf32>
    %162 = arith.index_cast %c1_i32_49 : i32 to index
    %c0_59 = arith.constant 0 : index
    %163 = vector.load %arg10[%162, %c0_59] : memref<8x512xf32, #tpu.memory_space<vmem>>, vector<1x512xf32>
    tpu.vector_store %arg10[%162, %c0_59], %161 {strides = array<i32>} : memref<8x512xf32, #tpu.memory_space<vmem>>, vector<1x512xf32>,
    %c2_i32_60 = arith.constant 2 : i32
    %c8_i32_61 = arith.constant 8 : i32
    %164 = arith.muli %c2_i32_60, %c8_i32_61 : i32
    %165 = tpu.assume_multiple %164, 8 : i32
    %c8_i32_62 = arith.constant 8 : i32
    %166 = arith.addi %c8_i32_62, %c2_i32_60 : i32
    %c8_i32_63 = arith.constant 8 : i32
    %167 = arith.muli %166, %c8_i32_63 : i32
    %168 = tpu.assume_multiple %167, 8 : i32
    %169 = arith.index_cast %165 : i32 to index
    %c0_64 = arith.constant 0 : index
    %170 = vector.load %arg7[%169, %c0_64] : memref<128x512xf32, #tpu.memory_space<vmem>>, vector<8x512xf32>
    %171 = arith.index_cast %168 : i32 to index
    %c0_65 = arith.constant 0 : index
    %172 = vector.load %arg7[%171, %c0_65] : memref<128x512xf32, #tpu.memory_space<vmem>>, vector<8x512xf32>
    %173 = arith.index_cast %c2_i32_60 : i32 to index
    %c0_66 = arith.constant 0 : index
    %174 = vector.load %arg8[%173, %c0_66] : memref<8x512xf32, #tpu.memory_space<vmem>>, vector<1x512xf32>
    %175 = arith.index_cast %c2_i32_60 : i32 to index
    %c0_67 = arith.constant 0 : index
    %176 = vector.load %arg9[%175, %c0_67] : memref<8x512xf32, #tpu.memory_space<vmem>>, vector<1x512xf32>
    %177 = arith.mulf %158, %172 : vector<8x512xf32>
    %cst_68 = arith.constant dense<0.000000e+00> : vector<512xf32>
    %178 = vector.multi_reduction <add>, %177, %cst_68 [0] : vector<8x512xf32> to vector<512xf32>
    %179 = vector.shape_cast %178 : vector<512xf32> to vector<1x512xf32>
    %180 = arith.subf %174, %179 : vector<1x512xf32>
    %181 = arith.mulf %180, %176 : vector<1x512xf32>
    %182 = vector.broadcast %181 : vector<1x512xf32> to vector<8x512xf32>
    %183 = arith.mulf %172, %182 : vector<8x512xf32>
    %184 = arith.addf %158, %183 : vector<8x512xf32>
    %185 = arith.mulf %184, %170 : vector<8x512xf32>
    %cst_69 = arith.constant dense<0.000000e+00> : vector<512xf32>
    %186 = vector.multi_reduction <add>, %185, %cst_69 [0] : vector<8x512xf32> to vector<512xf32>
    %187 = vector.shape_cast %186 : vector<512xf32> to vector<1x512xf32>
    %188 = arith.index_cast %c2_i32_60 : i32 to index
    %c0_70 = arith.constant 0 : index
    %189 = vector.load %arg10[%188, %c0_70] : memref<8x512xf32, #tpu.memory_space<vmem>>, vector<1x512xf32>
    tpu.vector_store %arg10[%188, %c0_70], %187 {strides = array<i32>} : memref<8x512xf32, #tpu.memory_space<vmem>>, vector<1x512xf32>,
    %c3_i32_71 = arith.constant 3 : i32
    %c8_i32_72 = arith.constant 8 : i32
    %190 = arith.muli %c3_i32_71, %c8_i32_72 : i32
    %191 = tpu.assume_multiple %190, 8 : i32
    %c8_i32_73 = arith.constant 8 : i32
    %192 = arith.addi %c8_i32_73, %c3_i32_71 : i32
    %c8_i32_74 = arith.constant 8 : i32
    %193 = arith.muli %192, %c8_i32_74 : i32
    %194 = tpu.assume_multiple %193, 8 : i32
    %195 = arith.index_cast %191 : i32 to index
    %c0_75 = arith.constant 0 : index
    %196 = vector.load %arg7[%195, %c0_75] : memref<128x512xf32, #tpu.memory_space<vmem>>, vector<8x512xf32>
    %197 = arith.index_cast %194 : i32 to index
    %c0_76 = arith.constant 0 : index
    %198 = vector.load %arg7[%197, %c0_76] : memref<128x512xf32, #tpu.memory_space<vmem>>, vector<8x512xf32>
    %199 = arith.index_cast %c3_i32_71 : i32 to index
    %c0_77 = arith.constant 0 : index
    %200 = vector.load %arg8[%199, %c0_77] : memref<8x512xf32, #tpu.memory_space<vmem>>, vector<1x512xf32>
    %201 = arith.index_cast %c3_i32_71 : i32 to index
    %c0_78 = arith.constant 0 : index
    %202 = vector.load %arg9[%201, %c0_78] : memref<8x512xf32, #tpu.memory_space<vmem>>, vector<1x512xf32>
    %203 = arith.mulf %184, %198 : vector<8x512xf32>
    %cst_79 = arith.constant dense<0.000000e+00> : vector<512xf32>
    %204 = vector.multi_reduction <add>, %203, %cst_79 [0] : vector<8x512xf32> to vector<512xf32>
    %205 = vector.shape_cast %204 : vector<512xf32> to vector<1x512xf32>
    %206 = arith.subf %200, %205 : vector<1x512xf32>
    %207 = arith.mulf %206, %202 : vector<1x512xf32>
    %208 = vector.broadcast %207 : vector<1x512xf32> to vector<8x512xf32>
    %209 = arith.mulf %198, %208 : vector<8x512xf32>
    %210 = arith.addf %184, %209 : vector<8x512xf32>
    %211 = arith.mulf %210, %196 : vector<8x512xf32>
    %cst_80 = arith.constant dense<0.000000e+00> : vector<512xf32>
    %212 = vector.multi_reduction <add>, %211, %cst_80 [0] : vector<8x512xf32> to vector<512xf32>
    %213 = vector.shape_cast %212 : vector<512xf32> to vector<1x512xf32>
    %214 = arith.index_cast %c3_i32_71 : i32 to index
    %c0_81 = arith.constant 0 : index
    %215 = vector.load %arg10[%214, %c0_81] : memref<8x512xf32, #tpu.memory_space<vmem>>, vector<1x512xf32>
    tpu.vector_store %arg10[%214, %c0_81], %213 {strides = array<i32>} : memref<8x512xf32, #tpu.memory_space<vmem>>, vector<1x512xf32>,
    %c4_i32 = arith.constant 4 : i32
    %c8_i32_82 = arith.constant 8 : i32
    %216 = arith.muli %c4_i32, %c8_i32_82 : i32
    %217 = tpu.assume_multiple %216, 8 : i32
    %c8_i32_83 = arith.constant 8 : i32
    %218 = arith.addi %c8_i32_83, %c4_i32 : i32
    %c8_i32_84 = arith.constant 8 : i32
    %219 = arith.muli %218, %c8_i32_84 : i32
    %220 = tpu.assume_multiple %219, 8 : i32
    %221 = arith.index_cast %217 : i32 to index
    %c0_85 = arith.constant 0 : index
    %222 = vector.load %arg7[%221, %c0_85] : memref<128x512xf32, #tpu.memory_space<vmem>>, vector<8x512xf32>
    %223 = arith.index_cast %220 : i32 to index
    %c0_86 = arith.constant 0 : index
    %224 = vector.load %arg7[%223, %c0_86] : memref<128x512xf32, #tpu.memory_space<vmem>>, vector<8x512xf32>
    %225 = arith.index_cast %c4_i32 : i32 to index
    %c0_87 = arith.constant 0 : index
    %226 = vector.load %arg8[%225, %c0_87] : memref<8x512xf32, #tpu.memory_space<vmem>>, vector<1x512xf32>
    %227 = arith.index_cast %c4_i32 : i32 to index
    %c0_88 = arith.constant 0 : index
    %228 = vector.load %arg9[%227, %c0_88] : memref<8x512xf32, #tpu.memory_space<vmem>>, vector<1x512xf32>
    %229 = arith.mulf %210, %224 : vector<8x512xf32>
    %cst_89 = arith.constant dense<0.000000e+00> : vector<512xf32>
    %230 = vector.multi_reduction <add>, %229, %cst_89 [0] : vector<8x512xf32> to vector<512xf32>
    %231 = vector.shape_cast %230 : vector<512xf32> to vector<1x512xf32>
    %232 = arith.subf %226, %231 : vector<1x512xf32>
    %233 = arith.mulf %232, %228 : vector<1x512xf32>
    %234 = vector.broadcast %233 : vector<1x512xf32> to vector<8x512xf32>
    %235 = arith.mulf %224, %234 : vector<8x512xf32>
    %236 = arith.addf %210, %235 : vector<8x512xf32>
    %237 = arith.mulf %236, %222 : vector<8x512xf32>
    %cst_90 = arith.constant dense<0.000000e+00> : vector<512xf32>
    %238 = vector.multi_reduction <add>, %237, %cst_90 [0] : vector<8x512xf32> to vector<512xf32>
    %239 = vector.shape_cast %238 : vector<512xf32> to vector<1x512xf32>
    %240 = arith.index_cast %c4_i32 : i32 to index
    %c0_91 = arith.constant 0 : index
    %241 = vector.load %arg10[%240, %c0_91] : memref<8x512xf32, #tpu.memory_space<vmem>>, vector<1x512xf32>
    tpu.vector_store %arg10[%240, %c0_91], %239 {strides = array<i32>} : memref<8x512xf32, #tpu.memory_space<vmem>>, vector<1x512xf32>,
    %c5_i32 = arith.constant 5 : i32
    %c8_i32_92 = arith.constant 8 : i32
    %242 = arith.muli %c5_i32, %c8_i32_92 : i32
    %243 = tpu.assume_multiple %242, 8 : i32
    %c8_i32_93 = arith.constant 8 : i32
    %244 = arith.addi %c8_i32_93, %c5_i32 : i32
    %c8_i32_94 = arith.constant 8 : i32
    %245 = arith.muli %244, %c8_i32_94 : i32
    %246 = tpu.assume_multiple %245, 8 : i32
    %247 = arith.index_cast %243 : i32 to index
    %c0_95 = arith.constant 0 : index
    %248 = vector.load %arg7[%247, %c0_95] : memref<128x512xf32, #tpu.memory_space<vmem>>, vector<8x512xf32>
    %249 = arith.index_cast %246 : i32 to index
    %c0_96 = arith.constant 0 : index
    %250 = vector.load %arg7[%249, %c0_96] : memref<128x512xf32, #tpu.memory_space<vmem>>, vector<8x512xf32>
    %251 = arith.index_cast %c5_i32 : i32 to index
    %c0_97 = arith.constant 0 : index
    %252 = vector.load %arg8[%251, %c0_97] : memref<8x512xf32, #tpu.memory_space<vmem>>, vector<1x512xf32>
    %253 = arith.index_cast %c5_i32 : i32 to index
    %c0_98 = arith.constant 0 : index
    %254 = vector.load %arg9[%253, %c0_98] : memref<8x512xf32, #tpu.memory_space<vmem>>, vector<1x512xf32>
    %255 = arith.mulf %236, %250 : vector<8x512xf32>
    %cst_99 = arith.constant dense<0.000000e+00> : vector<512xf32>
    %256 = vector.multi_reduction <add>, %255, %cst_99 [0] : vector<8x512xf32> to vector<512xf32>
    %257 = vector.shape_cast %256 : vector<512xf32> to vector<1x512xf32>
    %258 = arith.subf %252, %257 : vector<1x512xf32>
    %259 = arith.mulf %258, %254 : vector<1x512xf32>
    %260 = vector.broadcast %259 : vector<1x512xf32> to vector<8x512xf32>
    %261 = arith.mulf %250, %260 : vector<8x512xf32>
    %262 = arith.addf %236, %261 : vector<8x512xf32>
    %263 = arith.mulf %262, %248 : vector<8x512xf32>
    %cst_100 = arith.constant dense<0.000000e+00> : vector<512xf32>
    %264 = vector.multi_reduction <add>, %263, %cst_100 [0] : vector<8x512xf32> to vector<512xf32>
    %265 = vector.shape_cast %264 : vector<512xf32> to vector<1x512xf32>
    %266 = arith.index_cast %c5_i32 : i32 to index
    %c0_101 = arith.constant 0 : index
    %267 = vector.load %arg10[%266, %c0_101] : memref<8x512xf32, #tpu.memory_space<vmem>>, vector<1x512xf32>
    tpu.vector_store %arg10[%266, %c0_101], %265 {strides = array<i32>} : memref<8x512xf32, #tpu.memory_space<vmem>>, vector<1x512xf32>,
    %c6_i32 = arith.constant 6 : i32
    %c8_i32_102 = arith.constant 8 : i32
    %268 = arith.muli %c6_i32, %c8_i32_102 : i32
    %269 = tpu.assume_multiple %268, 8 : i32
    %c8_i32_103 = arith.constant 8 : i32
    %270 = arith.addi %c8_i32_103, %c6_i32 : i32
    %c8_i32_104 = arith.constant 8 : i32
    %271 = arith.muli %270, %c8_i32_104 : i32
    %272 = tpu.assume_multiple %271, 8 : i32
    %273 = arith.index_cast %269 : i32 to index
    %c0_105 = arith.constant 0 : index
    %274 = vector.load %arg7[%273, %c0_105] : memref<128x512xf32, #tpu.memory_space<vmem>>, vector<8x512xf32>
    %275 = arith.index_cast %272 : i32 to index
    %c0_106 = arith.constant 0 : index
    %276 = vector.load %arg7[%275, %c0_106] : memref<128x512xf32, #tpu.memory_space<vmem>>, vector<8x512xf32>
    %277 = arith.index_cast %c6_i32 : i32 to index
    %c0_107 = arith.constant 0 : index
    %278 = vector.load %arg8[%277, %c0_107] : memref<8x512xf32, #tpu.memory_space<vmem>>, vector<1x512xf32>
    %279 = arith.index_cast %c6_i32 : i32 to index
    %c0_108 = arith.constant 0 : index
    %280 = vector.load %arg9[%279, %c0_108] : memref<8x512xf32, #tpu.memory_space<vmem>>, vector<1x512xf32>
    %281 = arith.mulf %262, %276 : vector<8x512xf32>
    %cst_109 = arith.constant dense<0.000000e+00> : vector<512xf32>
    %282 = vector.multi_reduction <add>, %281, %cst_109 [0] : vector<8x512xf32> to vector<512xf32>
    %283 = vector.shape_cast %282 : vector<512xf32> to vector<1x512xf32>
    %284 = arith.subf %278, %283 : vector<1x512xf32>
    %285 = arith.mulf %284, %280 : vector<1x512xf32>
    %286 = vector.broadcast %285 : vector<1x512xf32> to vector<8x512xf32>
    %287 = arith.mulf %276, %286 : vector<8x512xf32>
    %288 = arith.addf %262, %287 : vector<8x512xf32>
    %289 = arith.mulf %288, %274 : vector<8x512xf32>
    %cst_110 = arith.constant dense<0.000000e+00> : vector<512xf32>
    %290 = vector.multi_reduction <add>, %289, %cst_110 [0] : vector<8x512xf32> to vector<512xf32>
    %291 = vector.shape_cast %290 : vector<512xf32> to vector<1x512xf32>
    %292 = arith.index_cast %c6_i32 : i32 to index
    %c0_111 = arith.constant 0 : index
    %293 = vector.load %arg10[%292, %c0_111] : memref<8x512xf32, #tpu.memory_space<vmem>>, vector<1x512xf32>
    tpu.vector_store %arg10[%292, %c0_111], %291 {strides = array<i32>} : memref<8x512xf32, #tpu.memory_space<vmem>>, vector<1x512xf32>,
    %c7_i32 = arith.constant 7 : i32
    %c8_i32_112 = arith.constant 8 : i32
    %294 = arith.muli %c7_i32, %c8_i32_112 : i32
    %295 = tpu.assume_multiple %294, 8 : i32
    %c8_i32_113 = arith.constant 8 : i32
    %296 = arith.addi %c8_i32_113, %c7_i32 : i32
    %c8_i32_114 = arith.constant 8 : i32
    %297 = arith.muli %296, %c8_i32_114 : i32
    %298 = tpu.assume_multiple %297, 8 : i32
    %299 = arith.index_cast %295 : i32 to index
    %c0_115 = arith.constant 0 : index
    %300 = vector.load %arg7[%299, %c0_115] : memref<128x512xf32, #tpu.memory_space<vmem>>, vector<8x512xf32>
    %301 = arith.index_cast %298 : i32 to index
    %c0_116 = arith.constant 0 : index
    %302 = vector.load %arg7[%301, %c0_116] : memref<128x512xf32, #tpu.memory_space<vmem>>, vector<8x512xf32>
    %303 = arith.index_cast %c7_i32 : i32 to index
    %c0_117 = arith.constant 0 : index
    %304 = vector.load %arg8[%303, %c0_117] : memref<8x512xf32, #tpu.memory_space<vmem>>, vector<1x512xf32>
    %305 = arith.index_cast %c7_i32 : i32 to index
    %c0_118 = arith.constant 0 : index
    %306 = vector.load %arg9[%305, %c0_118] : memref<8x512xf32, #tpu.memory_space<vmem>>, vector<1x512xf32>
    %307 = arith.mulf %288, %302 : vector<8x512xf32>
    %cst_119 = arith.constant dense<0.000000e+00> : vector<512xf32>
    %308 = vector.multi_reduction <add>, %307, %cst_119 [0] : vector<8x512xf32> to vector<512xf32>
    %309 = vector.shape_cast %308 : vector<512xf32> to vector<1x512xf32>
    %310 = arith.subf %304, %309 : vector<1x512xf32>
    %311 = arith.mulf %310, %306 : vector<1x512xf32>
    %312 = vector.broadcast %311 : vector<1x512xf32> to vector<8x512xf32>
    %313 = arith.mulf %302, %312 : vector<8x512xf32>
    %314 = arith.addf %288, %313 : vector<8x512xf32>
    %315 = arith.mulf %314, %300 : vector<8x512xf32>
    %cst_120 = arith.constant dense<0.000000e+00> : vector<512xf32>
    %316 = vector.multi_reduction <add>, %315, %cst_120 [0] : vector<8x512xf32> to vector<512xf32>
    %317 = vector.shape_cast %316 : vector<512xf32> to vector<1x512xf32>
    %318 = arith.index_cast %c7_i32 : i32 to index
    %c0_121 = arith.constant 0 : index
    %319 = vector.load %arg10[%318, %c0_121] : memref<8x512xf32, #tpu.memory_space<vmem>>, vector<1x512xf32>
    tpu.vector_store %arg10[%318, %c0_121], %317 {strides = array<i32>} : memref<8x512xf32, #tpu.memory_space<vmem>>, vector<1x512xf32>,
    %c8_i32_122 = arith.constant 8 : i32
    %c0_123 = arith.constant 0 : index
    %c0_124 = arith.constant 0 : index
    %320 = vector.load %arg10[%c0_123, %c0_124] : memref<8x512xf32, #tpu.memory_space<vmem>>, vector<8x512xf32>
    %321 = arith.mulf %320, %320 : vector<8x512xf32>
    %cst_125 = arith.constant dense<0.000000e+00> : vector<8x512xf32>
    %322 = tpu.matmul %321, %52, %cst_125 {dimension_numbers = #tpu.dot_dimension_numbers<[1], [0], [0], [1], [0, 0, 1, 1], [], []>} : vector<8x512xf32>, vector<512x512xf32>, vector<8x512xf32> -> vector<8x512xf32>
    %cst_126 = arith.constant 1.250000e-01 : f32
    %323 = vector.broadcast %cst_126 : f32 to vector<8x512xf32>
    %324 = arith.mulf %322, %323 : vector<8x512xf32>
    %cst_127 = arith.constant 9.99999974E-6 : f32
    %325 = vector.broadcast %cst_127 : f32 to vector<8x512xf32>
    %326 = arith.addf %324, %325 : vector<8x512xf32>
    %327 = math.rsqrt %326 : vector<8x512xf32>
    %328 = arith.mulf %320, %327 : vector<8x512xf32>
    %329 = arith.truncf %328 : vector<8x512xf32> to vector<8x512xbf16>
    %c0_128 = arith.constant 0 : index
    %c0_129 = arith.constant 0 : index
    %330 = vector.load %arg5[%c0_128, %c0_129] : memref<512x512xbf16, #tpu.memory_space<vmem>>, vector<512x512xbf16>
    %cst_130 = arith.constant dense<0.000000e+00> : vector<8x512xf32>
    %331 = tpu.matmul %329, %330, %cst_130 {dimension_numbers = #tpu.dot_dimension_numbers<[1], [0], [0], [1], [0, 0, 1, 1], [], []>} : vector<8x512xbf16>, vector<512x512xbf16>, vector<8x512xf32> -> vector<8x512xf32>
    %c0_131 = arith.constant 0 : index
    %c0_132 = arith.constant 0 : index
    %332 = vector.load %arg6[%c0_131, %c0_132] : memref<8x512xf32, #tpu.memory_space<vmem>>, vector<8x512xf32>
    tpu.vector_store %arg6[%c0_131, %c0_132], %331 {strides = array<i32>} : memref<8x512xf32, #tpu.memory_space<vmem>>, vector<8x512xf32>,
    return
  }
  func.func @transform_0(%arg0: i32) -> (i32, i32) {
    %c0_i32 = arith.constant 0 : i32
    %c0_i32_0 = arith.constant 0 : i32
    return %c0_i32, %arg0 : i32, i32
  }
  func.func @transform_1(%arg0: i32) -> (i32, i32) {
    %c0_i32 = arith.constant 0 : i32
    %c0_i32_0 = arith.constant 0 : i32
    %c0_i32_1 = arith.constant 0 : i32
    return %c0_i32, %c0_i32_0 : i32, i32
  }
  func.func @transform_2(%arg0: i32) -> (i32, i32) {
    %c0_i32 = arith.constant 0 : i32
    %c0_i32_0 = arith.constant 0 : i32
    %c0_i32_1 = arith.constant 0 : i32
    return %c0_i32, %c0_i32_0 : i32, i32
  }
  func.func @transform_3(%arg0: i32) -> (i32, i32) {
    %c0_i32 = arith.constant 0 : i32
    %c0_i32_0 = arith.constant 0 : i32
    %c0_i32_1 = arith.constant 0 : i32
    return %c0_i32, %c0_i32_0 : i32, i32
  }
  func.func @transform_4(%arg0: i32) -> (i32, i32) {
    %c0_i32 = arith.constant 0 : i32
    %c0_i32_0 = arith.constant 0 : i32
    %c0_i32_1 = arith.constant 0 : i32
    return %c0_i32, %c0_i32_0 : i32, i32
  }
  func.func @transform_5(%arg0: i32) -> (i32, i32) {
    %c0_i32 = arith.constant 0 : i32
    %c0_i32_0 = arith.constant 0 : i32
    return %c0_i32, %arg0 : i32, i32
  }
}

</mosaic_0001>

<llo_original>
// kernel: tpu_custom_call.1
$region0: #{tpu_custom_call.1}
  #allocation0 [shape = 'u32[]', space=smem, size = 0x4, offset = 0x4, fixed_abs, tag = 'smem constant byte address 0x4 - core index']
  #allocation1 [shape = 'u32[72,128]{1,0:T(1,128)}', space=vmem, size = 0x9000, scoped, tag = 'internal scratch']
  #allocation2 [shape = 'f32[128,512]{1,0:T(8,128)}', space=vmem, size = 0x40000, scoped, tag = 'scratch operand']
  #allocation3 [shape = 'f32[8,512]{1,0:T(8,128)}', space=vmem, size = 0x4000, scoped, tag = 'scratch operand']
  #allocation4 [shape = 'f32[8,512]{1,0:T(8,128)}', space=vmem, size = 0x4000, scoped, tag = 'scratch operand']
  #allocation5 [shape = 'f32[8,512]{1,0:T(8,128)}', space=vmem, size = 0x4000, scoped, tag = 'scratch operand']
  %s0 = inlined_call_operand.hbm [shape: f32[8,1024], index: 0, kind: input, shape index: {}]
  %s1 = inlined_call_operand.hbm [shape: bf16[512,2048], index: 1, kind: input, shape index: {}]
  %s2 = inlined_call_operand.hbm [shape: f32[4,1536], index: 2, kind: input, shape index: {}]
  %s3 = inlined_call_operand.hbm [shape: f32[512,512], index: 3, kind: input, shape index: {}]
  %s4 = inlined_call_operand.hbm [shape: bf16[512,512], index: 4, kind: input, shape index: {}]
  %s5 = inlined_call_operand.hbm [shape: f32[8,1024], index: 5, kind: output, shape index: {}]
  %s6 = sld [smem:[#allocation0]]
  $region73: #{tpu_custom_call.1} parent=0
    _
  %s8 = ssub.s32 1, %s6
  %s9 = scalar_select 0, %s8, %s6
  $region1: #{tpu_custom_call.1} parent=0
    #allocation6 [shape = 'u8[32768]{0}', space=vmem, size = 0x8000, scoped, tag = 'input window, operand 0']
    #allocation7 [shape = 's32[2]{0}', space=sflag, size = 0x8, scoped, tag = 'scoped memory for tpu_custom_call.1']
    #allocation8 [shape = 's32[2]{0}', space=sflag, size = 0x8, scoped, tag = 'scoped memory for tpu_custom_call.1']
    #allocation9 [shape = 'u8[2097152]{0}', space=vmem, size = 0x200000, scoped, tag = 'input window, operand 1, single buffered']
    #allocation10 [shape = 's32[1]{0}', space=sflag, size = 0x4, scoped, tag = 'scoped memory for tpu_custom_call.1']
    #allocation11 [shape = 'u8[24576]{0}', space=vmem, size = 0x6000, scoped, tag = 'input window, operand 2, single buffered']
    #allocation12 [shape = 'u8[1048576]{0}', space=vmem, size = 0x100000, scoped, tag = 'input window, operand 3, single buffered']
    #allocation13 [shape = 's32[1]{0}', space=sflag, size = 0x4, scoped, tag = 'scoped memory for tpu_custom_call.1']
    #allocation14 [shape = 'u8[524288]{0}', space=vmem, size = 0x80000, scoped, tag = 'input window, operand 4, single buffered']
    #allocation15 [shape = 'u8[32768]{0}', space=vmem, size = 0x8000, scoped, tag = 'output window, operand 0']
    %10 = vsyncpa [#allocation7], 0
    %s11 = scalar_lea.sflag [#allocation7], 1
    %12 = vsyncpa %s11, 0
    %13 = vsyncpa [#allocation10], 0
    %14 = vsyncpa [#allocation13], 0
    %15 = vsyncpa [#allocation8], 0
    %s16 = scalar_lea.sflag [#allocation8], 1
    %17 = vsyncpa %s16, 0
    loop: start=0, step=1, limit=4
    $region2: #{tpu_custom_call.1} parent=1 // loop_pre_header
      _
    $region3: #{tpu_custom_call.1} parent=1 // loop_header
      %s19 = sphi 0, %s23
      %p20 = scmp.ge.s32.totalorder %s19, 4
      %s29 = sphi 0, %s31
      %s32 = sphi 0, %s29
      %s33 = sphi 0, %s32
      %s49 = sphi 0, %s33
      %s53 = sphi 0, %s53
      %s55 = sphi 0, %s53
      %s56 = sphi 0, %s55
      %s70 = sphi 0, %s56
      %s74 = sphi 0, %s74
      %s76 = sphi 0, %s74
      %s77 = sphi 0, %s76
      %s91 = sphi 0, %s77
      %s95 = sphi 0, %s95
      %s97 = sphi 0, %s95
      %s98 = sphi 0, %s97
      %s112 = sphi 0, %s98
      %s116 = sphi 0, %s116
      %s118 = sphi 0, %s116
      %s119 = sphi 0, %s118
      %s133 = sphi 0, %s119
      %s139 = sphi 0, %s141
      %s142 = sphi 0, %s139
      %s143 = sphi 0, %s142
      %s159 = sphi 0, %s143
    $region4: #{tpu_custom_call.1} parent=1 // loop_header_branch
      %22 = sbr.rel (%p20) target = $region8
    $region5: #{tpu_custom_call.1} parent=1 // loop_body
      %s24 = ssub.s32 %s19, 1
      %s25 = ssub.s32 %s19, 2
      %s26 = sadd.s32 %s19, 1
      %s27 = ssub.s32 %s19, %s26
      %p28 = scmp.eq.s32.totalorder %s27, 0
      %s30 = sadd.s32 %s29, 1
      %s31 = scalar_select %p28, %s29, %s30
      %p34 = pneg %p28
      %p35 = scmp.eq.s32.totalorder %s19, 1
      %p36 = por %p34, %p35
      %p37 = scmp.ne.s32.totalorder %s29, %s32
      %p38 = scmp.eq.s32.totalorder %s19, 0
      %p39 = por %p37, %p38
      %p40 = scmp.ne.s32.totalorder %s29, %s32
      %p41 = scmp.eq.s32.totalorder %s24, 1
      %p42 = por %p40, %p41
      %p43 = scmp.ne.s32.totalorder %s32, %s33
      %p44 = scmp.eq.s32.totalorder %s24, 0
      %p45 = por %p43, %p44
      %p46 = scmp.ne.s32.totalorder %s32, %s33
      %p47 = scmp.eq.s32.totalorder %s25, 1
      %p48 = por %p46, %p47
      %p50 = scmp.ne.s32.totalorder %s33, %s49
      %p51 = scmp.eq.s32.totalorder %s25, 0
      %p52 = por %p50, %p51
      %s54 = sadd.s32 %s53, 1
      %p57 = scmp.eq.s32.totalorder %s19, 1
      %p58 = scmp.ne.s32.totalorder %s53, %s55
      %p59 = scmp.eq.s32.totalorder %s19, 0
      %p60 = por %p58, %p59
      %p61 = scmp.ne.s32.totalorder %s53, %s55
      %p62 = scmp.eq.s32.totalorder %s24, 1
      %p63 = por %p61, %p62
      %p64 = scmp.ne.s32.totalorder %s55, %s56
      %p65 = scmp.eq.s32.totalorder %s24, 0
      %p66 = por %p64, %p65
      %p67 = scmp.ne.s32.totalorder %s55, %s56
      %p68 = scmp.eq.s32.totalorder %s25, 1
      %p69 = por %p67, %p68
      %p71 = scmp.ne.s32.totalorder %s56, %s70
      %p72 = scmp.eq.s32.totalorder %s25, 0
      %p73 = por %p71, %p72
      %s75 = sadd.s32 %s74, 1
      %p78 = scmp.eq.s32.totalorder %s19, 1
      %p79 = scmp.ne.s32.totalorder %s74, %s76
      %p80 = scmp.eq.s32.totalorder %s19, 0
      %p81 = por %p79, %p80
      %p82 = scmp.ne.s32.totalorder %s74, %s76
      %p83 = scmp.eq.s32.totalorder %s24, 1
      %p84 = por %p82, %p83
      %p85 = scmp.ne.s32.totalorder %s76, %s77
      %p86 = scmp.eq.s32.totalorder %s24, 0
      %p87 = por %p85, %p86
      %p88 = scmp.ne.s32.totalorder %s76, %s77
      %p89 = scmp.eq.s32.totalorder %s25, 1
      %p90 = por %p88, %p89
      %p92 = scmp.ne.s32.totalorder %s77, %s91
      %p93 = scmp.eq.s32.totalorder %s25, 0
      %p94 = por %p92, %p93
      %s96 = sadd.s32 %s95, 1
      %p99 = scmp.eq.s32.totalorder %s19, 1
      %p100 = scmp.ne.s32.totalorder %s95, %s97
      %p101 = scmp.eq.s32.totalorder %s19, 0
      %p102 = por %p100, %p101
      %p103 = scmp.ne.s32.totalorder %s95, %s97
      %p104 = scmp.eq.s32.totalorder %s24, 1
      %p105 = por %p103, %p104
      %p106 = scmp.ne.s32.totalorder %s97, %s98
      %p107 = scmp.eq.s32.totalorder %s24, 0
      %p108 = por %p106, %p107
      %p109 = scmp.ne.s32.totalorder %s97, %s98
      %p110 = scmp.eq.s32.totalorder %s25, 1
      %p111 = por %p109, %p110
      %p113 = scmp.ne.s32.totalorder %s98, %s112
      %p114 = scmp.eq.s32.totalorder %s25, 0
      %p115 = por %p113, %p114
      %s117 = sadd.s32 %s116, 1
      %p120 = scmp.eq.s32.totalorder %s19, 1
      %p121 = scmp.ne.s32.totalorder %s116, %s118
      %p122 = scmp.eq.s32.totalorder %s19, 0
      %p123 = por %p121, %p122
      %p124 = scmp.ne.s32.totalorder %s116, %s118
      %p125 = scmp.eq.s32.totalorder %s24, 1
      %p126 = por %p124, %p125
      %p127 = scmp.ne.s32.totalorder %s118, %s119
      %p128 = scmp.eq.s32.totalorder %s24, 0
      %p129 = por %p127, %p128
      %p130 = scmp.ne.s32.totalorder %s118, %s119
      %p131 = scmp.eq.s32.totalorder %s25, 1
      %p132 = por %p130, %p131
      %p134 = scmp.ne.s32.totalorder %s119, %s133
      %p135 = scmp.eq.s32.totalorder %s25, 0
      %p136 = por %p134, %p135
      %s137 = ssub.s32 %s19, %s26
      %p138 = scmp.eq.s32.totalorder %s137, 0
      %s140 = sadd.s32 %s139, 1
      %s141 = scalar_select %p138, %s139, %s140
      %p144 = pneg %p138
      %p145 = scmp.eq.s32.totalorder %s19, 1
      %p146 = por %p144, %p145
      %p147 = scmp.ne.s32.totalorder %s139, %s142
      %p148 = scmp.eq.s32.totalorder %s19, 0
      %p149 = por %p147, %p148
      %p150 = scmp.ne.s32.totalorder %s139, %s142
      %p151 = scmp.eq.s32.totalorder %s24, 1
      %p152 = por %p150, %p151
      %p153 = scmp.ne.s32.totalorder %s142, %s143
      %p154 = scmp.eq.s32.totalorder %s24, 0
      %p155 = por %p153, %p154
      %p156 = scmp.ne.s32.totalorder %s142, %s143
      %p157 = scmp.eq.s32.totalorder %s25, 1
      %p158 = por %p156, %p157
      %p160 = scmp.ne.s32.totalorder %s143, %s159
      %p161 = scmp.eq.s32.totalorder %s25, 0
      %p162 = por %p160, %p161
      %p163 = scmp.le.s32.totalorder 1, %s19
      %p164 = scmp.lt.s32.totalorder %s19, 3
      %p165 = pnand %p163, %p164
      %p166 = pneg %p165
      // Predicated region
      $region9: #{tpu_custom_call.1} parent=5 // pred_check
        _
      $region10: #{tpu_custom_call.1} parent=5 // pred_check_branch
        %168 = sbr.rel (%p165) target = $region12
      $region11: #{tpu_custom_call.1} parent=5 // pred_region
        %s169 = ssub.s32 %s19, 1
        // Predicated region
        $region13: #{tpu_custom_call.1} parent=11 // pred_check
          %p170 = pneg %p66
        $region14: #{tpu_custom_call.1} parent=11 // pred_check_branch
          %172 = sbr.rel (%p170) target = $region16
        $region15: #{tpu_custom_call.1} parent=11 // pred_region
          %174 = vsyncadd [#allocation10], 0
          %s175 = sshll.u32 %s1, 4
          %s176 = int_to_ptr.hbm [resolvable:$true] %s175
          %s177 = sshll.u32 [#allocation9], 4
          %s178 = int_to_ptr.vmem [resolvable:$true] %s177
          %183 = dma.hbm_to_vmem [thread:$0]  %s176, 65536, %s178, [#allocation10], 1024, 1024, 64
        $region16: #{tpu_custom_call.1} parent=11 // pred_fallthru
          _
        // Predicated region
        $region17: #{tpu_custom_call.1} parent=11 // pred_check
          %p184 = pneg %p87
        $region18: #{tpu_custom_call.1} parent=11 // pred_check_branch
          %186 = sbr.rel (%p184) target = $region20
        $region19: #{tpu_custom_call.1} parent=11 // pred_region
          %188 = vsyncadd [#allocation10], 0
          %s190 = sshll.u32 %s2, 4
          %s191 = int_to_ptr.hbm [resolvable:$true] %s190
          %s192 = sshll.u32 [#allocation11], 4
          %s193 = int_to_ptr.vmem [resolvable:$true] %s192
          %195 = dma.hbm_to_vmem [thread:$0]  %s191, 768, %s193, [#allocation10]
        $region20: #{tpu_custom_call.1} parent=11 // pred_fallthru
          _
        // Predicated region
        $region21: #{tpu_custom_call.1} parent=11 // pred_check
          %p196 = pneg %p108
        $region22: #{tpu_custom_call.1} parent=11 // pred_check_branch
          %198 = sbr.rel (%p196) target = $region24
        $region23: #{tpu_custom_call.1} parent=11 // pred_region
          %200 = vsyncadd [#allocation13], 0
          %s201 = sshll.u32 %s3, 4
          %s202 = int_to_ptr.hbm [resolvable:$true] %s201
          %s203 = sshll.u32 [#allocation12], 4
          %s204 = int_to_ptr.vmem [resolvable:$true] %s203
          %209 = dma.hbm_to_vmem [thread:$0]  %s202, 32768, %s204, [#allocation13], 512, 512, 32
        $region24: #{tpu_custom_call.1} parent=11 // pred_fallthru
          _
        // Predicated region
        $region25: #{tpu_custom_call.1} parent=11 // pred_check
          %p210 = pneg %p129
        $region26: #{tpu_custom_call.1} parent=11 // pred_check_branch
          %212 = sbr.rel (%p210) target = $region28
        $region27: #{tpu_custom_call.1} parent=11 // pred_region
          %214 = vsyncadd [#allocation13], 0
          %s215 = sshll.u32 %s4, 4
          %s216 = int_to_ptr.hbm [resolvable:$true] %s215
          %s217 = sshll.u32 [#allocation14], 4
          %s218 = int_to_ptr.vmem [resolvable:$true] %s217
          %223 = dma.hbm_to_vmem [thread:$0]  %s216, 16384, %s218, [#allocation13], 256, 256, 16
        $region28: #{tpu_custom_call.1} parent=11 // pred_fallthru
          _
      $region12: #{tpu_custom_call.1} parent=5 // pred_fallthru
        _
      %p224 = scmp.lt.s32.totalorder %s19, 2
      // Predicated region
      $region29: #{tpu_custom_call.1} parent=5 // pred_check
        %p225 = pneg %p224
      $region30: #{tpu_custom_call.1} parent=5 // pred_check_branch
        %227 = sbr.rel (%p225) target = $region32
      $region31: #{tpu_custom_call.1} parent=5 // pred_region
        // Predicated region
        $region33: #{tpu_custom_call.1} parent=31 // pred_check
          %p228 = pneg %p39
        $region34: #{tpu_custom_call.1} parent=31 // pred_check_branch
          %230 = sbr.rel (%p228) target = $region36
        $region35: #{tpu_custom_call.1} parent=31 // pred_region
          %s231 = sand.u32 %s29, 1
          %s232 = scalar_lea.sflag [#allocation7], %s231
          %s233 = sand.u32 %s29, 1
          %s234 = smul.addr %s233, 32
          %s235 = scalar_lea.vmem [#allocation6], %s234
          %s236 = smul.u32 4, %s19
          %238 = vsyncadd %s232, 0
          %s239 = smul.addr %s236, 8
          %s240 = scalar_lea.hbm %s0, %s239
          %s242 = sshll.u32 %s240, 4
          %s243 = int_to_ptr.hbm [resolvable:$true] %s242
          %s244 = sshll.u32 %s235, 4
          %s245 = int_to_ptr.vmem [resolvable:$true] %s244
          %247 = dma.hbm_to_vmem [thread:$0]  %s243, 512, %s245, %s232
        $region36: #{tpu_custom_call.1} parent=31 // pred_fallthru
          _
      $region32: #{tpu_custom_call.1} parent=5 // pred_fallthru
        _
      %p248 = scmp.le.s32.totalorder 1, %s19
      %p249 = scmp.lt.s32.totalorder %s19, 3
      %p250 = pnand %p248, %p249
      %p251 = pneg %p250
      // Predicated region
      $region37: #{tpu_custom_call.1} parent=5 // pred_check
        _
      $region38: #{tpu_custom_call.1} parent=5 // pred_check_branch
        %253 = sbr.rel (%p250) target = $region40
      $region39: #{tpu_custom_call.1} parent=5 // pred_region
        %s254 = ssub.s32 %s19, 1
        %s255 = sand.u32 %s32, 1
        %s256 = scalar_lea.sflag [#allocation7], %s255
        %s257 = sand.u32 %s32, 1
        %s258 = smul.addr %s257, 32
        %s259 = scalar_lea.vmem [#allocation6], %s258
        // Predicated region
        $region41: #{tpu_custom_call.1} parent=39 // pred_check
          %p260 = pneg %p45
        $region42: #{tpu_custom_call.1} parent=39 // pred_check_branch
          %262 = sbr.rel (%p260) target = $region44
        $region43: #{tpu_custom_call.1} parent=39 // pred_region
          %264 = dma.done %s256, 512
        $region44: #{tpu_custom_call.1} parent=39 // pred_fallthru
          _
        // Predicated region
        $region45: #{tpu_custom_call.1} parent=39 // pred_check
          %p265 = pneg %p66
        $region46: #{tpu_custom_call.1} parent=39 // pred_check_branch
          %267 = sbr.rel (%p265) target = $region48
        $region47: #{tpu_custom_call.1} parent=39 // pred_region
          %269 = dma.done [#allocation10], 65536
        $region48: #{tpu_custom_call.1} parent=39 // pred_fallthru
          _
        // Predicated region
        $region49: #{tpu_custom_call.1} parent=39 // pred_check
          %p270 = pneg %p87
        $region50: #{tpu_custom_call.1} parent=39 // pred_check_branch
          %272 = sbr.rel (%p270) target = $region52
        $region51: #{tpu_custom_call.1} parent=39 // pred_region
          %274 = dma.done [#allocation10], 768
        $region52: #{tpu_custom_call.1} parent=39 // pred_fallthru
          _
        // Predicated region
        $region53: #{tpu_custom_call.1} parent=39 // pred_check
          %p275 = pneg %p108
        $region54: #{tpu_custom_call.1} parent=39 // pred_check_branch
          %277 = sbr.rel (%p275) target = $region56
        $region55: #{tpu_custom_call.1} parent=39 // pred_region
          %279 = dma.done [#allocation13], 32768
        $region56: #{tpu_custom_call.1} parent=39 // pred_fallthru
          _
        // Predicated region
        $region57: #{tpu_custom_call.1} parent=39 // pred_check
          %p280 = pneg %p129
        $region58: #{tpu_custom_call.1} parent=39 // pred_check_branch
          %282 = sbr.rel (%p280) target = $region60
        $region59: #{tpu_custom_call.1} parent=39 // pred_region
          %284 = dma.done [#allocation13], 16384
        $region60: #{tpu_custom_call.1} parent=39 // pred_fallthru
          _
        %s285 = sand.u32 %s32, 1
        %s286 = scalar_lea.sflag [#allocation7], %s285
        %s287 = sand.u32 %s32, 1
        %s288 = smul.addr %s287, 32
        %s289 = scalar_lea.vmem [#allocation6], %s288
        %p290 = pneg %p45
        %p291 = pneg %p42
        %p292 = pneg %p66
        %p293 = pneg %p63
        %p294 = pneg %p87
        %p295 = pneg %p84
        %p296 = pneg %p108
        %p297 = pneg %p105
        %p298 = pneg %p129
        %p299 = pneg %p126
        %p300 = pneg %p155
        %p301 = pneg %p152
        %s302 = sand.u32 %s142, 1
        %s303 = scalar_lea.sflag [#allocation8], %s302
        %s304 = sand.u32 %s142, 1
        %s305 = smul.addr %s304, 32
        %s306 = scalar_lea.vmem [#allocation15], %s305
        %s307 = smul.u32 4, %s24
        %s308 = smul.u32 4, %s24
        %v309 = vld [vmem:[%s259] sm:$0xff]
        %v310 = vld [vmem:[%s259 + $0x8] sm:$0xff]
        %v311 = vld [vmem:[%s259 + $0x10] sm:$0xff]
        %v312 = vld [vmem:[%s259 + $0x18] sm:$0xff]
        %v313 = vpack.c.bf16 %v309, %v309
        %v314 = vpack.c.bf16 %v310, %v310
        %v315 = vpack.c.bf16 %v311, %v311
        %v316 = vpack.c.bf16 %v312, %v312
        %v317 = vld [vmem:[#allocation9] sm:$0xff]
        %v318 = vld [vmem:[#allocation9 + $0x8] sm:$0xff]
        %v319 = vld [vmem:[#allocation9 + $0x10] sm:$0xff]
        %v320 = vld [vmem:[#allocation9 + $0x18] sm:$0xff]
        %v321 = vld [vmem:[#allocation9 + $0x20] sm:$0xff]
        %v322 = vld [vmem:[#allocation9 + $0x28] sm:$0xff]
        %v323 = vld [vmem:[#allocation9 + $0x30] sm:$0xff]
        %v324 = vld [vmem:[#allocation9 + $0x38] sm:$0xff]
        %v325 = vld [vmem:[#allocation9 + $0x40] sm:$0xff]
        %v326 = vld [vmem:[#allocation9 + $0x48] sm:$0xff]
        %v327 = vld [vmem:[#allocation9 + $0x50] sm:$0xff]
        %v328 = vld [vmem:[#allocation9 + $0x58] sm:$0xff]
        %v329 = vld [vmem:[#allocation9 + $0x60] sm:$0xff]
        %v330 = vld [vmem:[#allocation9 + $0x68] sm:$0xff]
        %v331 = vld [vmem:[#allocation9 + $0x70] sm:$0xff]
        %v332 = vld [vmem:[#allocation9 + $0x78] sm:$0xff]
        %v333 = vld [vmem:[#allocation9 + $0x80] sm:$0xff]
        %v334 = vld [vmem:[#allocation9 + $0x88] sm:$0xff]
        %v335 = vld [vmem:[#allocation9 + $0x90] sm:$0xff]
        %v336 = vld [vmem:[#allocation9 + $0x98] sm:$0xff]
        %v337 = vld [vmem:[#allocation9 + $0xa0] sm:$0xff]
        %v338 = vld [vmem:[#allocation9 + $0xa8] sm:$0xff]
        %v339 = vld [vmem:[#allocation9 + $0xb0] sm:$0xff]
        %v340 = vld [vmem:[#allocation9 + $0xb8] sm:$0xff]
        %v341 = vld [vmem:[#allocation9 + $0xc0] sm:$0xff]
        %v342 = vld [vmem:[#allocation9 + $0xc8] sm:$0xff]
        %v343 = vld [vmem:[#allocation9 + $0xd0] sm:$0xff]
        %v344 = vld [vmem:[#allocation9 + $0xd8] sm:$0xff]
        %v345 = vld [vmem:[#allocation9 + $0xe0] sm:$0xff]
        %v346 = vld [vmem:[#allocation9 + $0xe8] sm:$0xff]
        %v347 = vld [vmem:[#allocation9 + $0xf0] sm:$0xff]
        %v348 = vld [vmem:[#allocation9 + $0xf8] sm:$0xff]
        %v349 = vld [vmem:[#allocation9 + $0x100] sm:$0xff]
        %v350 = vld [vmem:[#allocation9 + $0x108] sm:$0xff]
        %v351 = vld [vmem:[#allocation9 + $0x110] sm:$0xff]
        %v352 = vld [vmem:[#allocation9 + $0x118] sm:$0xff]
        %v353 = vld [vmem:[#allocation9 + $0x120] sm:$0xff]
        %v354 = vld [vmem:[#allocation9 + $0x128] sm:$0xff]
        %v355 = vld [vmem:[#allocation9 + $0x130] sm:$0xff]
        %v356 = vld [vmem:[#allocation9 + $0x138] sm:$0xff]
        %v357 = vld [vmem:[#allocation9 + $0x140] sm:$0xff]
        %v358 = vld [vmem:[#allocation9 + $0x148] sm:$0xff]
        %v359 = vld [vmem:[#allocation9 + $0x150] sm:$0xff]
        %v360 = vld [vmem:[#allocation9 + $0x158] sm:$0xff]
        %v361 = vld [vmem:[#allocation9 + $0x160] sm:$0xff]
        %v362 = vld [vmem:[#allocation9 + $0x168] sm:$0xff]
        %v363 = vld [vmem:[#allocation9 + $0x170] sm:$0xff]
        %v364 = vld [vmem:[#allocation9 + $0x178] sm:$0xff]
        %v365 = vld [vmem:[#allocation9 + $0x180] sm:$0xff]
        %v366 = vld [vmem:[#allocation9 + $0x188] sm:$0xff]
        %v367 = vld [vmem:[#allocation9 + $0x190] sm:$0xff]
        %v368 = vld [vmem:[#allocation9 + $0x198] sm:$0xff]
        %v369 = vld [vmem:[#allocation9 + $0x1a0] sm:$0xff]
        %v370 = vld [vmem:[#allocation9 + $0x1a8] sm:$0xff]
        %v371 = vld [vmem:[#allocation9 + $0x1b0] sm:$0xff]
        %v372 = vld [vmem:[#allocation9 + $0x1b8] sm:$0xff]
        %v373 = vld [vmem:[#allocation9 + $0x1c0] sm:$0xff]
        %v374 = vld [vmem:[#allocation9 + $0x1c8] sm:$0xff]
        %v375 = vld [vmem:[#allocation9 + $0x1d0] sm:$0xff]
        %v376 = vld [vmem:[#allocation9 + $0x1d8] sm:$0xff]
        %v377 = vld [vmem:[#allocation9 + $0x1e0] sm:$0xff]
        %v378 = vld [vmem:[#allocation9 + $0x1e8] sm:$0xff]
        %v379 = vld [vmem:[#allocation9 + $0x1f0] sm:$0xff]
        %v380 = vld [vmem:[#allocation9 + $0x1f8] sm:$0xff]
        %v381 = vld [vmem:[#allocation9 + $0x200] sm:$0xff]
        %v382 = vld [vmem:[#allocation9 + $0x208] sm:$0xff]
        %v383 = vld [vmem:[#allocation9 + $0x210] sm:$0xff]
        %v384 = vld [vmem:[#allocation9 + $0x218] sm:$0xff]
        %v385 = vld [vmem:[#allocation9 + $0x220] sm:$0xff]
        %v386 = vld [vmem:[#allocation9 + $0x228] sm:$0xff]
        %v387 = vld [vmem:[#allocation9 + $0x230] sm:$0xff]
        %v388 = vld [vmem:[#allocation9 + $0x238] sm:$0xff]
        %v389 = vld [vmem:[#allocation9 + $0x240] sm:$0xff]
        %v390 = vld [vmem:[#allocation9 + $0x248] sm:$0xff]
        %v391 = vld [vmem:[#allocation9 + $0x250] sm:$0xff]
        %v392 = vld [vmem:[#allocation9 + $0x258] sm:$0xff]
        %v393 = vld [vmem:[#allocation9 + $0x260] sm:$0xff]
        %v394 = vld [vmem:[#allocation9 + $0x268] sm:$0xff]
        %v395 = vld [vmem:[#allocation9 + $0x270] sm:$0xff]
        %v396 = vld [vmem:[#allocation9 + $0x278] sm:$0xff]
        %v397 = vld [vmem:[#allocation9 + $0x280] sm:$0xff]
        %v398 = vld [vmem:[#allocation9 + $0x288] sm:$0xff]
        %v399 = vld [vmem:[#allocation9 + $0x290] sm:$0xff]
        %v400 = vld [vmem:[#allocation9 + $0x298] sm:$0xff]
        %v401 = vld [vmem:[#allocation9 + $0x2a0] sm:$0xff]
        %v402 = vld [vmem:[#allocation9 + $0x2a8] sm:$0xff]
        %v403 = vld [vmem:[#allocation9 + $0x2b0] sm:$0xff]
        %v404 = vld [vmem:[#allocation9 + $0x2b8] sm:$0xff]
        %v405 = vld [vmem:[#allocation9 + $0x2c0] sm:$0xff]
        %v406 = vld [vmem:[#allocation9 + $0x2c8] sm:$0xff]
        %v407 = vld [vmem:[#allocation9 + $0x2d0] sm:$0xff]
        %v408 = vld [vmem:[#allocation9 + $0x2d8] sm:$0xff]
        %v409 = vld [vmem:[#allocation9 + $0x2e0] sm:$0xff]
        %v410 = vld [vmem:[#allocation9 + $0x2e8] sm:$0xff]
        %v411 = vld [vmem:[#allocation9 + $0x2f0] sm:$0xff]
        %v412 = vld [vmem:[#allocation9 + $0x2f8] sm:$0xff]
        %v413 = vld [vmem:[#allocation9 + $0x300] sm:$0xff]
        %v414 = vld [vmem:[#allocation9 + $0x308] sm:$0xff]
        %v415 = vld [vmem:[#allocation9 + $0x310] sm:$0xff]
        %v416 = vld [vmem:[#allocation9 + $0x318] sm:$0xff]
        %v417 = vld [vmem:[#allocation9 + $0x320] sm:$0xff]
        %v418 = vld [vmem:[#allocation9 + $0x328] sm:$0xff]
        %v419 = vld [vmem:[#allocation9 + $0x330] sm:$0xff]
        %v420 = vld [vmem:[#allocation9 + $0x338] sm:$0xff]
        %v421 = vld [vmem:[#allocation9 + $0x340] sm:$0xff]
        %v422 = vld [vmem:[#allocation9 + $0x348] sm:$0xff]
        %v423 = vld [vmem:[#allocation9 + $0x350] sm:$0xff]
        %v424 = vld [vmem:[#allocation9 + $0x358] sm:$0xff]
        %v425 = vld [vmem:[#allocation9 + $0x360] sm:$0xff]
        %v426 = vld [vmem:[#allocation9 + $0x368] sm:$0xff]
        %v427 = vld [vmem:[#allocation9 + $0x370] sm:$0xff]
        %v428 = vld [vmem:[#allocation9 + $0x378] sm:$0xff]
        %v429 = vld [vmem:[#allocation9 + $0x380] sm:$0xff]
        %v430 = vld [vmem:[#allocation9 + $0x388] sm:$0xff]
        %v431 = vld [vmem:[#allocation9 + $0x390] sm:$0xff]
        %v432 = vld [vmem:[#allocation9 + $0x398] sm:$0xff]
        %v433 = vld [vmem:[#allocation9 + $0x3a0] sm:$0xff]
        %v434 = vld [vmem:[#allocation9 + $0x3a8] sm:$0xff]
        %v435 = vld [vmem:[#allocation9 + $0x3b0] sm:$0xff]
        %v436 = vld [vmem:[#allocation9 + $0x3b8] sm:$0xff]
        %v437 = vld [vmem:[#allocation9 + $0x3c0] sm:$0xff]
        %v438 = vld [vmem:[#allocation9 + $0x3c8] sm:$0xff]
        %v439 = vld [vmem:[#allocation9 + $0x3d0] sm:$0xff]
        %v440 = vld [vmem:[#allocation9 + $0x3d8] sm:$0xff]
        %v441 = vld [vmem:[#allocation9 + $0x3e0] sm:$0xff]
        %v442 = vld [vmem:[#allocation9 + $0x3e8] sm:$0xff]
        %v443 = vld [vmem:[#allocation9 + $0x3f0] sm:$0xff]
        %v444 = vld [vmem:[#allocation9 + $0x3f8] sm:$0xff]
        %v445 = vld [vmem:[#allocation9 + $0x400] sm:$0xff]
        %v446 = vld [vmem:[#allocation9 + $0x408] sm:$0xff]
        %v447 = vld [vmem:[#allocation9 + $0x410] sm:$0xff]
        %v448 = vld [vmem:[#allocation9 + $0x418] sm:$0xff]
        %v449 = vld [vmem:[#allocation9 + $0x420] sm:$0xff]
        %v450 = vld [vmem:[#allocation9 + $0x428] sm:$0xff]
        %v451 = vld [vmem:[#allocation9 + $0x430] sm:$0xff]
        %v452 = vld [vmem:[#allocation9 + $0x438] sm:$0xff]
        %v453 = vld [vmem:[#allocation9 + $0x440] sm:$0xff]
        %v454 = vld [vmem:[#allocation9 + $0x448] sm:$0xff]
        %v455 = vld [vmem:[#allocation9 + $0x450] sm:$0xff]
        %v456 = vld [vmem:[#allocation9 + $0x458] sm:$0xff]
        %v457 = vld [vmem:[#allocation9 + $0x460] sm:$0xff]
        %v458 = vld [vmem:[#allocation9 + $0x468] sm:$0xff]
        %v459 = vld [vmem:[#allocation9 + $0x470] sm:$0xff]
        %v460 = vld [vmem:[#allocation9 + $0x478] sm:$0xff]
        %v461 = vld [vmem:[#allocation9 + $0x480] sm:$0xff]
        %v462 = vld [vmem:[#allocation9 + $0x488] sm:$0xff]
        %v463 = vld [vmem:[#allocation9 + $0x490] sm:$0xff]
        %v464 = vld [vmem:[#allocation9 + $0x498] sm:$0xff]
        %v465 = vld [vmem:[#allocation9 + $0x4a0] sm:$0xff]
        %v466 = vld [vmem:[#allocation9 + $0x4a8] sm:$0xff]
        %v467 = vld [vmem:[#allocation9 + $0x4b0] sm:$0xff]
        %v468 = vld [vmem:[#allocation9 + $0x4b8] sm:$0xff]
        %v469 = vld [vmem:[#allocation9 + $0x4c0] sm:$0xff]
        %v470 = vld [vmem:[#allocation9 + $0x4c8] sm:$0xff]
        %v471 = vld [vmem:[#allocation9 + $0x4d0] sm:$0xff]
        %v472 = vld [vmem:[#allocation9 + $0x4d8] sm:$0xff]
        %v473 = vld [vmem:[#allocation9 + $0x4e0] sm:$0xff]
        %v474 = vld [vmem:[#allocation9 + $0x4e8] sm:$0xff]
        %v475 = vld [vmem:[#allocation9 + $0x4f0] sm:$0xff]
        %v476 = vld [vmem:[#allocation9 + $0x4f8] sm:$0xff]
        %v477 = vld [vmem:[#allocation9 + $0x500] sm:$0xff]
        %v478 = vld [vmem:[#allocation9 + $0x508] sm:$0xff]
        %v479 = vld [vmem:[#allocation9 + $0x510] sm:$0xff]
        %v480 = vld [vmem:[#allocation9 + $0x518] sm:$0xff]
        %v481 = vld [vmem:[#allocation9 + $0x520] sm:$0xff]
        %v482 = vld [vmem:[#allocation9 + $0x528] sm:$0xff]
        %v483 = vld [vmem:[#allocation9 + $0x530] sm:$0xff]
        %v484 = vld [vmem:[#allocation9 + $0x538] sm:$0xff]
        %v485 = vld [vmem:[#allocation9 + $0x540] sm:$0xff]
        %v486 = vld [vmem:[#allocation9 + $0x548] sm:$0xff]
        %v487 = vld [vmem:[#allocation9 + $0x550] sm:$0xff]
        %v488 = vld [vmem:[#allocation9 + $0x558] sm:$0xff]
        %v489 = vld [vmem:[#allocation9 + $0x560] sm:$0xff]
        %v490 = vld [vmem:[#allocation9 + $0x568] sm:$0xff]
        %v491 = vld [vmem:[#allocation9 + $0x570] sm:$0xff]
        %v492 = vld [vmem:[#allocation9 + $0x578] sm:$0xff]
        %v493 = vld [vmem:[#allocation9 + $0x580] sm:$0xff]
        %v494 = vld [vmem:[#allocation9 + $0x588] sm:$0xff]
        %v495 = vld [vmem:[#allocation9 + $0x590] sm:$0xff]
        %v496 = vld [vmem:[#allocation9 + $0x598] sm:$0xff]
        %v497 = vld [vmem:[#allocation9 + $0x5a0] sm:$0xff]
        %v498 = vld [vmem:[#allocation9 + $0x5a8] sm:$0xff]
        %v499 = vld [vmem:[#allocation9 + $0x5b0] sm:$0xff]
        %v500 = vld [vmem:[#allocation9 + $0x5b8] sm:$0xff]
        %v501 = vld [vmem:[#allocation9 + $0x5c0] sm:$0xff]
        %v502 = vld [vmem:[#allocation9 + $0x5c8] sm:$0xff]
        %v503 = vld [vmem:[#allocation9 + $0x5d0] sm:$0xff]
        %v504 = vld [vmem:[#allocation9 + $0x5d8] sm:$0xff]
        %v505 = vld [vmem:[#allocation9 + $0x5e0] sm:$0xff]
        %v506 = vld [vmem:[#allocation9 + $0x5e8] sm:$0xff]
        %v507 = vld [vmem:[#allocation9 + $0x5f0] sm:$0xff]
        %v508 = vld [vmem:[#allocation9 + $0x5f8] sm:$0xff]
        %v509 = vld [vmem:[#allocation9 + $0x600] sm:$0xff]
        %v510 = vld [vmem:[#allocation9 + $0x608] sm:$0xff]
        %v511 = vld [vmem:[#allocation9 + $0x610] sm:$0xff]
        %v512 = vld [vmem:[#allocation9 + $0x618] sm:$0xff]
        %v513 = vld [vmem:[#allocation9 + $0x620] sm:$0xff]
        %v514 = vld [vmem:[#allocation9 + $0x628] sm:$0xff]
        %v515 = vld [vmem:[#allocation9 + $0x630] sm:$0xff]
        %v516 = vld [vmem:[#allocation9 + $0x638] sm:$0xff]
        %v517 = vld [vmem:[#allocation9 + $0x640] sm:$0xff]
        %v518 = vld [vmem:[#allocation9 + $0x648] sm:$0xff]
        %v519 = vld [vmem:[#allocation9 + $0x650] sm:$0xff]
        %v520 = vld [vmem:[#allocation9 + $0x658] sm:$0xff]
        %v521 = vld [vmem:[#allocation9 + $0x660] sm:$0xff]
        %v522 = vld [vmem:[#allocation9 + $0x668] sm:$0xff]
        %v523 = vld [vmem:[#allocation9 + $0x670] sm:$0xff]
        %v524 = vld [vmem:[#allocation9 + $0x678] sm:$0xff]
        %v525 = vld [vmem:[#allocation9 + $0x680] sm:$0xff]
        %v526 = vld [vmem:[#allocation9 + $0x688] sm:$0xff]
        %v527 = vld [vmem:[#allocation9 + $0x690] sm:$0xff]
        %v528 = vld [vmem:[#allocation9 + $0x698] sm:$0xff]
        %v529 = vld [vmem:[#allocation9 + $0x6a0] sm:$0xff]
        %v530 = vld [vmem:[#allocation9 + $0x6a8] sm:$0xff]
        %v531 = vld [vmem:[#allocation9 + $0x6b0] sm:$0xff]
        %v532 = vld [vmem:[#allocation9 + $0x6b8] sm:$0xff]
        %v533 = vld [vmem:[#allocation9 + $0x6c0] sm:$0xff]
        %v534 = vld [vmem:[#allocation9 + $0x6c8] sm:$0xff]
        %v535 = vld [vmem:[#allocation9 + $0x6d0] sm:$0xff]
        %v536 = vld [vmem:[#allocation9 + $0x6d8] sm:$0xff]
        %v537 = vld [vmem:[#allocation9 + $0x6e0] sm:$0xff]
        %v538 = vld [vmem:[#allocation9 + $0x6e8] sm:$0xff]
        %v539 = vld [vmem:[#allocation9 + $0x6f0] sm:$0xff]
        %v540 = vld [vmem:[#allocation9 + $0x6f8] sm:$0xff]
        %v541 = vld [vmem:[#allocation9 + $0x700] sm:$0xff]
        %v542 = vld [vmem:[#allocation9 + $0x708] sm:$0xff]
        %v543 = vld [vmem:[#allocation9 + $0x710] sm:$0xff]
        %v544 = vld [vmem:[#allocation9 + $0x718] sm:$0xff]
        %v545 = vld [vmem:[#allocation9 + $0x720] sm:$0xff]
        %v546 = vld [vmem:[#allocation9 + $0x728] sm:$0xff]
        %v547 = vld [vmem:[#allocation9 + $0x730] sm:$0xff]
        %v548 = vld [vmem:[#allocation9 + $0x738] sm:$0xff]
        %v549 = vld [vmem:[#allocation9 + $0x740] sm:$0xff]
        %v550 = vld [vmem:[#allocation9 + $0x748] sm:$0xff]
        %v551 = vld [vmem:[#allocation9 + $0x750] sm:$0xff]
        %v552 = vld [vmem:[#allocation9 + $0x758] sm:$0xff]
        %v553 = vld [vmem:[#allocation9 + $0x760] sm:$0xff]
        %v554 = vld [vmem:[#allocation9 + $0x768] sm:$0xff]
        %v555 = vld [vmem:[#allocation9 + $0x770] sm:$0xff]
        %v556 = vld [vmem:[#allocation9 + $0x778] sm:$0xff]
        %v557 = vld [vmem:[#allocation9 + $0x780] sm:$0xff]
        %v558 = vld [vmem:[#allocation9 + $0x788] sm:$0xff]
        %v559 = vld [vmem:[#allocation9 + $0x790] sm:$0xff]
        %v560 = vld [vmem:[#allocation9 + $0x798] sm:$0xff]
        %v561 = vld [vmem:[#allocation9 + $0x7a0] sm:$0xff]
        %v562 = vld [vmem:[#allocation9 + $0x7a8] sm:$0xff]
        %v563 = vld [vmem:[#allocation9 + $0x7b0] sm:$0xff]
        %v564 = vld [vmem:[#allocation9 + $0x7b8] sm:$0xff]
        %v565 = vld [vmem:[#allocation9 + $0x7c0] sm:$0xff]
        %v566 = vld [vmem:[#allocation9 + $0x7c8] sm:$0xff]
        %v567 = vld [vmem:[#allocation9 + $0x7d0] sm:$0xff]
        %v568 = vld [vmem:[#allocation9 + $0x7d8] sm:$0xff]
        %v569 = vld [vmem:[#allocation9 + $0x7e0] sm:$0xff]
        %v570 = vld [vmem:[#allocation9 + $0x7e8] sm:$0xff]
        %v571 = vld [vmem:[#allocation9 + $0x7f0] sm:$0xff]
        %v572 = vld [vmem:[#allocation9 + $0x7f8] sm:$0xff]
        %v573 = vld [vmem:[#allocation9 + $0x800] sm:$0xff]
        %v574 = vld [vmem:[#allocation9 + $0x808] sm:$0xff]
        %v575 = vld [vmem:[#allocation9 + $0x810] sm:$0xff]
        %v576 = vld [vmem:[#allocation9 + $0x818] sm:$0xff]
        %v577 = vld [vmem:[#allocation9 + $0x820] sm:$0xff]
        %v578 = vld [vmem:[#allocation9 + $0x828] sm:$0xff]
        %v579 = vld [vmem:[#allocation9 + $0x830] sm:$0xff]
        %v580 = vld [vmem:[#allocation9 + $0x838] sm:$0xff]
        %v581 = vld [vmem:[#allocation9 + $0x840] sm:$0xff]
        %v582 = vld [vmem:[#allocation9 + $0x848] sm:$0xff]
        %v583 = vld [vmem:[#allocation9 + $0x850] sm:$0xff]
        %v584 = vld [vmem:[#allocation9 + $0x858] sm:$0xff]
        %v585 = vld [vmem:[#allocation9 + $0x860] sm:$0xff]
        %v586 = vld [vmem:[#allocation9 + $0x868] sm:$0xff]
        %v587 = vld [vmem:[#allocation9 + $0x870] sm:$0xff]
        %v588 = vld [vmem:[#allocation9 + $0x878] sm:$0xff]
        %v589 = vld [vmem:[#allocation9 + $0x880] sm:$0xff]
        %v590 = vld [vmem:[#allocation9 + $0x888] sm:$0xff]
        %v591 = vld [vmem:[#allocation9 + $0x890] sm:$0xff]
        %v592 = vld [vmem:[#allocation9 + $0x898] sm:$0xff]
        %v593 = vld [vmem:[#allocation9 + $0x8a0] sm:$0xff]
        %v594 = vld [vmem:[#allocation9 + $0x8a8] sm:$0xff]
        %v595 = vld [vmem:[#allocation9 + $0x8b0] sm:$0xff]
        %v596 = vld [vmem:[#allocation9 + $0x8b8] sm:$0xff]
        %v597 = vld [vmem:[#allocation9 + $0x8c0] sm:$0xff]
        %v598 = vld [vmem:[#allocation9 + $0x8c8] sm:$0xff]
        %v599 = vld [vmem:[#allocation9 + $0x8d0] sm:$0xff]
        %v600 = vld [vmem:[#allocation9 + $0x8d8] sm:$0xff]
        %v601 = vld [vmem:[#allocation9 + $0x8e0] sm:$0xff]
        %v602 = vld [vmem:[#allocation9 + $0x8e8] sm:$0xff]
        %v603 = vld [vmem:[#allocation9 + $0x8f0] sm:$0xff]
        %v604 = vld [vmem:[#allocation9 + $0x8f8] sm:$0xff]
        %v605 = vld [vmem:[#allocation9 + $0x900] sm:$0xff]
        %v606 = vld [vmem:[#allocation9 + $0x908] sm:$0xff]
        %v607 = vld [vmem:[#allocation9 + $0x910] sm:$0xff]
        %v608 = vld [vmem:[#allocation9 + $0x918] sm:$0xff]
        %v609 = vld [vmem:[#allocation9 + $0x920] sm:$0xff]
        %v610 = vld [vmem:[#allocation9 + $0x928] sm:$0xff]
        %v611 = vld [vmem:[#allocation9 + $0x930] sm:$0xff]
        %v612 = vld [vmem:[#allocation9 + $0x938] sm:$0xff]
        %v613 = vld [vmem:[#allocation9 + $0x940] sm:$0xff]
        %v614 = vld [vmem:[#allocation9 + $0x948] sm:$0xff]
        %v615 = vld [vmem:[#allocation9 + $0x950] sm:$0xff]
        %v616 = vld [vmem:[#allocation9 + $0x958] sm:$0xff]
        %v617 = vld [vmem:[#allocation9 + $0x960] sm:$0xff]
        %v618 = vld [vmem:[#allocation9 + $0x968] sm:$0xff]
        %v619 = vld [vmem:[#allocation9 + $0x970] sm:$0xff]
        %v620 = vld [vmem:[#allocation9 + $0x978] sm:$0xff]
        %v621 = vld [vmem:[#allocation9 + $0x980] sm:$0xff]
        %v622 = vld [vmem:[#allocation9 + $0x988] sm:$0xff]
        %v623 = vld [vmem:[#allocation9 + $0x990] sm:$0xff]
        %v624 = vld [vmem:[#allocation9 + $0x998] sm:$0xff]
        %v625 = vld [vmem:[#allocation9 + $0x9a0] sm:$0xff]
        %v626 = vld [vmem:[#allocation9 + $0x9a8] sm:$0xff]
        %v627 = vld [vmem:[#allocation9 + $0x9b0] sm:$0xff]
        %v628 = vld [vmem:[#allocation9 + $0x9b8] sm:$0xff]
        %v629 = vld [vmem:[#allocation9 + $0x9c0] sm:$0xff]
        %v630 = vld [vmem:[#allocation9 + $0x9c8] sm:$0xff]
        %v631 = vld [vmem:[#allocation9 + $0x9d0] sm:$0xff]
        %v632 = vld [vmem:[#allocation9 + $0x9d8] sm:$0xff]
        %v633 = vld [vmem:[#allocation9 + $0x9e0] sm:$0xff]
        %v634 = vld [vmem:[#allocation9 + $0x9e8] sm:$0xff]
        %v635 = vld [vmem:[#allocation9 + $0x9f0] sm:$0xff]
        %v636 = vld [vmem:[#allocation9 + $0x9f8] sm:$0xff]
        %v637 = vld [vmem:[#allocation9 + $0xa00] sm:$0xff]
        %v638 = vld [vmem:[#allocation9 + $0xa08] sm:$0xff]
        %v639 = vld [vmem:[#allocation9 + $0xa10] sm:$0xff]
        %v640 = vld [vmem:[#allocation9 + $0xa18] sm:$0xff]
        %v641 = vld [vmem:[#allocation9 + $0xa20] sm:$0xff]
        %v642 = vld [vmem:[#allocation9 + $0xa28] sm:$0xff]
        %v643 = vld [vmem:[#allocation9 + $0xa30] sm:$0xff]
        %v644 = vld [vmem:[#allocation9 + $0xa38] sm:$0xff]
        %v645 = vld [vmem:[#allocation9 + $0xa40] sm:$0xff]
        %v646 = vld [vmem:[#allocation9 + $0xa48] sm:$0xff]
        %v647 = vld [vmem:[#allocation9 + $0xa50] sm:$0xff]
        %v648 = vld [vmem:[#allocation9 + $0xa58] sm:$0xff]
        %v649 = vld [vmem:[#allocation9 + $0xa60] sm:$0xff]
        %v650 = vld [vmem:[#allocation9 + $0xa68] sm:$0xff]
        %v651 = vld [vmem:[#allocation9 + $0xa70] sm:$0xff]
        %v652 = vld [vmem:[#allocation9 + $0xa78] sm:$0xff]
        %v653 = vld [vmem:[#allocation9 + $0xa80] sm:$0xff]
        %v654 = vld [vmem:[#allocation9 + $0xa88] sm:$0xff]
        %v655 = vld [vmem:[#allocation9 + $0xa90] sm:$0xff]
        %v656 = vld [vmem:[#allocation9 + $0xa98] sm:$0xff]
        %v657 = vld [vmem:[#allocation9 + $0xaa0] sm:$0xff]
        %v658 = vld [vmem:[#allocation9 + $0xaa8] sm:$0xff]
        %v659 = vld [vmem:[#allocation9 + $0xab0] sm:$0xff]
        %v660 = vld [vmem:[#allocation9 + $0xab8] sm:$0xff]
        %v661 = vld [vmem:[#allocation9 + $0xac0] sm:$0xff]
        %v662 = vld [vmem:[#allocation9 + $0xac8] sm:$0xff]
        %v663 = vld [vmem:[#allocation9 + $0xad0] sm:$0xff]
        %v664 = vld [vmem:[#allocation9 + $0xad8] sm:$0xff]
        %v665 = vld [vmem:[#allocation9 + $0xae0] sm:$0xff]
        %v666 = vld [vmem:[#allocation9 + $0xae8] sm:$0xff]
        %v667 = vld [vmem:[#allocation9 + $0xaf0] sm:$0xff]
        %v668 = vld [vmem:[#allocation9 + $0xaf8] sm:$0xff]
        %v669 = vld [vmem:[#allocation9 + $0xb00] sm:$0xff]
        %v670 = vld [vmem:[#allocation9 + $0xb08] sm:$0xff]
        %v671 = vld [vmem:[#allocation9 + $0xb10] sm:$0xff]
        %v672 = vld [vmem:[#allocation9 + $0xb18] sm:$0xff]
        %v673 = vld [vmem:[#allocation9 + $0xb20] sm:$0xff]
        %v674 = vld [vmem:[#allocation9 + $0xb28] sm:$0xff]
        %v675 = vld [vmem:[#allocation9 + $0xb30] sm:$0xff]
        %v676 = vld [vmem:[#allocation9 + $0xb38] sm:$0xff]
        %v677 = vld [vmem:[#allocation9 + $0xb40] sm:$0xff]
        %v678 = vld [vmem:[#allocation9 + $0xb48] sm:$0xff]
        %v679 = vld [vmem:[#allocation9 + $0xb50] sm:$0xff]
        %v680 = vld [vmem:[#allocation9 + $0xb58] sm:$0xff]
        %v681 = vld [vmem:[#allocation9 + $0xb60] sm:$0xff]
        %v682 = vld [vmem:[#allocation9 + $0xb68] sm:$0xff]
        %v683 = vld [vmem:[#allocation9 + $0xb70] sm:$0xff]
        %v684 = vld [vmem:[#allocation9 + $0xb78] sm:$0xff]
        %v685 = vld [vmem:[#allocation9 + $0xb80] sm:$0xff]
        %v686 = vld [vmem:[#allocation9 + $0xb88] sm:$0xff]
        %v687 = vld [vmem:[#allocation9 + $0xb90] sm:$0xff]
        %v688 = vld [vmem:[#allocation9 + $0xb98] sm:$0xff]
        %v689 = vld [vmem:[#allocation9 + $0xba0] sm:$0xff]
        %v690 = vld [vmem:[#allocation9 + $0xba8] sm:$0xff]
        %v691 = vld [vmem:[#allocation9 + $0xbb0] sm:$0xff]
        %v692 = vld [vmem:[#allocation9 + $0xbb8] sm:$0xff]
        %v693 = vld [vmem:[#allocation9 + $0xbc0] sm:$0xff]
        %v694 = vld [vmem:[#allocation9 + $0xbc8] sm:$0xff]
        %v695 = vld [vmem:[#allocation9 + $0xbd0] sm:$0xff]
        %v696 = vld [vmem:[#allocation9 + $0xbd8] sm:$0xff]
        %v697 = vld [vmem:[#allocation9 + $0xbe0] sm:$0xff]
        %v698 = vld [vmem:[#allocation9 + $0xbe8] sm:$0xff]
        %v699 = vld [vmem:[#allocation9 + $0xbf0] sm:$0xff]
        %v700 = vld [vmem:[#allocation9 + $0xbf8] sm:$0xff]
        %v701 = vld [vmem:[#allocation9 + $0xc00] sm:$0xff]
        %v702 = vld [vmem:[#allocation9 + $0xc08] sm:$0xff]
        %v703 = vld [vmem:[#allocation9 + $0xc10] sm:$0xff]
        %v704 = vld [vmem:[#allocation9 + $0xc18] sm:$0xff]
        %v705 = vld [vmem:[#allocation9 + $0xc20] sm:$0xff]
        %v706 = vld [vmem:[#allocation9 + $0xc28] sm:$0xff]
        %v707 = vld [vmem:[#allocation9 + $0xc30] sm:$0xff]
        %v708 = vld [vmem:[#allocation9 + $0xc38] sm:$0xff]
        %v709 = vld [vmem:[#allocation9 + $0xc40] sm:$0xff]
        %v710 = vld [vmem:[#allocation9 + $0xc48] sm:$0xff]
        %v711 = vld [vmem:[#allocation9 + $0xc50] sm:$0xff]
        %v712 = vld [vmem:[#allocation9 + $0xc58] sm:$0xff]
        %v713 = vld [vmem:[#allocation9 + $0xc60] sm:$0xff]
        %v714 = vld [vmem:[#allocation9 + $0xc68] sm:$0xff]
        %v715 = vld [vmem:[#allocation9 + $0xc70] sm:$0xff]
        %v716 = vld [vmem:[#allocation9 + $0xc78] sm:$0xff]
        %v717 = vld [vmem:[#allocation9 + $0xc80] sm:$0xff]
        %v718 = vld [vmem:[#allocation9 + $0xc88] sm:$0xff]
        %v719 = vld [vmem:[#allocation9 + $0xc90] sm:$0xff]
        %v720 = vld [vmem:[#allocation9 + $0xc98] sm:$0xff]
        %v721 = vld [vmem:[#allocation9 + $0xca0] sm:$0xff]
        %v722 = vld [vmem:[#allocation9 + $0xca8] sm:$0xff]
        %v723 = vld [vmem:[#allocation9 + $0xcb0] sm:$0xff]
        %v724 = vld [vmem:[#allocation9 + $0xcb8] sm:$0xff]
        %v725 = vld [vmem:[#allocation9 + $0xcc0] sm:$0xff]
        %v726 = vld [vmem:[#allocation9 + $0xcc8] sm:$0xff]
        %v727 = vld [vmem:[#allocation9 + $0xcd0] sm:$0xff]
        %v728 = vld [vmem:[#allocation9 + $0xcd8] sm:$0xff]
        %v729 = vld [vmem:[#allocation9 + $0xce0] sm:$0xff]
        %v730 = vld [vmem:[#allocation9 + $0xce8] sm:$0xff]
        %v731 = vld [vmem:[#allocation9 + $0xcf0] sm:$0xff]
        %v732 = vld [vmem:[#allocation9 + $0xcf8] sm:$0xff]
        %v733 = vld [vmem:[#allocation9 + $0xd00] sm:$0xff]
        %v734 = vld [vmem:[#allocation9 + $0xd08] sm:$0xff]
        %v735 = vld [vmem:[#allocation9 + $0xd10] sm:$0xff]
        %v736 = vld [vmem:[#allocation9 + $0xd18] sm:$0xff]
        %v737 = vld [vmem:[#allocation9 + $0xd20] sm:$0xff]
        %v738 = vld [vmem:[#allocation9 + $0xd28] sm:$0xff]
        %v739 = vld [vmem:[#allocation9 + $0xd30] sm:$0xff]
        %v740 = vld [vmem:[#allocation9 + $0xd38] sm:$0xff]
        %v741 = vld [vmem:[#allocation9 + $0xd40] sm:$0xff]
        %v742 = vld [vmem:[#allocation9 + $0xd48] sm:$0xff]
        %v743 = vld [vmem:[#allocation9 + $0xd50] sm:$0xff]
        %v744 = vld [vmem:[#allocation9 + $0xd58] sm:$0xff]
        %v745 = vld [vmem:[#allocation9 + $0xd60] sm:$0xff]
        %v746 = vld [vmem:[#allocation9 + $0xd68] sm:$0xff]
        %v747 = vld [vmem:[#allocation9 + $0xd70] sm:$0xff]
        %v748 = vld [vmem:[#allocation9 + $0xd78] sm:$0xff]
        %v749 = vld [vmem:[#allocation9 + $0xd80] sm:$0xff]
        %v750 = vld [vmem:[#allocation9 + $0xd88] sm:$0xff]
        %v751 = vld [vmem:[#allocation9 + $0xd90] sm:$0xff]
        %v752 = vld [vmem:[#allocation9 + $0xd98] sm:$0xff]
        %v753 = vld [vmem:[#allocation9 + $0xda0] sm:$0xff]
        %v754 = vld [vmem:[#allocation9 + $0xda8] sm:$0xff]
        %v755 = vld [vmem:[#allocation9 + $0xdb0] sm:$0xff]
        %v756 = vld [vmem:[#allocation9 + $0xdb8] sm:$0xff]
        %v757 = vld [vmem:[#allocation9 + $0xdc0] sm:$0xff]
        %v758 = vld [vmem:[#allocation9 + $0xdc8] sm:$0xff]
        %v759 = vld [vmem:[#allocation9 + $0xdd0] sm:$0xff]
        %v760 = vld [vmem:[#allocation9 + $0xdd8] sm:$0xff]
        %v761 = vld [vmem:[#allocation9 + $0xde0] sm:$0xff]
        %v762 = vld [vmem:[#allocation9 + $0xde8] sm:$0xff]
        %v763 = vld [vmem:[#allocation9 + $0xdf0] sm:$0xff]
        %v764 = vld [vmem:[#allocation9 + $0xdf8] sm:$0xff]
        %v765 = vld [vmem:[#allocation9 + $0xe00] sm:$0xff]
        %v766 = vld [vmem:[#allocation9 + $0xe08] sm:$0xff]
        %v767 = vld [vmem:[#allocation9 + $0xe10] sm:$0xff]
        %v768 = vld [vmem:[#allocation9 + $0xe18] sm:$0xff]
        %v769 = vld [vmem:[#allocation9 + $0xe20] sm:$0xff]
        %v770 = vld [vmem:[#allocation9 + $0xe28] sm:$0xff]
        %v771 = vld [vmem:[#allocation9 + $0xe30] sm:$0xff]
        %v772 = vld [vmem:[#allocation9 + $0xe38] sm:$0xff]
        %v773 = vld [vmem:[#allocation9 + $0xe40] sm:$0xff]
        %v774 = vld [vmem:[#allocation9 + $0xe48] sm:$0xff]
        %v775 = vld [vmem:[#allocation9 + $0xe50] sm:$0xff]
        %v776 = vld [vmem:[#allocation9 + $0xe58] sm:$0xff]
        %v777 = vld [vmem:[#allocation9 + $0xe60] sm:$0xff]
        %v778 = vld [vmem:[#allocation9 + $0xe68] sm:$0xff]
        %v779 = vld [vmem:[#allocation9 + $0xe70] sm:$0xff]
        %v780 = vld [vmem:[#allocation9 + $0xe78] sm:$0xff]
        %v781 = vld [vmem:[#allocation9 + $0xe80] sm:$0xff]
        %v782 = vld [vmem:[#allocation9 + $0xe88] sm:$0xff]
        %v783 = vld [vmem:[#allocation9 + $0xe90] sm:$0xff]
        %v784 = vld [vmem:[#allocation9 + $0xe98] sm:$0xff]
        %v785 = vld [vmem:[#allocation9 + $0xea0] sm:$0xff]
        %v786 = vld [vmem:[#allocation9 + $0xea8] sm:$0xff]
        %v787 = vld [vmem:[#allocation9 + $0xeb0] sm:$0xff]
        %v788 = vld [vmem:[#allocation9 + $0xeb8] sm:$0xff]
        %v789 = vld [vmem:[#allocation9 + $0xec0] sm:$0xff]
        %v790 = vld [vmem:[#allocation9 + $0xec8] sm:$0xff]
        %v791 = vld [vmem:[#allocation9 + $0xed0] sm:$0xff]
        %v792 = vld [vmem:[#allocation9 + $0xed8] sm:$0xff]
        %v793 = vld [vmem:[#allocation9 + $0xee0] sm:$0xff]
        %v794 = vld [vmem:[#allocation9 + $0xee8] sm:$0xff]
        %v795 = vld [vmem:[#allocation9 + $0xef0] sm:$0xff]
        %v796 = vld [vmem:[#allocation9 + $0xef8] sm:$0xff]
        %v797 = vld [vmem:[#allocation9 + $0xf00] sm:$0xff]
        %v798 = vld [vmem:[#allocation9 + $0xf08] sm:$0xff]
        %v799 = vld [vmem:[#allocation9 + $0xf10] sm:$0xff]
        %v800 = vld [vmem:[#allocation9 + $0xf18] sm:$0xff]
        %v801 = vld [vmem:[#allocation9 + $0xf20] sm:$0xff]
        %v802 = vld [vmem:[#allocation9 + $0xf28] sm:$0xff]
        %v803 = vld [vmem:[#allocation9 + $0xf30] sm:$0xff]
        %v804 = vld [vmem:[#allocation9 + $0xf38] sm:$0xff]
        %v805 = vld [vmem:[#allocation9 + $0xf40] sm:$0xff]
        %v806 = vld [vmem:[#allocation9 + $0xf48] sm:$0xff]
        %v807 = vld [vmem:[#allocation9 + $0xf50] sm:$0xff]
        %v808 = vld [vmem:[#allocation9 + $0xf58] sm:$0xff]
        %v809 = vld [vmem:[#allocation9 + $0xf60] sm:$0xff]
        %v810 = vld [vmem:[#allocation9 + $0xf68] sm:$0xff]
        %v811 = vld [vmem:[#allocation9 + $0xf70] sm:$0xff]
        %v812 = vld [vmem:[#allocation9 + $0xf78] sm:$0xff]
        %v813 = vld [vmem:[#allocation9 + $0xf80] sm:$0xff]
        %v814 = vld [vmem:[#allocation9 + $0xf88] sm:$0xff]
        %v815 = vld [vmem:[#allocation9 + $0xf90] sm:$0xff]
        %v816 = vld [vmem:[#allocation9 + $0xf98] sm:$0xff]
        %v817 = vld [vmem:[#allocation9 + $0xfa0] sm:$0xff]
        %v818 = vld [vmem:[#allocation9 + $0xfa8] sm:$0xff]
        %v819 = vld [vmem:[#allocation9 + $0xfb0] sm:$0xff]
        %v820 = vld [vmem:[#allocation9 + $0xfb8] sm:$0xff]
        %v821 = vld [vmem:[#allocation9 + $0xfc0] sm:$0xff]
        %v822 = vld [vmem:[#allocation9 + $0xfc8] sm:$0xff]
        %v823 = vld [vmem:[#allocation9 + $0xfd0] sm:$0xff]
        %v824 = vld [vmem:[#allocation9 + $0xfd8] sm:$0xff]
        %v825 = vld [vmem:[#allocation9 + $0xfe0] sm:$0xff]
        %v826 = vld [vmem:[#allocation9 + $0xfe8] sm:$0xff]
        %v827 = vld [vmem:[#allocation9 + $0xff0] sm:$0xff]
        %v828 = vld [vmem:[#allocation9 + $0xff8] sm:$0xff]
        %v1341 = vunpack.c.l.b16 %v317
        %v1342 = vunpack.c.h.b16 %v317
        %v1343 = vunpack.c.l.b16 %v318
        %v1344 = vunpack.c.h.b16 %v318
        %v1345 = vunpack.c.l.b16 %v319
        %v1346 = vunpack.c.h.b16 %v319
        %v1347 = vunpack.c.l.b16 %v320
        %v1348 = vunpack.c.h.b16 %v320
        %v1349 = vunpack.c.l.b16 %v321
        %v1350 = vunpack.c.h.b16 %v321
        %v1351 = vunpack.c.l.b16 %v322
        %v1352 = vunpack.c.h.b16 %v322
        %v1353 = vunpack.c.l.b16 %v323
        %v1354 = vunpack.c.h.b16 %v323
        %v1355 = vunpack.c.l.b16 %v324
        %v1356 = vunpack.c.h.b16 %v324
        %v1357 = vunpack.c.l.b16 %v325
        %v1358 = vunpack.c.h.b16 %v325
        %v1359 = vunpack.c.l.b16 %v326
        %v1360 = vunpack.c.h.b16 %v326
        %v1361 = vunpack.c.l.b16 %v327
        %v1362 = vunpack.c.h.b16 %v327
        %v1363 = vunpack.c.l.b16 %v328
        %v1364 = vunpack.c.h.b16 %v328
        %v1365 = vunpack.c.l.b16 %v329
        %v1366 = vunpack.c.h.b16 %v329
        %v1367 = vunpack.c.l.b16 %v330
        %v1368 = vunpack.c.h.b16 %v330
        %v1369 = vunpack.c.l.b16 %v331
        %v1370 = vunpack.c.h.b16 %v331
        %v1371 = vunpack.c.l.b16 %v332
        %v1372 = vunpack.c.h.b16 %v332
        %v1373 = vunpack.c.l.b16 %v333
        %v1374 = vunpack.c.h.b16 %v333
        %v1375 = vunpack.c.l.b16 %v334
        %v1376 = vunpack.c.h.b16 %v334
        %v1377 = vunpack.c.l.b16 %v335
        %v1378 = vunpack.c.h.b16 %v335
        %v1379 = vunpack.c.l.b16 %v336
        %v1380 = vunpack.c.h.b16 %v336
        %v1381 = vunpack.c.l.b16 %v337
        %v1382 = vunpack.c.h.b16 %v337
        %v1383 = vunpack.c.l.b16 %v338
        %v1384 = vunpack.c.h.b16 %v338
        %v1385 = vunpack.c.l.b16 %v339
        %v1386 = vunpack.c.h.b16 %v339
        %v1387 = vunpack.c.l.b16 %v340
        %v1388 = vunpack.c.h.b16 %v340
        %v1389 = vunpack.c.l.b16 %v341
        %v1390 = vunpack.c.h.b16 %v341
        %v1391 = vunpack.c.l.b16 %v342
        %v1392 = vunpack.c.h.b16 %v342
        %v1393 = vunpack.c.l.b16 %v343
        %v1394 = vunpack.c.h.b16 %v343
        %v1395 = vunpack.c.l.b16 %v344
        %v1396 = vunpack.c.h.b16 %v344
        %v1397 = vunpack.c.l.b16 %v345
        %v1398 = vunpack.c.h.b16 %v345
        %v1399 = vunpack.c.l.b16 %v346
        %v1400 = vunpack.c.h.b16 %v346
        %v1401 = vunpack.c.l.b16 %v347
        %v1402 = vunpack.c.h.b16 %v347
        %v1403 = vunpack.c.l.b16 %v348
        %v1404 = vunpack.c.h.b16 %v348
        %v1405 = vunpack.c.l.b16 %v349
        %v1406 = vunpack.c.h.b16 %v349
        %v1407 = vunpack.c.l.b16 %v350
        %v1408 = vunpack.c.h.b16 %v350
        %v1409 = vunpack.c.l.b16 %v351
        %v1410 = vunpack.c.h.b16 %v351
        %v1411 = vunpack.c.l.b16 %v352
        %v1412 = vunpack.c.h.b16 %v352
        %v1413 = vunpack.c.l.b16 %v353
        %v1414 = vunpack.c.h.b16 %v353
        %v1415 = vunpack.c.l.b16 %v354
        %v1416 = vunpack.c.h.b16 %v354
        %v1417 = vunpack.c.l.b16 %v355
        %v1418 = vunpack.c.h.b16 %v355
        %v1419 = vunpack.c.l.b16 %v356
        %v1420 = vunpack.c.h.b16 %v356
        %v1421 = vunpack.c.l.b16 %v357
        %v1422 = vunpack.c.h.b16 %v357
        %v1423 = vunpack.c.l.b16 %v358
        %v1424 = vunpack.c.h.b16 %v358
        %v1425 = vunpack.c.l.b16 %v359
        %v1426 = vunpack.c.h.b16 %v359
        %v1427 = vunpack.c.l.b16 %v360
        %v1428 = vunpack.c.h.b16 %v360
        %v1429 = vunpack.c.l.b16 %v361
        %v1430 = vunpack.c.h.b16 %v361
        %v1431 = vunpack.c.l.b16 %v362
        %v1432 = vunpack.c.h.b16 %v362
        %v1433 = vunpack.c.l.b16 %v363
        %v1434 = vunpack.c.h.b16 %v363
        %v1435 = vunpack.c.l.b16 %v364
        %v1436 = vunpack.c.h.b16 %v364
        %v1437 = vunpack.c.l.b16 %v365
        %v1438 = vunpack.c.h.b16 %v365
        %v1439 = vunpack.c.l.b16 %v366
        %v1440 = vunpack.c.h.b16 %v366
        %v1441 = vunpack.c.l.b16 %v367
        %v1442 = vunpack.c.h.b16 %v367
        %v1443 = vunpack.c.l.b16 %v368
        %v1444 = vunpack.c.h.b16 %v368
        %v1445 = vunpack.c.l.b16 %v369
        %v1446 = vunpack.c.h.b16 %v369
        %v1447 = vunpack.c.l.b16 %v370
        %v1448 = vunpack.c.h.b16 %v370
        %v1449 = vunpack.c.l.b16 %v371
        %v1450 = vunpack.c.h.b16 %v371
        %v1451 = vunpack.c.l.b16 %v372
        %v1452 = vunpack.c.h.b16 %v372
        %v1453 = vunpack.c.l.b16 %v373
        %v1454 = vunpack.c.h.b16 %v373
        %v1455 = vunpack.c.l.b16 %v374
        %v1456 = vunpack.c.h.b16 %v374
        %v1457 = vunpack.c.l.b16 %v375
        %v1458 = vunpack.c.h.b16 %v375
        %v1459 = vunpack.c.l.b16 %v376
        %v1460 = vunpack.c.h.b16 %v376
        %v1461 = vunpack.c.l.b16 %v377
        %v1462 = vunpack.c.h.b16 %v377
        %v1463 = vunpack.c.l.b16 %v378
        %v1464 = vunpack.c.h.b16 %v378
        %v1465 = vunpack.c.l.b16 %v379
        %v1466 = vunpack.c.h.b16 %v379
        %v1467 = vunpack.c.l.b16 %v380
        %v1468 = vunpack.c.h.b16 %v380
        %v1469 = vunpack.c.l.b16 %v381
        %v1470 = vunpack.c.h.b16 %v381
        %v1471 = vunpack.c.l.b16 %v382
        %v1472 = vunpack.c.h.b16 %v382
        %v1473 = vunpack.c.l.b16 %v383
        %v1474 = vunpack.c.h.b16 %v383
        %v1475 = vunpack.c.l.b16 %v384
        %v1476 = vunpack.c.h.b16 %v384
        %v1477 = vunpack.c.l.b16 %v385
        %v1478 = vunpack.c.h.b16 %v385
        %v1479 = vunpack.c.l.b16 %v386
        %v1480 = vunpack.c.h.b16 %v386
        %v1481 = vunpack.c.l.b16 %v387
        %v1482 = vunpack.c.h.b16 %v387
        %v1483 = vunpack.c.l.b16 %v388
        %v1484 = vunpack.c.h.b16 %v388
        %v1485 = vunpack.c.l.b16 %v389
        %v1486 = vunpack.c.h.b16 %v389
        %v1487 = vunpack.c.l.b16 %v390
        %v1488 = vunpack.c.h.b16 %v390
        %v1489 = vunpack.c.l.b16 %v391
        %v1490 = vunpack.c.h.b16 %v391
        %v1491 = vunpack.c.l.b16 %v392
        %v1492 = vunpack.c.h.b16 %v392
        %v1493 = vunpack.c.l.b16 %v393
        %v1494 = vunpack.c.h.b16 %v393
        %v1495 = vunpack.c.l.b16 %v394
        %v1496 = vunpack.c.h.b16 %v394
        %v1497 = vunpack.c.l.b16 %v395
        %v1498 = vunpack.c.h.b16 %v395
        %v1499 = vunpack.c.l.b16 %v396
        %v1500 = vunpack.c.h.b16 %v396
        %v1501 = vunpack.c.l.b16 %v397
        %v1502 = vunpack.c.h.b16 %v397
        %v1503 = vunpack.c.l.b16 %v398
        %v1504 = vunpack.c.h.b16 %v398
        %v1505 = vunpack.c.l.b16 %v399
        %v1506 = vunpack.c.h.b16 %v399
        %v1507 = vunpack.c.l.b16 %v400
        %v1508 = vunpack.c.h.b16 %v400
        %v1509 = vunpack.c.l.b16 %v401
        %v1510 = vunpack.c.h.b16 %v401
        %v1511 = vunpack.c.l.b16 %v402
        %v1512 = vunpack.c.h.b16 %v402
        %v1513 = vunpack.c.l.b16 %v403
        %v1514 = vunpack.c.h.b16 %v403
        %v1515 = vunpack.c.l.b16 %v404
        %v1516 = vunpack.c.h.b16 %v404
        %v1517 = vunpack.c.l.b16 %v405
        %v1518 = vunpack.c.h.b16 %v405
        %v1519 = vunpack.c.l.b16 %v406
        %v1520 = vunpack.c.h.b16 %v406
        %v1521 = vunpack.c.l.b16 %v407
        %v1522 = vunpack.c.h.b16 %v407
        %v1523 = vunpack.c.l.b16 %v408
        %v1524 = vunpack.c.h.b16 %v408
        %v1525 = vunpack.c.l.b16 %v409
        %v1526 = vunpack.c.h.b16 %v409
        %v1527 = vunpack.c.l.b16 %v410
        %v1528 = vunpack.c.h.b16 %v410
        %v1529 = vunpack.c.l.b16 %v411
        %v1530 = vunpack.c.h.b16 %v411
        %v1531 = vunpack.c.l.b16 %v412
        %v1532 = vunpack.c.h.b16 %v412
        %v1533 = vunpack.c.l.b16 %v413
        %v1534 = vunpack.c.h.b16 %v413
        %v1535 = vunpack.c.l.b16 %v414
        %v1536 = vunpack.c.h.b16 %v414
        %v1537 = vunpack.c.l.b16 %v415
        %v1538 = vunpack.c.h.b16 %v415
        %v1539 = vunpack.c.l.b16 %v416
        %v1540 = vunpack.c.h.b16 %v416
        %v1541 = vunpack.c.l.b16 %v417
        %v1542 = vunpack.c.h.b16 %v417
        %v1543 = vunpack.c.l.b16 %v418
        %v1544 = vunpack.c.h.b16 %v418
        %v1545 = vunpack.c.l.b16 %v419
        %v1546 = vunpack.c.h.b16 %v419
        %v1547 = vunpack.c.l.b16 %v420
        %v1548 = vunpack.c.h.b16 %v420
        %v1549 = vunpack.c.l.b16 %v421
        %v1550 = vunpack.c.h.b16 %v421
        %v1551 = vunpack.c.l.b16 %v422
        %v1552 = vunpack.c.h.b16 %v422
        %v1553 = vunpack.c.l.b16 %v423
        %v1554 = vunpack.c.h.b16 %v423
        %v1555 = vunpack.c.l.b16 %v424
        %v1556 = vunpack.c.h.b16 %v424
        %v1557 = vunpack.c.l.b16 %v425
        %v1558 = vunpack.c.h.b16 %v425
        %v1559 = vunpack.c.l.b16 %v426
        %v1560 = vunpack.c.h.b16 %v426
        %v1561 = vunpack.c.l.b16 %v427
        %v1562 = vunpack.c.h.b16 %v427
        %v1563 = vunpack.c.l.b16 %v428
        %v1564 = vunpack.c.h.b16 %v428
        %v1565 = vunpack.c.l.b16 %v429
        %v1566 = vunpack.c.h.b16 %v429
        %v1567 = vunpack.c.l.b16 %v430
        %v1568 = vunpack.c.h.b16 %v430
        %v1569 = vunpack.c.l.b16 %v431
        %v1570 = vunpack.c.h.b16 %v431
        %v1571 = vunpack.c.l.b16 %v432
        %v1572 = vunpack.c.h.b16 %v432
        %v1573 = vunpack.c.l.b16 %v433
        %v1574 = vunpack.c.h.b16 %v433
        %v1575 = vunpack.c.l.b16 %v434
        %v1576 = vunpack.c.h.b16 %v434
        %v1577 = vunpack.c.l.b16 %v435
        %v1578 = vunpack.c.h.b16 %v435
        %v1579 = vunpack.c.l.b16 %v436
        %v1580 = vunpack.c.h.b16 %v436
        %v1581 = vunpack.c.l.b16 %v437
        %v1582 = vunpack.c.h.b16 %v437
        %v1583 = vunpack.c.l.b16 %v438
        %v1584 = vunpack.c.h.b16 %v438
        %v1585 = vunpack.c.l.b16 %v439
        %v1586 = vunpack.c.h.b16 %v439
        %v1587 = vunpack.c.l.b16 %v440
        %v1588 = vunpack.c.h.b16 %v440
        %v1589 = vunpack.c.l.b16 %v441
        %v1590 = vunpack.c.h.b16 %v441
        %v1591 = vunpack.c.l.b16 %v442
        %v1592 = vunpack.c.h.b16 %v442
        %v1593 = vunpack.c.l.b16 %v443
        %v1594 = vunpack.c.h.b16 %v443
        %v1595 = vunpack.c.l.b16 %v444
        %v1596 = vunpack.c.h.b16 %v444
        %v1597 = vunpack.c.l.b16 %v445
        %v1598 = vunpack.c.h.b16 %v445
        %v1599 = vunpack.c.l.b16 %v446
        %v1600 = vunpack.c.h.b16 %v446
        %v1601 = vunpack.c.l.b16 %v447
        %v1602 = vunpack.c.h.b16 %v447
        %v1603 = vunpack.c.l.b16 %v448
        %v1604 = vunpack.c.h.b16 %v448
        %v1605 = vunpack.c.l.b16 %v449
        %v1606 = vunpack.c.h.b16 %v449
        %v1607 = vunpack.c.l.b16 %v450
        %v1608 = vunpack.c.h.b16 %v450
        %v1609 = vunpack.c.l.b16 %v451
        %v1610 = vunpack.c.h.b16 %v451
        %v1611 = vunpack.c.l.b16 %v452
        %v1612 = vunpack.c.h.b16 %v452
        %v1613 = vunpack.c.l.b16 %v453
        %v1614 = vunpack.c.h.b16 %v453
        %v1615 = vunpack.c.l.b16 %v454
        %v1616 = vunpack.c.h.b16 %v454
        %v1617 = vunpack.c.l.b16 %v455
        %v1618 = vunpack.c.h.b16 %v455
        %v1619 = vunpack.c.l.b16 %v456
        %v1620 = vunpack.c.h.b16 %v456
        %v1621 = vunpack.c.l.b16 %v457
        %v1622 = vunpack.c.h.b16 %v457
        %v1623 = vunpack.c.l.b16 %v458
        %v1624 = vunpack.c.h.b16 %v458
        %v1625 = vunpack.c.l.b16 %v459
        %v1626 = vunpack.c.h.b16 %v459
        %v1627 = vunpack.c.l.b16 %v460
        %v1628 = vunpack.c.h.b16 %v460
        %v1629 = vunpack.c.l.b16 %v461
        %v1630 = vunpack.c.h.b16 %v461
        %v1631 = vunpack.c.l.b16 %v462
        %v1632 = vunpack.c.h.b16 %v462
        %v1633 = vunpack.c.l.b16 %v463
        %v1634 = vunpack.c.h.b16 %v463
        %v1635 = vunpack.c.l.b16 %v464
        %v1636 = vunpack.c.h.b16 %v464
        %v1637 = vunpack.c.l.b16 %v465
        %v1638 = vunpack.c.h.b16 %v465
        %v1639 = vunpack.c.l.b16 %v466
        %v1640 = vunpack.c.h.b16 %v466
        %v1641 = vunpack.c.l.b16 %v467
        %v1642 = vunpack.c.h.b16 %v467
        %v1643 = vunpack.c.l.b16 %v468
        %v1644 = vunpack.c.h.b16 %v468
        %v1645 = vunpack.c.l.b16 %v469
        %v1646 = vunpack.c.h.b16 %v469
        %v1647 = vunpack.c.l.b16 %v470
        %v1648 = vunpack.c.h.b16 %v470
        %v1649 = vunpack.c.l.b16 %v471
        %v1650 = vunpack.c.h.b16 %v471
        %v1651 = vunpack.c.l.b16 %v472
        %v1652 = vunpack.c.h.b16 %v472
        %v1653 = vunpack.c.l.b16 %v473
        %v1654 = vunpack.c.h.b16 %v473
        %v1655 = vunpack.c.l.b16 %v474
        %v1656 = vunpack.c.h.b16 %v474
        %v1657 = vunpack.c.l.b16 %v475
        %v1658 = vunpack.c.h.b16 %v475
        %v1659 = vunpack.c.l.b16 %v476
        %v1660 = vunpack.c.h.b16 %v476
        %v1661 = vunpack.c.l.b16 %v477
        %v1662 = vunpack.c.h.b16 %v477
        %v1663 = vunpack.c.l.b16 %v478
        %v1664 = vunpack.c.h.b16 %v478
        %v1665 = vunpack.c.l.b16 %v479
        %v1666 = vunpack.c.h.b16 %v479
        %v1667 = vunpack.c.l.b16 %v480
        %v1668 = vunpack.c.h.b16 %v480
        %v1669 = vunpack.c.l.b16 %v481
        %v1670 = vunpack.c.h.b16 %v481
        %v1671 = vunpack.c.l.b16 %v482
        %v1672 = vunpack.c.h.b16 %v482
        %v1673 = vunpack.c.l.b16 %v483
        %v1674 = vunpack.c.h.b16 %v483
        %v1675 = vunpack.c.l.b16 %v484
        %v1676 = vunpack.c.h.b16 %v484
        %v1677 = vunpack.c.l.b16 %v485
        %v1678 = vunpack.c.h.b16 %v485
        %v1679 = vunpack.c.l.b16 %v486
        %v1680 = vunpack.c.h.b16 %v486
        %v1681 = vunpack.c.l.b16 %v487
        %v1682 = vunpack.c.h.b16 %v487
        %v1683 = vunpack.c.l.b16 %v488
        %v1684 = vunpack.c.h.b16 %v488
        %v1685 = vunpack.c.l.b16 %v489
        %v1686 = vunpack.c.h.b16 %v489
        %v1687 = vunpack.c.l.b16 %v490
        %v1688 = vunpack.c.h.b16 %v490
        %v1689 = vunpack.c.l.b16 %v491
        %v1690 = vunpack.c.h.b16 %v491
        %v1691 = vunpack.c.l.b16 %v492
        %v1692 = vunpack.c.h.b16 %v492
        %v1693 = vunpack.c.l.b16 %v493
        %v1694 = vunpack.c.h.b16 %v493
        %v1695 = vunpack.c.l.b16 %v494
        %v1696 = vunpack.c.h.b16 %v494
        %v1697 = vunpack.c.l.b16 %v495
        %v1698 = vunpack.c.h.b16 %v495
        %v1699 = vunpack.c.l.b16 %v496
        %v1700 = vunpack.c.h.b16 %v496
        %v1701 = vunpack.c.l.b16 %v497
        %v1702 = vunpack.c.h.b16 %v497
        %v1703 = vunpack.c.l.b16 %v498
        %v1704 = vunpack.c.h.b16 %v498
        %v1705 = vunpack.c.l.b16 %v499
        %v1706 = vunpack.c.h.b16 %v499
        %v1707 = vunpack.c.l.b16 %v500
        %v1708 = vunpack.c.h.b16 %v500
        %v1709 = vunpack.c.l.b16 %v501
        %v1710 = vunpack.c.h.b16 %v501
        %v1711 = vunpack.c.l.b16 %v502
        %v1712 = vunpack.c.h.b16 %v502
        %v1713 = vunpack.c.l.b16 %v503
        %v1714 = vunpack.c.h.b16 %v503
        %v1715 = vunpack.c.l.b16 %v504
        %v1716 = vunpack.c.h.b16 %v504
        %v1717 = vunpack.c.l.b16 %v505
        %v1718 = vunpack.c.h.b16 %v505
        %v1719 = vunpack.c.l.b16 %v506
        %v1720 = vunpack.c.h.b16 %v506
        %v1721 = vunpack.c.l.b16 %v507
        %v1722 = vunpack.c.h.b16 %v507
        %v1723 = vunpack.c.l.b16 %v508
        %v1724 = vunpack.c.h.b16 %v508
        %v1725 = vunpack.c.l.b16 %v509
        %v1726 = vunpack.c.h.b16 %v509
        %v1727 = vunpack.c.l.b16 %v510
        %v1728 = vunpack.c.h.b16 %v510
        %v1729 = vunpack.c.l.b16 %v511
        %v1730 = vunpack.c.h.b16 %v511
        %v1731 = vunpack.c.l.b16 %v512
        %v1732 = vunpack.c.h.b16 %v512
        %v1733 = vunpack.c.l.b16 %v513
        %v1734 = vunpack.c.h.b16 %v513
        %v1735 = vunpack.c.l.b16 %v514
        %v1736 = vunpack.c.h.b16 %v514
        %v1737 = vunpack.c.l.b16 %v515
        %v1738 = vunpack.c.h.b16 %v515
        %v1739 = vunpack.c.l.b16 %v516
        %v1740 = vunpack.c.h.b16 %v516
        %v1741 = vunpack.c.l.b16 %v517
        %v1742 = vunpack.c.h.b16 %v517
        %v1743 = vunpack.c.l.b16 %v518
        %v1744 = vunpack.c.h.b16 %v518
        %v1745 = vunpack.c.l.b16 %v519
        %v1746 = vunpack.c.h.b16 %v519
        %v1747 = vunpack.c.l.b16 %v520
        %v1748 = vunpack.c.h.b16 %v520
        %v1749 = vunpack.c.l.b16 %v521
        %v1750 = vunpack.c.h.b16 %v521
        %v1751 = vunpack.c.l.b16 %v522
        %v1752 = vunpack.c.h.b16 %v522
        %v1753 = vunpack.c.l.b16 %v523
        %v1754 = vunpack.c.h.b16 %v523
        %v1755 = vunpack.c.l.b16 %v524
        %v1756 = vunpack.c.h.b16 %v524
        %v1757 = vunpack.c.l.b16 %v525
        %v1758 = vunpack.c.h.b16 %v525
        %v1759 = vunpack.c.l.b16 %v526
        %v1760 = vunpack.c.h.b16 %v526
        %v1761 = vunpack.c.l.b16 %v527
        %v1762 = vunpack.c.h.b16 %v527
        %v1763 = vunpack.c.l.b16 %v528
        %v1764 = vunpack.c.h.b16 %v528
        %v1765 = vunpack.c.l.b16 %v529
        %v1766 = vunpack.c.h.b16 %v529
        %v1767 = vunpack.c.l.b16 %v530
        %v1768 = vunpack.c.h.b16 %v530
        %v1769 = vunpack.c.l.b16 %v531
        %v1770 = vunpack.c.h.b16 %v531
        %v1771 = vunpack.c.l.b16 %v532
        %v1772 = vunpack.c.h.b16 %v532
        %v1773 = vunpack.c.l.b16 %v533
        %v1774 = vunpack.c.h.b16 %v533
        %v1775 = vunpack.c.l.b16 %v534
        %v1776 = vunpack.c.h.b16 %v534
        %v1777 = vunpack.c.l.b16 %v535
        %v1778 = vunpack.c.h.b16 %v535
        %v1779 = vunpack.c.l.b16 %v536
        %v1780 = vunpack.c.h.b16 %v536
        %v1781 = vunpack.c.l.b16 %v537
        %v1782 = vunpack.c.h.b16 %v537
        %v1783 = vunpack.c.l.b16 %v538
        %v1784 = vunpack.c.h.b16 %v538
        %v1785 = vunpack.c.l.b16 %v539
        %v1786 = vunpack.c.h.b16 %v539
        %v1787 = vunpack.c.l.b16 %v540
        %v1788 = vunpack.c.h.b16 %v540
        %v1789 = vunpack.c.l.b16 %v541
        %v1790 = vunpack.c.h.b16 %v541
        %v1791 = vunpack.c.l.b16 %v542
        %v1792 = vunpack.c.h.b16 %v542
        %v1793 = vunpack.c.l.b16 %v543
        %v1794 = vunpack.c.h.b16 %v543
        %v1795 = vunpack.c.l.b16 %v544
        %v1796 = vunpack.c.h.b16 %v544
        %v1797 = vunpack.c.l.b16 %v545
        %v1798 = vunpack.c.h.b16 %v545
        %v1799 = vunpack.c.l.b16 %v546
        %v1800 = vunpack.c.h.b16 %v546
        %v1801 = vunpack.c.l.b16 %v547
        %v1802 = vunpack.c.h.b16 %v547
        %v1803 = vunpack.c.l.b16 %v548
        %v1804 = vunpack.c.h.b16 %v548
        %v1805 = vunpack.c.l.b16 %v549
        %v1806 = vunpack.c.h.b16 %v549
        %v1807 = vunpack.c.l.b16 %v550
        %v1808 = vunpack.c.h.b16 %v550
        %v1809 = vunpack.c.l.b16 %v551
        %v1810 = vunpack.c.h.b16 %v551
        %v1811 = vunpack.c.l.b16 %v552
        %v1812 = vunpack.c.h.b16 %v552
        %v1813 = vunpack.c.l.b16 %v553
        %v1814 = vunpack.c.h.b16 %v553
        %v1815 = vunpack.c.l.b16 %v554
        %v1816 = vunpack.c.h.b16 %v554
        %v1817 = vunpack.c.l.b16 %v555
        %v1818 = vunpack.c.h.b16 %v555
        %v1819 = vunpack.c.l.b16 %v556
        %v1820 = vunpack.c.h.b16 %v556
        %v1821 = vunpack.c.l.b16 %v557
        %v1822 = vunpack.c.h.b16 %v557
        %v1823 = vunpack.c.l.b16 %v558
        %v1824 = vunpack.c.h.b16 %v558
        %v1825 = vunpack.c.l.b16 %v559
        %v1826 = vunpack.c.h.b16 %v559
        %v1827 = vunpack.c.l.b16 %v560
        %v1828 = vunpack.c.h.b16 %v560
        %v1829 = vunpack.c.l.b16 %v561
        %v1830 = vunpack.c.h.b16 %v561
        %v1831 = vunpack.c.l.b16 %v562
        %v1832 = vunpack.c.h.b16 %v562
        %v1833 = vunpack.c.l.b16 %v563
        %v1834 = vunpack.c.h.b16 %v563
        %v1835 = vunpack.c.l.b16 %v564
        %v1836 = vunpack.c.h.b16 %v564
        %v1837 = vunpack.c.l.b16 %v565
        %v1838 = vunpack.c.h.b16 %v565
        %v1839 = vunpack.c.l.b16 %v566
        %v1840 = vunpack.c.h.b16 %v566
        %v1841 = vunpack.c.l.b16 %v567
        %v1842 = vunpack.c.h.b16 %v567
        %v1843 = vunpack.c.l.b16 %v568
        %v1844 = vunpack.c.h.b16 %v568
        %v1845 = vunpack.c.l.b16 %v569
        %v1846 = vunpack.c.h.b16 %v569
        %v1847 = vunpack.c.l.b16 %v570
        %v1848 = vunpack.c.h.b16 %v570
        %v1849 = vunpack.c.l.b16 %v571
        %v1850 = vunpack.c.h.b16 %v571
        %v1851 = vunpack.c.l.b16 %v572
        %v1852 = vunpack.c.h.b16 %v572
        %v1853 = vunpack.c.l.b16 %v573
        %v1854 = vunpack.c.h.b16 %v573
        %v1855 = vunpack.c.l.b16 %v574
        %v1856 = vunpack.c.h.b16 %v574
        %v1857 = vunpack.c.l.b16 %v575
        %v1858 = vunpack.c.h.b16 %v575
        %v1859 = vunpack.c.l.b16 %v576
        %v1860 = vunpack.c.h.b16 %v576
        %v1861 = vunpack.c.l.b16 %v577
        %v1862 = vunpack.c.h.b16 %v577
        %v1863 = vunpack.c.l.b16 %v578
        %v1864 = vunpack.c.h.b16 %v578
        %v1865 = vunpack.c.l.b16 %v579
        %v1866 = vunpack.c.h.b16 %v579
        %v1867 = vunpack.c.l.b16 %v580
        %v1868 = vunpack.c.h.b16 %v580
        %v1869 = vunpack.c.l.b16 %v581
        %v1870 = vunpack.c.h.b16 %v581
        %v1871 = vunpack.c.l.b16 %v582
        %v1872 = vunpack.c.h.b16 %v582
        %v1873 = vunpack.c.l.b16 %v583
        %v1874 = vunpack.c.h.b16 %v583
        %v1875 = vunpack.c.l.b16 %v584
        %v1876 = vunpack.c.h.b16 %v584
        %v1877 = vunpack.c.l.b16 %v585
        %v1878 = vunpack.c.h.b16 %v585
        %v1879 = vunpack.c.l.b16 %v586
        %v1880 = vunpack.c.h.b16 %v586
        %v1881 = vunpack.c.l.b16 %v587
        %v1882 = vunpack.c.h.b16 %v587
        %v1883 = vunpack.c.l.b16 %v588
        %v1884 = vunpack.c.h.b16 %v588
        %v1885 = vunpack.c.l.b16 %v589
        %v1886 = vunpack.c.h.b16 %v589
        %v1887 = vunpack.c.l.b16 %v590
        %v1888 = vunpack.c.h.b16 %v590
        %v1889 = vunpack.c.l.b16 %v591
        %v1890 = vunpack.c.h.b16 %v591
        %v1891 = vunpack.c.l.b16 %v592
        %v1892 = vunpack.c.h.b16 %v592
        %v1893 = vunpack.c.l.b16 %v593
        %v1894 = vunpack.c.h.b16 %v593
        %v1895 = vunpack.c.l.b16 %v594
        %v1896 = vunpack.c.h.b16 %v594
        %v1897 = vunpack.c.l.b16 %v595
        %v1898 = vunpack.c.h.b16 %v595
        %v1899 = vunpack.c.l.b16 %v596
        %v1900 = vunpack.c.h.b16 %v596
        %v1901 = vunpack.c.l.b16 %v597
        %v1902 = vunpack.c.h.b16 %v597
        %v1903 = vunpack.c.l.b16 %v598
        %v1904 = vunpack.c.h.b16 %v598
        %v1905 = vunpack.c.l.b16 %v599
        %v1906 = vunpack.c.h.b16 %v599
        %v1907 = vunpack.c.l.b16 %v600
        %v1908 = vunpack.c.h.b16 %v600
        %v1909 = vunpack.c.l.b16 %v601
        %v1910 = vunpack.c.h.b16 %v601
        %v1911 = vunpack.c.l.b16 %v602
        %v1912 = vunpack.c.h.b16 %v602
        %v1913 = vunpack.c.l.b16 %v603
        %v1914 = vunpack.c.h.b16 %v603
        %v1915 = vunpack.c.l.b16 %v604
        %v1916 = vunpack.c.h.b16 %v604
        %v1917 = vunpack.c.l.b16 %v605
        %v1918 = vunpack.c.h.b16 %v605
        %v1919 = vunpack.c.l.b16 %v606
        %v1920 = vunpack.c.h.b16 %v606
        %v1921 = vunpack.c.l.b16 %v607
        %v1922 = vunpack.c.h.b16 %v607
        %v1923 = vunpack.c.l.b16 %v608
        %v1924 = vunpack.c.h.b16 %v608
        %v1925 = vunpack.c.l.b16 %v609
        %v1926 = vunpack.c.h.b16 %v609
        %v1927 = vunpack.c.l.b16 %v610
        %v1928 = vunpack.c.h.b16 %v610
        %v1929 = vunpack.c.l.b16 %v611
        %v1930 = vunpack.c.h.b16 %v611
        %v1931 = vunpack.c.l.b16 %v612
        %v1932 = vunpack.c.h.b16 %v612
        %v1933 = vunpack.c.l.b16 %v613
        %v1934 = vunpack.c.h.b16 %v613
        %v1935 = vunpack.c.l.b16 %v614
        %v1936 = vunpack.c.h.b16 %v614
        %v1937 = vunpack.c.l.b16 %v615
        %v1938 = vunpack.c.h.b16 %v615
        %v1939 = vunpack.c.l.b16 %v616
        %v1940 = vunpack.c.h.b16 %v616
        %v1941 = vunpack.c.l.b16 %v617
        %v1942 = vunpack.c.h.b16 %v617
        %v1943 = vunpack.c.l.b16 %v618
        %v1944 = vunpack.c.h.b16 %v618
        %v1945 = vunpack.c.l.b16 %v619
        %v1946 = vunpack.c.h.b16 %v619
        %v1947 = vunpack.c.l.b16 %v620
        %v1948 = vunpack.c.h.b16 %v620
        %v1949 = vunpack.c.l.b16 %v621
        %v1950 = vunpack.c.h.b16 %v621
        %v1951 = vunpack.c.l.b16 %v622
        %v1952 = vunpack.c.h.b16 %v622
        %v1953 = vunpack.c.l.b16 %v623
        %v1954 = vunpack.c.h.b16 %v623
        %v1955 = vunpack.c.l.b16 %v624
        %v1956 = vunpack.c.h.b16 %v624
        %v1957 = vunpack.c.l.b16 %v625
        %v1958 = vunpack.c.h.b16 %v625
        %v1959 = vunpack.c.l.b16 %v626
        %v1960 = vunpack.c.h.b16 %v626
        %v1961 = vunpack.c.l.b16 %v627
        %v1962 = vunpack.c.h.b16 %v627
        %v1963 = vunpack.c.l.b16 %v628
        %v1964 = vunpack.c.h.b16 %v628
        %v1965 = vunpack.c.l.b16 %v629
        %v1966 = vunpack.c.h.b16 %v629
        %v1967 = vunpack.c.l.b16 %v630
        %v1968 = vunpack.c.h.b16 %v630
        %v1969 = vunpack.c.l.b16 %v631
        %v1970 = vunpack.c.h.b16 %v631
        %v1971 = vunpack.c.l.b16 %v632
        %v1972 = vunpack.c.h.b16 %v632
        %v1973 = vunpack.c.l.b16 %v633
        %v1974 = vunpack.c.h.b16 %v633
        %v1975 = vunpack.c.l.b16 %v634
        %v1976 = vunpack.c.h.b16 %v634
        %v1977 = vunpack.c.l.b16 %v635
        %v1978 = vunpack.c.h.b16 %v635
        %v1979 = vunpack.c.l.b16 %v636
        %v1980 = vunpack.c.h.b16 %v636
        %v1981 = vunpack.c.l.b16 %v637
        %v1982 = vunpack.c.h.b16 %v637
        %v1983 = vunpack.c.l.b16 %v638
        %v1984 = vunpack.c.h.b16 %v638
        %v1985 = vunpack.c.l.b16 %v639
        %v1986 = vunpack.c.h.b16 %v639
        %v1987 = vunpack.c.l.b16 %v640
        %v1988 = vunpack.c.h.b16 %v640
        %v1989 = vunpack.c.l.b16 %v641
        %v1990 = vunpack.c.h.b16 %v641
        %v1991 = vunpack.c.l.b16 %v642
        %v1992 = vunpack.c.h.b16 %v642
        %v1993 = vunpack.c.l.b16 %v643
        %v1994 = vunpack.c.h.b16 %v643
        %v1995 = vunpack.c.l.b16 %v644
        %v1996 = vunpack.c.h.b16 %v644
        %v1997 = vunpack.c.l.b16 %v645
        %v1998 = vunpack.c.h.b16 %v645
        %v1999 = vunpack.c.l.b16 %v646
        %v2000 = vunpack.c.h.b16 %v646
        %v2001 = vunpack.c.l.b16 %v647
        %v2002 = vunpack.c.h.b16 %v647
        %v2003 = vunpack.c.l.b16 %v648
        %v2004 = vunpack.c.h.b16 %v648
        %v2005 = vunpack.c.l.b16 %v649
        %v2006 = vunpack.c.h.b16 %v649
        %v2007 = vunpack.c.l.b16 %v650
        %v2008 = vunpack.c.h.b16 %v650
        %v2009 = vunpack.c.l.b16 %v651
        %v2010 = vunpack.c.h.b16 %v651
        %v2011 = vunpack.c.l.b16 %v652
        %v2012 = vunpack.c.h.b16 %v652
        %v2013 = vunpack.c.l.b16 %v653
        %v2014 = vunpack.c.h.b16 %v653
        %v2015 = vunpack.c.l.b16 %v654
        %v2016 = vunpack.c.h.b16 %v654
        %v2017 = vunpack.c.l.b16 %v655
        %v2018 = vunpack.c.h.b16 %v655
        %v2019 = vunpack.c.l.b16 %v656
        %v2020 = vunpack.c.h.b16 %v656
        %v2021 = vunpack.c.l.b16 %v657
        %v2022 = vunpack.c.h.b16 %v657
        %v2023 = vunpack.c.l.b16 %v658
        %v2024 = vunpack.c.h.b16 %v658
        %v2025 = vunpack.c.l.b16 %v659
        %v2026 = vunpack.c.h.b16 %v659
        %v2027 = vunpack.c.l.b16 %v660
        %v2028 = vunpack.c.h.b16 %v660
        %v2029 = vunpack.c.l.b16 %v661
        %v2030 = vunpack.c.h.b16 %v661
        %v2031 = vunpack.c.l.b16 %v662
        %v2032 = vunpack.c.h.b16 %v662
        %v2033 = vunpack.c.l.b16 %v663
        %v2034 = vunpack.c.h.b16 %v663
        %v2035 = vunpack.c.l.b16 %v664
        %v2036 = vunpack.c.h.b16 %v664
        %v2037 = vunpack.c.l.b16 %v665
        %v2038 = vunpack.c.h.b16 %v665
        %v2039 = vunpack.c.l.b16 %v666
        %v2040 = vunpack.c.h.b16 %v666
        %v2041 = vunpack.c.l.b16 %v667
        %v2042 = vunpack.c.h.b16 %v667
        %v2043 = vunpack.c.l.b16 %v668
        %v2044 = vunpack.c.h.b16 %v668
        %v2045 = vunpack.c.l.b16 %v669
        %v2046 = vunpack.c.h.b16 %v669
        %v2047 = vunpack.c.l.b16 %v670
        %v2048 = vunpack.c.h.b16 %v670
        %v2049 = vunpack.c.l.b16 %v671
        %v2050 = vunpack.c.h.b16 %v671
        %v2051 = vunpack.c.l.b16 %v672
        %v2052 = vunpack.c.h.b16 %v672
        %v2053 = vunpack.c.l.b16 %v673
        %v2054 = vunpack.c.h.b16 %v673
        %v2055 = vunpack.c.l.b16 %v674
        %v2056 = vunpack.c.h.b16 %v674
        %v2057 = vunpack.c.l.b16 %v675
        %v2058 = vunpack.c.h.b16 %v675
        %v2059 = vunpack.c.l.b16 %v676
        %v2060 = vunpack.c.h.b16 %v676
        %v2061 = vunpack.c.l.b16 %v677
        %v2062 = vunpack.c.h.b16 %v677
        %v2063 = vunpack.c.l.b16 %v678
        %v2064 = vunpack.c.h.b16 %v678
        %v2065 = vunpack.c.l.b16 %v679
        %v2066 = vunpack.c.h.b16 %v679
        %v2067 = vunpack.c.l.b16 %v680
        %v2068 = vunpack.c.h.b16 %v680
        %v2069 = vunpack.c.l.b16 %v681
        %v2070 = vunpack.c.h.b16 %v681
        %v2071 = vunpack.c.l.b16 %v682
        %v2072 = vunpack.c.h.b16 %v682
        %v2073 = vunpack.c.l.b16 %v683
        %v2074 = vunpack.c.h.b16 %v683
        %v2075 = vunpack.c.l.b16 %v684
        %v2076 = vunpack.c.h.b16 %v684
        %v2077 = vunpack.c.l.b16 %v685
        %v2078 = vunpack.c.h.b16 %v685
        %v2079 = vunpack.c.l.b16 %v686
        %v2080 = vunpack.c.h.b16 %v686
        %v2081 = vunpack.c.l.b16 %v687
        %v2082 = vunpack.c.h.b16 %v687
        %v2083 = vunpack.c.l.b16 %v688
        %v2084 = vunpack.c.h.b16 %v688
        %v2085 = vunpack.c.l.b16 %v689
        %v2086 = vunpack.c.h.b16 %v689
        %v2087 = vunpack.c.l.b16 %v690
        %v2088 = vunpack.c.h.b16 %v690
        %v2089 = vunpack.c.l.b16 %v691
        %v2090 = vunpack.c.h.b16 %v691
        %v2091 = vunpack.c.l.b16 %v692
        %v2092 = vunpack.c.h.b16 %v692
        %v2093 = vunpack.c.l.b16 %v693
        %v2094 = vunpack.c.h.b16 %v693
        %v2095 = vunpack.c.l.b16 %v694
        %v2096 = vunpack.c.h.b16 %v694
        %v2097 = vunpack.c.l.b16 %v695
        %v2098 = vunpack.c.h.b16 %v695
        %v2099 = vunpack.c.l.b16 %v696
        %v2100 = vunpack.c.h.b16 %v696
        %v2101 = vunpack.c.l.b16 %v697
        %v2102 = vunpack.c.h.b16 %v697
        %v2103 = vunpack.c.l.b16 %v698
        %v2104 = vunpack.c.h.b16 %v698
        %v2105 = vunpack.c.l.b16 %v699
        %v2106 = vunpack.c.h.b16 %v699
        %v2107 = vunpack.c.l.b16 %v700
        %v2108 = vunpack.c.h.b16 %v700
        %v2109 = vunpack.c.l.b16 %v701
        %v2110 = vunpack.c.h.b16 %v701
        %v2111 = vunpack.c.l.b16 %v702
        %v2112 = vunpack.c.h.b16 %v702
        %v2113 = vunpack.c.l.b16 %v703
        %v2114 = vunpack.c.h.b16 %v703
        %v2115 = vunpack.c.l.b16 %v704
        %v2116 = vunpack.c.h.b16 %v704
        %v2117 = vunpack.c.l.b16 %v705
        %v2118 = vunpack.c.h.b16 %v705
        %v2119 = vunpack.c.l.b16 %v706
        %v2120 = vunpack.c.h.b16 %v706
        %v2121 = vunpack.c.l.b16 %v707
        %v2122 = vunpack.c.h.b16 %v707
        %v2123 = vunpack.c.l.b16 %v708
        %v2124 = vunpack.c.h.b16 %v708
        %v2125 = vunpack.c.l.b16 %v709
        %v2126 = vunpack.c.h.b16 %v709
        %v2127 = vunpack.c.l.b16 %v710
        %v2128 = vunpack.c.h.b16 %v710
        %v2129 = vunpack.c.l.b16 %v711
        %v2130 = vunpack.c.h.b16 %v711
        %v2131 = vunpack.c.l.b16 %v712
        %v2132 = vunpack.c.h.b16 %v712
        %v2133 = vunpack.c.l.b16 %v713
        %v2134 = vunpack.c.h.b16 %v713
        %v2135 = vunpack.c.l.b16 %v714
        %v2136 = vunpack.c.h.b16 %v714
        %v2137 = vunpack.c.l.b16 %v715
        %v2138 = vunpack.c.h.b16 %v715
        %v2139 = vunpack.c.l.b16 %v716
        %v2140 = vunpack.c.h.b16 %v716
        %v2141 = vunpack.c.l.b16 %v717
        %v2142 = vunpack.c.h.b16 %v717
        %v2143 = vunpack.c.l.b16 %v718
        %v2144 = vunpack.c.h.b16 %v718
        %v2145 = vunpack.c.l.b16 %v719
        %v2146 = vunpack.c.h.b16 %v719
        %v2147 = vunpack.c.l.b16 %v720
        %v2148 = vunpack.c.h.b16 %v720
        %v2149 = vunpack.c.l.b16 %v721
        %v2150 = vunpack.c.h.b16 %v721
        %v2151 = vunpack.c.l.b16 %v722
        %v2152 = vunpack.c.h.b16 %v722
        %v2153 = vunpack.c.l.b16 %v723
        %v2154 = vunpack.c.h.b16 %v723
        %v2155 = vunpack.c.l.b16 %v724
        %v2156 = vunpack.c.h.b16 %v724
        %v2157 = vunpack.c.l.b16 %v725
        %v2158 = vunpack.c.h.b16 %v725
        %v2159 = vunpack.c.l.b16 %v726
        %v2160 = vunpack.c.h.b16 %v726
        %v2161 = vunpack.c.l.b16 %v727
        %v2162 = vunpack.c.h.b16 %v727
        %v2163 = vunpack.c.l.b16 %v728
        %v2164 = vunpack.c.h.b16 %v728
        %v2165 = vunpack.c.l.b16 %v729
        %v2166 = vunpack.c.h.b16 %v729
        %v2167 = vunpack.c.l.b16 %v730
        %v2168 = vunpack.c.h.b16 %v730
        %v2169 = vunpack.c.l.b16 %v731
        %v2170 = vunpack.c.h.b16 %v731
        %v2171 = vunpack.c.l.b16 %v732
        %v2172 = vunpack.c.h.b16 %v732
        %v2173 = vunpack.c.l.b16 %v733
        %v2174 = vunpack.c.h.b16 %v733
        %v2175 = vunpack.c.l.b16 %v734
        %v2176 = vunpack.c.h.b16 %v734
        %v2177 = vunpack.c.l.b16 %v735
        %v2178 = vunpack.c.h.b16 %v735
        %v2179 = vunpack.c.l.b16 %v736
        %v2180 = vunpack.c.h.b16 %v736
        %v2181 = vunpack.c.l.b16 %v737
        %v2182 = vunpack.c.h.b16 %v737
        %v2183 = vunpack.c.l.b16 %v738
        %v2184 = vunpack.c.h.b16 %v738
        %v2185 = vunpack.c.l.b16 %v739
        %v2186 = vunpack.c.h.b16 %v739
        %v2187 = vunpack.c.l.b16 %v740
        %v2188 = vunpack.c.h.b16 %v740
        %v2189 = vunpack.c.l.b16 %v741
        %v2190 = vunpack.c.h.b16 %v741
        %v2191 = vunpack.c.l.b16 %v742
        %v2192 = vunpack.c.h.b16 %v742
        %v2193 = vunpack.c.l.b16 %v743
        %v2194 = vunpack.c.h.b16 %v743
        %v2195 = vunpack.c.l.b16 %v744
        %v2196 = vunpack.c.h.b16 %v744
        %v2197 = vunpack.c.l.b16 %v745
        %v2198 = vunpack.c.h.b16 %v745
        %v2199 = vunpack.c.l.b16 %v746
        %v2200 = vunpack.c.h.b16 %v746
        %v2201 = vunpack.c.l.b16 %v747
        %v2202 = vunpack.c.h.b16 %v747
        %v2203 = vunpack.c.l.b16 %v748
        %v2204 = vunpack.c.h.b16 %v748
        %v2205 = vunpack.c.l.b16 %v749
        %v2206 = vunpack.c.h.b16 %v749
        %v2207 = vunpack.c.l.b16 %v750
        %v2208 = vunpack.c.h.b16 %v750
        %v2209 = vunpack.c.l.b16 %v751
        %v2210 = vunpack.c.h.b16 %v751
        %v2211 = vunpack.c.l.b16 %v752
        %v2212 = vunpack.c.h.b16 %v752
        %v2213 = vunpack.c.l.b16 %v753
        %v2214 = vunpack.c.h.b16 %v753
        %v2215 = vunpack.c.l.b16 %v754
        %v2216 = vunpack.c.h.b16 %v754
        %v2217 = vunpack.c.l.b16 %v755
        %v2218 = vunpack.c.h.b16 %v755
        %v2219 = vunpack.c.l.b16 %v756
        %v2220 = vunpack.c.h.b16 %v756
        %v2221 = vunpack.c.l.b16 %v757
        %v2222 = vunpack.c.h.b16 %v757
        %v2223 = vunpack.c.l.b16 %v758
        %v2224 = vunpack.c.h.b16 %v758
        %v2225 = vunpack.c.l.b16 %v759
        %v2226 = vunpack.c.h.b16 %v759
        %v2227 = vunpack.c.l.b16 %v760
        %v2228 = vunpack.c.h.b16 %v760
        %v2229 = vunpack.c.l.b16 %v761
        %v2230 = vunpack.c.h.b16 %v761
        %v2231 = vunpack.c.l.b16 %v762
        %v2232 = vunpack.c.h.b16 %v762
        %v2233 = vunpack.c.l.b16 %v763
        %v2234 = vunpack.c.h.b16 %v763
        %v2235 = vunpack.c.l.b16 %v764
        %v2236 = vunpack.c.h.b16 %v764
        %v2237 = vunpack.c.l.b16 %v765
        %v2238 = vunpack.c.h.b16 %v765
        %v2239 = vunpack.c.l.b16 %v766
        %v2240 = vunpack.c.h.b16 %v766
        %v2241 = vunpack.c.l.b16 %v767
        %v2242 = vunpack.c.h.b16 %v767
        %v2243 = vunpack.c.l.b16 %v768
        %v2244 = vunpack.c.h.b16 %v768
        %v2245 = vunpack.c.l.b16 %v769
        %v2246 = vunpack.c.h.b16 %v769
        %v2247 = vunpack.c.l.b16 %v770
        %v2248 = vunpack.c.h.b16 %v770
        %v2249 = vunpack.c.l.b16 %v771
        %v2250 = vunpack.c.h.b16 %v771
        %v2251 = vunpack.c.l.b16 %v772
        %v2252 = vunpack.c.h.b16 %v772
        %v2253 = vunpack.c.l.b16 %v773
        %v2254 = vunpack.c.h.b16 %v773
        %v2255 = vunpack.c.l.b16 %v774
        %v2256 = vunpack.c.h.b16 %v774
        %v2257 = vunpack.c.l.b16 %v775
        %v2258 = vunpack.c.h.b16 %v775
        %v2259 = vunpack.c.l.b16 %v776
        %v2260 = vunpack.c.h.b16 %v776
        %v2261 = vunpack.c.l.b16 %v777
        %v2262 = vunpack.c.h.b16 %v777
        %v2263 = vunpack.c.l.b16 %v778
        %v2264 = vunpack.c.h.b16 %v778
        %v2265 = vunpack.c.l.b16 %v779
        %v2266 = vunpack.c.h.b16 %v779
        %v2267 = vunpack.c.l.b16 %v780
        %v2268 = vunpack.c.h.b16 %v780
        %v2269 = vunpack.c.l.b16 %v781
        %v2270 = vunpack.c.h.b16 %v781
        %v2271 = vunpack.c.l.b16 %v782
        %v2272 = vunpack.c.h.b16 %v782
        %v2273 = vunpack.c.l.b16 %v783
        %v2274 = vunpack.c.h.b16 %v783
        %v2275 = vunpack.c.l.b16 %v784
        %v2276 = vunpack.c.h.b16 %v784
        %v2277 = vunpack.c.l.b16 %v785
        %v2278 = vunpack.c.h.b16 %v785
        %v2279 = vunpack.c.l.b16 %v786
        %v2280 = vunpack.c.h.b16 %v786
        %v2281 = vunpack.c.l.b16 %v787
        %v2282 = vunpack.c.h.b16 %v787
        %v2283 = vunpack.c.l.b16 %v788
        %v2284 = vunpack.c.h.b16 %v788
        %v2285 = vunpack.c.l.b16 %v789
        %v2286 = vunpack.c.h.b16 %v789
        %v2287 = vunpack.c.l.b16 %v790
        %v2288 = vunpack.c.h.b16 %v790
        %v2289 = vunpack.c.l.b16 %v791
        %v2290 = vunpack.c.h.b16 %v791
        %v2291 = vunpack.c.l.b16 %v792
        %v2292 = vunpack.c.h.b16 %v792
        %v2293 = vunpack.c.l.b16 %v793
        %v2294 = vunpack.c.h.b16 %v793
        %v2295 = vunpack.c.l.b16 %v794
        %v2296 = vunpack.c.h.b16 %v794
        %v2297 = vunpack.c.l.b16 %v795
        %v2298 = vunpack.c.h.b16 %v795
        %v2299 = vunpack.c.l.b16 %v796
        %v2300 = vunpack.c.h.b16 %v796
        %v2301 = vunpack.c.l.b16 %v797
        %v2302 = vunpack.c.h.b16 %v797
        %v2303 = vunpack.c.l.b16 %v798
        %v2304 = vunpack.c.h.b16 %v798
        %v2305 = vunpack.c.l.b16 %v799
        %v2306 = vunpack.c.h.b16 %v799
        %v2307 = vunpack.c.l.b16 %v800
        %v2308 = vunpack.c.h.b16 %v800
        %v2309 = vunpack.c.l.b16 %v801
        %v2310 = vunpack.c.h.b16 %v801
        %v2311 = vunpack.c.l.b16 %v802
        %v2312 = vunpack.c.h.b16 %v802
        %v2313 = vunpack.c.l.b16 %v803
        %v2314 = vunpack.c.h.b16 %v803
        %v2315 = vunpack.c.l.b16 %v804
        %v2316 = vunpack.c.h.b16 %v804
        %v2317 = vunpack.c.l.b16 %v805
        %v2318 = vunpack.c.h.b16 %v805
        %v2319 = vunpack.c.l.b16 %v806
        %v2320 = vunpack.c.h.b16 %v806
        %v2321 = vunpack.c.l.b16 %v807
        %v2322 = vunpack.c.h.b16 %v807
        %v2323 = vunpack.c.l.b16 %v808
        %v2324 = vunpack.c.h.b16 %v808
        %v2325 = vunpack.c.l.b16 %v809
        %v2326 = vunpack.c.h.b16 %v809
        %v2327 = vunpack.c.l.b16 %v810
        %v2328 = vunpack.c.h.b16 %v810
        %v2329 = vunpack.c.l.b16 %v811
        %v2330 = vunpack.c.h.b16 %v811
        %v2331 = vunpack.c.l.b16 %v812
        %v2332 = vunpack.c.h.b16 %v812
        %v2333 = vunpack.c.l.b16 %v813
        %v2334 = vunpack.c.h.b16 %v813
        %v2335 = vunpack.c.l.b16 %v814
        %v2336 = vunpack.c.h.b16 %v814
        %v2337 = vunpack.c.l.b16 %v815
        %v2338 = vunpack.c.h.b16 %v815
        %v2339 = vunpack.c.l.b16 %v816
        %v2340 = vunpack.c.h.b16 %v816
        %v2341 = vunpack.c.l.b16 %v817
        %v2342 = vunpack.c.h.b16 %v817
        %v2343 = vunpack.c.l.b16 %v818
        %v2344 = vunpack.c.h.b16 %v818
        %v2345 = vunpack.c.l.b16 %v819
        %v2346 = vunpack.c.h.b16 %v819
        %v2347 = vunpack.c.l.b16 %v820
        %v2348 = vunpack.c.h.b16 %v820
        %v2349 = vunpack.c.l.b16 %v821
        %v2350 = vunpack.c.h.b16 %v821
        %v2351 = vunpack.c.l.b16 %v822
        %v2352 = vunpack.c.h.b16 %v822
        %v2353 = vunpack.c.l.b16 %v823
        %v2354 = vunpack.c.h.b16 %v823
        %v2355 = vunpack.c.l.b16 %v824
        %v2356 = vunpack.c.h.b16 %v824
        %v2357 = vunpack.c.l.b16 %v825
        %v2358 = vunpack.c.h.b16 %v825
        %v2359 = vunpack.c.l.b16 %v826
        %v2360 = vunpack.c.h.b16 %v826
        %v2361 = vunpack.c.l.b16 %v827
        %v2362 = vunpack.c.h.b16 %v827
        %v2363 = vunpack.c.l.b16 %v828
        %v2364 = vunpack.c.h.b16 %v828
        %v2365 = vpack.c.b16 %v1357, %v1341
        %v2366 = vpack.c.b16 %v1358, %v1342
        %v2367 = vpack.c.b16 %v1359, %v1343
        %v2368 = vpack.c.b16 %v1360, %v1344
        %v2369 = vpack.c.b16 %v1361, %v1345
        %v2370 = vpack.c.b16 %v1362, %v1346
        %v2371 = vpack.c.b16 %v1363, %v1347
        %v2372 = vpack.c.b16 %v1364, %v1348
        %v2373 = vpack.c.b16 %v1365, %v1349
        %v2374 = vpack.c.b16 %v1366, %v1350
        %v2375 = vpack.c.b16 %v1367, %v1351
        %v2376 = vpack.c.b16 %v1368, %v1352
        %v2377 = vpack.c.b16 %v1369, %v1353
        %v2378 = vpack.c.b16 %v1370, %v1354
        %v2379 = vpack.c.b16 %v1371, %v1355
        %v2380 = vpack.c.b16 %v1372, %v1356
        %v2381 = vpack.c.b16 %v1389, %v1373
        %v2382 = vpack.c.b16 %v1390, %v1374
        %v2383 = vpack.c.b16 %v1391, %v1375
        %v2384 = vpack.c.b16 %v1392, %v1376
        %v2385 = vpack.c.b16 %v1393, %v1377
        %v2386 = vpack.c.b16 %v1394, %v1378
        %v2387 = vpack.c.b16 %v1395, %v1379
        %v2388 = vpack.c.b16 %v1396, %v1380
        %v2389 = vpack.c.b16 %v1397, %v1381
        %v2390 = vpack.c.b16 %v1398, %v1382
        %v2391 = vpack.c.b16 %v1399, %v1383
        %v2392 = vpack.c.b16 %v1400, %v1384
        %v2393 = vpack.c.b16 %v1401, %v1385
        %v2394 = vpack.c.b16 %v1402, %v1386
        %v2395 = vpack.c.b16 %v1403, %v1387
        %v2396 = vpack.c.b16 %v1404, %v1388
        %v2397 = vpack.c.b16 %v1421, %v1405
        %v2398 = vpack.c.b16 %v1422, %v1406
        %v2399 = vpack.c.b16 %v1423, %v1407
        %v2400 = vpack.c.b16 %v1424, %v1408
        %v2401 = vpack.c.b16 %v1425, %v1409
        %v2402 = vpack.c.b16 %v1426, %v1410
        %v2403 = vpack.c.b16 %v1427, %v1411
        %v2404 = vpack.c.b16 %v1428, %v1412
        %v2405 = vpack.c.b16 %v1429, %v1413
        %v2406 = vpack.c.b16 %v1430, %v1414
        %v2407 = vpack.c.b16 %v1431, %v1415
        %v2408 = vpack.c.b16 %v1432, %v1416
        %v2409 = vpack.c.b16 %v1433, %v1417
        %v2410 = vpack.c.b16 %v1434, %v1418
        %v2411 = vpack.c.b16 %v1435, %v1419
        %v2412 = vpack.c.b16 %v1436, %v1420
        %v2413 = vpack.c.b16 %v1453, %v1437
        %v2414 = vpack.c.b16 %v1454, %v1438
        %v2415 = vpack.c.b16 %v1455, %v1439
        %v2416 = vpack.c.b16 %v1456, %v1440
        %v2417 = vpack.c.b16 %v1457, %v1441
        %v2418 = vpack.c.b16 %v1458, %v1442
        %v2419 = vpack.c.b16 %v1459, %v1443
        %v2420 = vpack.c.b16 %v1460, %v1444
        %v2421 = vpack.c.b16 %v1461, %v1445
        %v2422 = vpack.c.b16 %v1462, %v1446
        %v2423 = vpack.c.b16 %v1463, %v1447
        %v2424 = vpack.c.b16 %v1464, %v1448
        %v2425 = vpack.c.b16 %v1465, %v1449
        %v2426 = vpack.c.b16 %v1466, %v1450
        %v2427 = vpack.c.b16 %v1467, %v1451
        %v2428 = vpack.c.b16 %v1468, %v1452
        %v2429 = vpack.c.b16 %v1485, %v1469
        %v2430 = vpack.c.b16 %v1486, %v1470
        %v2431 = vpack.c.b16 %v1487, %v1471
        %v2432 = vpack.c.b16 %v1488, %v1472
        %v2433 = vpack.c.b16 %v1489, %v1473
        %v2434 = vpack.c.b16 %v1490, %v1474
        %v2435 = vpack.c.b16 %v1491, %v1475
        %v2436 = vpack.c.b16 %v1492, %v1476
        %v2437 = vpack.c.b16 %v1493, %v1477
        %v2438 = vpack.c.b16 %v1494, %v1478
        %v2439 = vpack.c.b16 %v1495, %v1479
        %v2440 = vpack.c.b16 %v1496, %v1480
        %v2441 = vpack.c.b16 %v1497, %v1481
        %v2442 = vpack.c.b16 %v1498, %v1482
        %v2443 = vpack.c.b16 %v1499, %v1483
        %v2444 = vpack.c.b16 %v1500, %v1484
        %v2445 = vpack.c.b16 %v1517, %v1501
        %v2446 = vpack.c.b16 %v1518, %v1502
        %v2447 = vpack.c.b16 %v1519, %v1503
        %v2448 = vpack.c.b16 %v1520, %v1504
        %v2449 = vpack.c.b16 %v1521, %v1505
        %v2450 = vpack.c.b16 %v1522, %v1506
        %v2451 = vpack.c.b16 %v1523, %v1507
        %v2452 = vpack.c.b16 %v1524, %v1508
        %v2453 = vpack.c.b16 %v1525, %v1509
        %v2454 = vpack.c.b16 %v1526, %v1510
        %v2455 = vpack.c.b16 %v1527, %v1511
        %v2456 = vpack.c.b16 %v1528, %v1512
        %v2457 = vpack.c.b16 %v1529, %v1513
        %v2458 = vpack.c.b16 %v1530, %v1514
        %v2459 = vpack.c.b16 %v1531, %v1515
        %v2460 = vpack.c.b16 %v1532, %v1516
        %v2461 = vpack.c.b16 %v1549, %v1533
        %v2462 = vpack.c.b16 %v1550, %v1534
        %v2463 = vpack.c.b16 %v1551, %v1535
        %v2464 = vpack.c.b16 %v1552, %v1536
        %v2465 = vpack.c.b16 %v1553, %v1537
        %v2466 = vpack.c.b16 %v1554, %v1538
        %v2467 = vpack.c.b16 %v1555, %v1539
        %v2468 = vpack.c.b16 %v1556, %v1540
        %v2469 = vpack.c.b16 %v1557, %v1541
        %v2470 = vpack.c.b16 %v1558, %v1542
        %v2471 = vpack.c.b16 %v1559, %v1543
        %v2472 = vpack.c.b16 %v1560, %v1544
        %v2473 = vpack.c.b16 %v1561, %v1545
        %v2474 = vpack.c.b16 %v1562, %v1546
        %v2475 = vpack.c.b16 %v1563, %v1547
        %v2476 = vpack.c.b16 %v1564, %v1548
        %v2477 = vpack.c.b16 %v1581, %v1565
        %v2478 = vpack.c.b16 %v1582, %v1566
        %v2479 = vpack.c.b16 %v1583, %v1567
        %v2480 = vpack.c.b16 %v1584, %v1568
        %v2481 = vpack.c.b16 %v1585, %v1569
        %v2482 = vpack.c.b16 %v1586, %v1570
        %v2483 = vpack.c.b16 %v1587, %v1571
        %v2484 = vpack.c.b16 %v1588, %v1572
        %v2485 = vpack.c.b16 %v1589, %v1573
        %v2486 = vpack.c.b16 %v1590, %v1574
        %v2487 = vpack.c.b16 %v1591, %v1575
        %v2488 = vpack.c.b16 %v1592, %v1576
        %v2489 = vpack.c.b16 %v1593, %v1577
        %v2490 = vpack.c.b16 %v1594, %v1578
        %v2491 = vpack.c.b16 %v1595, %v1579
        %v2492 = vpack.c.b16 %v1596, %v1580
        %v2493 = vpack.c.b16 %v1613, %v1597
        %v2494 = vpack.c.b16 %v1614, %v1598
        %v2495 = vpack.c.b16 %v1615, %v1599
        %v2496 = vpack.c.b16 %v1616, %v1600
        %v2497 = vpack.c.b16 %v1617, %v1601
        %v2498 = vpack.c.b16 %v1618, %v1602
        %v2499 = vpack.c.b16 %v1619, %v1603
        %v2500 = vpack.c.b16 %v1620, %v1604
        %v2501 = vpack.c.b16 %v1621, %v1605
        %v2502 = vpack.c.b16 %v1622, %v1606
        %v2503 = vpack.c.b16 %v1623, %v1607
        %v2504 = vpack.c.b16 %v1624, %v1608
        %v2505 = vpack.c.b16 %v1625, %v1609
        %v2506 = vpack.c.b16 %v1626, %v1610
        %v2507 = vpack.c.b16 %v1627, %v1611
        %v2508 = vpack.c.b16 %v1628, %v1612
        %v2509 = vpack.c.b16 %v1645, %v1629
        %v2510 = vpack.c.b16 %v1646, %v1630
        %v2511 = vpack.c.b16 %v1647, %v1631
        %v2512 = vpack.c.b16 %v1648, %v1632
        %v2513 = vpack.c.b16 %v1649, %v1633
        %v2514 = vpack.c.b16 %v1650, %v1634
        %v2515 = vpack.c.b16 %v1651, %v1635
        %v2516 = vpack.c.b16 %v1652, %v1636
        %v2517 = vpack.c.b16 %v1653, %v1637
        %v2518 = vpack.c.b16 %v1654, %v1638
        %v2519 = vpack.c.b16 %v1655, %v1639
        %v2520 = vpack.c.b16 %v1656, %v1640
        %v2521 = vpack.c.b16 %v1657, %v1641
        %v2522 = vpack.c.b16 %v1658, %v1642
        %v2523 = vpack.c.b16 %v1659, %v1643
        %v2524 = vpack.c.b16 %v1660, %v1644
        %v2525 = vpack.c.b16 %v1677, %v1661
        %v2526 = vpack.c.b16 %v1678, %v1662
        %v2527 = vpack.c.b16 %v1679, %v1663
        %v2528 = vpack.c.b16 %v1680, %v1664
        %v2529 = vpack.c.b16 %v1681, %v1665
        %v2530 = vpack.c.b16 %v1682, %v1666
        %v2531 = vpack.c.b16 %v1683, %v1667
        %v2532 = vpack.c.b16 %v1684, %v1668
        %v2533 = vpack.c.b16 %v1685, %v1669
        %v2534 = vpack.c.b16 %v1686, %v1670
        %v2535 = vpack.c.b16 %v1687, %v1671
        %v2536 = vpack.c.b16 %v1688, %v1672
        %v2537 = vpack.c.b16 %v1689, %v1673
        %v2538 = vpack.c.b16 %v1690, %v1674
        %v2539 = vpack.c.b16 %v1691, %v1675
        %v2540 = vpack.c.b16 %v1692, %v1676
        %v2541 = vpack.c.b16 %v1709, %v1693
        %v2542 = vpack.c.b16 %v1710, %v1694
        %v2543 = vpack.c.b16 %v1711, %v1695
        %v2544 = vpack.c.b16 %v1712, %v1696
        %v2545 = vpack.c.b16 %v1713, %v1697
        %v2546 = vpack.c.b16 %v1714, %v1698
        %v2547 = vpack.c.b16 %v1715, %v1699
        %v2548 = vpack.c.b16 %v1716, %v1700
        %v2549 = vpack.c.b16 %v1717, %v1701
        %v2550 = vpack.c.b16 %v1718, %v1702
        %v2551 = vpack.c.b16 %v1719, %v1703
        %v2552 = vpack.c.b16 %v1720, %v1704
        %v2553 = vpack.c.b16 %v1721, %v1705
        %v2554 = vpack.c.b16 %v1722, %v1706
        %v2555 = vpack.c.b16 %v1723, %v1707
        %v2556 = vpack.c.b16 %v1724, %v1708
        %v2557 = vpack.c.b16 %v1741, %v1725
        %v2558 = vpack.c.b16 %v1742, %v1726
        %v2559 = vpack.c.b16 %v1743, %v1727
        %v2560 = vpack.c.b16 %v1744, %v1728
        %v2561 = vpack.c.b16 %v1745, %v1729
        %v2562 = vpack.c.b16 %v1746, %v1730
        %v2563 = vpack.c.b16 %v1747, %v1731
        %v2564 = vpack.c.b16 %v1748, %v1732
        %v2565 = vpack.c.b16 %v1749, %v1733
        %v2566 = vpack.c.b16 %v1750, %v1734
        %v2567 = vpack.c.b16 %v1751, %v1735
        %v2568 = vpack.c.b16 %v1752, %v1736
        %v2569 = vpack.c.b16 %v1753, %v1737
        %v2570 = vpack.c.b16 %v1754, %v1738
        %v2571 = vpack.c.b16 %v1755, %v1739
        %v2572 = vpack.c.b16 %v1756, %v1740
        %v2573 = vpack.c.b16 %v1773, %v1757
        %v2574 = vpack.c.b16 %v1774, %v1758
        %v2575 = vpack.c.b16 %v1775, %v1759
        %v2576 = vpack.c.b16 %v1776, %v1760
        %v2577 = vpack.c.b16 %v1777, %v1761
        %v2578 = vpack.c.b16 %v1778, %v1762
        %v2579 = vpack.c.b16 %v1779, %v1763
        %v2580 = vpack.c.b16 %v1780, %v1764
        %v2581 = vpack.c.b16 %v1781, %v1765
        %v2582 = vpack.c.b16 %v1782, %v1766
        %v2583 = vpack.c.b16 %v1783, %v1767
        %v2584 = vpack.c.b16 %v1784, %v1768
        %v2585 = vpack.c.b16 %v1785, %v1769
        %v2586 = vpack.c.b16 %v1786, %v1770
        %v2587 = vpack.c.b16 %v1787, %v1771
        %v2588 = vpack.c.b16 %v1788, %v1772
        %v2589 = vpack.c.b16 %v1805, %v1789
        %v2590 = vpack.c.b16 %v1806, %v1790
        %v2591 = vpack.c.b16 %v1807, %v1791
        %v2592 = vpack.c.b16 %v1808, %v1792
        %v2593 = vpack.c.b16 %v1809, %v1793
        %v2594 = vpack.c.b16 %v1810, %v1794
        %v2595 = vpack.c.b16 %v1811, %v1795
        %v2596 = vpack.c.b16 %v1812, %v1796
        %v2597 = vpack.c.b16 %v1813, %v1797
        %v2598 = vpack.c.b16 %v1814, %v1798
        %v2599 = vpack.c.b16 %v1815, %v1799
        %v2600 = vpack.c.b16 %v1816, %v1800
        %v2601 = vpack.c.b16 %v1817, %v1801
        %v2602 = vpack.c.b16 %v1818, %v1802
        %v2603 = vpack.c.b16 %v1819, %v1803
        %v2604 = vpack.c.b16 %v1820, %v1804
        %v2605 = vpack.c.b16 %v1837, %v1821
        %v2606 = vpack.c.b16 %v1838, %v1822
        %v2607 = vpack.c.b16 %v1839, %v1823
        %v2608 = vpack.c.b16 %v1840, %v1824
        %v2609 = vpack.c.b16 %v1841, %v1825
        %v2610 = vpack.c.b16 %v1842, %v1826
        %v2611 = vpack.c.b16 %v1843, %v1827
        %v2612 = vpack.c.b16 %v1844, %v1828
        %v2613 = vpack.c.b16 %v1845, %v1829
        %v2614 = vpack.c.b16 %v1846, %v1830
        %v2615 = vpack.c.b16 %v1847, %v1831
        %v2616 = vpack.c.b16 %v1848, %v1832
        %v2617 = vpack.c.b16 %v1849, %v1833
        %v2618 = vpack.c.b16 %v1850, %v1834
        %v2619 = vpack.c.b16 %v1851, %v1835
        %v2620 = vpack.c.b16 %v1852, %v1836
        %v2621 = vpack.c.b16 %v1869, %v1853
        %v2622 = vpack.c.b16 %v1870, %v1854
        %v2623 = vpack.c.b16 %v1871, %v1855
        %v2624 = vpack.c.b16 %v1872, %v1856
        %v2625 = vpack.c.b16 %v1873, %v1857
        %v2626 = vpack.c.b16 %v1874, %v1858
        %v2627 = vpack.c.b16 %v1875, %v1859
        %v2628 = vpack.c.b16 %v1876, %v1860
        %v2629 = vpack.c.b16 %v1877, %v1861
        %v2630 = vpack.c.b16 %v1878, %v1862
        %v2631 = vpack.c.b16 %v1879, %v1863
        %v2632 = vpack.c.b16 %v1880, %v1864
        %v2633 = vpack.c.b16 %v1881, %v1865
        %v2634 = vpack.c.b16 %v1882, %v1866
        %v2635 = vpack.c.b16 %v1883, %v1867
        %v2636 = vpack.c.b16 %v1884, %v1868
        %v2637 = vpack.c.b16 %v1901, %v1885
        %v2638 = vpack.c.b16 %v1902, %v1886
        %v2639 = vpack.c.b16 %v1903, %v1887
        %v2640 = vpack.c.b16 %v1904, %v1888
        %v2641 = vpack.c.b16 %v1905, %v1889
        %v2642 = vpack.c.b16 %v1906, %v1890
        %v2643 = vpack.c.b16 %v1907, %v1891
        %v2644 = vpack.c.b16 %v1908, %v1892
        %v2645 = vpack.c.b16 %v1909, %v1893
        %v2646 = vpack.c.b16 %v1910, %v1894
        %v2647 = vpack.c.b16 %v1911, %v1895
        %v2648 = vpack.c.b16 %v1912, %v1896
        %v2649 = vpack.c.b16 %v1913, %v1897
        %v2650 = vpack.c.b16 %v1914, %v1898
        %v2651 = vpack.c.b16 %v1915, %v1899
        %v2652 = vpack.c.b16 %v1916, %v1900
        %v2653 = vpack.c.b16 %v1933, %v1917
        %v2654 = vpack.c.b16 %v1934, %v1918
        %v2655 = vpack.c.b16 %v1935, %v1919
        %v2656 = vpack.c.b16 %v1936, %v1920
        %v2657 = vpack.c.b16 %v1937, %v1921
        %v2658 = vpack.c.b16 %v1938, %v1922
        %v2659 = vpack.c.b16 %v1939, %v1923
        %v2660 = vpack.c.b16 %v1940, %v1924
        %v2661 = vpack.c.b16 %v1941, %v1925
        %v2662 = vpack.c.b16 %v1942, %v1926
        %v2663 = vpack.c.b16 %v1943, %v1927
        %v2664 = vpack.c.b16 %v1944, %v1928
        %v2665 = vpack.c.b16 %v1945, %v1929
        %v2666 = vpack.c.b16 %v1946, %v1930
        %v2667 = vpack.c.b16 %v1947, %v1931
        %v2668 = vpack.c.b16 %v1948, %v1932
        %v2669 = vpack.c.b16 %v1965, %v1949
        %v2670 = vpack.c.b16 %v1966, %v1950
        %v2671 = vpack.c.b16 %v1967, %v1951
        %v2672 = vpack.c.b16 %v1968, %v1952
        %v2673 = vpack.c.b16 %v1969, %v1953
        %v2674 = vpack.c.b16 %v1970, %v1954
        %v2675 = vpack.c.b16 %v1971, %v1955
        %v2676 = vpack.c.b16 %v1972, %v1956
        %v2677 = vpack.c.b16 %v1973, %v1957
        %v2678 = vpack.c.b16 %v1974, %v1958
        %v2679 = vpack.c.b16 %v1975, %v1959
        %v2680 = vpack.c.b16 %v1976, %v1960
        %v2681 = vpack.c.b16 %v1977, %v1961
        %v2682 = vpack.c.b16 %v1978, %v1962
        %v2683 = vpack.c.b16 %v1979, %v1963
        %v2684 = vpack.c.b16 %v1980, %v1964
        %v2685 = vpack.c.b16 %v1997, %v1981
        %v2686 = vpack.c.b16 %v1998, %v1982
        %v2687 = vpack.c.b16 %v1999, %v1983
        %v2688 = vpack.c.b16 %v2000, %v1984
        %v2689 = vpack.c.b16 %v2001, %v1985
        %v2690 = vpack.c.b16 %v2002, %v1986
        %v2691 = vpack.c.b16 %v2003, %v1987
        %v2692 = vpack.c.b16 %v2004, %v1988
        %v2693 = vpack.c.b16 %v2005, %v1989
        %v2694 = vpack.c.b16 %v2006, %v1990
        %v2695 = vpack.c.b16 %v2007, %v1991
        %v2696 = vpack.c.b16 %v2008, %v1992
        %v2697 = vpack.c.b16 %v2009, %v1993
        %v2698 = vpack.c.b16 %v2010, %v1994
        %v2699 = vpack.c.b16 %v2011, %v1995
        %v2700 = vpack.c.b16 %v2012, %v1996
        %v2701 = vpack.c.b16 %v2029, %v2013
        %v2702 = vpack.c.b16 %v2030, %v2014
        %v2703 = vpack.c.b16 %v2031, %v2015
        %v2704 = vpack.c.b16 %v2032, %v2016
        %v2705 = vpack.c.b16 %v2033, %v2017
        %v2706 = vpack.c.b16 %v2034, %v2018
        %v2707 = vpack.c.b16 %v2035, %v2019
        %v2708 = vpack.c.b16 %v2036, %v2020
        %v2709 = vpack.c.b16 %v2037, %v2021
        %v2710 = vpack.c.b16 %v2038, %v2022
        %v2711 = vpack.c.b16 %v2039, %v2023
        %v2712 = vpack.c.b16 %v2040, %v2024
        %v2713 = vpack.c.b16 %v2041, %v2025
        %v2714 = vpack.c.b16 %v2042, %v2026
        %v2715 = vpack.c.b16 %v2043, %v2027
        %v2716 = vpack.c.b16 %v2044, %v2028
        %v2717 = vpack.c.b16 %v2061, %v2045
        %v2718 = vpack.c.b16 %v2062, %v2046
        %v2719 = vpack.c.b16 %v2063, %v2047
        %v2720 = vpack.c.b16 %v2064, %v2048
        %v2721 = vpack.c.b16 %v2065, %v2049
        %v2722 = vpack.c.b16 %v2066, %v2050
        %v2723 = vpack.c.b16 %v2067, %v2051
        %v2724 = vpack.c.b16 %v2068, %v2052
        %v2725 = vpack.c.b16 %v2069, %v2053
        %v2726 = vpack.c.b16 %v2070, %v2054
        %v2727 = vpack.c.b16 %v2071, %v2055
        %v2728 = vpack.c.b16 %v2072, %v2056
        %v2729 = vpack.c.b16 %v2073, %v2057
        %v2730 = vpack.c.b16 %v2074, %v2058
        %v2731 = vpack.c.b16 %v2075, %v2059
        %v2732 = vpack.c.b16 %v2076, %v2060
        %v2733 = vpack.c.b16 %v2093, %v2077
        %v2734 = vpack.c.b16 %v2094, %v2078
        %v2735 = vpack.c.b16 %v2095, %v2079
        %v2736 = vpack.c.b16 %v2096, %v2080
        %v2737 = vpack.c.b16 %v2097, %v2081
        %v2738 = vpack.c.b16 %v2098, %v2082
        %v2739 = vpack.c.b16 %v2099, %v2083
        %v2740 = vpack.c.b16 %v2100, %v2084
        %v2741 = vpack.c.b16 %v2101, %v2085
        %v2742 = vpack.c.b16 %v2102, %v2086
        %v2743 = vpack.c.b16 %v2103, %v2087
        %v2744 = vpack.c.b16 %v2104, %v2088
        %v2745 = vpack.c.b16 %v2105, %v2089
        %v2746 = vpack.c.b16 %v2106, %v2090
        %v2747 = vpack.c.b16 %v2107, %v2091
        %v2748 = vpack.c.b16 %v2108, %v2092
        %v2749 = vpack.c.b16 %v2125, %v2109
        %v2750 = vpack.c.b16 %v2126, %v2110
        %v2751 = vpack.c.b16 %v2127, %v2111
        %v2752 = vpack.c.b16 %v2128, %v2112
        %v2753 = vpack.c.b16 %v2129, %v2113
        %v2754 = vpack.c.b16 %v2130, %v2114
        %v2755 = vpack.c.b16 %v2131, %v2115
        %v2756 = vpack.c.b16 %v2132, %v2116
        %v2757 = vpack.c.b16 %v2133, %v2117
        %v2758 = vpack.c.b16 %v2134, %v2118
        %v2759 = vpack.c.b16 %v2135, %v2119
        %v2760 = vpack.c.b16 %v2136, %v2120
        %v2761 = vpack.c.b16 %v2137, %v2121
        %v2762 = vpack.c.b16 %v2138, %v2122
        %v2763 = vpack.c.b16 %v2139, %v2123
        %v2764 = vpack.c.b16 %v2140, %v2124
        %v2765 = vpack.c.b16 %v2157, %v2141
        %v2766 = vpack.c.b16 %v2158, %v2142
        %v2767 = vpack.c.b16 %v2159, %v2143
        %v2768 = vpack.c.b16 %v2160, %v2144
        %v2769 = vpack.c.b16 %v2161, %v2145
        %v2770 = vpack.c.b16 %v2162, %v2146
        %v2771 = vpack.c.b16 %v2163, %v2147
        %v2772 = vpack.c.b16 %v2164, %v2148
        %v2773 = vpack.c.b16 %v2165, %v2149
        %v2774 = vpack.c.b16 %v2166, %v2150
        %v2775 = vpack.c.b16 %v2167, %v2151
        %v2776 = vpack.c.b16 %v2168, %v2152
        %v2777 = vpack.c.b16 %v2169, %v2153
        %v2778 = vpack.c.b16 %v2170, %v2154
        %v2779 = vpack.c.b16 %v2171, %v2155
        %v2780 = vpack.c.b16 %v2172, %v2156
        %v2781 = vpack.c.b16 %v2189, %v2173
        %v2782 = vpack.c.b16 %v2190, %v2174
        %v2783 = vpack.c.b16 %v2191, %v2175
        %v2784 = vpack.c.b16 %v2192, %v2176
        %v2785 = vpack.c.b16 %v2193, %v2177
        %v2786 = vpack.c.b16 %v2194, %v2178
        %v2787 = vpack.c.b16 %v2195, %v2179
        %v2788 = vpack.c.b16 %v2196, %v2180
        %v2789 = vpack.c.b16 %v2197, %v2181
        %v2790 = vpack.c.b16 %v2198, %v2182
        %v2791 = vpack.c.b16 %v2199, %v2183
        %v2792 = vpack.c.b16 %v2200, %v2184
        %v2793 = vpack.c.b16 %v2201, %v2185
        %v2794 = vpack.c.b16 %v2202, %v2186
        %v2795 = vpack.c.b16 %v2203, %v2187
        %v2796 = vpack.c.b16 %v2204, %v2188
        %v2797 = vpack.c.b16 %v2221, %v2205
        %v2798 = vpack.c.b16 %v2222, %v2206
        %v2799 = vpack.c.b16 %v2223, %v2207
        %v2800 = vpack.c.b16 %v2224, %v2208
        %v2801 = vpack.c.b16 %v2225, %v2209
        %v2802 = vpack.c.b16 %v2226, %v2210
        %v2803 = vpack.c.b16 %v2227, %v2211
        %v2804 = vpack.c.b16 %v2228, %v2212
        %v2805 = vpack.c.b16 %v2229, %v2213
        %v2806 = vpack.c.b16 %v2230, %v2214
        %v2807 = vpack.c.b16 %v2231, %v2215
        %v2808 = vpack.c.b16 %v2232, %v2216
        %v2809 = vpack.c.b16 %v2233, %v2217
        %v2810 = vpack.c.b16 %v2234, %v2218
        %v2811 = vpack.c.b16 %v2235, %v2219
        %v2812 = vpack.c.b16 %v2236, %v2220
        %v2813 = vpack.c.b16 %v2253, %v2237
        %v2814 = vpack.c.b16 %v2254, %v2238
        %v2815 = vpack.c.b16 %v2255, %v2239
        %v2816 = vpack.c.b16 %v2256, %v2240
        %v2817 = vpack.c.b16 %v2257, %v2241
        %v2818 = vpack.c.b16 %v2258, %v2242
        %v2819 = vpack.c.b16 %v2259, %v2243
        %v2820 = vpack.c.b16 %v2260, %v2244
        %v2821 = vpack.c.b16 %v2261, %v2245
        %v2822 = vpack.c.b16 %v2262, %v2246
        %v2823 = vpack.c.b16 %v2263, %v2247
        %v2824 = vpack.c.b16 %v2264, %v2248
        %v2825 = vpack.c.b16 %v2265, %v2249
        %v2826 = vpack.c.b16 %v2266, %v2250
        %v2827 = vpack.c.b16 %v2267, %v2251
        %v2828 = vpack.c.b16 %v2268, %v2252
        %v2829 = vpack.c.b16 %v2285, %v2269
        %v2830 = vpack.c.b16 %v2286, %v2270
        %v2831 = vpack.c.b16 %v2287, %v2271
        %v2832 = vpack.c.b16 %v2288, %v2272
        %v2833 = vpack.c.b16 %v2289, %v2273
        %v2834 = vpack.c.b16 %v2290, %v2274
        %v2835 = vpack.c.b16 %v2291, %v2275
        %v2836 = vpack.c.b16 %v2292, %v2276
        %v2837 = vpack.c.b16 %v2293, %v2277
        %v2838 = vpack.c.b16 %v2294, %v2278
        %v2839 = vpack.c.b16 %v2295, %v2279
        %v2840 = vpack.c.b16 %v2296, %v2280
        %v2841 = vpack.c.b16 %v2297, %v2281
        %v2842 = vpack.c.b16 %v2298, %v2282
        %v2843 = vpack.c.b16 %v2299, %v2283
        %v2844 = vpack.c.b16 %v2300, %v2284
        %v2845 = vpack.c.b16 %v2317, %v2301
        %v2846 = vpack.c.b16 %v2318, %v2302
        %v2847 = vpack.c.b16 %v2319, %v2303
        %v2848 = vpack.c.b16 %v2320, %v2304
        %v2849 = vpack.c.b16 %v2321, %v2305
        %v2850 = vpack.c.b16 %v2322, %v2306
        %v2851 = vpack.c.b16 %v2323, %v2307
        %v2852 = vpack.c.b16 %v2324, %v2308
        %v2853 = vpack.c.b16 %v2325, %v2309
        %v2854 = vpack.c.b16 %v2326, %v2310
        %v2855 = vpack.c.b16 %v2327, %v2311
        %v2856 = vpack.c.b16 %v2328, %v2312
        %v2857 = vpack.c.b16 %v2329, %v2313
        %v2858 = vpack.c.b16 %v2330, %v2314
        %v2859 = vpack.c.b16 %v2331, %v2315
        %v2860 = vpack.c.b16 %v2332, %v2316
        %v2861 = vpack.c.b16 %v2349, %v2333
        %v2862 = vpack.c.b16 %v2350, %v2334
        %v2863 = vpack.c.b16 %v2351, %v2335
        %v2864 = vpack.c.b16 %v2352, %v2336
        %v2865 = vpack.c.b16 %v2353, %v2337
        %v2866 = vpack.c.b16 %v2354, %v2338
        %v2867 = vpack.c.b16 %v2355, %v2339
        %v2868 = vpack.c.b16 %v2356, %v2340
        %v2869 = vpack.c.b16 %v2357, %v2341
        %v2870 = vpack.c.b16 %v2358, %v2342
        %v2871 = vpack.c.b16 %v2359, %v2343
        %v2872 = vpack.c.b16 %v2360, %v2344
        %v2873 = vpack.c.b16 %v2361, %v2345
        %v2874 = vpack.c.b16 %v2362, %v2346
        %v2875 = vpack.c.b16 %v2363, %v2347
        %v2876 = vpack.c.b16 %v2364, %v2348
        %3389 = vmatpush.bf16.msra.mxu0 %v2477
        %3390 = vmatpush.bf16.msra.mxu0 %v2461
        %3391 = vmatpush.bf16.msra.mxu0 %v2445
        %3392 = vmatpush.bf16.msra.mxu0 %v2429
        %3393 = vmatpush.bf16.msra.mxu0 %v2413
        %3394 = vmatpush.bf16.msra.mxu0 %v2397
        %3395 = vmatpush.bf16.msra.mxu0 %v2381
        %3396 = vmatpush.bf16.msra.mxu0 %v2365
        %3397 = vmatmul.bf16.gmra.mxu0 %v313
        %v3398 = vpop.f32.mrf.mxu0
        %v3399 = vadd.f32 0.0, %v3398
        %v3400 = vpop.f32.mrf.mxu0
        %3401 = vdwg.mxu0
        %3402 = vmatpush.bf16.msra.mxu0 %v2605
        %3403 = vmatpush.bf16.msra.mxu0 %v2589
        %3404 = vmatpush.bf16.msra.mxu0 %v2573
        %3405 = vmatpush.bf16.msra.mxu0 %v2557
        %3406 = vmatpush.bf16.msra.mxu0 %v2541
        %3407 = vmatpush.bf16.msra.mxu0 %v2525
        %3408 = vmatpush.bf16.msra.mxu0 %v2509
        %3409 = vmatpush.bf16.msra.mxu0 %v2493
        %3410 = vmatmul.bf16.gmra.mxu0 %v314
        %v3411 = vpop.f32.mrf.mxu0
        %v3412 = vadd.f32 %v3399, %v3411
        %v3413 = vpop.f32.mrf.mxu0
        %3414 = vdwg.mxu0
        %3415 = vmatpush.bf16.msra.mxu0 %v2733
        %3416 = vmatpush.bf16.msra.mxu0 %v2717
        %3417 = vmatpush.bf16.msra.mxu0 %v2701
        %3418 = vmatpush.bf16.msra.mxu0 %v2685
        %3419 = vmatpush.bf16.msra.mxu0 %v2669
        %3420 = vmatpush.bf16.msra.mxu0 %v2653
        %3421 = vmatpush.bf16.msra.mxu0 %v2637
        %3422 = vmatpush.bf16.msra.mxu0 %v2621
        %3423 = vmatmul.bf16.gmra.mxu0 %v315
        %v3424 = vpop.f32.mrf.mxu0
        %v3425 = vadd.f32 %v3412, %v3424
        %v3426 = vpop.f32.mrf.mxu0
        %3427 = vdwg.mxu0
        %3428 = vmatpush.bf16.msra.mxu0 %v2861
        %3429 = vmatpush.bf16.msra.mxu0 %v2845
        %3430 = vmatpush.bf16.msra.mxu0 %v2829
        %3431 = vmatpush.bf16.msra.mxu0 %v2813
        %3432 = vmatpush.bf16.msra.mxu0 %v2797
        %3433 = vmatpush.bf16.msra.mxu0 %v2781
        %3434 = vmatpush.bf16.msra.mxu0 %v2765
        %3435 = vmatpush.bf16.msra.mxu0 %v2749
        %3436 = vmatmul.bf16.gmra.mxu0 %v316
        %v3437 = vpop.f32.mrf.mxu0
        %v3438 = vadd.f32 %v3425, %v3437
        %v3439 = vpop.f32.mrf.mxu0
        %3440 = vdwg.mxu0
        %3441 = vmatpush.bf16.msra.mxu0 %v2478
        %3442 = vmatpush.bf16.msra.mxu0 %v2462
        %3443 = vmatpush.bf16.msra.mxu0 %v2446
        %3444 = vmatpush.bf16.msra.mxu0 %v2430
        %3445 = vmatpush.bf16.msra.mxu0 %v2414
        %3446 = vmatpush.bf16.msra.mxu0 %v2398
        %3447 = vmatpush.bf16.msra.mxu0 %v2382
        %3448 = vmatpush.bf16.msra.mxu0 %v2366
        %3449 = vmatmul.bf16.gmra.mxu0 %v313
        %v3450 = vpop.f32.mrf.mxu0
        %v3451 = vadd.f32 0.0, %v3450
        %v3452 = vpop.f32.mrf.mxu0
        %3453 = vdwg.mxu0
        %3454 = vmatpush.bf16.msra.mxu0 %v2606
        %3455 = vmatpush.bf16.msra.mxu0 %v2590
        %3456 = vmatpush.bf16.msra.mxu0 %v2574
        %3457 = vmatpush.bf16.msra.mxu0 %v2558
        %3458 = vmatpush.bf16.msra.mxu0 %v2542
        %3459 = vmatpush.bf16.msra.mxu0 %v2526
        %3460 = vmatpush.bf16.msra.mxu0 %v2510
        %3461 = vmatpush.bf16.msra.mxu0 %v2494
        %3462 = vmatmul.bf16.gmra.mxu0 %v314
        %v3463 = vpop.f32.mrf.mxu0
        %v3464 = vadd.f32 %v3451, %v3463
        %v3465 = vpop.f32.mrf.mxu0
        %3466 = vdwg.mxu0
        %3467 = vmatpush.bf16.msra.mxu0 %v2734
        %3468 = vmatpush.bf16.msra.mxu0 %v2718
        %3469 = vmatpush.bf16.msra.mxu0 %v2702
        %3470 = vmatpush.bf16.msra.mxu0 %v2686
        %3471 = vmatpush.bf16.msra.mxu0 %v2670
        %3472 = vmatpush.bf16.msra.mxu0 %v2654
        %3473 = vmatpush.bf16.msra.mxu0 %v2638
        %3474 = vmatpush.bf16.msra.mxu0 %v2622
        %3475 = vmatmul.bf16.gmra.mxu0 %v315
        %v3476 = vpop.f32.mrf.mxu0
        %v3477 = vadd.f32 %v3464, %v3476
        %v3478 = vpop.f32.mrf.mxu0
        %3479 = vdwg.mxu0
        %3480 = vmatpush.bf16.msra.mxu0 %v2862
        %3481 = vmatpush.bf16.msra.mxu0 %v2846
        %3482 = vmatpush.bf16.msra.mxu0 %v2830
        %3483 = vmatpush.bf16.msra.mxu0 %v2814
        %3484 = vmatpush.bf16.msra.mxu0 %v2798
        %3485 = vmatpush.bf16.msra.mxu0 %v2782
        %3486 = vmatpush.bf16.msra.mxu0 %v2766
        %3487 = vmatpush.bf16.msra.mxu0 %v2750
        %3488 = vmatmul.bf16.gmra.mxu0 %v316
        %v3489 = vpop.f32.mrf.mxu0
        %v3490 = vadd.f32 %v3477, %v3489
        %v3491 = vpop.f32.mrf.mxu0
        %3492 = vdwg.mxu0
        %3493 = vmatpush.bf16.msra.mxu0 %v2479
        %3494 = vmatpush.bf16.msra.mxu0 %v2463
        %3495 = vmatpush.bf16.msra.mxu0 %v2447
        %3496 = vmatpush.bf16.msra.mxu0 %v2431
        %3497 = vmatpush.bf16.msra.mxu0 %v2415
        %3498 = vmatpush.bf16.msra.mxu0 %v2399
        %3499 = vmatpush.bf16.msra.mxu0 %v2383
        %3500 = vmatpush.bf16.msra.mxu0 %v2367
        %3501 = vmatmul.bf16.gmra.mxu0 %v313
        %v3502 = vpop.f32.mrf.mxu0
        %v3503 = vadd.f32 0.0, %v3502
        %v3504 = vpop.f32.mrf.mxu0
        %3505 = vdwg.mxu0
        %3506 = vmatpush.bf16.msra.mxu0 %v2607
        %3507 = vmatpush.bf16.msra.mxu0 %v2591
        %3508 = vmatpush.bf16.msra.mxu0 %v2575
        %3509 = vmatpush.bf16.msra.mxu0 %v2559
        %3510 = vmatpush.bf16.msra.mxu0 %v2543
        %3511 = vmatpush.bf16.msra.mxu0 %v2527
        %3512 = vmatpush.bf16.msra.mxu0 %v2511
        %3513 = vmatpush.bf16.msra.mxu0 %v2495
        %3514 = vmatmul.bf16.gmra.mxu0 %v314
        %v3515 = vpop.f32.mrf.mxu0
        %v3516 = vadd.f32 %v3503, %v3515
        %v3517 = vpop.f32.mrf.mxu0
        %3518 = vdwg.mxu0
        %3519 = vmatpush.bf16.msra.mxu0 %v2735
        %3520 = vmatpush.bf16.msra.mxu0 %v2719
        %3521 = vmatpush.bf16.msra.mxu0 %v2703
        %3522 = vmatpush.bf16.msra.mxu0 %v2687
        %3523 = vmatpush.bf16.msra.mxu0 %v2671
        %3524 = vmatpush.bf16.msra.mxu0 %v2655
        %3525 = vmatpush.bf16.msra.mxu0 %v2639
        %3526 = vmatpush.bf16.msra.mxu0 %v2623
        %3527 = vmatmul.bf16.gmra.mxu0 %v315
        %v3528 = vpop.f32.mrf.mxu0
        %v3529 = vadd.f32 %v3516, %v3528
        %v3530 = vpop.f32.mrf.mxu0
        %3531 = vdwg.mxu0
        %3532 = vmatpush.bf16.msra.mxu0 %v2863
        %3533 = vmatpush.bf16.msra.mxu0 %v2847
        %3534 = vmatpush.bf16.msra.mxu0 %v2831
        %3535 = vmatpush.bf16.msra.mxu0 %v2815
        %3536 = vmatpush.bf16.msra.mxu0 %v2799
        %3537 = vmatpush.bf16.msra.mxu0 %v2783
        %3538 = vmatpush.bf16.msra.mxu0 %v2767
        %3539 = vmatpush.bf16.msra.mxu0 %v2751
        %3540 = vmatmul.bf16.gmra.mxu0 %v316
        %v3541 = vpop.f32.mrf.mxu0
        %v3542 = vadd.f32 %v3529, %v3541
        %v3543 = vpop.f32.mrf.mxu0
        %3544 = vdwg.mxu0
        %3545 = vmatpush.bf16.msra.mxu0 %v2480
        %3546 = vmatpush.bf16.msra.mxu0 %v2464
        %3547 = vmatpush.bf16.msra.mxu0 %v2448
        %3548 = vmatpush.bf16.msra.mxu0 %v2432
        %3549 = vmatpush.bf16.msra.mxu0 %v2416
        %3550 = vmatpush.bf16.msra.mxu0 %v2400
        %3551 = vmatpush.bf16.msra.mxu0 %v2384
        %3552 = vmatpush.bf16.msra.mxu0 %v2368
        %3553 = vmatmul.bf16.gmra.mxu0 %v313
        %v3554 = vpop.f32.mrf.mxu0
        %v3555 = vadd.f32 0.0, %v3554
        %v3556 = vpop.f32.mrf.mxu0
        %3557 = vdwg.mxu0
        %3558 = vmatpush.bf16.msra.mxu0 %v2608
        %3559 = vmatpush.bf16.msra.mxu0 %v2592
        %3560 = vmatpush.bf16.msra.mxu0 %v2576
        %3561 = vmatpush.bf16.msra.mxu0 %v2560
        %3562 = vmatpush.bf16.msra.mxu0 %v2544
        %3563 = vmatpush.bf16.msra.mxu0 %v2528
        %3564 = vmatpush.bf16.msra.mxu0 %v2512
        %3565 = vmatpush.bf16.msra.mxu0 %v2496
        %3566 = vmatmul.bf16.gmra.mxu0 %v314
        %v3567 = vpop.f32.mrf.mxu0
        %v3568 = vadd.f32 %v3555, %v3567
        %v3569 = vpop.f32.mrf.mxu0
        %3570 = vdwg.mxu0
        %3571 = vmatpush.bf16.msra.mxu0 %v2736
        %3572 = vmatpush.bf16.msra.mxu0 %v2720
        %3573 = vmatpush.bf16.msra.mxu0 %v2704
        %3574 = vmatpush.bf16.msra.mxu0 %v2688
        %3575 = vmatpush.bf16.msra.mxu0 %v2672
        %3576 = vmatpush.bf16.msra.mxu0 %v2656
        %3577 = vmatpush.bf16.msra.mxu0 %v2640
        %3578 = vmatpush.bf16.msra.mxu0 %v2624
        %3579 = vmatmul.bf16.gmra.mxu0 %v315
        %v3580 = vpop.f32.mrf.mxu0
        %v3581 = vadd.f32 %v3568, %v3580
        %v3582 = vpop.f32.mrf.mxu0
        %3583 = vdwg.mxu0
        %3584 = vmatpush.bf16.msra.mxu0 %v2864
        %3585 = vmatpush.bf16.msra.mxu0 %v2848
        %3586 = vmatpush.bf16.msra.mxu0 %v2832
        %3587 = vmatpush.bf16.msra.mxu0 %v2816
        %3588 = vmatpush.bf16.msra.mxu0 %v2800
        %3589 = vmatpush.bf16.msra.mxu0 %v2784
        %3590 = vmatpush.bf16.msra.mxu0 %v2768
        %3591 = vmatpush.bf16.msra.mxu0 %v2752
        %3592 = vmatmul.bf16.gmra.mxu0 %v316
        %v3593 = vpop.f32.mrf.mxu0
        %v3594 = vadd.f32 %v3581, %v3593
        %v3595 = vpop.f32.mrf.mxu0
        %3596 = vdwg.mxu0
        %3597 = vmatpush.bf16.msra.mxu0 %v2481
        %3598 = vmatpush.bf16.msra.mxu0 %v2465
        %3599 = vmatpush.bf16.msra.mxu0 %v2449
        %3600 = vmatpush.bf16.msra.mxu0 %v2433
        %3601 = vmatpush.bf16.msra.mxu0 %v2417
        %3602 = vmatpush.bf16.msra.mxu0 %v2401
        %3603 = vmatpush.bf16.msra.mxu0 %v2385
        %3604 = vmatpush.bf16.msra.mxu0 %v2369
        %3605 = vmatmul.bf16.gmra.mxu0 %v313
        %v3606 = vpop.f32.mrf.mxu0
        %v3607 = vadd.f32 0.0, %v3606
        %v3608 = vpop.f32.mrf.mxu0
        %3609 = vdwg.mxu0
        %3610 = vmatpush.bf16.msra.mxu0 %v2609
        %3611 = vmatpush.bf16.msra.mxu0 %v2593
        %3612 = vmatpush.bf16.msra.mxu0 %v2577
        %3613 = vmatpush.bf16.msra.mxu0 %v2561
        %3614 = vmatpush.bf16.msra.mxu0 %v2545
        %3615 = vmatpush.bf16.msra.mxu0 %v2529
        %3616 = vmatpush.bf16.msra.mxu0 %v2513
        %3617 = vmatpush.bf16.msra.mxu0 %v2497
        %3618 = vmatmul.bf16.gmra.mxu0 %v314
        %v3619 = vpop.f32.mrf.mxu0
        %v3620 = vadd.f32 %v3607, %v3619
        %v3621 = vpop.f32.mrf.mxu0
        %3622 = vdwg.mxu0
        %3623 = vmatpush.bf16.msra.mxu0 %v2737
        %3624 = vmatpush.bf16.msra.mxu0 %v2721
        %3625 = vmatpush.bf16.msra.mxu0 %v2705
        %3626 = vmatpush.bf16.msra.mxu0 %v2689
        %3627 = vmatpush.bf16.msra.mxu0 %v2673
        %3628 = vmatpush.bf16.msra.mxu0 %v2657
        %3629 = vmatpush.bf16.msra.mxu0 %v2641
        %3630 = vmatpush.bf16.msra.mxu0 %v2625
        %3631 = vmatmul.bf16.gmra.mxu0 %v315
        %v3632 = vpop.f32.mrf.mxu0
        %v3633 = vadd.f32 %v3620, %v3632
        %v3634 = vpop.f32.mrf.mxu0
        %3635 = vdwg.mxu0
        %3636 = vmatpush.bf16.msra.mxu0 %v2865
        %3637 = vmatpush.bf16.msra.mxu0 %v2849
        %3638 = vmatpush.bf16.msra.mxu0 %v2833
        %3639 = vmatpush.bf16.msra.mxu0 %v2817
        %3640 = vmatpush.bf16.msra.mxu0 %v2801
        %3641 = vmatpush.bf16.msra.mxu0 %v2785
        %3642 = vmatpush.bf16.msra.mxu0 %v2769
        %3643 = vmatpush.bf16.msra.mxu0 %v2753
        %3644 = vmatmul.bf16.gmra.mxu0 %v316
        %v3645 = vpop.f32.mrf.mxu0
        %v3646 = vadd.f32 %v3633, %v3645
        %v3647 = vpop.f32.mrf.mxu0
        %3648 = vdwg.mxu0
        %3649 = vmatpush.bf16.msra.mxu0 %v2482
        %3650 = vmatpush.bf16.msra.mxu0 %v2466
        %3651 = vmatpush.bf16.msra.mxu0 %v2450
        %3652 = vmatpush.bf16.msra.mxu0 %v2434
        %3653 = vmatpush.bf16.msra.mxu0 %v2418
        %3654 = vmatpush.bf16.msra.mxu0 %v2402
        %3655 = vmatpush.bf16.msra.mxu0 %v2386
        %3656 = vmatpush.bf16.msra.mxu0 %v2370
        %3657 = vmatmul.bf16.gmra.mxu0 %v313
        %v3658 = vpop.f32.mrf.mxu0
        %v3659 = vadd.f32 0.0, %v3658
        %v3660 = vpop.f32.mrf.mxu0
        %3661 = vdwg.mxu0
        %3662 = vmatpush.bf16.msra.mxu0 %v2610
        %3663 = vmatpush.bf16.msra.mxu0 %v2594
        %3664 = vmatpush.bf16.msra.mxu0 %v2578
        %3665 = vmatpush.bf16.msra.mxu0 %v2562
        %3666 = vmatpush.bf16.msra.mxu0 %v2546
        %3667 = vmatpush.bf16.msra.mxu0 %v2530
        %3668 = vmatpush.bf16.msra.mxu0 %v2514
        %3669 = vmatpush.bf16.msra.mxu0 %v2498
        %3670 = vmatmul.bf16.gmra.mxu0 %v314
        %v3671 = vpop.f32.mrf.mxu0
        %v3672 = vadd.f32 %v3659, %v3671
        %v3673 = vpop.f32.mrf.mxu0
        %3674 = vdwg.mxu0
        %3675 = vmatpush.bf16.msra.mxu0 %v2738
        %3676 = vmatpush.bf16.msra.mxu0 %v2722
        %3677 = vmatpush.bf16.msra.mxu0 %v2706
        %3678 = vmatpush.bf16.msra.mxu0 %v2690
        %3679 = vmatpush.bf16.msra.mxu0 %v2674
        %3680 = vmatpush.bf16.msra.mxu0 %v2658
        %3681 = vmatpush.bf16.msra.mxu0 %v2642
        %3682 = vmatpush.bf16.msra.mxu0 %v2626
        %3683 = vmatmul.bf16.gmra.mxu0 %v315
        %v3684 = vpop.f32.mrf.mxu0
        %v3685 = vadd.f32 %v3672, %v3684
        %v3686 = vpop.f32.mrf.mxu0
        %3687 = vdwg.mxu0
        %3688 = vmatpush.bf16.msra.mxu0 %v2866
        %3689 = vmatpush.bf16.msra.mxu0 %v2850
        %3690 = vmatpush.bf16.msra.mxu0 %v2834
        %3691 = vmatpush.bf16.msra.mxu0 %v2818
        %3692 = vmatpush.bf16.msra.mxu0 %v2802
        %3693 = vmatpush.bf16.msra.mxu0 %v2786
        %3694 = vmatpush.bf16.msra.mxu0 %v2770
        %3695 = vmatpush.bf16.msra.mxu0 %v2754
        %3696 = vmatmul.bf16.gmra.mxu0 %v316
        %v3697 = vpop.f32.mrf.mxu0
        %v3698 = vadd.f32 %v3685, %v3697
        %v3699 = vpop.f32.mrf.mxu0
        %3700 = vdwg.mxu0
        %3701 = vmatpush.bf16.msra.mxu0 %v2483
        %3702 = vmatpush.bf16.msra.mxu0 %v2467
        %3703 = vmatpush.bf16.msra.mxu0 %v2451
        %3704 = vmatpush.bf16.msra.mxu0 %v2435
        %3705 = vmatpush.bf16.msra.mxu0 %v2419
        %3706 = vmatpush.bf16.msra.mxu0 %v2403
        %3707 = vmatpush.bf16.msra.mxu0 %v2387
        %3708 = vmatpush.bf16.msra.mxu0 %v2371
        %3709 = vmatmul.bf16.gmra.mxu0 %v313
        %v3710 = vpop.f32.mrf.mxu0
        %v3711 = vadd.f32 0.0, %v3710
        %v3712 = vpop.f32.mrf.mxu0
        %3713 = vdwg.mxu0
        %3714 = vmatpush.bf16.msra.mxu0 %v2611
        %3715 = vmatpush.bf16.msra.mxu0 %v2595
        %3716 = vmatpush.bf16.msra.mxu0 %v2579
        %3717 = vmatpush.bf16.msra.mxu0 %v2563
        %3718 = vmatpush.bf16.msra.mxu0 %v2547
        %3719 = vmatpush.bf16.msra.mxu0 %v2531
        %3720 = vmatpush.bf16.msra.mxu0 %v2515
        %3721 = vmatpush.bf16.msra.mxu0 %v2499
        %3722 = vmatmul.bf16.gmra.mxu0 %v314
        %v3723 = vpop.f32.mrf.mxu0
        %v3724 = vadd.f32 %v3711, %v3723
        %v3725 = vpop.f32.mrf.mxu0
        %3726 = vdwg.mxu0
        %3727 = vmatpush.bf16.msra.mxu0 %v2739
        %3728 = vmatpush.bf16.msra.mxu0 %v2723
        %3729 = vmatpush.bf16.msra.mxu0 %v2707
        %3730 = vmatpush.bf16.msra.mxu0 %v2691
        %3731 = vmatpush.bf16.msra.mxu0 %v2675
        %3732 = vmatpush.bf16.msra.mxu0 %v2659
        %3733 = vmatpush.bf16.msra.mxu0 %v2643
        %3734 = vmatpush.bf16.msra.mxu0 %v2627
        %3735 = vmatmul.bf16.gmra.mxu0 %v315
        %v3736 = vpop.f32.mrf.mxu0
        %v3737 = vadd.f32 %v3724, %v3736
        %v3738 = vpop.f32.mrf.mxu0
        %3739 = vdwg.mxu0
        %3740 = vmatpush.bf16.msra.mxu0 %v2867
        %3741 = vmatpush.bf16.msra.mxu0 %v2851
        %3742 = vmatpush.bf16.msra.mxu0 %v2835
        %3743 = vmatpush.bf16.msra.mxu0 %v2819
        %3744 = vmatpush.bf16.msra.mxu0 %v2803
        %3745 = vmatpush.bf16.msra.mxu0 %v2787
        %3746 = vmatpush.bf16.msra.mxu0 %v2771
        %3747 = vmatpush.bf16.msra.mxu0 %v2755
        %3748 = vmatmul.bf16.gmra.mxu0 %v316
        %v3749 = vpop.f32.mrf.mxu0
        %v3750 = vadd.f32 %v3737, %v3749
        %v3751 = vpop.f32.mrf.mxu0
        %3752 = vdwg.mxu0
        %3753 = vmatpush.bf16.msra.mxu0 %v2484
        %3754 = vmatpush.bf16.msra.mxu0 %v2468
        %3755 = vmatpush.bf16.msra.mxu0 %v2452
        %3756 = vmatpush.bf16.msra.mxu0 %v2436
        %3757 = vmatpush.bf16.msra.mxu0 %v2420
        %3758 = vmatpush.bf16.msra.mxu0 %v2404
        %3759 = vmatpush.bf16.msra.mxu0 %v2388
        %3760 = vmatpush.bf16.msra.mxu0 %v2372
        %3761 = vmatmul.bf16.gmra.mxu0 %v313
        %v3762 = vpop.f32.mrf.mxu0
        %v3763 = vadd.f32 0.0, %v3762
        %v3764 = vpop.f32.mrf.mxu0
        %3765 = vdwg.mxu0
        %3766 = vmatpush.bf16.msra.mxu0 %v2612
        %3767 = vmatpush.bf16.msra.mxu0 %v2596
        %3768 = vmatpush.bf16.msra.mxu0 %v2580
        %3769 = vmatpush.bf16.msra.mxu0 %v2564
        %3770 = vmatpush.bf16.msra.mxu0 %v2548
        %3771 = vmatpush.bf16.msra.mxu0 %v2532
        %3772 = vmatpush.bf16.msra.mxu0 %v2516
        %3773 = vmatpush.bf16.msra.mxu0 %v2500
        %3774 = vmatmul.bf16.gmra.mxu0 %v314
        %v3775 = vpop.f32.mrf.mxu0
        %v3776 = vadd.f32 %v3763, %v3775
        %v3777 = vpop.f32.mrf.mxu0
        %3778 = vdwg.mxu0
        %3779 = vmatpush.bf16.msra.mxu0 %v2740
        %3780 = vmatpush.bf16.msra.mxu0 %v2724
        %3781 = vmatpush.bf16.msra.mxu0 %v2708
        %3782 = vmatpush.bf16.msra.mxu0 %v2692
        %3783 = vmatpush.bf16.msra.mxu0 %v2676
        %3784 = vmatpush.bf16.msra.mxu0 %v2660
        %3785 = vmatpush.bf16.msra.mxu0 %v2644
        %3786 = vmatpush.bf16.msra.mxu0 %v2628
        %3787 = vmatmul.bf16.gmra.mxu0 %v315
        %v3788 = vpop.f32.mrf.mxu0
        %v3789 = vadd.f32 %v3776, %v3788
        %v3790 = vpop.f32.mrf.mxu0
        %3791 = vdwg.mxu0
        %3792 = vmatpush.bf16.msra.mxu0 %v2868
        %3793 = vmatpush.bf16.msra.mxu0 %v2852
        %3794 = vmatpush.bf16.msra.mxu0 %v2836
        %3795 = vmatpush.bf16.msra.mxu0 %v2820
        %3796 = vmatpush.bf16.msra.mxu0 %v2804
        %3797 = vmatpush.bf16.msra.mxu0 %v2788
        %3798 = vmatpush.bf16.msra.mxu0 %v2772
        %3799 = vmatpush.bf16.msra.mxu0 %v2756
        %3800 = vmatmul.bf16.gmra.mxu0 %v316
        %v3801 = vpop.f32.mrf.mxu0
        %v3802 = vadd.f32 %v3789, %v3801
        %v3803 = vpop.f32.mrf.mxu0
        %3804 = vdwg.mxu0
        %3805 = vmatpush.bf16.msra.mxu0 %v2485
        %3806 = vmatpush.bf16.msra.mxu0 %v2469
        %3807 = vmatpush.bf16.msra.mxu0 %v2453
        %3808 = vmatpush.bf16.msra.mxu0 %v2437
        %3809 = vmatpush.bf16.msra.mxu0 %v2421
        %3810 = vmatpush.bf16.msra.mxu0 %v2405
        %3811 = vmatpush.bf16.msra.mxu0 %v2389
        %3812 = vmatpush.bf16.msra.mxu0 %v2373
        %3813 = vmatmul.bf16.gmra.mxu0 %v313
        %v3814 = vpop.f32.mrf.mxu0
        %v3815 = vadd.f32 0.0, %v3814
        %v3816 = vpop.f32.mrf.mxu0
        %3817 = vdwg.mxu0
        %3818 = vmatpush.bf16.msra.mxu0 %v2613
        %3819 = vmatpush.bf16.msra.mxu0 %v2597
        %3820 = vmatpush.bf16.msra.mxu0 %v2581
        %3821 = vmatpush.bf16.msra.mxu0 %v2565
        %3822 = vmatpush.bf16.msra.mxu0 %v2549
        %3823 = vmatpush.bf16.msra.mxu0 %v2533
        %3824 = vmatpush.bf16.msra.mxu0 %v2517
        %3825 = vmatpush.bf16.msra.mxu0 %v2501
        %3826 = vmatmul.bf16.gmra.mxu0 %v314
        %v3827 = vpop.f32.mrf.mxu0
        %v3828 = vadd.f32 %v3815, %v3827
        %v3829 = vpop.f32.mrf.mxu0
        %3830 = vdwg.mxu0
        %3831 = vmatpush.bf16.msra.mxu0 %v2741
        %3832 = vmatpush.bf16.msra.mxu0 %v2725
        %3833 = vmatpush.bf16.msra.mxu0 %v2709
        %3834 = vmatpush.bf16.msra.mxu0 %v2693
        %3835 = vmatpush.bf16.msra.mxu0 %v2677
        %3836 = vmatpush.bf16.msra.mxu0 %v2661
        %3837 = vmatpush.bf16.msra.mxu0 %v2645
        %3838 = vmatpush.bf16.msra.mxu0 %v2629
        %3839 = vmatmul.bf16.gmra.mxu0 %v315
        %v3840 = vpop.f32.mrf.mxu0
        %v3841 = vadd.f32 %v3828, %v3840
        %v3842 = vpop.f32.mrf.mxu0
        %3843 = vdwg.mxu0
        %3844 = vmatpush.bf16.msra.mxu0 %v2869
        %3845 = vmatpush.bf16.msra.mxu0 %v2853
        %3846 = vmatpush.bf16.msra.mxu0 %v2837
        %3847 = vmatpush.bf16.msra.mxu0 %v2821
        %3848 = vmatpush.bf16.msra.mxu0 %v2805
        %3849 = vmatpush.bf16.msra.mxu0 %v2789
        %3850 = vmatpush.bf16.msra.mxu0 %v2773
        %3851 = vmatpush.bf16.msra.mxu0 %v2757
        %3852 = vmatmul.bf16.gmra.mxu0 %v316
        %v3853 = vpop.f32.mrf.mxu0
        %v3854 = vadd.f32 %v3841, %v3853
        %v3855 = vpop.f32.mrf.mxu0
        %3856 = vdwg.mxu0
        %3857 = vmatpush.bf16.msra.mxu0 %v2486
        %3858 = vmatpush.bf16.msra.mxu0 %v2470
        %3859 = vmatpush.bf16.msra.mxu0 %v2454
        %3860 = vmatpush.bf16.msra.mxu0 %v2438
        %3861 = vmatpush.bf16.msra.mxu0 %v2422
        %3862 = vmatpush.bf16.msra.mxu0 %v2406
        %3863 = vmatpush.bf16.msra.mxu0 %v2390
        %3864 = vmatpush.bf16.msra.mxu0 %v2374
        %3865 = vmatmul.bf16.gmra.mxu0 %v313
        %v3866 = vpop.f32.mrf.mxu0
        %v3867 = vadd.f32 0.0, %v3866
        %v3868 = vpop.f32.mrf.mxu0
        %3869 = vdwg.mxu0
        %3870 = vmatpush.bf16.msra.mxu0 %v2614
        %3871 = vmatpush.bf16.msra.mxu0 %v2598
        %3872 = vmatpush.bf16.msra.mxu0 %v2582
        %3873 = vmatpush.bf16.msra.mxu0 %v2566
        %3874 = vmatpush.bf16.msra.mxu0 %v2550
        %3875 = vmatpush.bf16.msra.mxu0 %v2534
        %3876 = vmatpush.bf16.msra.mxu0 %v2518
        %3877 = vmatpush.bf16.msra.mxu0 %v2502
        %3878 = vmatmul.bf16.gmra.mxu0 %v314
        %v3879 = vpop.f32.mrf.mxu0
        %v3880 = vadd.f32 %v3867, %v3879
        %v3881 = vpop.f32.mrf.mxu0
        %3882 = vdwg.mxu0
        %3883 = vmatpush.bf16.msra.mxu0 %v2742
        %3884 = vmatpush.bf16.msra.mxu0 %v2726
        %3885 = vmatpush.bf16.msra.mxu0 %v2710
        %3886 = vmatpush.bf16.msra.mxu0 %v2694
        %3887 = vmatpush.bf16.msra.mxu0 %v2678
        %3888 = vmatpush.bf16.msra.mxu0 %v2662
        %3889 = vmatpush.bf16.msra.mxu0 %v2646
        %3890 = vmatpush.bf16.msra.mxu0 %v2630
        %3891 = vmatmul.bf16.gmra.mxu0 %v315
        %v3892 = vpop.f32.mrf.mxu0
        %v3893 = vadd.f32 %v3880, %v3892
        %v3894 = vpop.f32.mrf.mxu0
        %3895 = vdwg.mxu0
        %3896 = vmatpush.bf16.msra.mxu0 %v2870
        %3897 = vmatpush.bf16.msra.mxu0 %v2854
        %3898 = vmatpush.bf16.msra.mxu0 %v2838
        %3899 = vmatpush.bf16.msra.mxu0 %v2822
        %3900 = vmatpush.bf16.msra.mxu0 %v2806
        %3901 = vmatpush.bf16.msra.mxu0 %v2790
        %3902 = vmatpush.bf16.msra.mxu0 %v2774
        %3903 = vmatpush.bf16.msra.mxu0 %v2758
        %3904 = vmatmul.bf16.gmra.mxu0 %v316
        %v3905 = vpop.f32.mrf.mxu0
        %v3906 = vadd.f32 %v3893, %v3905
        %v3907 = vpop.f32.mrf.mxu0
        %3908 = vdwg.mxu0
        %3909 = vmatpush.bf16.msra.mxu0 %v2487
        %3910 = vmatpush.bf16.msra.mxu0 %v2471
        %3911 = vmatpush.bf16.msra.mxu0 %v2455
        %3912 = vmatpush.bf16.msra.mxu0 %v2439
        %3913 = vmatpush.bf16.msra.mxu0 %v2423
        %3914 = vmatpush.bf16.msra.mxu0 %v2407
        %3915 = vmatpush.bf16.msra.mxu0 %v2391
        %3916 = vmatpush.bf16.msra.mxu0 %v2375
        %3917 = vmatmul.bf16.gmra.mxu0 %v313
        %v3918 = vpop.f32.mrf.mxu0
        %v3919 = vadd.f32 0.0, %v3918
        %v3920 = vpop.f32.mrf.mxu0
        %3921 = vdwg.mxu0
        %3922 = vmatpush.bf16.msra.mxu0 %v2615
        %3923 = vmatpush.bf16.msra.mxu0 %v2599
        %3924 = vmatpush.bf16.msra.mxu0 %v2583
        %3925 = vmatpush.bf16.msra.mxu0 %v2567
        %3926 = vmatpush.bf16.msra.mxu0 %v2551
        %3927 = vmatpush.bf16.msra.mxu0 %v2535
        %3928 = vmatpush.bf16.msra.mxu0 %v2519
        %3929 = vmatpush.bf16.msra.mxu0 %v2503
        %3930 = vmatmul.bf16.gmra.mxu0 %v314
        %v3931 = vpop.f32.mrf.mxu0
        %v3932 = vadd.f32 %v3919, %v3931
        %v3933 = vpop.f32.mrf.mxu0
        %3934 = vdwg.mxu0
        %3935 = vmatpush.bf16.msra.mxu0 %v2743
        %3936 = vmatpush.bf16.msra.mxu0 %v2727
        %3937 = vmatpush.bf16.msra.mxu0 %v2711
        %3938 = vmatpush.bf16.msra.mxu0 %v2695
        %3939 = vmatpush.bf16.msra.mxu0 %v2679
        %3940 = vmatpush.bf16.msra.mxu0 %v2663
        %3941 = vmatpush.bf16.msra.mxu0 %v2647
        %3942 = vmatpush.bf16.msra.mxu0 %v2631
        %3943 = vmatmul.bf16.gmra.mxu0 %v315
        %v3944 = vpop.f32.mrf.mxu0
        %v3945 = vadd.f32 %v3932, %v3944
        %v3946 = vpop.f32.mrf.mxu0
        %3947 = vdwg.mxu0
        %3948 = vmatpush.bf16.msra.mxu0 %v2871
        %3949 = vmatpush.bf16.msra.mxu0 %v2855
        %3950 = vmatpush.bf16.msra.mxu0 %v2839
        %3951 = vmatpush.bf16.msra.mxu0 %v2823
        %3952 = vmatpush.bf16.msra.mxu0 %v2807
        %3953 = vmatpush.bf16.msra.mxu0 %v2791
        %3954 = vmatpush.bf16.msra.mxu0 %v2775
        %3955 = vmatpush.bf16.msra.mxu0 %v2759
        %3956 = vmatmul.bf16.gmra.mxu0 %v316
        %v3957 = vpop.f32.mrf.mxu0
        %v3958 = vadd.f32 %v3945, %v3957
        %v3959 = vpop.f32.mrf.mxu0
        %3960 = vdwg.mxu0
        %3961 = vmatpush.bf16.msra.mxu0 %v2488
        %3962 = vmatpush.bf16.msra.mxu0 %v2472
        %3963 = vmatpush.bf16.msra.mxu0 %v2456
        %3964 = vmatpush.bf16.msra.mxu0 %v2440
        %3965 = vmatpush.bf16.msra.mxu0 %v2424
        %3966 = vmatpush.bf16.msra.mxu0 %v2408
        %3967 = vmatpush.bf16.msra.mxu0 %v2392
        %3968 = vmatpush.bf16.msra.mxu0 %v2376
        %3969 = vmatmul.bf16.gmra.mxu0 %v313
        %v3970 = vpop.f32.mrf.mxu0
        %v3971 = vadd.f32 0.0, %v3970
        %v3972 = vpop.f32.mrf.mxu0
        %3973 = vdwg.mxu0
        %3974 = vmatpush.bf16.msra.mxu0 %v2616
        %3975 = vmatpush.bf16.msra.mxu0 %v2600
        %3976 = vmatpush.bf16.msra.mxu0 %v2584
        %3977 = vmatpush.bf16.msra.mxu0 %v2568
        %3978 = vmatpush.bf16.msra.mxu0 %v2552
        %3979 = vmatpush.bf16.msra.mxu0 %v2536
        %3980 = vmatpush.bf16.msra.mxu0 %v2520
        %3981 = vmatpush.bf16.msra.mxu0 %v2504
        %3982 = vmatmul.bf16.gmra.mxu0 %v314
        %v3983 = vpop.f32.mrf.mxu0
        %v3984 = vadd.f32 %v3971, %v3983
        %v3985 = vpop.f32.mrf.mxu0
        %3986 = vdwg.mxu0
        %3987 = vmatpush.bf16.msra.mxu0 %v2744
        %3988 = vmatpush.bf16.msra.mxu0 %v2728
        %3989 = vmatpush.bf16.msra.mxu0 %v2712
        %3990 = vmatpush.bf16.msra.mxu0 %v2696
        %3991 = vmatpush.bf16.msra.mxu0 %v2680
        %3992 = vmatpush.bf16.msra.mxu0 %v2664
        %3993 = vmatpush.bf16.msra.mxu0 %v2648
        %3994 = vmatpush.bf16.msra.mxu0 %v2632
        %3995 = vmatmul.bf16.gmra.mxu0 %v315
        %v3996 = vpop.f32.mrf.mxu0
        %v3997 = vadd.f32 %v3984, %v3996
        %v3998 = vpop.f32.mrf.mxu0
        %3999 = vdwg.mxu0
        %4000 = vmatpush.bf16.msra.mxu0 %v2872
        %4001 = vmatpush.bf16.msra.mxu0 %v2856
        %4002 = vmatpush.bf16.msra.mxu0 %v2840
        %4003 = vmatpush.bf16.msra.mxu0 %v2824
        %4004 = vmatpush.bf16.msra.mxu0 %v2808
        %4005 = vmatpush.bf16.msra.mxu0 %v2792
        %4006 = vmatpush.bf16.msra.mxu0 %v2776
        %4007 = vmatpush.bf16.msra.mxu0 %v2760
        %4008 = vmatmul.bf16.gmra.mxu0 %v316
        %v4009 = vpop.f32.mrf.mxu0
        %v4010 = vadd.f32 %v3997, %v4009
        %v4011 = vpop.f32.mrf.mxu0
        %4012 = vdwg.mxu0
        %4013 = vmatpush.bf16.msra.mxu0 %v2489
        %4014 = vmatpush.bf16.msra.mxu0 %v2473
        %4015 = vmatpush.bf16.msra.mxu0 %v2457
        %4016 = vmatpush.bf16.msra.mxu0 %v2441
        %4017 = vmatpush.bf16.msra.mxu0 %v2425
        %4018 = vmatpush.bf16.msra.mxu0 %v2409
        %4019 = vmatpush.bf16.msra.mxu0 %v2393
        %4020 = vmatpush.bf16.msra.mxu0 %v2377
        %4021 = vmatmul.bf16.gmra.mxu0 %v313
        %v4022 = vpop.f32.mrf.mxu0
        %v4023 = vadd.f32 0.0, %v4022
        %v4024 = vpop.f32.mrf.mxu0
        %4025 = vdwg.mxu0
        %4026 = vmatpush.bf16.msra.mxu0 %v2617
        %4027 = vmatpush.bf16.msra.mxu0 %v2601
        %4028 = vmatpush.bf16.msra.mxu0 %v2585
        %4029 = vmatpush.bf16.msra.mxu0 %v2569
        %4030 = vmatpush.bf16.msra.mxu0 %v2553
        %4031 = vmatpush.bf16.msra.mxu0 %v2537
        %4032 = vmatpush.bf16.msra.mxu0 %v2521
        %4033 = vmatpush.bf16.msra.mxu0 %v2505
        %4034 = vmatmul.bf16.gmra.mxu0 %v314
        %v4035 = vpop.f32.mrf.mxu0
        %v4036 = vadd.f32 %v4023, %v4035
        %v4037 = vpop.f32.mrf.mxu0
        %4038 = vdwg.mxu0
        %4039 = vmatpush.bf16.msra.mxu0 %v2745
        %4040 = vmatpush.bf16.msra.mxu0 %v2729
        %4041 = vmatpush.bf16.msra.mxu0 %v2713
        %4042 = vmatpush.bf16.msra.mxu0 %v2697
        %4043 = vmatpush.bf16.msra.mxu0 %v2681
        %4044 = vmatpush.bf16.msra.mxu0 %v2665
        %4045 = vmatpush.bf16.msra.mxu0 %v2649
        %4046 = vmatpush.bf16.msra.mxu0 %v2633
        %4047 = vmatmul.bf16.gmra.mxu0 %v315
        %v4048 = vpop.f32.mrf.mxu0
        %v4049 = vadd.f32 %v4036, %v4048
        %v4050 = vpop.f32.mrf.mxu0
        %4051 = vdwg.mxu0
        %4052 = vmatpush.bf16.msra.mxu0 %v2873
        %4053 = vmatpush.bf16.msra.mxu0 %v2857
        %4054 = vmatpush.bf16.msra.mxu0 %v2841
        %4055 = vmatpush.bf16.msra.mxu0 %v2825
        %4056 = vmatpush.bf16.msra.mxu0 %v2809
        %4057 = vmatpush.bf16.msra.mxu0 %v2793
        %4058 = vmatpush.bf16.msra.mxu0 %v2777
        %4059 = vmatpush.bf16.msra.mxu0 %v2761
        %4060 = vmatmul.bf16.gmra.mxu0 %v316
        %v4061 = vpop.f32.mrf.mxu0
        %v4062 = vadd.f32 %v4049, %v4061
        %v4063 = vpop.f32.mrf.mxu0
        %4064 = vdwg.mxu0
        %4065 = vmatpush.bf16.msra.mxu0 %v2490
        %4066 = vmatpush.bf16.msra.mxu0 %v2474
        %4067 = vmatpush.bf16.msra.mxu0 %v2458
        %4068 = vmatpush.bf16.msra.mxu0 %v2442
        %4069 = vmatpush.bf16.msra.mxu0 %v2426
        %4070 = vmatpush.bf16.msra.mxu0 %v2410
        %4071 = vmatpush.bf16.msra.mxu0 %v2394
        %4072 = vmatpush.bf16.msra.mxu0 %v2378
        %4073 = vmatmul.bf16.gmra.mxu0 %v313
        %v4074 = vpop.f32.mrf.mxu0
        %v4075 = vadd.f32 0.0, %v4074
        %v4076 = vpop.f32.mrf.mxu0
        %4077 = vdwg.mxu0
        %4078 = vmatpush.bf16.msra.mxu0 %v2618
        %4079 = vmatpush.bf16.msra.mxu0 %v2602
        %4080 = vmatpush.bf16.msra.mxu0 %v2586
        %4081 = vmatpush.bf16.msra.mxu0 %v2570
        %4082 = vmatpush.bf16.msra.mxu0 %v2554
        %4083 = vmatpush.bf16.msra.mxu0 %v2538
        %4084 = vmatpush.bf16.msra.mxu0 %v2522
        %4085 = vmatpush.bf16.msra.mxu0 %v2506
        %4086 = vmatmul.bf16.gmra.mxu0 %v314
        %v4087 = vpop.f32.mrf.mxu0
        %v4088 = vadd.f32 %v4075, %v4087
        %v4089 = vpop.f32.mrf.mxu0
        %4090 = vdwg.mxu0
        %4091 = vmatpush.bf16.msra.mxu0 %v2746
        %4092 = vmatpush.bf16.msra.mxu0 %v2730
        %4093 = vmatpush.bf16.msra.mxu0 %v2714
        %4094 = vmatpush.bf16.msra.mxu0 %v2698
        %4095 = vmatpush.bf16.msra.mxu0 %v2682
        %4096 = vmatpush.bf16.msra.mxu0 %v2666
        %4097 = vmatpush.bf16.msra.mxu0 %v2650
        %4098 = vmatpush.bf16.msra.mxu0 %v2634
        %4099 = vmatmul.bf16.gmra.mxu0 %v315
        %v4100 = vpop.f32.mrf.mxu0
        %v4101 = vadd.f32 %v4088, %v4100
        %v4102 = vpop.f32.mrf.mxu0
        %4103 = vdwg.mxu0
        %4104 = vmatpush.bf16.msra.mxu0 %v2874
        %4105 = vmatpush.bf16.msra.mxu0 %v2858
        %4106 = vmatpush.bf16.msra.mxu0 %v2842
        %4107 = vmatpush.bf16.msra.mxu0 %v2826
        %4108 = vmatpush.bf16.msra.mxu0 %v2810
        %4109 = vmatpush.bf16.msra.mxu0 %v2794
        %4110 = vmatpush.bf16.msra.mxu0 %v2778
        %4111 = vmatpush.bf16.msra.mxu0 %v2762
        %4112 = vmatmul.bf16.gmra.mxu0 %v316
        %v4113 = vpop.f32.mrf.mxu0
        %v4114 = vadd.f32 %v4101, %v4113
        %v4115 = vpop.f32.mrf.mxu0
        %4116 = vdwg.mxu0
        %4117 = vmatpush.bf16.msra.mxu0 %v2491
        %4118 = vmatpush.bf16.msra.mxu0 %v2475
        %4119 = vmatpush.bf16.msra.mxu0 %v2459
        %4120 = vmatpush.bf16.msra.mxu0 %v2443
        %4121 = vmatpush.bf16.msra.mxu0 %v2427
        %4122 = vmatpush.bf16.msra.mxu0 %v2411
        %4123 = vmatpush.bf16.msra.mxu0 %v2395
        %4124 = vmatpush.bf16.msra.mxu0 %v2379
        %4125 = vmatmul.bf16.gmra.mxu0 %v313
        %v4126 = vpop.f32.mrf.mxu0
        %v4127 = vadd.f32 0.0, %v4126
        %v4128 = vpop.f32.mrf.mxu0
        %4129 = vdwg.mxu0
        %4130 = vmatpush.bf16.msra.mxu0 %v2619
        %4131 = vmatpush.bf16.msra.mxu0 %v2603
        %4132 = vmatpush.bf16.msra.mxu0 %v2587
        %4133 = vmatpush.bf16.msra.mxu0 %v2571
        %4134 = vmatpush.bf16.msra.mxu0 %v2555
        %4135 = vmatpush.bf16.msra.mxu0 %v2539
        %4136 = vmatpush.bf16.msra.mxu0 %v2523
        %4137 = vmatpush.bf16.msra.mxu0 %v2507
        %4138 = vmatmul.bf16.gmra.mxu0 %v314
        %v4139 = vpop.f32.mrf.mxu0
        %v4140 = vadd.f32 %v4127, %v4139
        %v4141 = vpop.f32.mrf.mxu0
        %4142 = vdwg.mxu0
        %4143 = vmatpush.bf16.msra.mxu0 %v2747
        %4144 = vmatpush.bf16.msra.mxu0 %v2731
        %4145 = vmatpush.bf16.msra.mxu0 %v2715
        %4146 = vmatpush.bf16.msra.mxu0 %v2699
        %4147 = vmatpush.bf16.msra.mxu0 %v2683
        %4148 = vmatpush.bf16.msra.mxu0 %v2667
        %4149 = vmatpush.bf16.msra.mxu0 %v2651
        %4150 = vmatpush.bf16.msra.mxu0 %v2635
        %4151 = vmatmul.bf16.gmra.mxu0 %v315
        %v4152 = vpop.f32.mrf.mxu0
        %v4153 = vadd.f32 %v4140, %v4152
        %v4154 = vpop.f32.mrf.mxu0
        %4155 = vdwg.mxu0
        %4156 = vmatpush.bf16.msra.mxu0 %v2875
        %4157 = vmatpush.bf16.msra.mxu0 %v2859
        %4158 = vmatpush.bf16.msra.mxu0 %v2843
        %4159 = vmatpush.bf16.msra.mxu0 %v2827
        %4160 = vmatpush.bf16.msra.mxu0 %v2811
        %4161 = vmatpush.bf16.msra.mxu0 %v2795
        %4162 = vmatpush.bf16.msra.mxu0 %v2779
        %4163 = vmatpush.bf16.msra.mxu0 %v2763
        %4164 = vmatmul.bf16.gmra.mxu0 %v316
        %v4165 = vpop.f32.mrf.mxu0
        %v4166 = vadd.f32 %v4153, %v4165
        %v4167 = vpop.f32.mrf.mxu0
        %4168 = vdwg.mxu0
        %4169 = vmatpush.bf16.msra.mxu0 %v2492
        %4170 = vmatpush.bf16.msra.mxu0 %v2476
        %4171 = vmatpush.bf16.msra.mxu0 %v2460
        %4172 = vmatpush.bf16.msra.mxu0 %v2444
        %4173 = vmatpush.bf16.msra.mxu0 %v2428
        %4174 = vmatpush.bf16.msra.mxu0 %v2412
        %4175 = vmatpush.bf16.msra.mxu0 %v2396
        %4176 = vmatpush.bf16.msra.mxu0 %v2380
        %4177 = vmatmul.bf16.gmra.mxu0 %v313
        %v4178 = vpop.f32.mrf.mxu0
        %v4179 = vadd.f32 0.0, %v4178
        %v4180 = vpop.f32.mrf.mxu0
        %4181 = vdwg.mxu0
        %4182 = vmatpush.bf16.msra.mxu0 %v2620
        %4183 = vmatpush.bf16.msra.mxu0 %v2604
        %4184 = vmatpush.bf16.msra.mxu0 %v2588
        %4185 = vmatpush.bf16.msra.mxu0 %v2572
        %4186 = vmatpush.bf16.msra.mxu0 %v2556
        %4187 = vmatpush.bf16.msra.mxu0 %v2540
        %4188 = vmatpush.bf16.msra.mxu0 %v2524
        %4189 = vmatpush.bf16.msra.mxu0 %v2508
        %4190 = vmatmul.bf16.gmra.mxu0 %v314
        %v4191 = vpop.f32.mrf.mxu0
        %v4192 = vadd.f32 %v4179, %v4191
        %v4193 = vpop.f32.mrf.mxu0
        %4194 = vdwg.mxu0
        %4195 = vmatpush.bf16.msra.mxu0 %v2748
        %4196 = vmatpush.bf16.msra.mxu0 %v2732
        %4197 = vmatpush.bf16.msra.mxu0 %v2716
        %4198 = vmatpush.bf16.msra.mxu0 %v2700
        %4199 = vmatpush.bf16.msra.mxu0 %v2684
        %4200 = vmatpush.bf16.msra.mxu0 %v2668
        %4201 = vmatpush.bf16.msra.mxu0 %v2652
        %4202 = vmatpush.bf16.msra.mxu0 %v2636
        %4203 = vmatmul.bf16.gmra.mxu0 %v315
        %v4204 = vpop.f32.mrf.mxu0
        %v4205 = vadd.f32 %v4192, %v4204
        %v4206 = vpop.f32.mrf.mxu0
        %4207 = vdwg.mxu0
        %4208 = vmatpush.bf16.msra.mxu0 %v2876
        %4209 = vmatpush.bf16.msra.mxu0 %v2860
        %4210 = vmatpush.bf16.msra.mxu0 %v2844
        %4211 = vmatpush.bf16.msra.mxu0 %v2828
        %4212 = vmatpush.bf16.msra.mxu0 %v2812
        %4213 = vmatpush.bf16.msra.mxu0 %v2796
        %4214 = vmatpush.bf16.msra.mxu0 %v2780
        %4215 = vmatpush.bf16.msra.mxu0 %v2764
        %4216 = vmatmul.bf16.gmra.mxu0 %v316
        %v4217 = vpop.f32.mrf.mxu0
        %v4218 = vadd.f32 %v4205, %v4217
        %v4219 = vpop.f32.mrf.mxu0
        %4220 = vdwg.mxu0
        %v4221 = vld [vmem:[#allocation11] sm:$0xff]
        %v4222 = vld [vmem:[#allocation11 + $0x8] sm:$0xff]
        %v4223 = vld [vmem:[#allocation11 + $0x10] sm:$0xff]
        %v4224 = vld [vmem:[#allocation11 + $0x18] sm:$0xff]
        %v4225 = vld [vmem:[#allocation11 + $0x20] sm:$0xff]
        %v4226 = vld [vmem:[#allocation11 + $0x28] sm:$0xff]
        %v4233 = vperm.slane %v4221, 3
        %v4234 = vperm.slane %v4221, 7
        %v4235 = vperm.slane %v4222, 3
        %v4236 = vperm.slane %v4222, 7
        %v4237 = vperm.slane %v4223, 3
        %v4238 = vperm.slane %v4223, 7
        %v4239 = vperm.slane %v4224, 3
        %v4240 = vperm.slane %v4224, 7
        %v4241 = vperm.slane %v4225, 3
        %v4242 = vperm.slane %v4225, 7
        %v4243 = vperm.slane %v4226, 3
        %v4244 = vperm.slane %v4226, 7
        %v4257 = vperm.slane %v4233, 3
        %v4258 = vperm.slane %v4234, 3
        %v4259 = vperm.slane %v4235, 3
        %v4260 = vperm.slane %v4236, 3
        %v4261 = vperm.slane %v4237, 3
        %v4262 = vperm.slane %v4238, 3
        %v4263 = vperm.slane %v4239, 3
        %v4264 = vperm.slane %v4240, 3
        %v4265 = vperm.slane %v4241, 3
        %v4266 = vperm.slane %v4242, 3
        %v4267 = vperm.slane %v4243, 3
        %v4268 = vperm.slane %v4244, 3
        %v4269 = vmul.f32 %v3438, %v4257
        %v4270 = vmul.f32 %v3490, %v4258
        %v4271 = vmul.f32 %v3542, %v4259
        %v4272 = vmul.f32 %v3594, %v4260
        %v4273 = vmul.f32 %v3646, %v4261
        %v4274 = vmul.f32 %v3698, %v4262
        %v4275 = vmul.f32 %v3750, %v4263
        %v4276 = vmul.f32 %v3802, %v4264
        %v4277 = vmul.f32 %v3854, %v4265
        %v4278 = vmul.f32 %v3906, %v4266
        %v4279 = vmul.f32 %v3958, %v4267
        %v4280 = vmul.f32 %v4010, %v4268
        %v4281 = vlaneseq
        %v4282 = vshrl.u32 %v4281, 7
        %v4283 = vrot.slane %v3438, 5
        %v4284 = vrot.slane %v3490, 5
        %v4285 = vrot.slane %v3542, 5
        %v4286 = vrot.slane %v3594, 5
        %v4287 = vrot.slane %v3646, 5
        %v4288 = vrot.slane %v3698, 5
        %v4289 = vrot.slane %v3750, 5
        %v4290 = vrot.slane %v3802, 5
        %v4291 = vrot.slane %v3854, 5
        %v4292 = vrot.slane %v3906, 5
        %v4293 = vrot.slane %v3958, 5
        %v4294 = vrot.slane %v4010, 5
        %vm4295 = vcmp.ge.s32.totalorder %v4282, 3
        %v4296 = vsel %vm4295, %v4283, 0.0
        %v4297 = vsel %vm4295, %v4284, 0.0
        %v4298 = vsel %vm4295, %v4285, 0.0
        %v4299 = vsel %vm4295, %v4286, 0.0
        %v4300 = vsel %vm4295, %v4287, 0.0
        %v4301 = vsel %vm4295, %v4288, 0.0
        %v4302 = vsel %vm4295, %v4289, 0.0
        %v4303 = vsel %vm4295, %v4290, 0.0
        %v4304 = vsel %vm4295, %v4291, 0.0
        %v4305 = vsel %vm4295, %v4292, 0.0
        %v4306 = vsel %vm4295, %v4293, 0.0
        %v4307 = vsel %vm4295, %v4294, 0.0
        %v4308 = vperm.slane %v4221, 0
        %v4309 = vperm.slane %v4221, 4
        %v4310 = vperm.slane %v4222, 0
        %v4311 = vperm.slane %v4222, 4
        %v4312 = vperm.slane %v4223, 0
        %v4313 = vperm.slane %v4223, 4
        %v4314 = vperm.slane %v4224, 0
        %v4315 = vperm.slane %v4224, 4
        %v4316 = vperm.slane %v4225, 0
        %v4317 = vperm.slane %v4225, 4
        %v4318 = vperm.slane %v4226, 0
        %v4319 = vperm.slane %v4226, 4
        %v4332 = vperm.slane %v4308, 0
        %v4333 = vperm.slane %v4309, 0
        %v4334 = vperm.slane %v4310, 0
        %v4335 = vperm.slane %v4311, 0
        %v4336 = vperm.slane %v4312, 0
        %v4337 = vperm.slane %v4313, 0
        %v4338 = vperm.slane %v4314, 0
        %v4339 = vperm.slane %v4315, 0
        %v4340 = vperm.slane %v4316, 0
        %v4341 = vperm.slane %v4317, 0
        %v4342 = vperm.slane %v4318, 0
        %v4343 = vperm.slane %v4319, 0
        %v4344 = vmul.f32 %v4296, %v4332
        %v4345 = vmul.f32 %v4297, %v4333
        %v4346 = vmul.f32 %v4298, %v4334
        %v4347 = vmul.f32 %v4299, %v4335
        %v4348 = vmul.f32 %v4300, %v4336
        %v4349 = vmul.f32 %v4301, %v4337
        %v4350 = vmul.f32 %v4302, %v4338
        %v4351 = vmul.f32 %v4303, %v4339
        %v4352 = vmul.f32 %v4304, %v4340
        %v4353 = vmul.f32 %v4305, %v4341
        %v4354 = vmul.f32 %v4306, %v4342
        %v4355 = vmul.f32 %v4307, %v4343
        %v4356 = vadd.f32 %v4269, %v4344
        %v4357 = vadd.f32 %v4270, %v4345
        %v4358 = vadd.f32 %v4271, %v4346
        %v4359 = vadd.f32 %v4272, %v4347
        %v4360 = vadd.f32 %v4273, %v4348
        %v4361 = vadd.f32 %v4274, %v4349
        %v4362 = vadd.f32 %v4275, %v4350
        %v4363 = vadd.f32 %v4276, %v4351
        %v4364 = vadd.f32 %v4277, %v4352
        %v4365 = vadd.f32 %v4278, %v4353
        %v4366 = vadd.f32 %v4279, %v4354
        %v4367 = vadd.f32 %v4280, %v4355
        %v4368 = vrot.slane %v3438, 6
        %v4369 = vrot.slane %v3490, 6
        %v4370 = vrot.slane %v3542, 6
        %v4371 = vrot.slane %v3594, 6
        %v4372 = vrot.slane %v3646, 6
        %v4373 = vrot.slane %v3698, 6
        %v4374 = vrot.slane %v3750, 6
        %v4375 = vrot.slane %v3802, 6
        %v4376 = vrot.slane %v3854, 6
        %v4377 = vrot.slane %v3906, 6
        %v4378 = vrot.slane %v3958, 6
        %v4379 = vrot.slane %v4010, 6
        %vm4380 = vcmp.ge.s32.totalorder %v4282, 2
        %v4381 = vsel %vm4380, %v4368, 0.0
        %v4382 = vsel %vm4380, %v4369, 0.0
        %v4383 = vsel %vm4380, %v4370, 0.0
        %v4384 = vsel %vm4380, %v4371, 0.0
        %v4385 = vsel %vm4380, %v4372, 0.0
        %v4386 = vsel %vm4380, %v4373, 0.0
        %v4387 = vsel %vm4380, %v4374, 0.0
        %v4388 = vsel %vm4380, %v4375, 0.0
        %v4389 = vsel %vm4380, %v4376, 0.0
        %v4390 = vsel %vm4380, %v4377, 0.0
        %v4391 = vsel %vm4380, %v4378, 0.0
        %v4392 = vsel %vm4380, %v4379, 0.0
        %v4393 = vperm.slane %v4221, 1
        %v4394 = vperm.slane %v4221, 5
        %v4395 = vperm.slane %v4222, 1
        %v4396 = vperm.slane %v4222, 5
        %v4397 = vperm.slane %v4223, 1
        %v4398 = vperm.slane %v4223, 5
        %v4399 = vperm.slane %v4224, 1
        %v4400 = vperm.slane %v4224, 5
        %v4401 = vperm.slane %v4225, 1
        %v4402 = vperm.slane %v4225, 5
        %v4403 = vperm.slane %v4226, 1
        %v4404 = vperm.slane %v4226, 5
        %v4417 = vperm.slane %v4393, 1
        %v4418 = vperm.slane %v4394, 1
        %v4419 = vperm.slane %v4395, 1
        %v4420 = vperm.slane %v4396, 1
        %v4421 = vperm.slane %v4397, 1
        %v4422 = vperm.slane %v4398, 1
        %v4423 = vperm.slane %v4399, 1
        %v4424 = vperm.slane %v4400, 1
        %v4425 = vperm.slane %v4401, 1
        %v4426 = vperm.slane %v4402, 1
        %v4427 = vperm.slane %v4403, 1
        %v4428 = vperm.slane %v4404, 1
        %v4429 = vmul.f32 %v4381, %v4417
        %v4430 = vmul.f32 %v4382, %v4418
        %v4431 = vmul.f32 %v4383, %v4419
        %v4432 = vmul.f32 %v4384, %v4420
        %v4433 = vmul.f32 %v4385, %v4421
        %v4434 = vmul.f32 %v4386, %v4422
        %v4435 = vmul.f32 %v4387, %v4423
        %v4436 = vmul.f32 %v4388, %v4424
        %v4437 = vmul.f32 %v4389, %v4425
        %v4438 = vmul.f32 %v4390, %v4426
        %v4439 = vmul.f32 %v4391, %v4427
        %v4440 = vmul.f32 %v4392, %v4428
        %v4441 = vadd.f32 %v4356, %v4429
        %v4442 = vadd.f32 %v4357, %v4430
        %v4443 = vadd.f32 %v4358, %v4431
        %v4444 = vadd.f32 %v4359, %v4432
        %v4445 = vadd.f32 %v4360, %v4433
        %v4446 = vadd.f32 %v4361, %v4434
        %v4447 = vadd.f32 %v4362, %v4435
        %v4448 = vadd.f32 %v4363, %v4436
        %v4449 = vadd.f32 %v4364, %v4437
        %v4450 = vadd.f32 %v4365, %v4438
        %v4451 = vadd.f32 %v4366, %v4439
        %v4452 = vadd.f32 %v4367, %v4440
        %v4453 = vrot.slane %v3438, 7
        %v4454 = vrot.slane %v3490, 7
        %v4455 = vrot.slane %v3542, 7
        %v4456 = vrot.slane %v3594, 7
        %v4457 = vrot.slane %v3646, 7
        %v4458 = vrot.slane %v3698, 7
        %v4459 = vrot.slane %v3750, 7
        %v4460 = vrot.slane %v3802, 7
        %v4461 = vrot.slane %v3854, 7
        %v4462 = vrot.slane %v3906, 7
        %v4463 = vrot.slane %v3958, 7
        %v4464 = vrot.slane %v4010, 7
        %vm4465 = vcmp.ge.s32.totalorder %v4282, 1
        %v4466 = vsel %vm4465, %v4453, 0.0
        %v4467 = vsel %vm4465, %v4454, 0.0
        %v4468 = vsel %vm4465, %v4455, 0.0
        %v4469 = vsel %vm4465, %v4456, 0.0
        %v4470 = vsel %vm4465, %v4457, 0.0
        %v4471 = vsel %vm4465, %v4458, 0.0
        %v4472 = vsel %vm4465, %v4459, 0.0
        %v4473 = vsel %vm4465, %v4460, 0.0
        %v4474 = vsel %vm4465, %v4461, 0.0
        %v4475 = vsel %vm4465, %v4462, 0.0
        %v4476 = vsel %vm4465, %v4463, 0.0
        %v4477 = vsel %vm4465, %v4464, 0.0
        %v4478 = vperm.slane %v4221, 2
        %v4479 = vperm.slane %v4221, 6
        %v4480 = vperm.slane %v4222, 2
        %v4481 = vperm.slane %v4222, 6
        %v4482 = vperm.slane %v4223, 2
        %v4483 = vperm.slane %v4223, 6
        %v4484 = vperm.slane %v4224, 2
        %v4485 = vperm.slane %v4224, 6
        %v4486 = vperm.slane %v4225, 2
        %v4487 = vperm.slane %v4225, 6
        %v4488 = vperm.slane %v4226, 2
        %v4489 = vperm.slane %v4226, 6
        %v4502 = vperm.slane %v4478, 2
        %v4503 = vperm.slane %v4479, 2
        %v4504 = vperm.slane %v4480, 2
        %v4505 = vperm.slane %v4481, 2
        %v4506 = vperm.slane %v4482, 2
        %v4507 = vperm.slane %v4483, 2
        %v4508 = vperm.slane %v4484, 2
        %v4509 = vperm.slane %v4485, 2
        %v4510 = vperm.slane %v4486, 2
        %v4511 = vperm.slane %v4487, 2
        %v4512 = vperm.slane %v4488, 2
        %v4513 = vperm.slane %v4489, 2
        %v4514 = vmul.f32 %v4466, %v4502
        %v4515 = vmul.f32 %v4467, %v4503
        %v4516 = vmul.f32 %v4468, %v4504
        %v4517 = vmul.f32 %v4469, %v4505
        %v4518 = vmul.f32 %v4470, %v4506
        %v4519 = vmul.f32 %v4471, %v4507
        %v4520 = vmul.f32 %v4472, %v4508
        %v4521 = vmul.f32 %v4473, %v4509
        %v4522 = vmul.f32 %v4474, %v4510
        %v4523 = vmul.f32 %v4475, %v4511
        %v4524 = vmul.f32 %v4476, %v4512
        %v4525 = vmul.f32 %v4477, %v4513
        %v4526 = vadd.f32 %v4441, %v4514
        %v4527 = vadd.f32 %v4442, %v4515
        %v4528 = vadd.f32 %v4443, %v4516
        %v4529 = vadd.f32 %v4444, %v4517
        %v4530 = vadd.f32 %v4445, %v4518
        %v4531 = vadd.f32 %v4446, %v4519
        %v4532 = vadd.f32 %v4447, %v4520
        %v4533 = vadd.f32 %v4448, %v4521
        %v4534 = vadd.f32 %v4449, %v4522
        %v4535 = vadd.f32 %v4450, %v4523
        %v4536 = vadd.f32 %v4451, %v4524
        %v4537 = vadd.f32 %v4452, %v4525
        %v4538 = vxor.u32 %v4526, 2147483648
        %v4539 = vxor.u32 %v4527, 2147483648
        %v4540 = vxor.u32 %v4528, 2147483648
        %v4541 = vxor.u32 %v4529, 2147483648
        %v4542 = vxor.u32 %v4530, 2147483648
        %v4543 = vxor.u32 %v4531, 2147483648
        %v4544 = vxor.u32 %v4532, 2147483648
        %v4545 = vxor.u32 %v4533, 2147483648
        %v4546 = vxor.u32 %v4534, 2147483648
        %v4547 = vxor.u32 %v4535, 2147483648
        %v4548 = vxor.u32 %v4536, 2147483648
        %v4549 = vxor.u32 %v4537, 2147483648
        %v4550 = vmul.f32 %v4538, 1.442695
        %v4551 = vpow.pop %v4550
        %v4552 = vmul.f32 %v4539, 1.442695
        %v4553 = vpow.pop %v4552
        %v4554 = vmul.f32 %v4540, 1.442695
        %v4555 = vpow.pop %v4554
        %v4556 = vmul.f32 %v4541, 1.442695
        %v4557 = vpow.pop %v4556
        %v4558 = vmul.f32 %v4542, 1.442695
        %v4559 = vpow.pop %v4558
        %v4560 = vmul.f32 %v4543, 1.442695
        %v4561 = vpow.pop %v4560
        %v4562 = vmul.f32 %v4544, 1.442695
        %v4563 = vpow.pop %v4562
        %v4564 = vmul.f32 %v4545, 1.442695
        %v4565 = vpow.pop %v4564
        %v4566 = vmul.f32 %v4546, 1.442695
        %v4567 = vpow.pop %v4566
        %v4568 = vmul.f32 %v4547, 1.442695
        %v4569 = vpow.pop %v4568
        %v4570 = vmul.f32 %v4548, 1.442695
        %v4571 = vpow.pop %v4570
        %v4572 = vmul.f32 %v4549, 1.442695
        %v4573 = vpow.pop %v4572
        %v4574 = vadd.f32 %v4551, 1.0
        %v4575 = vadd.f32 %v4553, 1.0
        %v4576 = vadd.f32 %v4555, 1.0
        %v4577 = vadd.f32 %v4557, 1.0
        %v4578 = vadd.f32 %v4559, 1.0
        %v4579 = vadd.f32 %v4561, 1.0
        %v4580 = vadd.f32 %v4563, 1.0
        %v4581 = vadd.f32 %v4565, 1.0
        %v4582 = vadd.f32 %v4567, 1.0
        %v4583 = vadd.f32 %v4569, 1.0
        %v4584 = vadd.f32 %v4571, 1.0
        %v4585 = vadd.f32 %v4573, 1.0
        %v4586 = vrcp.pop %v4574
        %v4587 = vmul.f32 %v4574, %v4586
        %v4588 = vsub.f32 1.0, %v4587
        %v4589 = vmul.f32 %v4586, %v4588
        %v4590 = vadd.f32 %v4586, %v4589
        %vm4591 = vweird.f32 %v4574
        %vm4592 = vweird.f32 %v4586
        %vm4593 = vmor %vm4591, %vm4592
        %v4594 = vsel %vm4593, %v4586, %v4590
        %v4595 = vand.u32 2147483647, %v4574
        %vm4596 = vcmp.eq.f32.partialorder %v4595, 8.507059e+37
        %v4597 = vand.u32 %v4574, 2147483648
        %v4598 = vor.u32 1.1754944e-38, %v4597
        %v4599 = vsel %vm4596, %v4598, %v4594
        %v4600 = vmul.f32 1.0, %v4599
        %v4601 = vrcp.pop %v4575
        %v4602 = vmul.f32 %v4575, %v4601
        %v4603 = vsub.f32 1.0, %v4602
        %v4604 = vmul.f32 %v4601, %v4603
        %v4605 = vadd.f32 %v4601, %v4604
        %vm4606 = vweird.f32 %v4575
        %vm4607 = vweird.f32 %v4601
        %vm4608 = vmor %vm4606, %vm4607
        %v4609 = vsel %vm4608, %v4601, %v4605
        %v4610 = vand.u32 2147483647, %v4575
        %vm4611 = vcmp.eq.f32.partialorder %v4610, 8.507059e+37
        %v4612 = vand.u32 %v4575, 2147483648
        %v4613 = vor.u32 1.1754944e-38, %v4612
        %v4614 = vsel %vm4611, %v4613, %v4609
        %v4615 = vmul.f32 1.0, %v4614
        %v4616 = vrcp.pop %v4576
        %v4617 = vmul.f32 %v4576, %v4616
        %v4618 = vsub.f32 1.0, %v4617
        %v4619 = vmul.f32 %v4616, %v4618
        %v4620 = vadd.f32 %v4616, %v4619
        %vm4621 = vweird.f32 %v4576
        %vm4622 = vweird.f32 %v4616
        %vm4623 = vmor %vm4621, %vm4622
        %v4624 = vsel %vm4623, %v4616, %v4620
        %v4625 = vand.u32 2147483647, %v4576
        %vm4626 = vcmp.eq.f32.partialorder %v4625, 8.507059e+37
        %v4627 = vand.u32 %v4576, 2147483648
        %v4628 = vor.u32 1.1754944e-38, %v4627
        %v4629 = vsel %vm4626, %v4628, %v4624
        %v4630 = vmul.f32 1.0, %v4629
        %v4631 = vrcp.pop %v4577
        %v4632 = vmul.f32 %v4577, %v4631
        %v4633 = vsub.f32 1.0, %v4632
        %v4634 = vmul.f32 %v4631, %v4633
        %v4635 = vadd.f32 %v4631, %v4634
        %vm4636 = vweird.f32 %v4577
        %vm4637 = vweird.f32 %v4631
        %vm4638 = vmor %vm4636, %vm4637
        %v4639 = vsel %vm4638, %v4631, %v4635
        %v4640 = vand.u32 2147483647, %v4577
        %vm4641 = vcmp.eq.f32.partialorder %v4640, 8.507059e+37
        %v4642 = vand.u32 %v4577, 2147483648
        %v4643 = vor.u32 1.1754944e-38, %v4642
        %v4644 = vsel %vm4641, %v4643, %v4639
        %v4645 = vmul.f32 1.0, %v4644
        %v4646 = vrcp.pop %v4578
        %v4647 = vmul.f32 %v4578, %v4646
        %v4648 = vsub.f32 1.0, %v4647
        %v4649 = vmul.f32 %v4646, %v4648
        %v4650 = vadd.f32 %v4646, %v4649
        %vm4651 = vweird.f32 %v4578
        %vm4652 = vweird.f32 %v4646
        %vm4653 = vmor %vm4651, %vm4652
        %v4654 = vsel %vm4653, %v4646, %v4650
        %v4655 = vand.u32 2147483647, %v4578
        %vm4656 = vcmp.eq.f32.partialorder %v4655, 8.507059e+37
        %v4657 = vand.u32 %v4578, 2147483648
        %v4658 = vor.u32 1.1754944e-38, %v4657
        %v4659 = vsel %vm4656, %v4658, %v4654
        %v4660 = vmul.f32 1.0, %v4659
        %v4661 = vrcp.pop %v4579
        %v4662 = vmul.f32 %v4579, %v4661
        %v4663 = vsub.f32 1.0, %v4662
        %v4664 = vmul.f32 %v4661, %v4663
        %v4665 = vadd.f32 %v4661, %v4664
        %vm4666 = vweird.f32 %v4579
        %vm4667 = vweird.f32 %v4661
        %vm4668 = vmor %vm4666, %vm4667
        %v4669 = vsel %vm4668, %v4661, %v4665
        %v4670 = vand.u32 2147483647, %v4579
        %vm4671 = vcmp.eq.f32.partialorder %v4670, 8.507059e+37
        %v4672 = vand.u32 %v4579, 2147483648
        %v4673 = vor.u32 1.1754944e-38, %v4672
        %v4674 = vsel %vm4671, %v4673, %v4669
        %v4675 = vmul.f32 1.0, %v4674
        %v4676 = vrcp.pop %v4580
        %v4677 = vmul.f32 %v4580, %v4676
        %v4678 = vsub.f32 1.0, %v4677
        %v4679 = vmul.f32 %v4676, %v4678
        %v4680 = vadd.f32 %v4676, %v4679
        %vm4681 = vweird.f32 %v4580
        %vm4682 = vweird.f32 %v4676
        %vm4683 = vmor %vm4681, %vm4682
        %v4684 = vsel %vm4683, %v4676, %v4680
        %v4685 = vand.u32 2147483647, %v4580
        %vm4686 = vcmp.eq.f32.partialorder %v4685, 8.507059e+37
        %v4687 = vand.u32 %v4580, 2147483648
        %v4688 = vor.u32 1.1754944e-38, %v4687
        %v4689 = vsel %vm4686, %v4688, %v4684
        %v4690 = vmul.f32 1.0, %v4689
        %v4691 = vrcp.pop %v4581
        %v4692 = vmul.f32 %v4581, %v4691
        %v4693 = vsub.f32 1.0, %v4692
        %v4694 = vmul.f32 %v4691, %v4693
        %v4695 = vadd.f32 %v4691, %v4694
        %vm4696 = vweird.f32 %v4581
        %vm4697 = vweird.f32 %v4691
        %vm4698 = vmor %vm4696, %vm4697
        %v4699 = vsel %vm4698, %v4691, %v4695
        %v4700 = vand.u32 2147483647, %v4581
        %vm4701 = vcmp.eq.f32.partialorder %v4700, 8.507059e+37
        %v4702 = vand.u32 %v4581, 2147483648
        %v4703 = vor.u32 1.1754944e-38, %v4702
        %v4704 = vsel %vm4701, %v4703, %v4699
        %v4705 = vmul.f32 1.0, %v4704
        %v4706 = vrcp.pop %v4582
        %v4707 = vmul.f32 %v4582, %v4706
        %v4708 = vsub.f32 1.0, %v4707
        %v4709 = vmul.f32 %v4706, %v4708
        %v4710 = vadd.f32 %v4706, %v4709
        %vm4711 = vweird.f32 %v4582
        %vm4712 = vweird.f32 %v4706
        %vm4713 = vmor %vm4711, %vm4712
        %v4714 = vsel %vm4713, %v4706, %v4710
        %v4715 = vand.u32 2147483647, %v4582
        %vm4716 = vcmp.eq.f32.partialorder %v4715, 8.507059e+37
        %v4717 = vand.u32 %v4582, 2147483648
        %v4718 = vor.u32 1.1754944e-38, %v4717
        %v4719 = vsel %vm4716, %v4718, %v4714
        %v4720 = vmul.f32 1.0, %v4719
        %v4721 = vrcp.pop %v4583
        %v4722 = vmul.f32 %v4583, %v4721
        %v4723 = vsub.f32 1.0, %v4722
        %v4724 = vmul.f32 %v4721, %v4723
        %v4725 = vadd.f32 %v4721, %v4724
        %vm4726 = vweird.f32 %v4583
        %vm4727 = vweird.f32 %v4721
        %vm4728 = vmor %vm4726, %vm4727
        %v4729 = vsel %vm4728, %v4721, %v4725
        %v4730 = vand.u32 2147483647, %v4583
        %vm4731 = vcmp.eq.f32.partialorder %v4730, 8.507059e+37
        %v4732 = vand.u32 %v4583, 2147483648
        %v4733 = vor.u32 1.1754944e-38, %v4732
        %v4734 = vsel %vm4731, %v4733, %v4729
        %v4735 = vmul.f32 1.0, %v4734
        %v4736 = vrcp.pop %v4584
        %v4737 = vmul.f32 %v4584, %v4736
        %v4738 = vsub.f32 1.0, %v4737
        %v4739 = vmul.f32 %v4736, %v4738
        %v4740 = vadd.f32 %v4736, %v4739
        %vm4741 = vweird.f32 %v4584
        %vm4742 = vweird.f32 %v4736
        %vm4743 = vmor %vm4741, %vm4742
        %v4744 = vsel %vm4743, %v4736, %v4740
        %v4745 = vand.u32 2147483647, %v4584
        %vm4746 = vcmp.eq.f32.partialorder %v4745, 8.507059e+37
        %v4747 = vand.u32 %v4584, 2147483648
        %v4748 = vor.u32 1.1754944e-38, %v4747
        %v4749 = vsel %vm4746, %v4748, %v4744
        %v4750 = vmul.f32 1.0, %v4749
        %v4751 = vrcp.pop %v4585
        %v4752 = vmul.f32 %v4585, %v4751
        %v4753 = vsub.f32 1.0, %v4752
        %v4754 = vmul.f32 %v4751, %v4753
        %v4755 = vadd.f32 %v4751, %v4754
        %vm4756 = vweird.f32 %v4585
        %vm4757 = vweird.f32 %v4751
        %vm4758 = vmor %vm4756, %vm4757
        %v4759 = vsel %vm4758, %v4751, %v4755
        %v4760 = vand.u32 2147483647, %v4585
        %vm4761 = vcmp.eq.f32.partialorder %v4760, 8.507059e+37
        %v4762 = vand.u32 %v4585, 2147483648
        %v4763 = vor.u32 1.1754944e-38, %v4762
        %v4764 = vsel %vm4761, %v4763, %v4759
        %v4765 = vmul.f32 1.0, %v4764
        %v4766 = vmul.f32 %v4526, %v4600
        %v4767 = vmul.f32 %v4527, %v4615
        %v4768 = vmul.f32 %v4528, %v4630
        %v4769 = vmul.f32 %v4529, %v4645
        %v4770 = vmul.f32 %v4530, %v4660
        %v4771 = vmul.f32 %v4531, %v4675
        %v4772 = vmul.f32 %v4532, %v4690
        %v4773 = vmul.f32 %v4533, %v4705
        %v4774 = vmul.f32 %v4534, %v4720
        %v4775 = vmul.f32 %v4535, %v4735
        %v4776 = vmul.f32 %v4536, %v4750
        %v4777 = vmul.f32 %v4537, %v4765
        %v4778 = vxor.u32 %v4062, 2147483648
        %v4779 = vxor.u32 %v4114, 2147483648
        %v4780 = vxor.u32 %v4166, 2147483648
        %v4781 = vxor.u32 %v4218, 2147483648
        %v4782 = vmul.f32 %v4778, 1.442695
        %v4783 = vpow.pop %v4782
        %v4784 = vmul.f32 %v4779, 1.442695
        %v4785 = vpow.pop %v4784
        %v4786 = vmul.f32 %v4780, 1.442695
        %v4787 = vpow.pop %v4786
        %v4788 = vmul.f32 %v4781, 1.442695
        %v4789 = vpow.pop %v4788
        %v4790 = vadd.f32 %v4783, 1.0
        %v4791 = vadd.f32 %v4785, 1.0
        %v4792 = vadd.f32 %v4787, 1.0
        %v4793 = vadd.f32 %v4789, 1.0
        %v4794 = vrcp.pop %v4790
        %v4795 = vmul.f32 %v4790, %v4794
        %v4796 = vsub.f32 1.0, %v4795
        %v4797 = vmul.f32 %v4794, %v4796
        %v4798 = vadd.f32 %v4794, %v4797
        %vm4799 = vweird.f32 %v4790
        %vm4800 = vweird.f32 %v4794
        %vm4801 = vmor %vm4799, %vm4800
        %v4802 = vsel %vm4801, %v4794, %v4798
        %v4803 = vand.u32 2147483647, %v4790
        %vm4804 = vcmp.eq.f32.partialorder %v4803, 8.507059e+37
        %v4805 = vand.u32 %v4790, 2147483648
        %v4806 = vor.u32 1.1754944e-38, %v4805
        %v4807 = vsel %vm4804, %v4806, %v4802
        %v4808 = vmul.f32 1.0, %v4807
        %v4809 = vrcp.pop %v4791
        %v4810 = vmul.f32 %v4791, %v4809
        %v4811 = vsub.f32 1.0, %v4810
        %v4812 = vmul.f32 %v4809, %v4811
        %v4813 = vadd.f32 %v4809, %v4812
        %vm4814 = vweird.f32 %v4791
        %vm4815 = vweird.f32 %v4809
        %vm4816 = vmor %vm4814, %vm4815
        %v4817 = vsel %vm4816, %v4809, %v4813
        %v4818 = vand.u32 2147483647, %v4791
        %vm4819 = vcmp.eq.f32.partialorder %v4818, 8.507059e+37
        %v4820 = vand.u32 %v4791, 2147483648
        %v4821 = vor.u32 1.1754944e-38, %v4820
        %v4822 = vsel %vm4819, %v4821, %v4817
        %v4823 = vmul.f32 1.0, %v4822
        %v4824 = vrcp.pop %v4792
        %v4825 = vmul.f32 %v4792, %v4824
        %v4826 = vsub.f32 1.0, %v4825
        %v4827 = vmul.f32 %v4824, %v4826
        %v4828 = vadd.f32 %v4824, %v4827
        %vm4829 = vweird.f32 %v4792
        %vm4830 = vweird.f32 %v4824
        %vm4831 = vmor %vm4829, %vm4830
        %v4832 = vsel %vm4831, %v4824, %v4828
        %v4833 = vand.u32 2147483647, %v4792
        %vm4834 = vcmp.eq.f32.partialorder %v4833, 8.507059e+37
        %v4835 = vand.u32 %v4792, 2147483648
        %v4836 = vor.u32 1.1754944e-38, %v4835
        %v4837 = vsel %vm4834, %v4836, %v4832
        %v4838 = vmul.f32 1.0, %v4837
        %v4839 = vrcp.pop %v4793
        %v4840 = vmul.f32 %v4793, %v4839
        %v4841 = vsub.f32 1.0, %v4840
        %v4842 = vmul.f32 %v4839, %v4841
        %v4843 = vadd.f32 %v4839, %v4842
        %vm4844 = vweird.f32 %v4793
        %vm4845 = vweird.f32 %v4839
        %vm4846 = vmor %vm4844, %vm4845
        %v4847 = vsel %vm4846, %v4839, %v4843
        %v4848 = vand.u32 2147483647, %v4793
        %vm4849 = vcmp.eq.f32.partialorder %v4848, 8.507059e+37
        %v4850 = vand.u32 %v4793, 2147483648
        %v4851 = vor.u32 1.1754944e-38, %v4850
        %v4852 = vsel %vm4849, %v4851, %v4847
        %v4853 = vmul.f32 1.0, %v4852
        %4854 = vst [vmem:[#allocation4] sm:$0xff] %v4808
        %4855 = vst [vmem:[#allocation4 + $0x8] sm:$0xff] %v4823
        %4856 = vst [vmem:[#allocation4 + $0x10] sm:$0xff] %v4838
        %4857 = vst [vmem:[#allocation4 + $0x18] sm:$0xff] %v4853
        %4858 = vst [vmem:[#allocation3] sm:$0xff] %v4774
        %4859 = vst [vmem:[#allocation3 + $0x8] sm:$0xff] %v4775
        %4860 = vst [vmem:[#allocation3 + $0x10] sm:$0xff] %v4776
        %4861 = vst [vmem:[#allocation3 + $0x18] sm:$0xff] %v4777
        %v4862 = vld [vmem:[#allocation12] sm:$0xff]
        %v4863 = vld [vmem:[#allocation12 + $0x8] sm:$0xff]
        %v4864 = vld [vmem:[#allocation12 + $0x10] sm:$0xff]
        %v4865 = vld [vmem:[#allocation12 + $0x18] sm:$0xff]
        %v4866 = vld [vmem:[#allocation12 + $0x20] sm:$0xff]
        %v4867 = vld [vmem:[#allocation12 + $0x28] sm:$0xff]
        %v4868 = vld [vmem:[#allocation12 + $0x30] sm:$0xff]
        %v4869 = vld [vmem:[#allocation12 + $0x38] sm:$0xff]
        %v4870 = vld [vmem:[#allocation12 + $0x40] sm:$0xff]
        %v4871 = vld [vmem:[#allocation12 + $0x48] sm:$0xff]
        %v4872 = vld [vmem:[#allocation12 + $0x50] sm:$0xff]
        %v4873 = vld [vmem:[#allocation12 + $0x58] sm:$0xff]
        %v4874 = vld [vmem:[#allocation12 + $0x60] sm:$0xff]
        %v4875 = vld [vmem:[#allocation12 + $0x68] sm:$0xff]
        %v4876 = vld [vmem:[#allocation12 + $0x70] sm:$0xff]
        %v4877 = vld [vmem:[#allocation12 + $0x78] sm:$0xff]
        %v4878 = vld [vmem:[#allocation12 + $0x80] sm:$0xff]
        %v4879 = vld [vmem:[#allocation12 + $0x88] sm:$0xff]
        %v4880 = vld [vmem:[#allocation12 + $0x90] sm:$0xff]
        %v4881 = vld [vmem:[#allocation12 + $0x98] sm:$0xff]
        %v4882 = vld [vmem:[#allocation12 + $0xa0] sm:$0xff]
        %v4883 = vld [vmem:[#allocation12 + $0xa8] sm:$0xff]
        %v4884 = vld [vmem:[#allocation12 + $0xb0] sm:$0xff]
        %v4885 = vld [vmem:[#allocation12 + $0xb8] sm:$0xff]
        %v4886 = vld [vmem:[#allocation12 + $0xc0] sm:$0xff]
        %v4887 = vld [vmem:[#allocation12 + $0xc8] sm:$0xff]
        %v4888 = vld [vmem:[#allocation12 + $0xd0] sm:$0xff]
        %v4889 = vld [vmem:[#allocation12 + $0xd8] sm:$0xff]
        %v4890 = vld [vmem:[#allocation12 + $0xe0] sm:$0xff]
        %v4891 = vld [vmem:[#allocation12 + $0xe8] sm:$0xff]
        %v4892 = vld [vmem:[#allocation12 + $0xf0] sm:$0xff]
        %v4893 = vld [vmem:[#allocation12 + $0xf8] sm:$0xff]
        %v4894 = vld [vmem:[#allocation12 + $0x100] sm:$0xff]
        %v4895 = vld [vmem:[#allocation12 + $0x108] sm:$0xff]
        %v4896 = vld [vmem:[#allocation12 + $0x110] sm:$0xff]
        %v4897 = vld [vmem:[#allocation12 + $0x118] sm:$0xff]
        %v4898 = vld [vmem:[#allocation12 + $0x120] sm:$0xff]
        %v4899 = vld [vmem:[#allocation12 + $0x128] sm:$0xff]
        %v4900 = vld [vmem:[#allocation12 + $0x130] sm:$0xff]
        %v4901 = vld [vmem:[#allocation12 + $0x138] sm:$0xff]
        %v4902 = vld [vmem:[#allocation12 + $0x140] sm:$0xff]
        %v4903 = vld [vmem:[#allocation12 + $0x148] sm:$0xff]
        %v4904 = vld [vmem:[#allocation12 + $0x150] sm:$0xff]
        %v4905 = vld [vmem:[#allocation12 + $0x158] sm:$0xff]
        %v4906 = vld [vmem:[#allocation12 + $0x160] sm:$0xff]
        %v4907 = vld [vmem:[#allocation12 + $0x168] sm:$0xff]
        %v4908 = vld [vmem:[#allocation12 + $0x170] sm:$0xff]
        %v4909 = vld [vmem:[#allocation12 + $0x178] sm:$0xff]
        %v4910 = vld [vmem:[#allocation12 + $0x180] sm:$0xff]
        %v4911 = vld [vmem:[#allocation12 + $0x188] sm:$0xff]
        %v4912 = vld [vmem:[#allocation12 + $0x190] sm:$0xff]
        %v4913 = vld [vmem:[#allocation12 + $0x198] sm:$0xff]
        %v4914 = vld [vmem:[#allocation12 + $0x1a0] sm:$0xff]
        %v4915 = vld [vmem:[#allocation12 + $0x1a8] sm:$0xff]
        %v4916 = vld [vmem:[#allocation12 + $0x1b0] sm:$0xff]
        %v4917 = vld [vmem:[#allocation12 + $0x1b8] sm:$0xff]
        %v4918 = vld [vmem:[#allocation12 + $0x1c0] sm:$0xff]
        %v4919 = vld [vmem:[#allocation12 + $0x1c8] sm:$0xff]
        %v4920 = vld [vmem:[#allocation12 + $0x1d0] sm:$0xff]
        %v4921 = vld [vmem:[#allocation12 + $0x1d8] sm:$0xff]
        %v4922 = vld [vmem:[#allocation12 + $0x1e0] sm:$0xff]
        %v4923 = vld [vmem:[#allocation12 + $0x1e8] sm:$0xff]
        %v4924 = vld [vmem:[#allocation12 + $0x1f0] sm:$0xff]
        %v4925 = vld [vmem:[#allocation12 + $0x1f8] sm:$0xff]
        %v4926 = vld [vmem:[#allocation12 + $0x200] sm:$0xff]
        %v4927 = vld [vmem:[#allocation12 + $0x208] sm:$0xff]
        %v4928 = vld [vmem:[#allocation12 + $0x210] sm:$0xff]
        %v4929 = vld [vmem:[#allocation12 + $0x218] sm:$0xff]
        %v4930 = vld [vmem:[#allocation12 + $0x220] sm:$0xff]
        %v4931 = vld [vmem:[#allocation12 + $0x228] sm:$0xff]
        %v4932 = vld [vmem:[#allocation12 + $0x230] sm:$0xff]
        %v4933 = vld [vmem:[#allocation12 + $0x238] sm:$0xff]
        %v4934 = vld [vmem:[#allocation12 + $0x240] sm:$0xff]
        %v4935 = vld [vmem:[#allocation12 + $0x248] sm:$0xff]
        %v4936 = vld [vmem:[#allocation12 + $0x250] sm:$0xff]
        %v4937 = vld [vmem:[#allocation12 + $0x258] sm:$0xff]
        %v4938 = vld [vmem:[#allocation12 + $0x260] sm:$0xff]
        %v4939 = vld [vmem:[#allocation12 + $0x268] sm:$0xff]
        %v4940 = vld [vmem:[#allocation12 + $0x270] sm:$0xff]
        %v4941 = vld [vmem:[#allocation12 + $0x278] sm:$0xff]
        %v4942 = vld [vmem:[#allocation12 + $0x280] sm:$0xff]
        %v4943 = vld [vmem:[#allocation12 + $0x288] sm:$0xff]
        %v4944 = vld [vmem:[#allocation12 + $0x290] sm:$0xff]
        %v4945 = vld [vmem:[#allocation12 + $0x298] sm:$0xff]
        %v4946 = vld [vmem:[#allocation12 + $0x2a0] sm:$0xff]
        %v4947 = vld [vmem:[#allocation12 + $0x2a8] sm:$0xff]
        %v4948 = vld [vmem:[#allocation12 + $0x2b0] sm:$0xff]
        %v4949 = vld [vmem:[#allocation12 + $0x2b8] sm:$0xff]
        %v4950 = vld [vmem:[#allocation12 + $0x2c0] sm:$0xff]
        %v4951 = vld [vmem:[#allocation12 + $0x2c8] sm:$0xff]
        %v4952 = vld [vmem:[#allocation12 + $0x2d0] sm:$0xff]
        %v4953 = vld [vmem:[#allocation12 + $0x2d8] sm:$0xff]
        %v4954 = vld [vmem:[#allocation12 + $0x2e0] sm:$0xff]
        %v4955 = vld [vmem:[#allocation12 + $0x2e8] sm:$0xff]
        %v4956 = vld [vmem:[#allocation12 + $0x2f0] sm:$0xff]
        %v4957 = vld [vmem:[#allocation12 + $0x2f8] sm:$0xff]
        %v4958 = vld [vmem:[#allocation12 + $0x300] sm:$0xff]
        %v4959 = vld [vmem:[#allocation12 + $0x308] sm:$0xff]
        %v4960 = vld [vmem:[#allocation12 + $0x310] sm:$0xff]
        %v4961 = vld [vmem:[#allocation12 + $0x318] sm:$0xff]
        %v4962 = vld [vmem:[#allocation12 + $0x320] sm:$0xff]
        %v4963 = vld [vmem:[#allocation12 + $0x328] sm:$0xff]
        %v4964 = vld [vmem:[#allocation12 + $0x330] sm:$0xff]
        %v4965 = vld [vmem:[#allocation12 + $0x338] sm:$0xff]
        %v4966 = vld [vmem:[#allocation12 + $0x340] sm:$0xff]
        %v4967 = vld [vmem:[#allocation12 + $0x348] sm:$0xff]
        %v4968 = vld [vmem:[#allocation12 + $0x350] sm:$0xff]
        %v4969 = vld [vmem:[#allocation12 + $0x358] sm:$0xff]
        %v4970 = vld [vmem:[#allocation12 + $0x360] sm:$0xff]
        %v4971 = vld [vmem:[#allocation12 + $0x368] sm:$0xff]
        %v4972 = vld [vmem:[#allocation12 + $0x370] sm:$0xff]
        %v4973 = vld [vmem:[#allocation12 + $0x378] sm:$0xff]
        %v4974 = vld [vmem:[#allocation12 + $0x380] sm:$0xff]
        %v4975 = vld [vmem:[#allocation12 + $0x388] sm:$0xff]
        %v4976 = vld [vmem:[#allocation12 + $0x390] sm:$0xff]
        %v4977 = vld [vmem:[#allocation12 + $0x398] sm:$0xff]
        %v4978 = vld [vmem:[#allocation12 + $0x3a0] sm:$0xff]
        %v4979 = vld [vmem:[#allocation12 + $0x3a8] sm:$0xff]
        %v4980 = vld [vmem:[#allocation12 + $0x3b0] sm:$0xff]
        %v4981 = vld [vmem:[#allocation12 + $0x3b8] sm:$0xff]
        %v4982 = vld [vmem:[#allocation12 + $0x3c0] sm:$0xff]
        %v4983 = vld [vmem:[#allocation12 + $0x3c8] sm:$0xff]
        %v4984 = vld [vmem:[#allocation12 + $0x3d0] sm:$0xff]
        %v4985 = vld [vmem:[#allocation12 + $0x3d8] sm:$0xff]
        %v4986 = vld [vmem:[#allocation12 + $0x3e0] sm:$0xff]
        %v4987 = vld [vmem:[#allocation12 + $0x3e8] sm:$0xff]
        %v4988 = vld [vmem:[#allocation12 + $0x3f0] sm:$0xff]
        %v4989 = vld [vmem:[#allocation12 + $0x3f8] sm:$0xff]
        %v4990 = vld [vmem:[#allocation12 + $0x400] sm:$0xff]
        %v4991 = vld [vmem:[#allocation12 + $0x408] sm:$0xff]
        %v4992 = vld [vmem:[#allocation12 + $0x410] sm:$0xff]
        %v4993 = vld [vmem:[#allocation12 + $0x418] sm:$0xff]
        %v4994 = vld [vmem:[#allocation12 + $0x420] sm:$0xff]
        %v4995 = vld [vmem:[#allocation12 + $0x428] sm:$0xff]
        %v4996 = vld [vmem:[#allocation12 + $0x430] sm:$0xff]
        %v4997 = vld [vmem:[#allocation12 + $0x438] sm:$0xff]
        %v4998 = vld [vmem:[#allocation12 + $0x440] sm:$0xff]
        %v4999 = vld [vmem:[#allocation12 + $0x448] sm:$0xff]
        %v5000 = vld [vmem:[#allocation12 + $0x450] sm:$0xff]
        %v5001 = vld [vmem:[#allocation12 + $0x458] sm:$0xff]
        %v5002 = vld [vmem:[#allocation12 + $0x460] sm:$0xff]
        %v5003 = vld [vmem:[#allocation12 + $0x468] sm:$0xff]
        %v5004 = vld [vmem:[#allocation12 + $0x470] sm:$0xff]
        %v5005 = vld [vmem:[#allocation12 + $0x478] sm:$0xff]
        %v5006 = vld [vmem:[#allocation12 + $0x480] sm:$0xff]
        %v5007 = vld [vmem:[#allocation12 + $0x488] sm:$0xff]
        %v5008 = vld [vmem:[#allocation12 + $0x490] sm:$0xff]
        %v5009 = vld [vmem:[#allocation12 + $0x498] sm:$0xff]
        %v5010 = vld [vmem:[#allocation12 + $0x4a0] sm:$0xff]
        %v5011 = vld [vmem:[#allocation12 + $0x4a8] sm:$0xff]
        %v5012 = vld [vmem:[#allocation12 + $0x4b0] sm:$0xff]
        %v5013 = vld [vmem:[#allocation12 + $0x4b8] sm:$0xff]
        %v5014 = vld [vmem:[#allocation12 + $0x4c0] sm:$0xff]
        %v5015 = vld [vmem:[#allocation12 + $0x4c8] sm:$0xff]
        %v5016 = vld [vmem:[#allocation12 + $0x4d0] sm:$0xff]
        %v5017 = vld [vmem:[#allocation12 + $0x4d8] sm:$0xff]
        %v5018 = vld [vmem:[#allocation12 + $0x4e0] sm:$0xff]
        %v5019 = vld [vmem:[#allocation12 + $0x4e8] sm:$0xff]
        %v5020 = vld [vmem:[#allocation12 + $0x4f0] sm:$0xff]
        %v5021 = vld [vmem:[#allocation12 + $0x4f8] sm:$0xff]
        %v5022 = vld [vmem:[#allocation12 + $0x500] sm:$0xff]
        %v5023 = vld [vmem:[#allocation12 + $0x508] sm:$0xff]
        %v5024 = vld [vmem:[#allocation12 + $0x510] sm:$0xff]
        %v5025 = vld [vmem:[#allocation12 + $0x518] sm:$0xff]
        %v5026 = vld [vmem:[#allocation12 + $0x520] sm:$0xff]
        %v5027 = vld [vmem:[#allocation12 + $0x528] sm:$0xff]
        %v5028 = vld [vmem:[#allocation12 + $0x530] sm:$0xff]
        %v5029 = vld [vmem:[#allocation12 + $0x538] sm:$0xff]
        %v5030 = vld [vmem:[#allocation12 + $0x540] sm:$0xff]
        %v5031 = vld [vmem:[#allocation12 + $0x548] sm:$0xff]
        %v5032 = vld [vmem:[#allocation12 + $0x550] sm:$0xff]
        %v5033 = vld [vmem:[#allocation12 + $0x558] sm:$0xff]
        %v5034 = vld [vmem:[#allocation12 + $0x560] sm:$0xff]
        %v5035 = vld [vmem:[#allocation12 + $0x568] sm:$0xff]
        %v5036 = vld [vmem:[#allocation12 + $0x570] sm:$0xff]
        %v5037 = vld [vmem:[#allocation12 + $0x578] sm:$0xff]
        %v5038 = vld [vmem:[#allocation12 + $0x580] sm:$0xff]
        %v5039 = vld [vmem:[#allocation12 + $0x588] sm:$0xff]
        %v5040 = vld [vmem:[#allocation12 + $0x590] sm:$0xff]
        %v5041 = vld [vmem:[#allocation12 + $0x598] sm:$0xff]
        %v5042 = vld [vmem:[#allocation12 + $0x5a0] sm:$0xff]
        %v5043 = vld [vmem:[#allocation12 + $0x5a8] sm:$0xff]
        %v5044 = vld [vmem:[#allocation12 + $0x5b0] sm:$0xff]
        %v5045 = vld [vmem:[#allocation12 + $0x5b8] sm:$0xff]
        %v5046 = vld [vmem:[#allocation12 + $0x5c0] sm:$0xff]
        %v5047 = vld [vmem:[#allocation12 + $0x5c8] sm:$0xff]
        %v5048 = vld [vmem:[#allocation12 + $0x5d0] sm:$0xff]
        %v5049 = vld [vmem:[#allocation12 + $0x5d8] sm:$0xff]
        %v5050 = vld [vmem:[#allocation12 + $0x5e0] sm:$0xff]
        %v5051 = vld [vmem:[#allocation12 + $0x5e8] sm:$0xff]
        %v5052 = vld [vmem:[#allocation12 + $0x5f0] sm:$0xff]
        %v5053 = vld [vmem:[#allocation12 + $0x5f8] sm:$0xff]
        %v5054 = vld [vmem:[#allocation12 + $0x600] sm:$0xff]
        %v5055 = vld [vmem:[#allocation12 + $0x608] sm:$0xff]
        %v5056 = vld [vmem:[#allocation12 + $0x610] sm:$0xff]
        %v5057 = vld [vmem:[#allocation12 + $0x618] sm:$0xff]
        %v5058 = vld [vmem:[#allocation12 + $0x620] sm:$0xff]
        %v5059 = vld [vmem:[#allocation12 + $0x628] sm:$0xff]
        %v5060 = vld [vmem:[#allocation12 + $0x630] sm:$0xff]
        %v5061 = vld [vmem:[#allocation12 + $0x638] sm:$0xff]
        %v5062 = vld [vmem:[#allocation12 + $0x640] sm:$0xff]
        %v5063 = vld [vmem:[#allocation12 + $0x648] sm:$0xff]
        %v5064 = vld [vmem:[#allocation12 + $0x650] sm:$0xff]
        %v5065 = vld [vmem:[#allocation12 + $0x658] sm:$0xff]
        %v5066 = vld [vmem:[#allocation12 + $0x660] sm:$0xff]
        %v5067 = vld [vmem:[#allocation12 + $0x668] sm:$0xff]
        %v5068 = vld [vmem:[#allocation12 + $0x670] sm:$0xff]
        %v5069 = vld [vmem:[#allocation12 + $0x678] sm:$0xff]
        %v5070 = vld [vmem:[#allocation12 + $0x680] sm:$0xff]
        %v5071 = vld [vmem:[#allocation12 + $0x688] sm:$0xff]
        %v5072 = vld [vmem:[#allocation12 + $0x690] sm:$0xff]
        %v5073 = vld [vmem:[#allocation12 + $0x698] sm:$0xff]
        %v5074 = vld [vmem:[#allocation12 + $0x6a0] sm:$0xff]
        %v5075 = vld [vmem:[#allocation12 + $0x6a8] sm:$0xff]
        %v5076 = vld [vmem:[#allocation12 + $0x6b0] sm:$0xff]
        %v5077 = vld [vmem:[#allocation12 + $0x6b8] sm:$0xff]
        %v5078 = vld [vmem:[#allocation12 + $0x6c0] sm:$0xff]
        %v5079 = vld [vmem:[#allocation12 + $0x6c8] sm:$0xff]
        %v5080 = vld [vmem:[#allocation12 + $0x6d0] sm:$0xff]
        %v5081 = vld [vmem:[#allocation12 + $0x6d8] sm:$0xff]
        %v5082 = vld [vmem:[#allocation12 + $0x6e0] sm:$0xff]
        %v5083 = vld [vmem:[#allocation12 + $0x6e8] sm:$0xff]
        %v5084 = vld [vmem:[#allocation12 + $0x6f0] sm:$0xff]
        %v5085 = vld [vmem:[#allocation12 + $0x6f8] sm:$0xff]
        %v5086 = vld [vmem:[#allocation12 + $0x700] sm:$0xff]
        %v5087 = vld [vmem:[#allocation12 + $0x708] sm:$0xff]
        %v5088 = vld [vmem:[#allocation12 + $0x710] sm:$0xff]
        %v5089 = vld [vmem:[#allocation12 + $0x718] sm:$0xff]
        %v5090 = vld [vmem:[#allocation12 + $0x720] sm:$0xff]
        %v5091 = vld [vmem:[#allocation12 + $0x728] sm:$0xff]
        %v5092 = vld [vmem:[#allocation12 + $0x730] sm:$0xff]
        %v5093 = vld [vmem:[#allocation12 + $0x738] sm:$0xff]
        %v5094 = vld [vmem:[#allocation12 + $0x740] sm:$0xff]
        %v5095 = vld [vmem:[#allocation12 + $0x748] sm:$0xff]
        %v5096 = vld [vmem:[#allocation12 + $0x750] sm:$0xff]
        %v5097 = vld [vmem:[#allocation12 + $0x758] sm:$0xff]
        %v5098 = vld [vmem:[#allocation12 + $0x760] sm:$0xff]
        %v5099 = vld [vmem:[#allocation12 + $0x768] sm:$0xff]
        %v5100 = vld [vmem:[#allocation12 + $0x770] sm:$0xff]
        %v5101 = vld [vmem:[#allocation12 + $0x778] sm:$0xff]
        %v5102 = vld [vmem:[#allocation12 + $0x780] sm:$0xff]
        %v5103 = vld [vmem:[#allocation12 + $0x788] sm:$0xff]
        %v5104 = vld [vmem:[#allocation12 + $0x790] sm:$0xff]
        %v5105 = vld [vmem:[#allocation12 + $0x798] sm:$0xff]
        %v5106 = vld [vmem:[#allocation12 + $0x7a0] sm:$0xff]
        %v5107 = vld [vmem:[#allocation12 + $0x7a8] sm:$0xff]
        %v5108 = vld [vmem:[#allocation12 + $0x7b0] sm:$0xff]
        %v5109 = vld [vmem:[#allocation12 + $0x7b8] sm:$0xff]
        %v5110 = vld [vmem:[#allocation12 + $0x7c0] sm:$0xff]
        %v5111 = vld [vmem:[#allocation12 + $0x7c8] sm:$0xff]
        %v5112 = vld [vmem:[#allocation12 + $0x7d0] sm:$0xff]
        %v5113 = vld [vmem:[#allocation12 + $0x7d8] sm:$0xff]
        %v5114 = vld [vmem:[#allocation12 + $0x7e0] sm:$0xff]
        %v5115 = vld [vmem:[#allocation12 + $0x7e8] sm:$0xff]
        %v5116 = vld [vmem:[#allocation12 + $0x7f0] sm:$0xff]
        %v5117 = vld [vmem:[#allocation12 + $0x7f8] sm:$0xff]
        %v5118 = vmul.f32 %v4766, %v4766
        %v5119 = vmul.f32 %v4767, %v4767
        %v5120 = vmul.f32 %v4768, %v4768
        %v5121 = vmul.f32 %v4769, %v4769
        %v5122 = vmul.f32 %v4770, %v4770
        %v5123 = vmul.f32 %v4771, %v4771
        %v5124 = vmul.f32 %v4772, %v4772
        %v5125 = vmul.f32 %v4773, %v4773
        %5126 = vmatpush.msra.mxu0 %v4922
        %5127 = vmatpush.msra.mxu0 %v4918
        %5128 = vmatpush.msra.mxu0 %v4914
        %5129 = vmatpush.msra.mxu0 %v4910
        %5130 = vmatpush.msra.mxu0 %v4906
        %5131 = vmatpush.msra.mxu0 %v4902
        %5132 = vmatpush.msra.mxu0 %v4898
        %5133 = vmatpush.msra.mxu0 %v4894
        %5134 = vmatpush.msra.mxu0 %v4890
        %5135 = vmatpush.msra.mxu0 %v4886
        %5136 = vmatpush.msra.mxu0 %v4882
        %5137 = vmatpush.msra.mxu0 %v4878
        %5138 = vmatpush.msra.mxu0 %v4874
        %5139 = vmatpush.msra.mxu0 %v4870
        %5140 = vmatpush.msra.mxu0 %v4866
        %5141 = vmatpush.msra.mxu0 %v4862
        %5142 = vmatmul.f32.gmra.mxu0 %v5118
        %v5143 = vpop.f32.mrf.mxu0
        %v5144 = vadd.f32 1e-06, %v5143
        %5145 = vmatmul.f32.gmra.mxu0 %v5122
        %v5146 = vpop.f32.mrf.mxu0
        %v5147 = vadd.f32 1e-06, %v5146
        %5148 = vdwg.mxu0
        %5149 = vmatpush.msra.mxu0 %v4986
        %5150 = vmatpush.msra.mxu0 %v4982
        %5151 = vmatpush.msra.mxu0 %v4978
        %5152 = vmatpush.msra.mxu0 %v4974
        %5153 = vmatpush.msra.mxu0 %v4970
        %5154 = vmatpush.msra.mxu0 %v4966
        %5155 = vmatpush.msra.mxu0 %v4962
        %5156 = vmatpush.msra.mxu0 %v4958
        %5157 = vmatpush.msra.mxu0 %v4954
        %5158 = vmatpush.msra.mxu0 %v4950
        %5159 = vmatpush.msra.mxu0 %v4946
        %5160 = vmatpush.msra.mxu0 %v4942
        %5161 = vmatpush.msra.mxu0 %v4938
        %5162 = vmatpush.msra.mxu0 %v4934
        %5163 = vmatpush.msra.mxu0 %v4930
        %5164 = vmatpush.msra.mxu0 %v4926
        %5165 = vmatmul.f32.gmra.mxu0 %v5119
        %v5166 = vpop.f32.mrf.mxu0
        %v5167 = vadd.f32 %v5144, %v5166
        %5168 = vmatmul.f32.gmra.mxu0 %v5123
        %v5169 = vpop.f32.mrf.mxu0
        %v5170 = vadd.f32 %v5147, %v5169
        %5171 = vdwg.mxu0
        %5172 = vmatpush.msra.mxu0 %v5050
        %5173 = vmatpush.msra.mxu0 %v5046
        %5174 = vmatpush.msra.mxu0 %v5042
        %5175 = vmatpush.msra.mxu0 %v5038
        %5176 = vmatpush.msra.mxu0 %v5034
        %5177 = vmatpush.msra.mxu0 %v5030
        %5178 = vmatpush.msra.mxu0 %v5026
        %5179 = vmatpush.msra.mxu0 %v5022
        %5180 = vmatpush.msra.mxu0 %v5018
        %5181 = vmatpush.msra.mxu0 %v5014
        %5182 = vmatpush.msra.mxu0 %v5010
        %5183 = vmatpush.msra.mxu0 %v5006
        %5184 = vmatpush.msra.mxu0 %v5002
        %5185 = vmatpush.msra.mxu0 %v4998
        %5186 = vmatpush.msra.mxu0 %v4994
        %5187 = vmatpush.msra.mxu0 %v4990
        %5188 = vmatmul.f32.gmra.mxu0 %v5120
        %v5189 = vpop.f32.mrf.mxu0
        %v5190 = vadd.f32 %v5167, %v5189
        %5191 = vmatmul.f32.gmra.mxu0 %v5124
        %v5192 = vpop.f32.mrf.mxu0
        %v5193 = vadd.f32 %v5170, %v5192
        %5194 = vdwg.mxu0
        %5195 = vmatpush.msra.mxu0 %v5114
        %5196 = vmatpush.msra.mxu0 %v5110
        %5197 = vmatpush.msra.mxu0 %v5106
        %5198 = vmatpush.msra.mxu0 %v5102
        %5199 = vmatpush.msra.mxu0 %v5098
        %5200 = vmatpush.msra.mxu0 %v5094
        %5201 = vmatpush.msra.mxu0 %v5090
        %5202 = vmatpush.msra.mxu0 %v5086
        %5203 = vmatpush.msra.mxu0 %v5082
        %5204 = vmatpush.msra.mxu0 %v5078
        %5205 = vmatpush.msra.mxu0 %v5074
        %5206 = vmatpush.msra.mxu0 %v5070
        %5207 = vmatpush.msra.mxu0 %v5066
        %5208 = vmatpush.msra.mxu0 %v5062
        %5209 = vmatpush.msra.mxu0 %v5058
        %5210 = vmatpush.msra.mxu0 %v5054
        %5211 = vmatmul.f32.gmra.mxu0 %v5121
        %v5212 = vpop.f32.mrf.mxu0
        %v5213 = vadd.f32 %v5190, %v5212
        %5214 = vmatmul.f32.gmra.mxu0 %v5125
        %v5215 = vpop.f32.mrf.mxu0
        %v5216 = vadd.f32 %v5193, %v5215
        %5217 = vdwg.mxu0
        %5218 = vmatpush.msra.mxu0 %v4923
        %5219 = vmatpush.msra.mxu0 %v4919
        %5220 = vmatpush.msra.mxu0 %v4915
        %5221 = vmatpush.msra.mxu0 %v4911
        %5222 = vmatpush.msra.mxu0 %v4907
        %5223 = vmatpush.msra.mxu0 %v4903
        %5224 = vmatpush.msra.mxu0 %v4899
        %5225 = vmatpush.msra.mxu0 %v4895
        %5226 = vmatpush.msra.mxu0 %v4891
        %5227 = vmatpush.msra.mxu0 %v4887
        %5228 = vmatpush.msra.mxu0 %v4883
        %5229 = vmatpush.msra.mxu0 %v4879
        %5230 = vmatpush.msra.mxu0 %v4875
        %5231 = vmatpush.msra.mxu0 %v4871
        %5232 = vmatpush.msra.mxu0 %v4867
        %5233 = vmatpush.msra.mxu0 %v4863
        %5234 = vmatmul.f32.gmra.mxu0 %v5118
        %v5235 = vpop.f32.mrf.mxu0
        %v5236 = vadd.f32 1e-06, %v5235
        %5237 = vmatmul.f32.gmra.mxu0 %v5122
        %v5238 = vpop.f32.mrf.mxu0
        %v5239 = vadd.f32 1e-06, %v5238
        %5240 = vdwg.mxu0
        %5241 = vmatpush.msra.mxu0 %v4987
        %5242 = vmatpush.msra.mxu0 %v4983
        %5243 = vmatpush.msra.mxu0 %v4979
        %5244 = vmatpush.msra.mxu0 %v4975
        %5245 = vmatpush.msra.mxu0 %v4971
        %5246 = vmatpush.msra.mxu0 %v4967
        %5247 = vmatpush.msra.mxu0 %v4963
        %5248 = vmatpush.msra.mxu0 %v4959
        %5249 = vmatpush.msra.mxu0 %v4955
        %5250 = vmatpush.msra.mxu0 %v4951
        %5251 = vmatpush.msra.mxu0 %v4947
        %5252 = vmatpush.msra.mxu0 %v4943
        %5253 = vmatpush.msra.mxu0 %v4939
        %5254 = vmatpush.msra.mxu0 %v4935
        %5255 = vmatpush.msra.mxu0 %v4931
        %5256 = vmatpush.msra.mxu0 %v4927
        %5257 = vmatmul.f32.gmra.mxu0 %v5119
        %v5258 = vpop.f32.mrf.mxu0
        %v5259 = vadd.f32 %v5236, %v5258
        %5260 = vmatmul.f32.gmra.mxu0 %v5123
        %v5261 = vpop.f32.mrf.mxu0
        %v5262 = vadd.f32 %v5239, %v5261
        %5263 = vdwg.mxu0
        %5264 = vmatpush.msra.mxu0 %v5051
        %5265 = vmatpush.msra.mxu0 %v5047
        %5266 = vmatpush.msra.mxu0 %v5043
        %5267 = vmatpush.msra.mxu0 %v5039
        %5268 = vmatpush.msra.mxu0 %v5035
        %5269 = vmatpush.msra.mxu0 %v5031
        %5270 = vmatpush.msra.mxu0 %v5027
        %5271 = vmatpush.msra.mxu0 %v5023
        %5272 = vmatpush.msra.mxu0 %v5019
        %5273 = vmatpush.msra.mxu0 %v5015
        %5274 = vmatpush.msra.mxu0 %v5011
        %5275 = vmatpush.msra.mxu0 %v5007
        %5276 = vmatpush.msra.mxu0 %v5003
        %5277 = vmatpush.msra.mxu0 %v4999
        %5278 = vmatpush.msra.mxu0 %v4995
        %5279 = vmatpush.msra.mxu0 %v4991
        %5280 = vmatmul.f32.gmra.mxu0 %v5120
        %v5281 = vpop.f32.mrf.mxu0
        %v5282 = vadd.f32 %v5259, %v5281
        %5283 = vmatmul.f32.gmra.mxu0 %v5124
        %v5284 = vpop.f32.mrf.mxu0
        %v5285 = vadd.f32 %v5262, %v5284
        %5286 = vdwg.mxu0
        %5287 = vmatpush.msra.mxu0 %v5115
        %5288 = vmatpush.msra.mxu0 %v5111
        %5289 = vmatpush.msra.mxu0 %v5107
        %5290 = vmatpush.msra.mxu0 %v5103
        %5291 = vmatpush.msra.mxu0 %v5099
        %5292 = vmatpush.msra.mxu0 %v5095
        %5293 = vmatpush.msra.mxu0 %v5091
        %5294 = vmatpush.msra.mxu0 %v5087
        %5295 = vmatpush.msra.mxu0 %v5083
        %5296 = vmatpush.msra.mxu0 %v5079
        %5297 = vmatpush.msra.mxu0 %v5075
        %5298 = vmatpush.msra.mxu0 %v5071
        %5299 = vmatpush.msra.mxu0 %v5067
        %5300 = vmatpush.msra.mxu0 %v5063
        %5301 = vmatpush.msra.mxu0 %v5059
        %5302 = vmatpush.msra.mxu0 %v5055
        %5303 = vmatmul.f32.gmra.mxu0 %v5121
        %v5304 = vpop.f32.mrf.mxu0
        %v5305 = vadd.f32 %v5282, %v5304
        %5306 = vmatmul.f32.gmra.mxu0 %v5125
        %v5307 = vpop.f32.mrf.mxu0
        %v5308 = vadd.f32 %v5285, %v5307
        %5309 = vdwg.mxu0
        %5310 = vmatpush.msra.mxu0 %v4924
        %5311 = vmatpush.msra.mxu0 %v4920
        %5312 = vmatpush.msra.mxu0 %v4916
        %5313 = vmatpush.msra.mxu0 %v4912
        %5314 = vmatpush.msra.mxu0 %v4908
        %5315 = vmatpush.msra.mxu0 %v4904
        %5316 = vmatpush.msra.mxu0 %v4900
        %5317 = vmatpush.msra.mxu0 %v4896
        %5318 = vmatpush.msra.mxu0 %v4892
        %5319 = vmatpush.msra.mxu0 %v4888
        %5320 = vmatpush.msra.mxu0 %v4884
        %5321 = vmatpush.msra.mxu0 %v4880
        %5322 = vmatpush.msra.mxu0 %v4876
        %5323 = vmatpush.msra.mxu0 %v4872
        %5324 = vmatpush.msra.mxu0 %v4868
        %5325 = vmatpush.msra.mxu0 %v4864
        %5326 = vmatmul.f32.gmra.mxu0 %v5118
        %v5327 = vpop.f32.mrf.mxu0
        %v5328 = vadd.f32 1e-06, %v5327
        %5329 = vmatmul.f32.gmra.mxu0 %v5122
        %v5330 = vpop.f32.mrf.mxu0
        %v5331 = vadd.f32 1e-06, %v5330
        %5332 = vdwg.mxu0
        %5333 = vmatpush.msra.mxu0 %v4988
        %5334 = vmatpush.msra.mxu0 %v4984
        %5335 = vmatpush.msra.mxu0 %v4980
        %5336 = vmatpush.msra.mxu0 %v4976
        %5337 = vmatpush.msra.mxu0 %v4972
        %5338 = vmatpush.msra.mxu0 %v4968
        %5339 = vmatpush.msra.mxu0 %v4964
        %5340 = vmatpush.msra.mxu0 %v4960
        %5341 = vmatpush.msra.mxu0 %v4956
        %5342 = vmatpush.msra.mxu0 %v4952
        %5343 = vmatpush.msra.mxu0 %v4948
        %5344 = vmatpush.msra.mxu0 %v4944
        %5345 = vmatpush.msra.mxu0 %v4940
        %5346 = vmatpush.msra.mxu0 %v4936
        %5347 = vmatpush.msra.mxu0 %v4932
        %5348 = vmatpush.msra.mxu0 %v4928
        %5349 = vmatmul.f32.gmra.mxu0 %v5119
        %v5350 = vpop.f32.mrf.mxu0
        %v5351 = vadd.f32 %v5328, %v5350
        %5352 = vmatmul.f32.gmra.mxu0 %v5123
        %v5353 = vpop.f32.mrf.mxu0
        %v5354 = vadd.f32 %v5331, %v5353
        %5355 = vdwg.mxu0
        %5356 = vmatpush.msra.mxu0 %v5052
        %5357 = vmatpush.msra.mxu0 %v5048
        %5358 = vmatpush.msra.mxu0 %v5044
        %5359 = vmatpush.msra.mxu0 %v5040
        %5360 = vmatpush.msra.mxu0 %v5036
        %5361 = vmatpush.msra.mxu0 %v5032
        %5362 = vmatpush.msra.mxu0 %v5028
        %5363 = vmatpush.msra.mxu0 %v5024
        %5364 = vmatpush.msra.mxu0 %v5020
        %5365 = vmatpush.msra.mxu0 %v5016
        %5366 = vmatpush.msra.mxu0 %v5012
        %5367 = vmatpush.msra.mxu0 %v5008
        %5368 = vmatpush.msra.mxu0 %v5004
        %5369 = vmatpush.msra.mxu0 %v5000
        %5370 = vmatpush.msra.mxu0 %v4996
        %5371 = vmatpush.msra.mxu0 %v4992
        %5372 = vmatmul.f32.gmra.mxu0 %v5120
        %v5373 = vpop.f32.mrf.mxu0
        %v5374 = vadd.f32 %v5351, %v5373
        %5375 = vmatmul.f32.gmra.mxu0 %v5124
        %v5376 = vpop.f32.mrf.mxu0
        %v5377 = vadd.f32 %v5354, %v5376
        %5378 = vdwg.mxu0
        %5379 = vmatpush.msra.mxu0 %v5116
        %5380 = vmatpush.msra.mxu0 %v5112
        %5381 = vmatpush.msra.mxu0 %v5108
        %5382 = vmatpush.msra.mxu0 %v5104
        %5383 = vmatpush.msra.mxu0 %v5100
        %5384 = vmatpush.msra.mxu0 %v5096
        %5385 = vmatpush.msra.mxu0 %v5092
        %5386 = vmatpush.msra.mxu0 %v5088
        %5387 = vmatpush.msra.mxu0 %v5084
        %5388 = vmatpush.msra.mxu0 %v5080
        %5389 = vmatpush.msra.mxu0 %v5076
        %5390 = vmatpush.msra.mxu0 %v5072
        %5391 = vmatpush.msra.mxu0 %v5068
        %5392 = vmatpush.msra.mxu0 %v5064
        %5393 = vmatpush.msra.mxu0 %v5060
        %5394 = vmatpush.msra.mxu0 %v5056
        %5395 = vmatmul.f32.gmra.mxu0 %v5121
        %v5396 = vpop.f32.mrf.mxu0
        %v5397 = vadd.f32 %v5374, %v5396
        %5398 = vmatmul.f32.gmra.mxu0 %v5125
        %v5399 = vpop.f32.mrf.mxu0
        %v5400 = vadd.f32 %v5377, %v5399
        %5401 = vdwg.mxu0
        %5402 = vmatpush.msra.mxu0 %v4925
        %5403 = vmatpush.msra.mxu0 %v4921
        %5404 = vmatpush.msra.mxu0 %v4917
        %5405 = vmatpush.msra.mxu0 %v4913
        %5406 = vmatpush.msra.mxu0 %v4909
        %5407 = vmatpush.msra.mxu0 %v4905
        %5408 = vmatpush.msra.mxu0 %v4901
        %5409 = vmatpush.msra.mxu0 %v4897
        %5410 = vmatpush.msra.mxu0 %v4893
        %5411 = vmatpush.msra.mxu0 %v4889
        %5412 = vmatpush.msra.mxu0 %v4885
        %5413 = vmatpush.msra.mxu0 %v4881
        %5414 = vmatpush.msra.mxu0 %v4877
        %5415 = vmatpush.msra.mxu0 %v4873
        %5416 = vmatpush.msra.mxu0 %v4869
        %5417 = vmatpush.msra.mxu0 %v4865
        %5418 = vmatmul.f32.gmra.mxu0 %v5118
        %v5419 = vpop.f32.mrf.mxu0
        %v5420 = vadd.f32 1e-06, %v5419
        %5421 = vmatmul.f32.gmra.mxu0 %v5122
        %v5422 = vpop.f32.mrf.mxu0
        %v5423 = vadd.f32 1e-06, %v5422
        %5424 = vdwg.mxu0
        %5425 = vmatpush.msra.mxu0 %v4989
        %5426 = vmatpush.msra.mxu0 %v4985
        %5427 = vmatpush.msra.mxu0 %v4981
        %5428 = vmatpush.msra.mxu0 %v4977
        %5429 = vmatpush.msra.mxu0 %v4973
        %5430 = vmatpush.msra.mxu0 %v4969
        %5431 = vmatpush.msra.mxu0 %v4965
        %5432 = vmatpush.msra.mxu0 %v4961
        %5433 = vmatpush.msra.mxu0 %v4957
        %5434 = vmatpush.msra.mxu0 %v4953
        %5435 = vmatpush.msra.mxu0 %v4949
        %5436 = vmatpush.msra.mxu0 %v4945
        %5437 = vmatpush.msra.mxu0 %v4941
        %5438 = vmatpush.msra.mxu0 %v4937
        %5439 = vmatpush.msra.mxu0 %v4933
        %5440 = vmatpush.msra.mxu0 %v4929
        %5441 = vmatmul.f32.gmra.mxu0 %v5119
        %v5442 = vpop.f32.mrf.mxu0
        %v5443 = vadd.f32 %v5420, %v5442
        %5444 = vmatmul.f32.gmra.mxu0 %v5123
        %v5445 = vpop.f32.mrf.mxu0
        %v5446 = vadd.f32 %v5423, %v5445
        %5447 = vdwg.mxu0
        %5448 = vmatpush.msra.mxu0 %v5053
        %5449 = vmatpush.msra.mxu0 %v5049
        %5450 = vmatpush.msra.mxu0 %v5045
        %5451 = vmatpush.msra.mxu0 %v5041
        %5452 = vmatpush.msra.mxu0 %v5037
        %5453 = vmatpush.msra.mxu0 %v5033
        %5454 = vmatpush.msra.mxu0 %v5029
        %5455 = vmatpush.msra.mxu0 %v5025
        %5456 = vmatpush.msra.mxu0 %v5021
        %5457 = vmatpush.msra.mxu0 %v5017
        %5458 = vmatpush.msra.mxu0 %v5013
        %5459 = vmatpush.msra.mxu0 %v5009
        %5460 = vmatpush.msra.mxu0 %v5005
        %5461 = vmatpush.msra.mxu0 %v5001
        %5462 = vmatpush.msra.mxu0 %v4997
        %5463 = vmatpush.msra.mxu0 %v4993
        %5464 = vmatmul.f32.gmra.mxu0 %v5120
        %v5465 = vpop.f32.mrf.mxu0
        %v5466 = vadd.f32 %v5443, %v5465
        %5467 = vmatmul.f32.gmra.mxu0 %v5124
        %v5468 = vpop.f32.mrf.mxu0
        %v5469 = vadd.f32 %v5446, %v5468
        %5470 = vdwg.mxu0
        %5471 = vmatpush.msra.mxu0 %v5117
        %5472 = vmatpush.msra.mxu0 %v5113
        %5473 = vmatpush.msra.mxu0 %v5109
        %5474 = vmatpush.msra.mxu0 %v5105
        %5475 = vmatpush.msra.mxu0 %v5101
        %5476 = vmatpush.msra.mxu0 %v5097
        %5477 = vmatpush.msra.mxu0 %v5093
        %5478 = vmatpush.msra.mxu0 %v5089
        %5479 = vmatpush.msra.mxu0 %v5085
        %5480 = vmatpush.msra.mxu0 %v5081
        %5481 = vmatpush.msra.mxu0 %v5077
        %5482 = vmatpush.msra.mxu0 %v5073
        %5483 = vmatpush.msra.mxu0 %v5069
        %5484 = vmatpush.msra.mxu0 %v5065
        %5485 = vmatpush.msra.mxu0 %v5061
        %5486 = vmatpush.msra.mxu0 %v5057
        %5487 = vmatmul.f32.gmra.mxu0 %v5121
        %v5488 = vpop.f32.mrf.mxu0
        %v5489 = vadd.f32 %v5466, %v5488
        %5490 = vmatmul.f32.gmra.mxu0 %v5125
        %v5491 = vpop.f32.mrf.mxu0
        %v5492 = vadd.f32 %v5469, %v5491
        %5493 = vdwg.mxu0
        %v5494 = vrsqrt.pop %v5213
        %v5495 = vmul.f32 %v5494, %v5213
        %v5496 = vmul.f32 %v5495, %v5494
        %v5497 = vmul.f32 0.5, %v5496
        %v5498 = vsub.f32 1.5, %v5497
        %v5499 = vmul.f32 %v5494, %v5498
        %vm5500 = vweird.f32 %v5213
        %vm5501 = vweird.f32 %v5494
        %vm5502 = vmor %vm5500, %vm5501
        %v5503 = vsel %vm5502, %v5494, %v5499
        %v5504 = vrsqrt.pop %v5305
        %v5505 = vmul.f32 %v5504, %v5305
        %v5506 = vmul.f32 %v5505, %v5504
        %v5507 = vmul.f32 0.5, %v5506
        %v5508 = vsub.f32 1.5, %v5507
        %v5509 = vmul.f32 %v5504, %v5508
        %vm5510 = vweird.f32 %v5305
        %vm5511 = vweird.f32 %v5504
        %vm5512 = vmor %vm5510, %vm5511
        %v5513 = vsel %vm5512, %v5504, %v5509
        %v5514 = vrsqrt.pop %v5397
        %v5515 = vmul.f32 %v5514, %v5397
        %v5516 = vmul.f32 %v5515, %v5514
        %v5517 = vmul.f32 0.5, %v5516
        %v5518 = vsub.f32 1.5, %v5517
        %v5519 = vmul.f32 %v5514, %v5518
        %vm5520 = vweird.f32 %v5397
        %vm5521 = vweird.f32 %v5514
        %vm5522 = vmor %vm5520, %vm5521
        %v5523 = vsel %vm5522, %v5514, %v5519
        %v5524 = vrsqrt.pop %v5489
        %v5525 = vmul.f32 %v5524, %v5489
        %v5526 = vmul.f32 %v5525, %v5524
        %v5527 = vmul.f32 0.5, %v5526
        %v5528 = vsub.f32 1.5, %v5527
        %v5529 = vmul.f32 %v5524, %v5528
        %vm5530 = vweird.f32 %v5489
        %vm5531 = vweird.f32 %v5524
        %vm5532 = vmor %vm5530, %vm5531
        %v5533 = vsel %vm5532, %v5524, %v5529
        %v5534 = vrsqrt.pop %v5216
        %v5535 = vmul.f32 %v5534, %v5216
        %v5536 = vmul.f32 %v5535, %v5534
        %v5537 = vmul.f32 0.5, %v5536
        %v5538 = vsub.f32 1.5, %v5537
        %v5539 = vmul.f32 %v5534, %v5538
        %vm5540 = vweird.f32 %v5216
        %vm5541 = vweird.f32 %v5534
        %vm5542 = vmor %vm5540, %vm5541
        %v5543 = vsel %vm5542, %v5534, %v5539
        %v5544 = vrsqrt.pop %v5308
        %v5545 = vmul.f32 %v5544, %v5308
        %v5546 = vmul.f32 %v5545, %v5544
        %v5547 = vmul.f32 0.5, %v5546
        %v5548 = vsub.f32 1.5, %v5547
        %v5549 = vmul.f32 %v5544, %v5548
        %vm5550 = vweird.f32 %v5308
        %vm5551 = vweird.f32 %v5544
        %vm5552 = vmor %vm5550, %vm5551
        %v5553 = vsel %vm5552, %v5544, %v5549
        %v5554 = vrsqrt.pop %v5400
        %v5555 = vmul.f32 %v5554, %v5400
        %v5556 = vmul.f32 %v5555, %v5554
        %v5557 = vmul.f32 0.5, %v5556
        %v5558 = vsub.f32 1.5, %v5557
        %v5559 = vmul.f32 %v5554, %v5558
        %vm5560 = vweird.f32 %v5400
        %vm5561 = vweird.f32 %v5554
        %vm5562 = vmor %vm5560, %vm5561
        %v5563 = vsel %vm5562, %v5554, %v5559
        %v5564 = vrsqrt.pop %v5492
        %v5565 = vmul.f32 %v5564, %v5492
        %v5566 = vmul.f32 %v5565, %v5564
        %v5567 = vmul.f32 0.5, %v5566
        %v5568 = vsub.f32 1.5, %v5567
        %v5569 = vmul.f32 %v5564, %v5568
        %vm5570 = vweird.f32 %v5492
        %vm5571 = vweird.f32 %v5564
        %vm5572 = vmor %vm5570, %vm5571
        %v5573 = vsel %vm5572, %v5564, %v5569
        %v5574 = vmul.f32 %v4766, %v5503
        %v5575 = vmul.f32 %v4767, %v5513
        %v5576 = vmul.f32 %v4768, %v5523
        %v5577 = vmul.f32 %v4769, %v5533
        %v5578 = vmul.f32 %v4770, %v5543
        %v5579 = vmul.f32 %v4771, %v5553
        %v5580 = vmul.f32 %v4772, %v5563
        %v5581 = vmul.f32 %v4773, %v5573
        %v5582 = vadd.s32 %v4282, 8
        %vm5583 = vcmp.lt.s32.totalorder %v4282, 8
        %vm5584 = vcmp.lt.s32.totalorder %v5582, 8
        %v5585 = vmul.f32 %v5574, 0.35355338
        %v5586 = vmul.f32 %v5575, 0.35355338
        %v5587 = vmul.f32 %v5576, 0.35355338
        %v5588 = vmul.f32 %v5577, 0.35355338
        %v5589 = vmul.f32 %v5578, 0.35355338
        %v5590 = vmul.f32 %v5579, 0.35355338
        %v5591 = vmul.f32 %v5580, 0.35355338
        %v5592 = vmul.f32 %v5581, 0.35355338
        %v5593 = vsel %vm5583, %v5585, %v5574
        %v5594 = vsel %vm5583, %v5586, %v5575
        %v5595 = vsel %vm5583, %v5587, %v5576
        %v5596 = vsel %vm5583, %v5588, %v5577
        %v5597 = vsel %vm5584, %v5589, %v5578
        %v5598 = vsel %vm5584, %v5590, %v5579
        %v5599 = vsel %vm5584, %v5591, %v5580
        %v5600 = vsel %vm5584, %v5592, %v5581
        %v5601 = vadd.s32 %v4282, 16
        %v5602 = vadd.s32 %v4282, 24
        %v5603 = vadd.s32 %v4282, 32
        %v5604 = vadd.s32 %v4282, 40
        %v5605 = vadd.s32 %v4282, 48
        %v5606 = vadd.s32 %v4282, 56
        %v5607 = vadd.s32 %v4282, 64
        %v5608 = vadd.s32 %v4282, 72
        %v5609 = vadd.s32 %v4282, 80
        %v5610 = vadd.s32 %v4282, 88
        %v5611 = vadd.s32 %v4282, 96
        %v5612 = vadd.s32 %v4282, 104
        %v5613 = vadd.s32 %v4282, 112
        %v5614 = vadd.s32 %v4282, 120
        %v5615 = vlaneseq
        %v5616 = vand.u32 %v5615, 127
        %v5617 = vadd.s32 %v5616, 128
        %v5618 = vadd.s32 %v5616, 256
        %v5619 = vadd.s32 %v5616, 384
        %v5628 = vrot.slane %v5594, 7
        %v5629 = vrot.slane %v5595, 6
        %v5630 = vrot.slane %v5596, 5
        %v5631 = vrot.slane %v5598, 7
        %v5632 = vrot.slane %v5599, 6
        %v5633 = vrot.slane %v5600, 5
        %vm5634 = vcmask 1040384
        %v5635 = vsel %vm5634, %v5593, %v5628
        %vm5636 = vcmask 1042434
        %v5637 = vsel %vm5636, %v5629, %v5630
        %vm5638 = vcmask 1041408
        %v5639 = vsel %vm5638, %v5635, %v5637
        %vm5640 = vcmask 1041409
        %v5641 = vsel %vm5640, %v5593, %v5628
        %vm5642 = vcmask 1043459
        %v5643 = vsel %vm5642, %v5629, %v5630
        %vm5644 = vcmask 1042433
        %v5645 = vsel %vm5644, %v5641, %v5643
        %v5646 = vrot.slane %v5645, 1
        %v5647 = vsel %vm5636, %v5593, %v5628
        %vm5648 = vcmask 1044484
        %v5649 = vsel %vm5648, %v5629, %v5630
        %vm5650 = vcmask 1043458
        %v5651 = vsel %vm5650, %v5647, %v5649
        %v5652 = vrot.slane %v5651, 2
        %v5653 = vsel %vm5642, %v5593, %v5628
        %vm5654 = vcmask 1045509
        %v5655 = vsel %vm5654, %v5629, %v5630
        %vm5656 = vcmask 1044483
        %v5657 = vsel %vm5656, %v5653, %v5655
        %v5658 = vrot.slane %v5657, 3
        %v5659 = vsel %vm5648, %v5593, %v5628
        %vm5660 = vcmask 1046534
        %v5661 = vsel %vm5660, %v5629, %v5630
        %vm5662 = vcmask 1045508
        %v5663 = vsel %vm5662, %v5659, %v5661
        %v5664 = vrot.slane %v5663, 4
        %v5665 = vsel %vm5654, %v5593, %v5628
        %vm5666 = vcmask 1046528
        %v5667 = vsel %vm5666, %v5630, %v5629
        %vm5668 = vcmask 1046533
        %v5669 = vsel %vm5668, %v5665, %v5667
        %v5670 = vrot.slane %v5669, 5
        %v5671 = vsel %vm5660, %v5593, %v5628
        %v5672 = vsel %vm5634, %v5629, %v5630
        %vm5673 = vcmask 1045504
        %v5674 = vsel %vm5673, %v5672, %v5671
        %v5675 = vrot.slane %v5674, 6
        %v5676 = vsel %vm5666, %v5628, %v5593
        %v5677 = vsel %vm5640, %v5629, %v5630
        %vm5678 = vcmask 1046529
        %v5679 = vsel %vm5678, %v5677, %v5676
        %v5680 = vrot.slane %v5679, 7
        %v5681 = vsel %vm5634, %v5597, %v5631
        %v5682 = vsel %vm5636, %v5632, %v5633
        %v5683 = vsel %vm5638, %v5681, %v5682
        %v5684 = vsel %vm5640, %v5597, %v5631
        %v5685 = vsel %vm5642, %v5632, %v5633
        %v5686 = vsel %vm5644, %v5684, %v5685
        %v5687 = vrot.slane %v5686, 1
        %v5688 = vsel %vm5636, %v5597, %v5631
        %v5689 = vsel %vm5648, %v5632, %v5633
        %v5690 = vsel %vm5650, %v5688, %v5689
        %v5691 = vrot.slane %v5690, 2
        %v5692 = vsel %vm5642, %v5597, %v5631
        %v5693 = vsel %vm5654, %v5632, %v5633
        %v5694 = vsel %vm5656, %v5692, %v5693
        %v5695 = vrot.slane %v5694, 3
        %v5696 = vsel %vm5648, %v5597, %v5631
        %v5697 = vsel %vm5660, %v5632, %v5633
        %v5698 = vsel %vm5662, %v5696, %v5697
        %v5699 = vrot.slane %v5698, 4
        %v5700 = vsel %vm5654, %v5597, %v5631
        %v5701 = vsel %vm5666, %v5633, %v5632
        %v5702 = vsel %vm5668, %v5700, %v5701
        %v5703 = vrot.slane %v5702, 5
        %v5704 = vsel %vm5660, %v5597, %v5631
        %v5705 = vsel %vm5634, %v5632, %v5633
        %v5706 = vsel %vm5673, %v5705, %v5704
        %v5707 = vrot.slane %v5706, 6
        %v5708 = vsel %vm5666, %v5631, %v5597
        %v5709 = vsel %vm5640, %v5632, %v5633
        %v5710 = vsel %vm5678, %v5709, %v5708
        %v5711 = vrot.slane %v5710, 7
        %v5712 = vperm.slane %v5639, 0
        %v5713 = vperm.slane %v5639, 1
        %v5714 = vperm.slane %v5639, 2
        %v5715 = vperm.slane %v5639, 3
        %v5716 = vperm.slane %v5646, 0
        %v5717 = vperm.slane %v5646, 1
        %v5718 = vperm.slane %v5646, 2
        %v5719 = vperm.slane %v5646, 3
        %v5720 = vperm.slane %v5652, 0
        %v5721 = vperm.slane %v5652, 1
        %v5722 = vperm.slane %v5652, 2
        %v5723 = vperm.slane %v5652, 3
        %v5724 = vperm.slane %v5658, 0
        %v5725 = vperm.slane %v5658, 1
        %v5726 = vperm.slane %v5658, 2
        %v5727 = vperm.slane %v5658, 3
        %v5728 = vperm.slane %v5664, 0
        %v5729 = vperm.slane %v5664, 1
        %v5730 = vperm.slane %v5664, 2
        %v5731 = vperm.slane %v5664, 3
        %v5732 = vperm.slane %v5670, 0
        %v5733 = vperm.slane %v5670, 1
        %v5734 = vperm.slane %v5670, 2
        %v5735 = vperm.slane %v5670, 3
        %v5736 = vperm.slane %v5675, 0
        %v5737 = vperm.slane %v5675, 1
        %v5738 = vperm.slane %v5675, 2
        %v5739 = vperm.slane %v5675, 3
        %v5740 = vperm.slane %v5680, 0
        %v5741 = vperm.slane %v5680, 1
        %v5742 = vperm.slane %v5680, 2
        %v5743 = vperm.slane %v5680, 3
        %v5744 = vperm.slane %v5683, 0
        %v5745 = vperm.slane %v5683, 1
        %v5746 = vperm.slane %v5683, 2
        %v5747 = vperm.slane %v5683, 3
        %v5748 = vperm.slane %v5687, 0
        %v5749 = vperm.slane %v5687, 1
        %v5750 = vperm.slane %v5687, 2
        %v5751 = vperm.slane %v5687, 3
        %v5752 = vperm.slane %v5691, 0
        %v5753 = vperm.slane %v5691, 1
        %v5754 = vperm.slane %v5691, 2
        %v5755 = vperm.slane %v5691, 3
        %v5756 = vperm.slane %v5695, 0
        %v5757 = vperm.slane %v5695, 1
        %v5758 = vperm.slane %v5695, 2
        %v5759 = vperm.slane %v5695, 3
        %v5760 = vperm.slane %v5699, 0
        %v5761 = vperm.slane %v5699, 1
        %v5762 = vperm.slane %v5699, 2
        %v5763 = vperm.slane %v5699, 3
        %v5764 = vperm.slane %v5703, 0
        %v5765 = vperm.slane %v5703, 1
        %v5766 = vperm.slane %v5703, 2
        %v5767 = vperm.slane %v5703, 3
        %v5768 = vperm.slane %v5707, 0
        %v5769 = vperm.slane %v5707, 1
        %v5770 = vperm.slane %v5707, 2
        %v5771 = vperm.slane %v5707, 3
        %v5772 = vperm.slane %v5711, 0
        %v5773 = vperm.slane %v5711, 1
        %v5774 = vperm.slane %v5711, 2
        %v5775 = vperm.slane %v5711, 3
        %vm5840 = vcmp.lt.s32.totalorder %v4282, 0
        %v5841 = vsub.s32 0, %v4282
        %v5842 = vsel %vm5840, %v5841, %v4282
        %v5843 = vshrl.u32 %v5842, 3
        %v5844 = vand.u32 %v5842, 7
        %v5845 = vsub.s32 0, %v5844
        %v5846 = vsel %vm5840, %v5845, %v5844
        %vm5847 = vcmp.lt.s32.totalorder %v5582, 0
        %v5848 = vsub.s32 0, %v5582
        %v5849 = vsel %vm5847, %v5848, %v5582
        %v5850 = vshrl.u32 %v5849, 3
        %v5851 = vand.u32 %v5849, 7
        %v5852 = vsub.s32 0, %v5851
        %v5853 = vsel %vm5847, %v5852, %v5851
        %vm5854 = vcmp.lt.s32.totalorder %v5601, 0
        %v5855 = vsub.s32 0, %v5601
        %v5856 = vsel %vm5854, %v5855, %v5601
        %v5857 = vshrl.u32 %v5856, 3
        %v5858 = vand.u32 %v5856, 7
        %v5859 = vsub.s32 0, %v5858
        %v5860 = vsel %vm5854, %v5859, %v5858
        %vm5861 = vcmp.lt.s32.totalorder %v5602, 0
        %v5862 = vsub.s32 0, %v5602
        %v5863 = vsel %vm5861, %v5862, %v5602
        %v5864 = vshrl.u32 %v5863, 3
        %v5865 = vand.u32 %v5863, 7
        %v5866 = vsub.s32 0, %v5865
        %v5867 = vsel %vm5861, %v5866, %v5865
        %vm5868 = vcmp.lt.s32.totalorder %v5603, 0
        %v5869 = vsub.s32 0, %v5603
        %v5870 = vsel %vm5868, %v5869, %v5603
        %v5871 = vshrl.u32 %v5870, 3
        %v5872 = vand.u32 %v5870, 7
        %v5873 = vsub.s32 0, %v5872
        %v5874 = vsel %vm5868, %v5873, %v5872
        %vm5875 = vcmp.lt.s32.totalorder %v5604, 0
        %v5876 = vsub.s32 0, %v5604
        %v5877 = vsel %vm5875, %v5876, %v5604
        %v5878 = vshrl.u32 %v5877, 3
        %v5879 = vand.u32 %v5877, 7
        %v5880 = vsub.s32 0, %v5879
        %v5881 = vsel %vm5875, %v5880, %v5879
        %vm5882 = vcmp.lt.s32.totalorder %v5605, 0
        %v5883 = vsub.s32 0, %v5605
        %v5884 = vsel %vm5882, %v5883, %v5605
        %v5885 = vshrl.u32 %v5884, 3
        %v5886 = vand.u32 %v5884, 7
        %v5887 = vsub.s32 0, %v5886
        %v5888 = vsel %vm5882, %v5887, %v5886
        %vm5889 = vcmp.lt.s32.totalorder %v5606, 0
        %v5890 = vsub.s32 0, %v5606
        %v5891 = vsel %vm5889, %v5890, %v5606
        %v5892 = vshrl.u32 %v5891, 3
        %v5893 = vand.u32 %v5891, 7
        %v5894 = vsub.s32 0, %v5893
        %v5895 = vsel %vm5889, %v5894, %v5893
        %vm5896 = vcmp.lt.s32.totalorder %v5607, 0
        %v5897 = vsub.s32 0, %v5607
        %v5898 = vsel %vm5896, %v5897, %v5607
        %v5899 = vshrl.u32 %v5898, 3
        %v5900 = vand.u32 %v5898, 7
        %v5901 = vsub.s32 0, %v5900
        %v5902 = vsel %vm5896, %v5901, %v5900
        %vm5903 = vcmp.lt.s32.totalorder %v5608, 0
        %v5904 = vsub.s32 0, %v5608
        %v5905 = vsel %vm5903, %v5904, %v5608
        %v5906 = vshrl.u32 %v5905, 3
        %v5907 = vand.u32 %v5905, 7
        %v5908 = vsub.s32 0, %v5907
        %v5909 = vsel %vm5903, %v5908, %v5907
        %vm5910 = vcmp.lt.s32.totalorder %v5609, 0
        %v5911 = vsub.s32 0, %v5609
        %v5912 = vsel %vm5910, %v5911, %v5609
        %v5913 = vshrl.u32 %v5912, 3
        %v5914 = vand.u32 %v5912, 7
        %v5915 = vsub.s32 0, %v5914
        %v5916 = vsel %vm5910, %v5915, %v5914
        %vm5917 = vcmp.lt.s32.totalorder %v5610, 0
        %v5918 = vsub.s32 0, %v5610
        %v5919 = vsel %vm5917, %v5918, %v5610
        %v5920 = vshrl.u32 %v5919, 3
        %v5921 = vand.u32 %v5919, 7
        %v5922 = vsub.s32 0, %v5921
        %v5923 = vsel %vm5917, %v5922, %v5921
        %vm5924 = vcmp.lt.s32.totalorder %v5611, 0
        %v5925 = vsub.s32 0, %v5611
        %v5926 = vsel %vm5924, %v5925, %v5611
        %v5927 = vshrl.u32 %v5926, 3
        %v5928 = vand.u32 %v5926, 7
        %v5929 = vsub.s32 0, %v5928
        %v5930 = vsel %vm5924, %v5929, %v5928
        %vm5931 = vcmp.lt.s32.totalorder %v5612, 0
        %v5932 = vsub.s32 0, %v5612
        %v5933 = vsel %vm5931, %v5932, %v5612
        %v5934 = vshrl.u32 %v5933, 3
        %v5935 = vand.u32 %v5933, 7
        %v5936 = vsub.s32 0, %v5935
        %v5937 = vsel %vm5931, %v5936, %v5935
        %vm5938 = vcmp.lt.s32.totalorder %v5613, 0
        %v5939 = vsub.s32 0, %v5613
        %v5940 = vsel %vm5938, %v5939, %v5613
        %v5941 = vshrl.u32 %v5940, 3
        %v5942 = vand.u32 %v5940, 7
        %v5943 = vsub.s32 0, %v5942
        %v5944 = vsel %vm5938, %v5943, %v5942
        %vm5945 = vcmp.lt.s32.totalorder %v5614, 0
        %v5946 = vsub.s32 0, %v5614
        %v5947 = vsel %vm5945, %v5946, %v5614
        %v5948 = vshrl.u32 %v5947, 3
        %v5949 = vand.u32 %v5947, 7
        %v5950 = vsub.s32 0, %v5949
        %v5951 = vsel %vm5945, %v5950, %v5949
        %vm5952 = vcmp.ne.s32.totalorder %v5846, 0
        %vm5953 = vcmp.ne.s32.totalorder %v5853, 0
        %vm5954 = vcmp.ne.s32.totalorder %v5860, 0
        %vm5955 = vcmp.ne.s32.totalorder %v5867, 0
        %vm5956 = vcmp.ne.s32.totalorder %v5874, 0
        %vm5957 = vcmp.ne.s32.totalorder %v5881, 0
        %vm5958 = vcmp.ne.s32.totalorder %v5888, 0
        %vm5959 = vcmp.ne.s32.totalorder %v5895, 0
        %vm5960 = vcmp.ne.s32.totalorder %v5902, 0
        %vm5961 = vcmp.ne.s32.totalorder %v5909, 0
        %vm5962 = vcmp.ne.s32.totalorder %v5916, 0
        %vm5963 = vcmp.ne.s32.totalorder %v5923, 0
        %vm5964 = vcmp.ne.s32.totalorder %v5930, 0
        %vm5965 = vcmp.ne.s32.totalorder %v5937, 0
        %vm5966 = vcmp.ne.s32.totalorder %v5944, 0
        %vm5967 = vcmp.ne.s32.totalorder %v5951, 0
        %vm5968 = vcmp.lt.s32.totalorder %v5846, 0
        %vm5969 = vcmp.lt.s32.totalorder %v5853, 0
        %vm5970 = vcmp.lt.s32.totalorder %v5860, 0
        %vm5971 = vcmp.lt.s32.totalorder %v5867, 0
        %vm5972 = vcmp.lt.s32.totalorder %v5874, 0
        %vm5973 = vcmp.lt.s32.totalorder %v5881, 0
        %vm5974 = vcmp.lt.s32.totalorder %v5888, 0
        %vm5975 = vcmp.lt.s32.totalorder %v5895, 0
        %vm5976 = vcmp.lt.s32.totalorder %v5902, 0
        %vm5977 = vcmp.lt.s32.totalorder %v5909, 0
        %vm5978 = vcmp.lt.s32.totalorder %v5916, 0
        %vm5979 = vcmp.lt.s32.totalorder %v5923, 0
        %vm5980 = vcmp.lt.s32.totalorder %v5930, 0
        %vm5981 = vcmp.lt.s32.totalorder %v5937, 0
        %vm5982 = vcmp.lt.s32.totalorder %v5944, 0
        %vm5983 = vcmp.lt.s32.totalorder %v5951, 0
        %vm5984 = vmand %vm5968, %vm5952
        %vm5985 = vmand %vm5969, %vm5953
        %vm5986 = vmand %vm5970, %vm5954
        %vm5987 = vmand %vm5971, %vm5955
        %vm5988 = vmand %vm5972, %vm5956
        %vm5989 = vmand %vm5973, %vm5957
        %vm5990 = vmand %vm5974, %vm5958
        %vm5991 = vmand %vm5975, %vm5959
        %vm5992 = vmand %vm5976, %vm5960
        %vm5993 = vmand %vm5977, %vm5961
        %vm5994 = vmand %vm5978, %vm5962
        %vm5995 = vmand %vm5979, %vm5963
        %vm5996 = vmand %vm5980, %vm5964
        %vm5997 = vmand %vm5981, %vm5965
        %vm5998 = vmand %vm5982, %vm5966
        %vm5999 = vmand %vm5983, %vm5967
        %v6000 = vadd.s32 %v5846, 8
        %v6001 = vadd.s32 %v5853, 8
        %v6002 = vadd.s32 %v5860, 8
        %v6003 = vadd.s32 %v5867, 8
        %v6004 = vadd.s32 %v5874, 8
        %v6005 = vadd.s32 %v5881, 8
        %v6006 = vadd.s32 %v5888, 8
        %v6007 = vadd.s32 %v5895, 8
        %v6008 = vadd.s32 %v5902, 8
        %v6009 = vadd.s32 %v5909, 8
        %v6010 = vadd.s32 %v5916, 8
        %v6011 = vadd.s32 %v5923, 8
        %v6012 = vadd.s32 %v5930, 8
        %v6013 = vadd.s32 %v5937, 8
        %v6014 = vadd.s32 %v5944, 8
        %v6015 = vadd.s32 %v5951, 8
        %v6016 = vsel %vm5984, %v6000, %v5846
        %v6017 = vsel %vm5985, %v6001, %v5853
        %v6018 = vsel %vm5986, %v6002, %v5860
        %v6019 = vsel %vm5987, %v6003, %v5867
        %v6020 = vsel %vm5988, %v6004, %v5874
        %v6021 = vsel %vm5989, %v6005, %v5881
        %v6022 = vsel %vm5990, %v6006, %v5888
        %v6023 = vsel %vm5991, %v6007, %v5895
        %v6024 = vsel %vm5992, %v6008, %v5902
        %v6025 = vsel %vm5993, %v6009, %v5909
        %v6026 = vsel %vm5994, %v6010, %v5916
        %v6027 = vsel %vm5995, %v6011, %v5923
        %v6028 = vsel %vm5996, %v6012, %v5930
        %v6029 = vsel %vm5997, %v6013, %v5937
        %v6030 = vsel %vm5998, %v6014, %v5944
        %v6031 = vsel %vm5999, %v6015, %v5951
        %vm6032 = vcmp.lt.s32.totalorder %v5616, 0
        %v6033 = vsub.s32 0, %v5616
        %v6034 = vsel %vm6032, %v6033, %v5616
        %v6035 = vshrl.u32 %v6034, 3
        %v6036 = vand.u32 %v6034, 7
        %v6037 = vsub.s32 0, %v6036
        %v6038 = vsel %vm6032, %v6037, %v6036
        %vm6039 = vcmp.lt.s32.totalorder %v5617, 0
        %v6040 = vsub.s32 0, %v5617
        %v6041 = vsel %vm6039, %v6040, %v5617
        %v6042 = vshrl.u32 %v6041, 3
        %v6043 = vand.u32 %v6041, 7
        %v6044 = vsub.s32 0, %v6043
        %v6045 = vsel %vm6039, %v6044, %v6043
        %vm6046 = vcmp.lt.s32.totalorder %v5618, 0
        %v6047 = vsub.s32 0, %v5618
        %v6048 = vsel %vm6046, %v6047, %v5618
        %v6049 = vshrl.u32 %v6048, 3
        %v6050 = vand.u32 %v6048, 7
        %v6051 = vsub.s32 0, %v6050
        %v6052 = vsel %vm6046, %v6051, %v6050
        %vm6053 = vcmp.lt.s32.totalorder %v5619, 0
        %v6054 = vsub.s32 0, %v5619
        %v6055 = vsel %vm6053, %v6054, %v5619
        %v6056 = vshrl.u32 %v6055, 3
        %v6057 = vand.u32 %v6055, 7
        %v6058 = vsub.s32 0, %v6057
        %v6059 = vsel %vm6053, %v6058, %v6057
        %vm6060 = vcmp.ne.s32.totalorder %v6038, 0
        %vm6061 = vcmp.ne.s32.totalorder %v6045, 0
        %vm6062 = vcmp.ne.s32.totalorder %v6052, 0
        %vm6063 = vcmp.ne.s32.totalorder %v6059, 0
        %vm6064 = vcmp.lt.s32.totalorder %v6038, 0
        %vm6065 = vcmp.lt.s32.totalorder %v6045, 0
        %vm6066 = vcmp.lt.s32.totalorder %v6052, 0
        %vm6067 = vcmp.lt.s32.totalorder %v6059, 0
        %vm6068 = vmand %vm6064, %vm6060
        %vm6069 = vmand %vm6065, %vm6061
        %vm6070 = vmand %vm6066, %vm6062
        %vm6071 = vmand %vm6067, %vm6063
        %v6072 = vadd.s32 %v6038, 8
        %v6073 = vadd.s32 %v6045, 8
        %v6074 = vadd.s32 %v6052, 8
        %v6075 = vadd.s32 %v6059, 8
        %v6076 = vsel %vm6068, %v6072, %v6038
        %v6077 = vsel %vm6069, %v6073, %v6045
        %v6078 = vsel %vm6070, %v6074, %v6052
        %v6079 = vsel %vm6071, %v6075, %v6059
        %vm6080 = vcmp.eq.s32.totalorder %v6016, %v6076
        %vm6081 = vcmp.eq.s32.totalorder %v6016, %v6077
        %vm6082 = vcmp.eq.s32.totalorder %v6016, %v6078
        %vm6083 = vcmp.eq.s32.totalorder %v6016, %v6079
        %vm6084 = vcmp.eq.s32.totalorder %v6017, %v6076
        %vm6085 = vcmp.eq.s32.totalorder %v6017, %v6077
        %vm6086 = vcmp.eq.s32.totalorder %v6017, %v6078
        %vm6087 = vcmp.eq.s32.totalorder %v6017, %v6079
        %vm6088 = vcmp.eq.s32.totalorder %v6018, %v6076
        %vm6089 = vcmp.eq.s32.totalorder %v6018, %v6077
        %vm6090 = vcmp.eq.s32.totalorder %v6018, %v6078
        %vm6091 = vcmp.eq.s32.totalorder %v6018, %v6079
        %vm6092 = vcmp.eq.s32.totalorder %v6019, %v6076
        %vm6093 = vcmp.eq.s32.totalorder %v6019, %v6077
        %vm6094 = vcmp.eq.s32.totalorder %v6019, %v6078
        %vm6095 = vcmp.eq.s32.totalorder %v6019, %v6079
        %vm6096 = vcmp.eq.s32.totalorder %v6020, %v6076
        %vm6097 = vcmp.eq.s32.totalorder %v6020, %v6077
        %vm6098 = vcmp.eq.s32.totalorder %v6020, %v6078
        %vm6099 = vcmp.eq.s32.totalorder %v6020, %v6079
        %vm6100 = vcmp.eq.s32.totalorder %v6021, %v6076
        %vm6101 = vcmp.eq.s32.totalorder %v6021, %v6077
        %vm6102 = vcmp.eq.s32.totalorder %v6021, %v6078
        %vm6103 = vcmp.eq.s32.totalorder %v6021, %v6079
        %vm6104 = vcmp.eq.s32.totalorder %v6022, %v6076
        %vm6105 = vcmp.eq.s32.totalorder %v6022, %v6077
        %vm6106 = vcmp.eq.s32.totalorder %v6022, %v6078
        %vm6107 = vcmp.eq.s32.totalorder %v6022, %v6079
        %vm6108 = vcmp.eq.s32.totalorder %v6023, %v6076
        %vm6109 = vcmp.eq.s32.totalorder %v6023, %v6077
        %vm6110 = vcmp.eq.s32.totalorder %v6023, %v6078
        %vm6111 = vcmp.eq.s32.totalorder %v6023, %v6079
        %vm6112 = vcmp.eq.s32.totalorder %v6024, %v6076
        %vm6113 = vcmp.eq.s32.totalorder %v6024, %v6077
        %vm6114 = vcmp.eq.s32.totalorder %v6024, %v6078
        %vm6115 = vcmp.eq.s32.totalorder %v6024, %v6079
        %vm6116 = vcmp.eq.s32.totalorder %v6025, %v6076
        %vm6117 = vcmp.eq.s32.totalorder %v6025, %v6077
        %vm6118 = vcmp.eq.s32.totalorder %v6025, %v6078
        %vm6119 = vcmp.eq.s32.totalorder %v6025, %v6079
        %vm6120 = vcmp.eq.s32.totalorder %v6026, %v6076
        %vm6121 = vcmp.eq.s32.totalorder %v6026, %v6077
        %vm6122 = vcmp.eq.s32.totalorder %v6026, %v6078
        %vm6123 = vcmp.eq.s32.totalorder %v6026, %v6079
        %vm6124 = vcmp.eq.s32.totalorder %v6027, %v6076
        %vm6125 = vcmp.eq.s32.totalorder %v6027, %v6077
        %vm6126 = vcmp.eq.s32.totalorder %v6027, %v6078
        %vm6127 = vcmp.eq.s32.totalorder %v6027, %v6079
        %vm6128 = vcmp.eq.s32.totalorder %v6028, %v6076
        %vm6129 = vcmp.eq.s32.totalorder %v6028, %v6077
        %vm6130 = vcmp.eq.s32.totalorder %v6028, %v6078
        %vm6131 = vcmp.eq.s32.totalorder %v6028, %v6079
        %vm6132 = vcmp.eq.s32.totalorder %v6029, %v6076
        %vm6133 = vcmp.eq.s32.totalorder %v6029, %v6077
        %vm6134 = vcmp.eq.s32.totalorder %v6029, %v6078
        %vm6135 = vcmp.eq.s32.totalorder %v6029, %v6079
        %vm6136 = vcmp.eq.s32.totalorder %v6030, %v6076
        %vm6137 = vcmp.eq.s32.totalorder %v6030, %v6077
        %vm6138 = vcmp.eq.s32.totalorder %v6030, %v6078
        %vm6139 = vcmp.eq.s32.totalorder %v6030, %v6079
        %vm6140 = vcmp.eq.s32.totalorder %v6031, %v6076
        %vm6141 = vcmp.eq.s32.totalorder %v6031, %v6077
        %vm6142 = vcmp.eq.s32.totalorder %v6031, %v6078
        %vm6143 = vcmp.eq.s32.totalorder %v6031, %v6079
        %v6144 = vsel %vm6080, %v5712, 0.0
        %v6145 = vsel %vm6081, %v5713, 0.0
        %v6146 = vsel %vm6082, %v5714, 0.0
        %v6147 = vsel %vm6083, %v5715, 0.0
        %v6148 = vsel %vm6084, %v5716, 0.0
        %v6149 = vsel %vm6085, %v5717, 0.0
        %v6150 = vsel %vm6086, %v5718, 0.0
        %v6151 = vsel %vm6087, %v5719, 0.0
        %v6152 = vsel %vm6088, %v5720, 0.0
        %v6153 = vsel %vm6089, %v5721, 0.0
        %v6154 = vsel %vm6090, %v5722, 0.0
        %v6155 = vsel %vm6091, %v5723, 0.0
        %v6156 = vsel %vm6092, %v5724, 0.0
        %v6157 = vsel %vm6093, %v5725, 0.0
        %v6158 = vsel %vm6094, %v5726, 0.0
        %v6159 = vsel %vm6095, %v5727, 0.0
        %v6160 = vsel %vm6096, %v5728, 0.0
        %v6161 = vsel %vm6097, %v5729, 0.0
        %v6162 = vsel %vm6098, %v5730, 0.0
        %v6163 = vsel %vm6099, %v5731, 0.0
        %v6164 = vsel %vm6100, %v5732, 0.0
        %v6165 = vsel %vm6101, %v5733, 0.0
        %v6166 = vsel %vm6102, %v5734, 0.0
        %v6167 = vsel %vm6103, %v5735, 0.0
        %v6168 = vsel %vm6104, %v5736, 0.0
        %v6169 = vsel %vm6105, %v5737, 0.0
        %v6170 = vsel %vm6106, %v5738, 0.0
        %v6171 = vsel %vm6107, %v5739, 0.0
        %v6172 = vsel %vm6108, %v5740, 0.0
        %v6173 = vsel %vm6109, %v5741, 0.0
        %v6174 = vsel %vm6110, %v5742, 0.0
        %v6175 = vsel %vm6111, %v5743, 0.0
        %v6176 = vsel %vm6112, %v5744, 0.0
        %v6177 = vsel %vm6113, %v5745, 0.0
        %v6178 = vsel %vm6114, %v5746, 0.0
        %v6179 = vsel %vm6115, %v5747, 0.0
        %v6180 = vsel %vm6116, %v5748, 0.0
        %v6181 = vsel %vm6117, %v5749, 0.0
        %v6182 = vsel %vm6118, %v5750, 0.0
        %v6183 = vsel %vm6119, %v5751, 0.0
        %v6184 = vsel %vm6120, %v5752, 0.0
        %v6185 = vsel %vm6121, %v5753, 0.0
        %v6186 = vsel %vm6122, %v5754, 0.0
        %v6187 = vsel %vm6123, %v5755, 0.0
        %v6188 = vsel %vm6124, %v5756, 0.0
        %v6189 = vsel %vm6125, %v5757, 0.0
        %v6190 = vsel %vm6126, %v5758, 0.0
        %v6191 = vsel %vm6127, %v5759, 0.0
        %v6192 = vsel %vm6128, %v5760, 0.0
        %v6193 = vsel %vm6129, %v5761, 0.0
        %v6194 = vsel %vm6130, %v5762, 0.0
        %v6195 = vsel %vm6131, %v5763, 0.0
        %v6196 = vsel %vm6132, %v5764, 0.0
        %v6197 = vsel %vm6133, %v5765, 0.0
        %v6198 = vsel %vm6134, %v5766, 0.0
        %v6199 = vsel %vm6135, %v5767, 0.0
        %v6200 = vsel %vm6136, %v5768, 0.0
        %v6201 = vsel %vm6137, %v5769, 0.0
        %v6202 = vsel %vm6138, %v5770, 0.0
        %v6203 = vsel %vm6139, %v5771, 0.0
        %v6204 = vsel %vm6140, %v5772, 0.0
        %v6205 = vsel %vm6141, %v5773, 0.0
        %v6206 = vsel %vm6142, %v5774, 0.0
        %v6207 = vsel %vm6143, %v5775, 0.0
        %6208 = vmatpush.msra.mxu0 %v4922
        %6209 = vmatpush.msra.mxu0 %v4918
        %6210 = vmatpush.msra.mxu0 %v4914
        %6211 = vmatpush.msra.mxu0 %v4910
        %6212 = vmatpush.msra.mxu0 %v4906
        %6213 = vmatpush.msra.mxu0 %v4902
        %6214 = vmatpush.msra.mxu0 %v4898
        %6215 = vmatpush.msra.mxu0 %v4894
        %6216 = vmatpush.msra.mxu0 %v4890
        %6217 = vmatpush.msra.mxu0 %v4886
        %6218 = vmatpush.msra.mxu0 %v4882
        %6219 = vmatpush.msra.mxu0 %v4878
        %6220 = vmatpush.msra.mxu0 %v4874
        %6221 = vmatpush.msra.mxu0 %v4870
        %6222 = vmatpush.msra.mxu0 %v4866
        %6223 = vmatpush.msra.mxu0 %v4862
        %6224 = vmatmul.f32.gmra.mxu0 %v6144
        %v6225 = vpop.f32.mrf.mxu0
        %v6226 = vadd.f32 0.0, %v6225
        %6227 = vmatmul.f32.gmra.mxu0 %v6148
        %v6228 = vpop.f32.mrf.mxu0
        %v6229 = vadd.f32 0.0, %v6228
        %6230 = vmatmul.f32.gmra.mxu0 %v6152
        %v6231 = vpop.f32.mrf.mxu0
        %v6232 = vadd.f32 0.0, %v6231
        %6233 = vmatmul.f32.gmra.mxu0 %v6156
        %v6234 = vpop.f32.mrf.mxu0
        %v6235 = vadd.f32 0.0, %v6234
        %6236 = vmatmul.f32.gmra.mxu0 %v6160
        %v6237 = vpop.f32.mrf.mxu0
        %v6238 = vadd.f32 0.0, %v6237
        %6239 = vmatmul.f32.gmra.mxu0 %v6164
        %v6240 = vpop.f32.mrf.mxu0
        %v6241 = vadd.f32 0.0, %v6240
        %6242 = vmatmul.f32.gmra.mxu0 %v6168
        %v6243 = vpop.f32.mrf.mxu0
        %v6244 = vadd.f32 0.0, %v6243
        %6245 = vmatmul.f32.gmra.mxu0 %v6172
        %v6246 = vpop.f32.mrf.mxu0
        %v6247 = vadd.f32 0.0, %v6246
        %6248 = vmatmul.f32.gmra.mxu0 %v6176
        %v6249 = vpop.f32.mrf.mxu0
        %v6250 = vadd.f32 0.0, %v6249
        %6251 = vmatmul.f32.gmra.mxu0 %v6180
        %v6252 = vpop.f32.mrf.mxu0
        %v6253 = vadd.f32 0.0, %v6252
        %6254 = vmatmul.f32.gmra.mxu0 %v6184
        %v6255 = vpop.f32.mrf.mxu0
        %v6256 = vadd.f32 0.0, %v6255
        %6257 = vmatmul.f32.gmra.mxu0 %v6188
        %v6258 = vpop.f32.mrf.mxu0
        %v6259 = vadd.f32 0.0, %v6258
        %6260 = vmatmul.f32.gmra.mxu0 %v6192
        %v6261 = vpop.f32.mrf.mxu0
        %v6262 = vadd.f32 0.0, %v6261
        %6263 = vmatmul.f32.gmra.mxu0 %v6196
        %v6264 = vpop.f32.mrf.mxu0
        %v6265 = vadd.f32 0.0, %v6264
        %6266 = vmatmul.f32.gmra.mxu0 %v6200
        %v6267 = vpop.f32.mrf.mxu0
        %v6268 = vadd.f32 0.0, %v6267
        %6269 = vmatmul.f32.gmra.mxu0 %v6204
        %v6270 = vpop.f32.mrf.mxu0
        %v6271 = vadd.f32 0.0, %v6270
        %6272 = vdwg.mxu0
        %6273 = vmatpush.msra.mxu0 %v4986
        %6274 = vmatpush.msra.mxu0 %v4982
        %6275 = vmatpush.msra.mxu0 %v4978
        %6276 = vmatpush.msra.mxu0 %v4974
        %6277 = vmatpush.msra.mxu0 %v4970
        %6278 = vmatpush.msra.mxu0 %v4966
        %6279 = vmatpush.msra.mxu0 %v4962
        %6280 = vmatpush.msra.mxu0 %v4958
        %6281 = vmatpush.msra.mxu0 %v4954
        %6282 = vmatpush.msra.mxu0 %v4950
        %6283 = vmatpush.msra.mxu0 %v4946
        %6284 = vmatpush.msra.mxu0 %v4942
        %6285 = vmatpush.msra.mxu0 %v4938
        %6286 = vmatpush.msra.mxu0 %v4934
        %6287 = vmatpush.msra.mxu0 %v4930
        %6288 = vmatpush.msra.mxu0 %v4926
        %6289 = vmatmul.f32.gmra.mxu0 %v6145
        %v6290 = vpop.f32.mrf.mxu0
        %v6291 = vadd.f32 %v6226, %v6290
        %6292 = vmatmul.f32.gmra.mxu0 %v6149
        %v6293 = vpop.f32.mrf.mxu0
        %v6294 = vadd.f32 %v6229, %v6293
        %6295 = vmatmul.f32.gmra.mxu0 %v6153
        %v6296 = vpop.f32.mrf.mxu0
        %v6297 = vadd.f32 %v6232, %v6296
        %6298 = vmatmul.f32.gmra.mxu0 %v6157
        %v6299 = vpop.f32.mrf.mxu0
        %v6300 = vadd.f32 %v6235, %v6299
        %6301 = vmatmul.f32.gmra.mxu0 %v6161
        %v6302 = vpop.f32.mrf.mxu0
        %v6303 = vadd.f32 %v6238, %v6302
        %6304 = vmatmul.f32.gmra.mxu0 %v6165
        %v6305 = vpop.f32.mrf.mxu0
        %v6306 = vadd.f32 %v6241, %v6305
        %6307 = vmatmul.f32.gmra.mxu0 %v6169
        %v6308 = vpop.f32.mrf.mxu0
        %v6309 = vadd.f32 %v6244, %v6308
        %6310 = vmatmul.f32.gmra.mxu0 %v6173
        %v6311 = vpop.f32.mrf.mxu0
        %v6312 = vadd.f32 %v6247, %v6311
        %6313 = vmatmul.f32.gmra.mxu0 %v6177
        %v6314 = vpop.f32.mrf.mxu0
        %v6315 = vadd.f32 %v6250, %v6314
        %6316 = vmatmul.f32.gmra.mxu0 %v6181
        %v6317 = vpop.f32.mrf.mxu0
        %v6318 = vadd.f32 %v6253, %v6317
        %6319 = vmatmul.f32.gmra.mxu0 %v6185
        %v6320 = vpop.f32.mrf.mxu0
        %v6321 = vadd.f32 %v6256, %v6320
        %6322 = vmatmul.f32.gmra.mxu0 %v6189
        %v6323 = vpop.f32.mrf.mxu0
        %v6324 = vadd.f32 %v6259, %v6323
        %6325 = vmatmul.f32.gmra.mxu0 %v6193
        %v6326 = vpop.f32.mrf.mxu0
        %v6327 = vadd.f32 %v6262, %v6326
        %6328 = vmatmul.f32.gmra.mxu0 %v6197
        %v6329 = vpop.f32.mrf.mxu0
        %v6330 = vadd.f32 %v6265, %v6329
        %6331 = vmatmul.f32.gmra.mxu0 %v6201
        %v6332 = vpop.f32.mrf.mxu0
        %v6333 = vadd.f32 %v6268, %v6332
        %6334 = vmatmul.f32.gmra.mxu0 %v6205
        %v6335 = vpop.f32.mrf.mxu0
        %v6336 = vadd.f32 %v6271, %v6335
        %6337 = vdwg.mxu0
        %6338 = vmatpush.msra.mxu0 %v5050
        %6339 = vmatpush.msra.mxu0 %v5046
        %6340 = vmatpush.msra.mxu0 %v5042
        %6341 = vmatpush.msra.mxu0 %v5038
        %6342 = vmatpush.msra.mxu0 %v5034
        %6343 = vmatpush.msra.mxu0 %v5030
        %6344 = vmatpush.msra.mxu0 %v5026
        %6345 = vmatpush.msra.mxu0 %v5022
        %6346 = vmatpush.msra.mxu0 %v5018
        %6347 = vmatpush.msra.mxu0 %v5014
        %6348 = vmatpush.msra.mxu0 %v5010
        %6349 = vmatpush.msra.mxu0 %v5006
        %6350 = vmatpush.msra.mxu0 %v5002
        %6351 = vmatpush.msra.mxu0 %v4998
        %6352 = vmatpush.msra.mxu0 %v4994
        %6353 = vmatpush.msra.mxu0 %v4990
        %6354 = vmatmul.f32.gmra.mxu0 %v6146
        %v6355 = vpop.f32.mrf.mxu0
        %v6356 = vadd.f32 %v6291, %v6355
        %6357 = vmatmul.f32.gmra.mxu0 %v6150
        %v6358 = vpop.f32.mrf.mxu0
        %v6359 = vadd.f32 %v6294, %v6358
        %6360 = vmatmul.f32.gmra.mxu0 %v6154
        %v6361 = vpop.f32.mrf.mxu0
        %v6362 = vadd.f32 %v6297, %v6361
        %6363 = vmatmul.f32.gmra.mxu0 %v6158
        %v6364 = vpop.f32.mrf.mxu0
        %v6365 = vadd.f32 %v6300, %v6364
        %6366 = vmatmul.f32.gmra.mxu0 %v6162
        %v6367 = vpop.f32.mrf.mxu0
        %v6368 = vadd.f32 %v6303, %v6367
        %6369 = vmatmul.f32.gmra.mxu0 %v6166
        %v6370 = vpop.f32.mrf.mxu0
        %v6371 = vadd.f32 %v6306, %v6370
        %6372 = vmatmul.f32.gmra.mxu0 %v6170
        %v6373 = vpop.f32.mrf.mxu0
        %v6374 = vadd.f32 %v6309, %v6373
        %6375 = vmatmul.f32.gmra.mxu0 %v6174
        %v6376 = vpop.f32.mrf.mxu0
        %v6377 = vadd.f32 %v6312, %v6376
        %6378 = vmatmul.f32.gmra.mxu0 %v6178
        %v6379 = vpop.f32.mrf.mxu0
        %v6380 = vadd.f32 %v6315, %v6379
        %6381 = vmatmul.f32.gmra.mxu0 %v6182
        %v6382 = vpop.f32.mrf.mxu0
        %v6383 = vadd.f32 %v6318, %v6382
        %6384 = vmatmul.f32.gmra.mxu0 %v6186
        %v6385 = vpop.f32.mrf.mxu0
        %v6386 = vadd.f32 %v6321, %v6385
        %6387 = vmatmul.f32.gmra.mxu0 %v6190
        %v6388 = vpop.f32.mrf.mxu0
        %v6389 = vadd.f32 %v6324, %v6388
        %6390 = vmatmul.f32.gmra.mxu0 %v6194
        %v6391 = vpop.f32.mrf.mxu0
        %v6392 = vadd.f32 %v6327, %v6391
        %6393 = vmatmul.f32.gmra.mxu0 %v6198
        %v6394 = vpop.f32.mrf.mxu0
        %v6395 = vadd.f32 %v6330, %v6394
        %6396 = vmatmul.f32.gmra.mxu0 %v6202
        %v6397 = vpop.f32.mrf.mxu0
        %v6398 = vadd.f32 %v6333, %v6397
        %6399 = vmatmul.f32.gmra.mxu0 %v6206
        %v6400 = vpop.f32.mrf.mxu0
        %v6401 = vadd.f32 %v6336, %v6400
        %6402 = vdwg.mxu0
        %6403 = vmatpush.msra.mxu0 %v5114
        %6404 = vmatpush.msra.mxu0 %v5110
        %6405 = vmatpush.msra.mxu0 %v5106
        %6406 = vmatpush.msra.mxu0 %v5102
        %6407 = vmatpush.msra.mxu0 %v5098
        %6408 = vmatpush.msra.mxu0 %v5094
        %6409 = vmatpush.msra.mxu0 %v5090
        %6410 = vmatpush.msra.mxu0 %v5086
        %6411 = vmatpush.msra.mxu0 %v5082
        %6412 = vmatpush.msra.mxu0 %v5078
        %6413 = vmatpush.msra.mxu0 %v5074
        %6414 = vmatpush.msra.mxu0 %v5070
        %6415 = vmatpush.msra.mxu0 %v5066
        %6416 = vmatpush.msra.mxu0 %v5062
        %6417 = vmatpush.msra.mxu0 %v5058
        %6418 = vmatpush.msra.mxu0 %v5054
        %6419 = vmatmul.f32.gmra.mxu0 %v6147
        %v6420 = vpop.f32.mrf.mxu0
        %v6421 = vadd.f32 %v6356, %v6420
        %6422 = vmatmul.f32.gmra.mxu0 %v6151
        %v6423 = vpop.f32.mrf.mxu0
        %v6424 = vadd.f32 %v6359, %v6423
        %6425 = vmatmul.f32.gmra.mxu0 %v6155
        %v6426 = vpop.f32.mrf.mxu0
        %v6427 = vadd.f32 %v6362, %v6426
        %6428 = vmatmul.f32.gmra.mxu0 %v6159
        %v6429 = vpop.f32.mrf.mxu0
        %v6430 = vadd.f32 %v6365, %v6429
        %6431 = vmatmul.f32.gmra.mxu0 %v6163
        %v6432 = vpop.f32.mrf.mxu0
        %v6433 = vadd.f32 %v6368, %v6432
        %6434 = vmatmul.f32.gmra.mxu0 %v6167
        %v6435 = vpop.f32.mrf.mxu0
        %v6436 = vadd.f32 %v6371, %v6435
        %6437 = vmatmul.f32.gmra.mxu0 %v6171
        %v6438 = vpop.f32.mrf.mxu0
        %v6439 = vadd.f32 %v6374, %v6438
        %6440 = vmatmul.f32.gmra.mxu0 %v6175
        %v6441 = vpop.f32.mrf.mxu0
        %v6442 = vadd.f32 %v6377, %v6441
        %6443 = vmatmul.f32.gmra.mxu0 %v6179
        %v6444 = vpop.f32.mrf.mxu0
        %v6445 = vadd.f32 %v6380, %v6444
        %6446 = vmatmul.f32.gmra.mxu0 %v6183
        %v6447 = vpop.f32.mrf.mxu0
        %v6448 = vadd.f32 %v6383, %v6447
        %6449 = vmatmul.f32.gmra.mxu0 %v6187
        %v6450 = vpop.f32.mrf.mxu0
        %v6451 = vadd.f32 %v6386, %v6450
        %6452 = vmatmul.f32.gmra.mxu0 %v6191
        %v6453 = vpop.f32.mrf.mxu0
        %v6454 = vadd.f32 %v6389, %v6453
        %6455 = vmatmul.f32.gmra.mxu0 %v6195
        %v6456 = vpop.f32.mrf.mxu0
        %v6457 = vadd.f32 %v6392, %v6456
        %6458 = vmatmul.f32.gmra.mxu0 %v6199
        %v6459 = vpop.f32.mrf.mxu0
        %v6460 = vadd.f32 %v6395, %v6459
        %6461 = vmatmul.f32.gmra.mxu0 %v6203
        %v6462 = vpop.f32.mrf.mxu0
        %v6463 = vadd.f32 %v6398, %v6462
        %6464 = vmatmul.f32.gmra.mxu0 %v6207
        %v6465 = vpop.f32.mrf.mxu0
        %v6466 = vadd.f32 %v6401, %v6465
        %6467 = vdwg.mxu0
        %6468 = vmatpush.msra.mxu0 %v4923
        %6469 = vmatpush.msra.mxu0 %v4919
        %6470 = vmatpush.msra.mxu0 %v4915
        %6471 = vmatpush.msra.mxu0 %v4911
        %6472 = vmatpush.msra.mxu0 %v4907
        %6473 = vmatpush.msra.mxu0 %v4903
        %6474 = vmatpush.msra.mxu0 %v4899
        %6475 = vmatpush.msra.mxu0 %v4895
        %6476 = vmatpush.msra.mxu0 %v4891
        %6477 = vmatpush.msra.mxu0 %v4887
        %6478 = vmatpush.msra.mxu0 %v4883
        %6479 = vmatpush.msra.mxu0 %v4879
        %6480 = vmatpush.msra.mxu0 %v4875
        %6481 = vmatpush.msra.mxu0 %v4871
        %6482 = vmatpush.msra.mxu0 %v4867
        %6483 = vmatpush.msra.mxu0 %v4863
        %6484 = vmatmul.f32.gmra.mxu0 %v6144
        %v6485 = vpop.f32.mrf.mxu0
        %v6486 = vadd.f32 0.0, %v6485
        %6487 = vmatmul.f32.gmra.mxu0 %v6148
        %v6488 = vpop.f32.mrf.mxu0
        %v6489 = vadd.f32 0.0, %v6488
        %6490 = vmatmul.f32.gmra.mxu0 %v6152
        %v6491 = vpop.f32.mrf.mxu0
        %v6492 = vadd.f32 0.0, %v6491
        %6493 = vmatmul.f32.gmra.mxu0 %v6156
        %v6494 = vpop.f32.mrf.mxu0
        %v6495 = vadd.f32 0.0, %v6494
        %6496 = vmatmul.f32.gmra.mxu0 %v6160
        %v6497 = vpop.f32.mrf.mxu0
        %v6498 = vadd.f32 0.0, %v6497
        %6499 = vmatmul.f32.gmra.mxu0 %v6164
        %v6500 = vpop.f32.mrf.mxu0
        %v6501 = vadd.f32 0.0, %v6500
        %6502 = vmatmul.f32.gmra.mxu0 %v6168
        %v6503 = vpop.f32.mrf.mxu0
        %v6504 = vadd.f32 0.0, %v6503
        %6505 = vmatmul.f32.gmra.mxu0 %v6172
        %v6506 = vpop.f32.mrf.mxu0
        %v6507 = vadd.f32 0.0, %v6506
        %6508 = vmatmul.f32.gmra.mxu0 %v6176
        %v6509 = vpop.f32.mrf.mxu0
        %v6510 = vadd.f32 0.0, %v6509
        %6511 = vmatmul.f32.gmra.mxu0 %v6180
        %v6512 = vpop.f32.mrf.mxu0
        %v6513 = vadd.f32 0.0, %v6512
        %6514 = vmatmul.f32.gmra.mxu0 %v6184
        %v6515 = vpop.f32.mrf.mxu0
        %v6516 = vadd.f32 0.0, %v6515
        %6517 = vmatmul.f32.gmra.mxu0 %v6188
        %v6518 = vpop.f32.mrf.mxu0
        %v6519 = vadd.f32 0.0, %v6518
        %6520 = vmatmul.f32.gmra.mxu0 %v6192
        %v6521 = vpop.f32.mrf.mxu0
        %v6522 = vadd.f32 0.0, %v6521
        %6523 = vmatmul.f32.gmra.mxu0 %v6196
        %v6524 = vpop.f32.mrf.mxu0
        %v6525 = vadd.f32 0.0, %v6524
        %6526 = vmatmul.f32.gmra.mxu0 %v6200
        %v6527 = vpop.f32.mrf.mxu0
        %v6528 = vadd.f32 0.0, %v6527
        %6529 = vmatmul.f32.gmra.mxu0 %v6204
        %v6530 = vpop.f32.mrf.mxu0
        %v6531 = vadd.f32 0.0, %v6530
        %6532 = vdwg.mxu0
        %6533 = vmatpush.msra.mxu0 %v4987
        %6534 = vmatpush.msra.mxu0 %v4983
        %6535 = vmatpush.msra.mxu0 %v4979
        %6536 = vmatpush.msra.mxu0 %v4975
        %6537 = vmatpush.msra.mxu0 %v4971
        %6538 = vmatpush.msra.mxu0 %v4967
        %6539 = vmatpush.msra.mxu0 %v4963
        %6540 = vmatpush.msra.mxu0 %v4959
        %6541 = vmatpush.msra.mxu0 %v4955
        %6542 = vmatpush.msra.mxu0 %v4951
        %6543 = vmatpush.msra.mxu0 %v4947
        %6544 = vmatpush.msra.mxu0 %v4943
        %6545 = vmatpush.msra.mxu0 %v4939
        %6546 = vmatpush.msra.mxu0 %v4935
        %6547 = vmatpush.msra.mxu0 %v4931
        %6548 = vmatpush.msra.mxu0 %v4927
        %6549 = vmatmul.f32.gmra.mxu0 %v6145
        %v6550 = vpop.f32.mrf.mxu0
        %v6551 = vadd.f32 %v6486, %v6550
        %6552 = vmatmul.f32.gmra.mxu0 %v6149
        %v6553 = vpop.f32.mrf.mxu0
        %v6554 = vadd.f32 %v6489, %v6553
        %6555 = vmatmul.f32.gmra.mxu0 %v6153
        %v6556 = vpop.f32.mrf.mxu0
        %v6557 = vadd.f32 %v6492, %v6556
        %6558 = vmatmul.f32.gmra.mxu0 %v6157
        %v6559 = vpop.f32.mrf.mxu0
        %v6560 = vadd.f32 %v6495, %v6559
        %6561 = vmatmul.f32.gmra.mxu0 %v6161
        %v6562 = vpop.f32.mrf.mxu0
        %v6563 = vadd.f32 %v6498, %v6562
        %6564 = vmatmul.f32.gmra.mxu0 %v6165
        %v6565 = vpop.f32.mrf.mxu0
        %v6566 = vadd.f32 %v6501, %v6565
        %6567 = vmatmul.f32.gmra.mxu0 %v6169
        %v6568 = vpop.f32.mrf.mxu0
        %v6569 = vadd.f32 %v6504, %v6568
        %6570 = vmatmul.f32.gmra.mxu0 %v6173
        %v6571 = vpop.f32.mrf.mxu0
        %v6572 = vadd.f32 %v6507, %v6571
        %6573 = vmatmul.f32.gmra.mxu0 %v6177
        %v6574 = vpop.f32.mrf.mxu0
        %v6575 = vadd.f32 %v6510, %v6574
        %6576 = vmatmul.f32.gmra.mxu0 %v6181
        %v6577 = vpop.f32.mrf.mxu0
        %v6578 = vadd.f32 %v6513, %v6577
        %6579 = vmatmul.f32.gmra.mxu0 %v6185
        %v6580 = vpop.f32.mrf.mxu0
        %v6581 = vadd.f32 %v6516, %v6580
        %6582 = vmatmul.f32.gmra.mxu0 %v6189
        %v6583 = vpop.f32.mrf.mxu0
        %v6584 = vadd.f32 %v6519, %v6583
        %6585 = vmatmul.f32.gmra.mxu0 %v6193
        %v6586 = vpop.f32.mrf.mxu0
        %v6587 = vadd.f32 %v6522, %v6586
        %6588 = vmatmul.f32.gmra.mxu0 %v6197
        %v6589 = vpop.f32.mrf.mxu0
        %v6590 = vadd.f32 %v6525, %v6589
        %6591 = vmatmul.f32.gmra.mxu0 %v6201
        %v6592 = vpop.f32.mrf.mxu0
        %v6593 = vadd.f32 %v6528, %v6592
        %6594 = vmatmul.f32.gmra.mxu0 %v6205
        %v6595 = vpop.f32.mrf.mxu0
        %v6596 = vadd.f32 %v6531, %v6595
        %6597 = vdwg.mxu0
        %6598 = vmatpush.msra.mxu0 %v5051
        %6599 = vmatpush.msra.mxu0 %v5047
        %6600 = vmatpush.msra.mxu0 %v5043
        %6601 = vmatpush.msra.mxu0 %v5039
        %6602 = vmatpush.msra.mxu0 %v5035
        %6603 = vmatpush.msra.mxu0 %v5031
        %6604 = vmatpush.msra.mxu0 %v5027
        %6605 = vmatpush.msra.mxu0 %v5023
        %6606 = vmatpush.msra.mxu0 %v5019
        %6607 = vmatpush.msra.mxu0 %v5015
        %6608 = vmatpush.msra.mxu0 %v5011
        %6609 = vmatpush.msra.mxu0 %v5007
        %6610 = vmatpush.msra.mxu0 %v5003
        %6611 = vmatpush.msra.mxu0 %v4999
        %6612 = vmatpush.msra.mxu0 %v4995
        %6613 = vmatpush.msra.mxu0 %v4991
        %6614 = vmatmul.f32.gmra.mxu0 %v6146
        %v6615 = vpop.f32.mrf.mxu0
        %v6616 = vadd.f32 %v6551, %v6615
        %6617 = vmatmul.f32.gmra.mxu0 %v6150
        %v6618 = vpop.f32.mrf.mxu0
        %v6619 = vadd.f32 %v6554, %v6618
        %6620 = vmatmul.f32.gmra.mxu0 %v6154
        %v6621 = vpop.f32.mrf.mxu0
        %v6622 = vadd.f32 %v6557, %v6621
        %6623 = vmatmul.f32.gmra.mxu0 %v6158
        %v6624 = vpop.f32.mrf.mxu0
        %v6625 = vadd.f32 %v6560, %v6624
        %6626 = vmatmul.f32.gmra.mxu0 %v6162
        %v6627 = vpop.f32.mrf.mxu0
        %v6628 = vadd.f32 %v6563, %v6627
        %6629 = vmatmul.f32.gmra.mxu0 %v6166
        %v6630 = vpop.f32.mrf.mxu0
        %v6631 = vadd.f32 %v6566, %v6630
        %6632 = vmatmul.f32.gmra.mxu0 %v6170
        %v6633 = vpop.f32.mrf.mxu0
        %v6634 = vadd.f32 %v6569, %v6633
        %6635 = vmatmul.f32.gmra.mxu0 %v6174
        %v6636 = vpop.f32.mrf.mxu0
        %v6637 = vadd.f32 %v6572, %v6636
        %6638 = vmatmul.f32.gmra.mxu0 %v6178
        %v6639 = vpop.f32.mrf.mxu0
        %v6640 = vadd.f32 %v6575, %v6639
        %6641 = vmatmul.f32.gmra.mxu0 %v6182
        %v6642 = vpop.f32.mrf.mxu0
        %v6643 = vadd.f32 %v6578, %v6642
        %6644 = vmatmul.f32.gmra.mxu0 %v6186
        %v6645 = vpop.f32.mrf.mxu0
        %v6646 = vadd.f32 %v6581, %v6645
        %6647 = vmatmul.f32.gmra.mxu0 %v6190
        %v6648 = vpop.f32.mrf.mxu0
        %v6649 = vadd.f32 %v6584, %v6648
        %6650 = vmatmul.f32.gmra.mxu0 %v6194
        %v6651 = vpop.f32.mrf.mxu0
        %v6652 = vadd.f32 %v6587, %v6651
        %6653 = vmatmul.f32.gmra.mxu0 %v6198
        %v6654 = vpop.f32.mrf.mxu0
        %v6655 = vadd.f32 %v6590, %v6654
        %6656 = vmatmul.f32.gmra.mxu0 %v6202
        %v6657 = vpop.f32.mrf.mxu0
        %v6658 = vadd.f32 %v6593, %v6657
        %6659 = vmatmul.f32.gmra.mxu0 %v6206
        %v6660 = vpop.f32.mrf.mxu0
        %v6661 = vadd.f32 %v6596, %v6660
        %6662 = vdwg.mxu0
        %6663 = vmatpush.msra.mxu0 %v5115
        %6664 = vmatpush.msra.mxu0 %v5111
        %6665 = vmatpush.msra.mxu0 %v5107
        %6666 = vmatpush.msra.mxu0 %v5103
        %6667 = vmatpush.msra.mxu0 %v5099
        %6668 = vmatpush.msra.mxu0 %v5095
        %6669 = vmatpush.msra.mxu0 %v5091
        %6670 = vmatpush.msra.mxu0 %v5087
        %6671 = vmatpush.msra.mxu0 %v5083
        %6672 = vmatpush.msra.mxu0 %v5079
        %6673 = vmatpush.msra.mxu0 %v5075
        %6674 = vmatpush.msra.mxu0 %v5071
        %6675 = vmatpush.msra.mxu0 %v5067
        %6676 = vmatpush.msra.mxu0 %v5063
        %6677 = vmatpush.msra.mxu0 %v5059
        %6678 = vmatpush.msra.mxu0 %v5055
        %6679 = vmatmul.f32.gmra.mxu0 %v6147
        %v6680 = vpop.f32.mrf.mxu0
        %v6681 = vadd.f32 %v6616, %v6680
        %6682 = vmatmul.f32.gmra.mxu0 %v6151
        %v6683 = vpop.f32.mrf.mxu0
        %v6684 = vadd.f32 %v6619, %v6683
        %6685 = vmatmul.f32.gmra.mxu0 %v6155
        %v6686 = vpop.f32.mrf.mxu0
        %v6687 = vadd.f32 %v6622, %v6686
        %6688 = vmatmul.f32.gmra.mxu0 %v6159
        %v6689 = vpop.f32.mrf.mxu0
        %v6690 = vadd.f32 %v6625, %v6689
        %6691 = vmatmul.f32.gmra.mxu0 %v6163
        %v6692 = vpop.f32.mrf.mxu0
        %v6693 = vadd.f32 %v6628, %v6692
        %6694 = vmatmul.f32.gmra.mxu0 %v6167
        %v6695 = vpop.f32.mrf.mxu0
        %v6696 = vadd.f32 %v6631, %v6695
        %6697 = vmatmul.f32.gmra.mxu0 %v6171
        %v6698 = vpop.f32.mrf.mxu0
        %v6699 = vadd.f32 %v6634, %v6698
        %6700 = vmatmul.f32.gmra.mxu0 %v6175
        %v6701 = vpop.f32.mrf.mxu0
        %v6702 = vadd.f32 %v6637, %v6701
        %6703 = vmatmul.f32.gmra.mxu0 %v6179
        %v6704 = vpop.f32.mrf.mxu0
        %v6705 = vadd.f32 %v6640, %v6704
        %6706 = vmatmul.f32.gmra.mxu0 %v6183
        %v6707 = vpop.f32.mrf.mxu0
        %v6708 = vadd.f32 %v6643, %v6707
        %6709 = vmatmul.f32.gmra.mxu0 %v6187
        %v6710 = vpop.f32.mrf.mxu0
        %v6711 = vadd.f32 %v6646, %v6710
        %6712 = vmatmul.f32.gmra.mxu0 %v6191
        %v6713 = vpop.f32.mrf.mxu0
        %v6714 = vadd.f32 %v6649, %v6713
        %6715 = vmatmul.f32.gmra.mxu0 %v6195
        %v6716 = vpop.f32.mrf.mxu0
        %v6717 = vadd.f32 %v6652, %v6716
        %6718 = vmatmul.f32.gmra.mxu0 %v6199
        %v6719 = vpop.f32.mrf.mxu0
        %v6720 = vadd.f32 %v6655, %v6719
        %6721 = vmatmul.f32.gmra.mxu0 %v6203
        %v6722 = vpop.f32.mrf.mxu0
        %v6723 = vadd.f32 %v6658, %v6722
        %6724 = vmatmul.f32.gmra.mxu0 %v6207
        %v6725 = vpop.f32.mrf.mxu0
        %v6726 = vadd.f32 %v6661, %v6725
        %6727 = vdwg.mxu0
        %6728 = vmatpush.msra.mxu0 %v4924
        %6729 = vmatpush.msra.mxu0 %v4920
        %6730 = vmatpush.msra.mxu0 %v4916
        %6731 = vmatpush.msra.mxu0 %v4912
        %6732 = vmatpush.msra.mxu0 %v4908
        %6733 = vmatpush.msra.mxu0 %v4904
        %6734 = vmatpush.msra.mxu0 %v4900
        %6735 = vmatpush.msra.mxu0 %v4896
        %6736 = vmatpush.msra.mxu0 %v4892
        %6737 = vmatpush.msra.mxu0 %v4888
        %6738 = vmatpush.msra.mxu0 %v4884
        %6739 = vmatpush.msra.mxu0 %v4880
        %6740 = vmatpush.msra.mxu0 %v4876
        %6741 = vmatpush.msra.mxu0 %v4872
        %6742 = vmatpush.msra.mxu0 %v4868
        %6743 = vmatpush.msra.mxu0 %v4864
        %6744 = vmatmul.f32.gmra.mxu0 %v6144
        %v6745 = vpop.f32.mrf.mxu0
        %v6746 = vadd.f32 0.0, %v6745
        %6747 = vmatmul.f32.gmra.mxu0 %v6148
        %v6748 = vpop.f32.mrf.mxu0
        %v6749 = vadd.f32 0.0, %v6748
        %6750 = vmatmul.f32.gmra.mxu0 %v6152
        %v6751 = vpop.f32.mrf.mxu0
        %v6752 = vadd.f32 0.0, %v6751
        %6753 = vmatmul.f32.gmra.mxu0 %v6156
        %v6754 = vpop.f32.mrf.mxu0
        %v6755 = vadd.f32 0.0, %v6754
        %6756 = vmatmul.f32.gmra.mxu0 %v6160
        %v6757 = vpop.f32.mrf.mxu0
        %v6758 = vadd.f32 0.0, %v6757
        %6759 = vmatmul.f32.gmra.mxu0 %v6164
        %v6760 = vpop.f32.mrf.mxu0
        %v6761 = vadd.f32 0.0, %v6760
        %6762 = vmatmul.f32.gmra.mxu0 %v6168
        %v6763 = vpop.f32.mrf.mxu0
        %v6764 = vadd.f32 0.0, %v6763
        %6765 = vmatmul.f32.gmra.mxu0 %v6172
        %v6766 = vpop.f32.mrf.mxu0
        %v6767 = vadd.f32 0.0, %v6766
        %6768 = vmatmul.f32.gmra.mxu0 %v6176
        %v6769 = vpop.f32.mrf.mxu0
        %v6770 = vadd.f32 0.0, %v6769
        %6771 = vmatmul.f32.gmra.mxu0 %v6180
        %v6772 = vpop.f32.mrf.mxu0
        %v6773 = vadd.f32 0.0, %v6772
        %6774 = vmatmul.f32.gmra.mxu0 %v6184
        %v6775 = vpop.f32.mrf.mxu0
        %v6776 = vadd.f32 0.0, %v6775
        %6777 = vmatmul.f32.gmra.mxu0 %v6188
        %v6778 = vpop.f32.mrf.mxu0
        %v6779 = vadd.f32 0.0, %v6778
        %6780 = vmatmul.f32.gmra.mxu0 %v6192
        %v6781 = vpop.f32.mrf.mxu0
        %v6782 = vadd.f32 0.0, %v6781
        %6783 = vmatmul.f32.gmra.mxu0 %v6196
        %v6784 = vpop.f32.mrf.mxu0
        %v6785 = vadd.f32 0.0, %v6784
        %6786 = vmatmul.f32.gmra.mxu0 %v6200
        %v6787 = vpop.f32.mrf.mxu0
        %v6788 = vadd.f32 0.0, %v6787
        %6789 = vmatmul.f32.gmra.mxu0 %v6204
        %v6790 = vpop.f32.mrf.mxu0
        %v6791 = vadd.f32 0.0, %v6790
        %6792 = vdwg.mxu0
        %6793 = vmatpush.msra.mxu0 %v4988
        %6794 = vmatpush.msra.mxu0 %v4984
        %6795 = vmatpush.msra.mxu0 %v4980
        %6796 = vmatpush.msra.mxu0 %v4976
        %6797 = vmatpush.msra.mxu0 %v4972
        %6798 = vmatpush.msra.mxu0 %v4968
        %6799 = vmatpush.msra.mxu0 %v4964
        %6800 = vmatpush.msra.mxu0 %v4960
        %6801 = vmatpush.msra.mxu0 %v4956
        %6802 = vmatpush.msra.mxu0 %v4952
        %6803 = vmatpush.msra.mxu0 %v4948
        %6804 = vmatpush.msra.mxu0 %v4944
        %6805 = vmatpush.msra.mxu0 %v4940
        %6806 = vmatpush.msra.mxu0 %v4936
        %6807 = vmatpush.msra.mxu0 %v4932
        %6808 = vmatpush.msra.mxu0 %v4928
        %6809 = vmatmul.f32.gmra.mxu0 %v6145
        %v6810 = vpop.f32.mrf.mxu0
        %v6811 = vadd.f32 %v6746, %v6810
        %6812 = vmatmul.f32.gmra.mxu0 %v6149
        %v6813 = vpop.f32.mrf.mxu0
        %v6814 = vadd.f32 %v6749, %v6813
        %6815 = vmatmul.f32.gmra.mxu0 %v6153
        %v6816 = vpop.f32.mrf.mxu0
        %v6817 = vadd.f32 %v6752, %v6816
        %6818 = vmatmul.f32.gmra.mxu0 %v6157
        %v6819 = vpop.f32.mrf.mxu0
        %v6820 = vadd.f32 %v6755, %v6819
        %6821 = vmatmul.f32.gmra.mxu0 %v6161
        %v6822 = vpop.f32.mrf.mxu0
        %v6823 = vadd.f32 %v6758, %v6822
        %6824 = vmatmul.f32.gmra.mxu0 %v6165
        %v6825 = vpop.f32.mrf.mxu0
        %v6826 = vadd.f32 %v6761, %v6825
        %6827 = vmatmul.f32.gmra.mxu0 %v6169
        %v6828 = vpop.f32.mrf.mxu0
        %v6829 = vadd.f32 %v6764, %v6828
        %6830 = vmatmul.f32.gmra.mxu0 %v6173
        %v6831 = vpop.f32.mrf.mxu0
        %v6832 = vadd.f32 %v6767, %v6831
        %6833 = vmatmul.f32.gmra.mxu0 %v6177
        %v6834 = vpop.f32.mrf.mxu0
        %v6835 = vadd.f32 %v6770, %v6834
        %6836 = vmatmul.f32.gmra.mxu0 %v6181
        %v6837 = vpop.f32.mrf.mxu0
        %v6838 = vadd.f32 %v6773, %v6837
        %6839 = vmatmul.f32.gmra.mxu0 %v6185
        %v6840 = vpop.f32.mrf.mxu0
        %v6841 = vadd.f32 %v6776, %v6840
        %6842 = vmatmul.f32.gmra.mxu0 %v6189
        %v6843 = vpop.f32.mrf.mxu0
        %v6844 = vadd.f32 %v6779, %v6843
        %6845 = vmatmul.f32.gmra.mxu0 %v6193
        %v6846 = vpop.f32.mrf.mxu0
        %v6847 = vadd.f32 %v6782, %v6846
        %6848 = vmatmul.f32.gmra.mxu0 %v6197
        %v6849 = vpop.f32.mrf.mxu0
        %v6850 = vadd.f32 %v6785, %v6849
        %6851 = vmatmul.f32.gmra.mxu0 %v6201
        %v6852 = vpop.f32.mrf.mxu0
        %v6853 = vadd.f32 %v6788, %v6852
        %6854 = vmatmul.f32.gmra.mxu0 %v6205
        %v6855 = vpop.f32.mrf.mxu0
        %v6856 = vadd.f32 %v6791, %v6855
        %6857 = vdwg.mxu0
        %6858 = vmatpush.msra.mxu0 %v5052
        %6859 = vmatpush.msra.mxu0 %v5048
        %6860 = vmatpush.msra.mxu0 %v5044
        %6861 = vmatpush.msra.mxu0 %v5040
        %6862 = vmatpush.msra.mxu0 %v5036
        %6863 = vmatpush.msra.mxu0 %v5032
        %6864 = vmatpush.msra.mxu0 %v5028
        %6865 = vmatpush.msra.mxu0 %v5024
        %6866 = vmatpush.msra.mxu0 %v5020
        %6867 = vmatpush.msra.mxu0 %v5016
        %6868 = vmatpush.msra.mxu0 %v5012
        %6869 = vmatpush.msra.mxu0 %v5008
        %6870 = vmatpush.msra.mxu0 %v5004
        %6871 = vmatpush.msra.mxu0 %v5000
        %6872 = vmatpush.msra.mxu0 %v4996
        %6873 = vmatpush.msra.mxu0 %v4992
        %6874 = vmatmul.f32.gmra.mxu0 %v6146
        %v6875 = vpop.f32.mrf.mxu0
        %v6876 = vadd.f32 %v6811, %v6875
        %6877 = vmatmul.f32.gmra.mxu0 %v6150
        %v6878 = vpop.f32.mrf.mxu0
        %v6879 = vadd.f32 %v6814, %v6878
        %6880 = vmatmul.f32.gmra.mxu0 %v6154
        %v6881 = vpop.f32.mrf.mxu0
        %v6882 = vadd.f32 %v6817, %v6881
        %6883 = vmatmul.f32.gmra.mxu0 %v6158
        %v6884 = vpop.f32.mrf.mxu0
        %v6885 = vadd.f32 %v6820, %v6884
        %6886 = vmatmul.f32.gmra.mxu0 %v6162
        %v6887 = vpop.f32.mrf.mxu0
        %v6888 = vadd.f32 %v6823, %v6887
        %6889 = vmatmul.f32.gmra.mxu0 %v6166
        %v6890 = vpop.f32.mrf.mxu0
        %v6891 = vadd.f32 %v6826, %v6890
        %6892 = vmatmul.f32.gmra.mxu0 %v6170
        %v6893 = vpop.f32.mrf.mxu0
        %v6894 = vadd.f32 %v6829, %v6893
        %6895 = vmatmul.f32.gmra.mxu0 %v6174
        %v6896 = vpop.f32.mrf.mxu0
        %v6897 = vadd.f32 %v6832, %v6896
        %6898 = vmatmul.f32.gmra.mxu0 %v6178
        %v6899 = vpop.f32.mrf.mxu0
        %v6900 = vadd.f32 %v6835, %v6899
        %6901 = vmatmul.f32.gmra.mxu0 %v6182
        %v6902 = vpop.f32.mrf.mxu0
        %v6903 = vadd.f32 %v6838, %v6902
        %6904 = vmatmul.f32.gmra.mxu0 %v6186
        %v6905 = vpop.f32.mrf.mxu0
        %v6906 = vadd.f32 %v6841, %v6905
        %6907 = vmatmul.f32.gmra.mxu0 %v6190
        %v6908 = vpop.f32.mrf.mxu0
        %v6909 = vadd.f32 %v6844, %v6908
        %6910 = vmatmul.f32.gmra.mxu0 %v6194
        %v6911 = vpop.f32.mrf.mxu0
        %v6912 = vadd.f32 %v6847, %v6911
        %6913 = vmatmul.f32.gmra.mxu0 %v6198
        %v6914 = vpop.f32.mrf.mxu0
        %v6915 = vadd.f32 %v6850, %v6914
        %6916 = vmatmul.f32.gmra.mxu0 %v6202
        %v6917 = vpop.f32.mrf.mxu0
        %v6918 = vadd.f32 %v6853, %v6917
        %6919 = vmatmul.f32.gmra.mxu0 %v6206
        %v6920 = vpop.f32.mrf.mxu0
        %v6921 = vadd.f32 %v6856, %v6920
        %6922 = vdwg.mxu0
        %6923 = vmatpush.msra.mxu0 %v5116
        %6924 = vmatpush.msra.mxu0 %v5112
        %6925 = vmatpush.msra.mxu0 %v5108
        %6926 = vmatpush.msra.mxu0 %v5104
        %6927 = vmatpush.msra.mxu0 %v5100
        %6928 = vmatpush.msra.mxu0 %v5096
        %6929 = vmatpush.msra.mxu0 %v5092
        %6930 = vmatpush.msra.mxu0 %v5088
        %6931 = vmatpush.msra.mxu0 %v5084
        %6932 = vmatpush.msra.mxu0 %v5080
        %6933 = vmatpush.msra.mxu0 %v5076
        %6934 = vmatpush.msra.mxu0 %v5072
        %6935 = vmatpush.msra.mxu0 %v5068
        %6936 = vmatpush.msra.mxu0 %v5064
        %6937 = vmatpush.msra.mxu0 %v5060
        %6938 = vmatpush.msra.mxu0 %v5056
        %6939 = vmatmul.f32.gmra.mxu0 %v6147
        %v6940 = vpop.f32.mrf.mxu0
        %v6941 = vadd.f32 %v6876, %v6940
        %6942 = vmatmul.f32.gmra.mxu0 %v6151
        %v6943 = vpop.f32.mrf.mxu0
        %v6944 = vadd.f32 %v6879, %v6943
        %6945 = vmatmul.f32.gmra.mxu0 %v6155
        %v6946 = vpop.f32.mrf.mxu0
        %v6947 = vadd.f32 %v6882, %v6946
        %6948 = vmatmul.f32.gmra.mxu0 %v6159
        %v6949 = vpop.f32.mrf.mxu0
        %v6950 = vadd.f32 %v6885, %v6949
        %6951 = vmatmul.f32.gmra.mxu0 %v6163
        %v6952 = vpop.f32.mrf.mxu0
        %v6953 = vadd.f32 %v6888, %v6952
        %6954 = vmatmul.f32.gmra.mxu0 %v6167
        %v6955 = vpop.f32.mrf.mxu0
        %v6956 = vadd.f32 %v6891, %v6955
        %6957 = vmatmul.f32.gmra.mxu0 %v6171
        %v6958 = vpop.f32.mrf.mxu0
        %v6959 = vadd.f32 %v6894, %v6958
        %6960 = vmatmul.f32.gmra.mxu0 %v6175
        %v6961 = vpop.f32.mrf.mxu0
        %v6962 = vadd.f32 %v6897, %v6961
        %6963 = vmatmul.f32.gmra.mxu0 %v6179
        %v6964 = vpop.f32.mrf.mxu0
        %v6965 = vadd.f32 %v6900, %v6964
        %6966 = vmatmul.f32.gmra.mxu0 %v6183
        %v6967 = vpop.f32.mrf.mxu0
        %v6968 = vadd.f32 %v6903, %v6967
        %6969 = vmatmul.f32.gmra.mxu0 %v6187
        %v6970 = vpop.f32.mrf.mxu0
        %v6971 = vadd.f32 %v6906, %v6970
        %6972 = vmatmul.f32.gmra.mxu0 %v6191
        %v6973 = vpop.f32.mrf.mxu0
        %v6974 = vadd.f32 %v6909, %v6973
        %6975 = vmatmul.f32.gmra.mxu0 %v6195
        %v6976 = vpop.f32.mrf.mxu0
        %v6977 = vadd.f32 %v6912, %v6976
        %6978 = vmatmul.f32.gmra.mxu0 %v6199
        %v6979 = vpop.f32.mrf.mxu0
        %v6980 = vadd.f32 %v6915, %v6979
        %6981 = vmatmul.f32.gmra.mxu0 %v6203
        %v6982 = vpop.f32.mrf.mxu0
        %v6983 = vadd.f32 %v6918, %v6982
        %6984 = vmatmul.f32.gmra.mxu0 %v6207
        %v6985 = vpop.f32.mrf.mxu0
        %v6986 = vadd.f32 %v6921, %v6985
        %6987 = vdwg.mxu0
        %6988 = vmatpush.msra.mxu0 %v4925
        %6989 = vmatpush.msra.mxu0 %v4921
        %6990 = vmatpush.msra.mxu0 %v4917
        %6991 = vmatpush.msra.mxu0 %v4913
        %6992 = vmatpush.msra.mxu0 %v4909
        %6993 = vmatpush.msra.mxu0 %v4905
        %6994 = vmatpush.msra.mxu0 %v4901
        %6995 = vmatpush.msra.mxu0 %v4897
        %6996 = vmatpush.msra.mxu0 %v4893
        %6997 = vmatpush.msra.mxu0 %v4889
        %6998 = vmatpush.msra.mxu0 %v4885
        %6999 = vmatpush.msra.mxu0 %v4881
        %7000 = vmatpush.msra.mxu0 %v4877
        %7001 = vmatpush.msra.mxu0 %v4873
        %7002 = vmatpush.msra.mxu0 %v4869
        %7003 = vmatpush.msra.mxu0 %v4865
        %7004 = vmatmul.f32.gmra.mxu0 %v6144
        %v7005 = vpop.f32.mrf.mxu0
        %v7006 = vadd.f32 0.0, %v7005
        %7007 = vmatmul.f32.gmra.mxu0 %v6148
        %v7008 = vpop.f32.mrf.mxu0
        %v7009 = vadd.f32 0.0, %v7008
        %7010 = vmatmul.f32.gmra.mxu0 %v6152
        %v7011 = vpop.f32.mrf.mxu0
        %v7012 = vadd.f32 0.0, %v7011
        %7013 = vmatmul.f32.gmra.mxu0 %v6156
        %v7014 = vpop.f32.mrf.mxu0
        %v7015 = vadd.f32 0.0, %v7014
        %7016 = vmatmul.f32.gmra.mxu0 %v6160
        %v7017 = vpop.f32.mrf.mxu0
        %v7018 = vadd.f32 0.0, %v7017
        %7019 = vmatmul.f32.gmra.mxu0 %v6164
        %v7020 = vpop.f32.mrf.mxu0
        %v7021 = vadd.f32 0.0, %v7020
        %7022 = vmatmul.f32.gmra.mxu0 %v6168
        %v7023 = vpop.f32.mrf.mxu0
        %v7024 = vadd.f32 0.0, %v7023
        %7025 = vmatmul.f32.gmra.mxu0 %v6172
        %v7026 = vpop.f32.mrf.mxu0
        %v7027 = vadd.f32 0.0, %v7026
        %7028 = vmatmul.f32.gmra.mxu0 %v6176
        %v7029 = vpop.f32.mrf.mxu0
        %v7030 = vadd.f32 0.0, %v7029
        %7031 = vmatmul.f32.gmra.mxu0 %v6180
        %v7032 = vpop.f32.mrf.mxu0
        %v7033 = vadd.f32 0.0, %v7032
        %7034 = vmatmul.f32.gmra.mxu0 %v6184
        %v7035 = vpop.f32.mrf.mxu0
        %v7036 = vadd.f32 0.0, %v7035
        %7037 = vmatmul.f32.gmra.mxu0 %v6188
        %v7038 = vpop.f32.mrf.mxu0
        %v7039 = vadd.f32 0.0, %v7038
        %7040 = vmatmul.f32.gmra.mxu0 %v6192
        %v7041 = vpop.f32.mrf.mxu0
        %v7042 = vadd.f32 0.0, %v7041
        %7043 = vmatmul.f32.gmra.mxu0 %v6196
        %v7044 = vpop.f32.mrf.mxu0
        %v7045 = vadd.f32 0.0, %v7044
        %7046 = vmatmul.f32.gmra.mxu0 %v6200
        %v7047 = vpop.f32.mrf.mxu0
        %v7048 = vadd.f32 0.0, %v7047
        %7049 = vmatmul.f32.gmra.mxu0 %v6204
        %v7050 = vpop.f32.mrf.mxu0
        %v7051 = vadd.f32 0.0, %v7050
        %7052 = vdwg.mxu0
        %7053 = vmatpush.msra.mxu0 %v4989
        %7054 = vmatpush.msra.mxu0 %v4985
        %7055 = vmatpush.msra.mxu0 %v4981
        %7056 = vmatpush.msra.mxu0 %v4977
        %7057 = vmatpush.msra.mxu0 %v4973
        %7058 = vmatpush.msra.mxu0 %v4969
        %7059 = vmatpush.msra.mxu0 %v4965
        %7060 = vmatpush.msra.mxu0 %v4961
        %7061 = vmatpush.msra.mxu0 %v4957
        %7062 = vmatpush.msra.mxu0 %v4953
        %7063 = vmatpush.msra.mxu0 %v4949
        %7064 = vmatpush.msra.mxu0 %v4945
        %7065 = vmatpush.msra.mxu0 %v4941
        %7066 = vmatpush.msra.mxu0 %v4937
        %7067 = vmatpush.msra.mxu0 %v4933
        %7068 = vmatpush.msra.mxu0 %v4929
        %7069 = vmatmul.f32.gmra.mxu0 %v6145
        %v7070 = vpop.f32.mrf.mxu0
        %v7071 = vadd.f32 %v7006, %v7070
        %7072 = vmatmul.f32.gmra.mxu0 %v6149
        %v7073 = vpop.f32.mrf.mxu0
        %v7074 = vadd.f32 %v7009, %v7073
        %7075 = vmatmul.f32.gmra.mxu0 %v6153
        %v7076 = vpop.f32.mrf.mxu0
        %v7077 = vadd.f32 %v7012, %v7076
        %7078 = vmatmul.f32.gmra.mxu0 %v6157
        %v7079 = vpop.f32.mrf.mxu0
        %v7080 = vadd.f32 %v7015, %v7079
        %7081 = vmatmul.f32.gmra.mxu0 %v6161
        %v7082 = vpop.f32.mrf.mxu0
        %v7083 = vadd.f32 %v7018, %v7082
        %7084 = vmatmul.f32.gmra.mxu0 %v6165
        %v7085 = vpop.f32.mrf.mxu0
        %v7086 = vadd.f32 %v7021, %v7085
        %7087 = vmatmul.f32.gmra.mxu0 %v6169
        %v7088 = vpop.f32.mrf.mxu0
        %v7089 = vadd.f32 %v7024, %v7088
        %7090 = vmatmul.f32.gmra.mxu0 %v6173
        %v7091 = vpop.f32.mrf.mxu0
        %v7092 = vadd.f32 %v7027, %v7091
        %7093 = vmatmul.f32.gmra.mxu0 %v6177
        %v7094 = vpop.f32.mrf.mxu0
        %v7095 = vadd.f32 %v7030, %v7094
        %7096 = vmatmul.f32.gmra.mxu0 %v6181
        %v7097 = vpop.f32.mrf.mxu0
        %v7098 = vadd.f32 %v7033, %v7097
        %7099 = vmatmul.f32.gmra.mxu0 %v6185
        %v7100 = vpop.f32.mrf.mxu0
        %v7101 = vadd.f32 %v7036, %v7100
        %7102 = vmatmul.f32.gmra.mxu0 %v6189
        %v7103 = vpop.f32.mrf.mxu0
        %v7104 = vadd.f32 %v7039, %v7103
        %7105 = vmatmul.f32.gmra.mxu0 %v6193
        %v7106 = vpop.f32.mrf.mxu0
        %v7107 = vadd.f32 %v7042, %v7106
        %7108 = vmatmul.f32.gmra.mxu0 %v6197
        %v7109 = vpop.f32.mrf.mxu0
        %v7110 = vadd.f32 %v7045, %v7109
        %7111 = vmatmul.f32.gmra.mxu0 %v6201
        %v7112 = vpop.f32.mrf.mxu0
        %v7113 = vadd.f32 %v7048, %v7112
        %7114 = vmatmul.f32.gmra.mxu0 %v6205
        %v7115 = vpop.f32.mrf.mxu0
        %v7116 = vadd.f32 %v7051, %v7115
        %7117 = vdwg.mxu0
        %7118 = vmatpush.msra.mxu0 %v5053
        %7119 = vmatpush.msra.mxu0 %v5049
        %7120 = vmatpush.msra.mxu0 %v5045
        %7121 = vmatpush.msra.mxu0 %v5041
        %7122 = vmatpush.msra.mxu0 %v5037
        %7123 = vmatpush.msra.mxu0 %v5033
        %7124 = vmatpush.msra.mxu0 %v5029
        %7125 = vmatpush.msra.mxu0 %v5025
        %7126 = vmatpush.msra.mxu0 %v5021
        %7127 = vmatpush.msra.mxu0 %v5017
        %7128 = vmatpush.msra.mxu0 %v5013
        %7129 = vmatpush.msra.mxu0 %v5009
        %7130 = vmatpush.msra.mxu0 %v5005
        %7131 = vmatpush.msra.mxu0 %v5001
        %7132 = vmatpush.msra.mxu0 %v4997
        %7133 = vmatpush.msra.mxu0 %v4993
        %7134 = vmatmul.f32.gmra.mxu0 %v6146
        %v7135 = vpop.f32.mrf.mxu0
        %v7136 = vadd.f32 %v7071, %v7135
        %7137 = vmatmul.f32.gmra.mxu0 %v6150
        %v7138 = vpop.f32.mrf.mxu0
        %v7139 = vadd.f32 %v7074, %v7138
        %7140 = vmatmul.f32.gmra.mxu0 %v6154
        %v7141 = vpop.f32.mrf.mxu0
        %v7142 = vadd.f32 %v7077, %v7141
        %7143 = vmatmul.f32.gmra.mxu0 %v6158
        %v7144 = vpop.f32.mrf.mxu0
        %v7145 = vadd.f32 %v7080, %v7144
        %7146 = vmatmul.f32.gmra.mxu0 %v6162
        %v7147 = vpop.f32.mrf.mxu0
        %v7148 = vadd.f32 %v7083, %v7147
        %7149 = vmatmul.f32.gmra.mxu0 %v6166
        %v7150 = vpop.f32.mrf.mxu0
        %v7151 = vadd.f32 %v7086, %v7150
        %7152 = vmatmul.f32.gmra.mxu0 %v6170
        %v7153 = vpop.f32.mrf.mxu0
        %v7154 = vadd.f32 %v7089, %v7153
        %7155 = vmatmul.f32.gmra.mxu0 %v6174
        %v7156 = vpop.f32.mrf.mxu0
        %v7157 = vadd.f32 %v7092, %v7156
        %7158 = vmatmul.f32.gmra.mxu0 %v6178
        %v7159 = vpop.f32.mrf.mxu0
        %v7160 = vadd.f32 %v7095, %v7159
        %7161 = vmatmul.f32.gmra.mxu0 %v6182
        %v7162 = vpop.f32.mrf.mxu0
        %v7163 = vadd.f32 %v7098, %v7162
        %7164 = vmatmul.f32.gmra.mxu0 %v6186
        %v7165 = vpop.f32.mrf.mxu0
        %v7166 = vadd.f32 %v7101, %v7165
        %7167 = vmatmul.f32.gmra.mxu0 %v6190
        %v7168 = vpop.f32.mrf.mxu0
        %v7169 = vadd.f32 %v7104, %v7168
        %7170 = vmatmul.f32.gmra.mxu0 %v6194
        %v7171 = vpop.f32.mrf.mxu0
        %v7172 = vadd.f32 %v7107, %v7171
        %7173 = vmatmul.f32.gmra.mxu0 %v6198
        %v7174 = vpop.f32.mrf.mxu0
        %v7175 = vadd.f32 %v7110, %v7174
        %7176 = vmatmul.f32.gmra.mxu0 %v6202
        %v7177 = vpop.f32.mrf.mxu0
        %v7178 = vadd.f32 %v7113, %v7177
        %7179 = vmatmul.f32.gmra.mxu0 %v6206
        %v7180 = vpop.f32.mrf.mxu0
        %v7181 = vadd.f32 %v7116, %v7180
        %7182 = vdwg.mxu0
        %7183 = vmatpush.msra.mxu0 %v5117
        %7184 = vmatpush.msra.mxu0 %v5113
        %7185 = vmatpush.msra.mxu0 %v5109
        %7186 = vmatpush.msra.mxu0 %v5105
        %7187 = vmatpush.msra.mxu0 %v5101
        %7188 = vmatpush.msra.mxu0 %v5097
        %7189 = vmatpush.msra.mxu0 %v5093
        %7190 = vmatpush.msra.mxu0 %v5089
        %7191 = vmatpush.msra.mxu0 %v5085
        %7192 = vmatpush.msra.mxu0 %v5081
        %7193 = vmatpush.msra.mxu0 %v5077
        %7194 = vmatpush.msra.mxu0 %v5073
        %7195 = vmatpush.msra.mxu0 %v5069
        %7196 = vmatpush.msra.mxu0 %v5065
        %7197 = vmatpush.msra.mxu0 %v5061
        %7198 = vmatpush.msra.mxu0 %v5057
        %7199 = vmatmul.f32.gmra.mxu0 %v6147
        %v7200 = vpop.f32.mrf.mxu0
        %v7201 = vadd.f32 %v7136, %v7200
        %7202 = vmatmul.f32.gmra.mxu0 %v6151
        %v7203 = vpop.f32.mrf.mxu0
        %v7204 = vadd.f32 %v7139, %v7203
        %7205 = vmatmul.f32.gmra.mxu0 %v6155
        %v7206 = vpop.f32.mrf.mxu0
        %v7207 = vadd.f32 %v7142, %v7206
        %7208 = vmatmul.f32.gmra.mxu0 %v6159
        %v7209 = vpop.f32.mrf.mxu0
        %v7210 = vadd.f32 %v7145, %v7209
        %7211 = vmatmul.f32.gmra.mxu0 %v6163
        %v7212 = vpop.f32.mrf.mxu0
        %v7213 = vadd.f32 %v7148, %v7212
        %7214 = vmatmul.f32.gmra.mxu0 %v6167
        %v7215 = vpop.f32.mrf.mxu0
        %v7216 = vadd.f32 %v7151, %v7215
        %7217 = vmatmul.f32.gmra.mxu0 %v6171
        %v7218 = vpop.f32.mrf.mxu0
        %v7219 = vadd.f32 %v7154, %v7218
        %7220 = vmatmul.f32.gmra.mxu0 %v6175
        %v7221 = vpop.f32.mrf.mxu0
        %v7222 = vadd.f32 %v7157, %v7221
        %7223 = vmatmul.f32.gmra.mxu0 %v6179
        %v7224 = vpop.f32.mrf.mxu0
        %v7225 = vadd.f32 %v7160, %v7224
        %7226 = vmatmul.f32.gmra.mxu0 %v6183
        %v7227 = vpop.f32.mrf.mxu0
        %v7228 = vadd.f32 %v7163, %v7227
        %7229 = vmatmul.f32.gmra.mxu0 %v6187
        %v7230 = vpop.f32.mrf.mxu0
        %v7231 = vadd.f32 %v7166, %v7230
        %7232 = vmatmul.f32.gmra.mxu0 %v6191
        %v7233 = vpop.f32.mrf.mxu0
        %v7234 = vadd.f32 %v7169, %v7233
        %7235 = vmatmul.f32.gmra.mxu0 %v6195
        %v7236 = vpop.f32.mrf.mxu0
        %v7237 = vadd.f32 %v7172, %v7236
        %7238 = vmatmul.f32.gmra.mxu0 %v6199
        %v7239 = vpop.f32.mrf.mxu0
        %v7240 = vadd.f32 %v7175, %v7239
        %7241 = vmatmul.f32.gmra.mxu0 %v6203
        %v7242 = vpop.f32.mrf.mxu0
        %v7243 = vadd.f32 %v7178, %v7242
        %7244 = vmatmul.f32.gmra.mxu0 %v6207
        %v7245 = vpop.f32.mrf.mxu0
        %v7246 = vadd.f32 %v7181, %v7245
        %7247 = vdwg.mxu0
        %7248 = vst [vmem:[#allocation2] sm:$0xff] %v6421
        %7249 = vst [vmem:[#allocation2 + $0x8] sm:$0xff] %v6681
        %7250 = vst [vmem:[#allocation2 + $0x10] sm:$0xff] %v6941
        %7251 = vst [vmem:[#allocation2 + $0x18] sm:$0xff] %v7201
        %7252 = vst [vmem:[#allocation2 + $0x20] sm:$0xff] %v6424
        %7253 = vst [vmem:[#allocation2 + $0x28] sm:$0xff] %v6684
        %7254 = vst [vmem:[#allocation2 + $0x30] sm:$0xff] %v6944
        %7255 = vst [vmem:[#allocation2 + $0x38] sm:$0xff] %v7204
        %7256 = vst [vmem:[#allocation2 + $0x40] sm:$0xff] %v6427
        %7257 = vst [vmem:[#allocation2 + $0x48] sm:$0xff] %v6687
        %7258 = vst [vmem:[#allocation2 + $0x50] sm:$0xff] %v6947
        %7259 = vst [vmem:[#allocation2 + $0x58] sm:$0xff] %v7207
        %7260 = vst [vmem:[#allocation2 + $0x60] sm:$0xff] %v6430
        %7261 = vst [vmem:[#allocation2 + $0x68] sm:$0xff] %v6690
        %7262 = vst [vmem:[#allocation2 + $0x70] sm:$0xff] %v6950
        %7263 = vst [vmem:[#allocation2 + $0x78] sm:$0xff] %v7210
        %7264 = vst [vmem:[#allocation2 + $0x80] sm:$0xff] %v6433
        %7265 = vst [vmem:[#allocation2 + $0x88] sm:$0xff] %v6693
        %7266 = vst [vmem:[#allocation2 + $0x90] sm:$0xff] %v6953
        %7267 = vst [vmem:[#allocation2 + $0x98] sm:$0xff] %v7213
        %7268 = vst [vmem:[#allocation2 + $0xa0] sm:$0xff] %v6436
        %7269 = vst [vmem:[#allocation2 + $0xa8] sm:$0xff] %v6696
        %7270 = vst [vmem:[#allocation2 + $0xb0] sm:$0xff] %v6956
        %7271 = vst [vmem:[#allocation2 + $0xb8] sm:$0xff] %v7216
        %7272 = vst [vmem:[#allocation2 + $0xc0] sm:$0xff] %v6439
        %7273 = vst [vmem:[#allocation2 + $0xc8] sm:$0xff] %v6699
        %7274 = vst [vmem:[#allocation2 + $0xd0] sm:$0xff] %v6959
        %7275 = vst [vmem:[#allocation2 + $0xd8] sm:$0xff] %v7219
        %7276 = vst [vmem:[#allocation2 + $0xe0] sm:$0xff] %v6442
        %7277 = vst [vmem:[#allocation2 + $0xe8] sm:$0xff] %v6702
        %7278 = vst [vmem:[#allocation2 + $0xf0] sm:$0xff] %v6962
        %7279 = vst [vmem:[#allocation2 + $0xf8] sm:$0xff] %v7222
        %7280 = vst [vmem:[#allocation2 + $0x100] sm:$0xff] %v6445
        %7281 = vst [vmem:[#allocation2 + $0x108] sm:$0xff] %v6705
        %7282 = vst [vmem:[#allocation2 + $0x110] sm:$0xff] %v6965
        %7283 = vst [vmem:[#allocation2 + $0x118] sm:$0xff] %v7225
        %7284 = vst [vmem:[#allocation2 + $0x120] sm:$0xff] %v6448
        %7285 = vst [vmem:[#allocation2 + $0x128] sm:$0xff] %v6708
        %7286 = vst [vmem:[#allocation2 + $0x130] sm:$0xff] %v6968
        %7287 = vst [vmem:[#allocation2 + $0x138] sm:$0xff] %v7228
        %7288 = vst [vmem:[#allocation2 + $0x140] sm:$0xff] %v6451
        %7289 = vst [vmem:[#allocation2 + $0x148] sm:$0xff] %v6711
        %7290 = vst [vmem:[#allocation2 + $0x150] sm:$0xff] %v6971
        %7291 = vst [vmem:[#allocation2 + $0x158] sm:$0xff] %v7231
        %7292 = vst [vmem:[#allocation2 + $0x160] sm:$0xff] %v6454
        %7293 = vst [vmem:[#allocation2 + $0x168] sm:$0xff] %v6714
        %7294 = vst [vmem:[#allocation2 + $0x170] sm:$0xff] %v6974
        %7295 = vst [vmem:[#allocation2 + $0x178] sm:$0xff] %v7234
        %7296 = vst [vmem:[#allocation2 + $0x180] sm:$0xff] %v6457
        %7297 = vst [vmem:[#allocation2 + $0x188] sm:$0xff] %v6717
        %7298 = vst [vmem:[#allocation2 + $0x190] sm:$0xff] %v6977
        %7299 = vst [vmem:[#allocation2 + $0x198] sm:$0xff] %v7237
        %7300 = vst [vmem:[#allocation2 + $0x1a0] sm:$0xff] %v6460
        %7301 = vst [vmem:[#allocation2 + $0x1a8] sm:$0xff] %v6720
        %7302 = vst [vmem:[#allocation2 + $0x1b0] sm:$0xff] %v6980
        %7303 = vst [vmem:[#allocation2 + $0x1b8] sm:$0xff] %v7240
        %7304 = vst [vmem:[#allocation2 + $0x1c0] sm:$0xff] %v6463
        %7305 = vst [vmem:[#allocation2 + $0x1c8] sm:$0xff] %v6723
        %7306 = vst [vmem:[#allocation2 + $0x1d0] sm:$0xff] %v6983
        %7307 = vst [vmem:[#allocation2 + $0x1d8] sm:$0xff] %v7243
        %7308 = vst [vmem:[#allocation2 + $0x1e0] sm:$0xff] %v6466
        %7309 = vst [vmem:[#allocation2 + $0x1e8] sm:$0xff] %v6726
        %7310 = vst [vmem:[#allocation2 + $0x1f0] sm:$0xff] %v6986
        %7311 = vst [vmem:[#allocation2 + $0x1f8] sm:$0xff] %v7246
        %s7312 = smul.u32 0, 4
        %s7313 = smul.addr %s7312, 8
        %s7314 = scalar_lea.vmem [#allocation2], %s7313
        %v7315 = vld [vmem:[%s7314] sm:$0xff]
        %v7316 = vld [vmem:[%s7314 + $0x8] sm:$0xff]
        %v7317 = vld [vmem:[%s7314 + $0x10] sm:$0xff]
        %v7318 = vld [vmem:[%s7314 + $0x18] sm:$0xff]
        %s7319 = smul.u32 8, 4
        %s7320 = smul.addr %s7319, 8
        %s7321 = scalar_lea.vmem [#allocation2], %s7320
        %v7322 = vld [vmem:[%s7321] sm:$0xff]
        %v7323 = vld [vmem:[%s7321 + $0x8] sm:$0xff]
        %v7324 = vld [vmem:[%s7321 + $0x10] sm:$0xff]
        %v7325 = vld [vmem:[%s7321 + $0x18] sm:$0xff]
        %v7326 = vld [vmem:[#allocation3] ss:$8 sm:$0xf]
        %v7327 = vld [vmem:[#allocation4] ss:$8 sm:$0xf]
        %v7328 = vmul.f32 %v7322, 0.0
        %v7329 = vmul.f32 %v7323, 0.0
        %v7330 = vmul.f32 %v7324, 0.0
        %v7331 = vmul.f32 %v7325, 0.0
        %v7332 = vrot.slane %v7328, 4
        %v7333 = vadd.f32 %v7328, %v7332
        %v7334 = vrot.slane %v7333, 2
        %v7335 = vadd.f32 %v7333, %v7334
        %v7336 = vrot.slane %v7335, 1
        %v7337 = vadd.f32 %v7335, %v7336
        %v7338 = vrot.slane %v7329, 4
        %v7339 = vadd.f32 %v7329, %v7338
        %v7340 = vrot.slane %v7339, 2
        %v7341 = vadd.f32 %v7339, %v7340
        %v7342 = vrot.slane %v7341, 1
        %v7343 = vadd.f32 %v7341, %v7342
        %v7344 = vrot.slane %v7330, 4
        %v7345 = vadd.f32 %v7330, %v7344
        %v7346 = vrot.slane %v7345, 2
        %v7347 = vadd.f32 %v7345, %v7346
        %v7348 = vrot.slane %v7347, 1
        %v7349 = vadd.f32 %v7347, %v7348
        %v7350 = vrot.slane %v7331, 4
        %v7351 = vadd.f32 %v7331, %v7350
        %v7352 = vrot.slane %v7351, 2
        %v7353 = vadd.f32 %v7351, %v7352
        %v7354 = vrot.slane %v7353, 1
        %v7355 = vadd.f32 %v7353, %v7354
        %v7360 = vrot.slane %v7343, 7
        %v7361 = vrot.slane %v7349, 6
        %v7362 = vrot.slane %v7355, 5
        %v7363 = vsel %vm5634, %v7337, %v7360
        %v7364 = vsel %vm5636, %v7361, %v7362
        %v7365 = vsel %vm5638, %v7363, %v7364
        %v7367 = vsub.f32 %v7326, %v7365
        %v7368 = vmul.f32 %v7367, %v7327
        %v7370 = vperm.slane %v7368, 0
        %v7371 = vperm.slane %v7368, 1
        %v7372 = vperm.slane %v7368, 2
        %v7373 = vperm.slane %v7368, 3
        %v7378 = vmul.f32 %v7322, %v7370
        %v7379 = vmul.f32 %v7323, %v7371
        %v7380 = vmul.f32 %v7324, %v7372
        %v7381 = vmul.f32 %v7325, %v7373
        %v7382 = vadd.f32 %v7378, 0.0
        %v7383 = vadd.f32 %v7379, 0.0
        %v7384 = vadd.f32 %v7380, 0.0
        %v7385 = vadd.f32 %v7381, 0.0
        %v7386 = vmul.f32 %v7382, %v7315
        %v7387 = vmul.f32 %v7383, %v7316
        %v7388 = vmul.f32 %v7384, %v7317
        %v7389 = vmul.f32 %v7385, %v7318
        %v7390 = vrot.slane %v7386, 4
        %v7391 = vadd.f32 %v7386, %v7390
        %v7392 = vrot.slane %v7391, 2
        %v7393 = vadd.f32 %v7391, %v7392
        %v7394 = vrot.slane %v7393, 1
        %v7395 = vadd.f32 %v7393, %v7394
        %v7396 = vrot.slane %v7387, 4
        %v7397 = vadd.f32 %v7387, %v7396
        %v7398 = vrot.slane %v7397, 2
        %v7399 = vadd.f32 %v7397, %v7398
        %v7400 = vrot.slane %v7399, 1
        %v7401 = vadd.f32 %v7399, %v7400
        %v7402 = vrot.slane %v7388, 4
        %v7403 = vadd.f32 %v7388, %v7402
        %v7404 = vrot.slane %v7403, 2
        %v7405 = vadd.f32 %v7403, %v7404
        %v7406 = vrot.slane %v7405, 1
        %v7407 = vadd.f32 %v7405, %v7406
        %v7408 = vrot.slane %v7389, 4
        %v7409 = vadd.f32 %v7389, %v7408
        %v7410 = vrot.slane %v7409, 2
        %v7411 = vadd.f32 %v7409, %v7410
        %v7412 = vrot.slane %v7411, 1
        %v7413 = vadd.f32 %v7411, %v7412
        %v7418 = vrot.slane %v7401, 7
        %v7419 = vrot.slane %v7407, 6
        %v7420 = vrot.slane %v7413, 5
        %v7421 = vsel %vm5634, %v7395, %v7418
        %v7422 = vsel %vm5636, %v7419, %v7420
        %v7423 = vsel %vm5638, %v7421, %v7422
        %v7425 = vlaneseq
        %vm7426 = vcmp.ge.s32.totalorder %v7425, 0
        %vm7427 = vcmp.lt.s32.totalorder %v7425, 512
        %vm7428 = vmand %vm7426, %vm7427
        %7429 = vst.msk [vmem:[#allocation5] ss:$8 sm:$0xf] %vm7428, %v7423
        %7430 = vst.msk [vmem:[#allocation5] ss:$8 sm:$0x0] %vm7428, %v7423
        %s7431 = smul.u32 1, 4
        %s7432 = smul.addr %s7431, 8
        %s7433 = scalar_lea.vmem [#allocation2], %s7432
        %v7434 = vld [vmem:[%s7433] sm:$0xff]
        %v7435 = vld [vmem:[%s7433 + $0x8] sm:$0xff]
        %v7436 = vld [vmem:[%s7433 + $0x10] sm:$0xff]
        %v7437 = vld [vmem:[%s7433 + $0x18] sm:$0xff]
        %s7438 = smul.u32 9, 4
        %s7439 = smul.addr %s7438, 8
        %s7440 = scalar_lea.vmem [#allocation2], %s7439
        %v7441 = vld [vmem:[%s7440] sm:$0xff]
        %v7442 = vld [vmem:[%s7440 + $0x8] sm:$0xff]
        %v7443 = vld [vmem:[%s7440 + $0x10] sm:$0xff]
        %v7444 = vld [vmem:[%s7440 + $0x18] sm:$0xff]
        %s7445 = scalar_lea.vmem [#allocation3], 1
        %v7446 = vld [vmem:[%s7445] ss:$8 sm:$0xf]
        %s7447 = scalar_lea.vmem [#allocation4], 1
        %v7448 = vld [vmem:[%s7447] ss:$8 sm:$0xf]
        %v7449 = vmul.f32 %v7382, %v7441
        %v7450 = vmul.f32 %v7383, %v7442
        %v7451 = vmul.f32 %v7384, %v7443
        %v7452 = vmul.f32 %v7385, %v7444
        %v7453 = vrot.slane %v7449, 4
        %v7454 = vadd.f32 %v7449, %v7453
        %v7455 = vrot.slane %v7454, 2
        %v7456 = vadd.f32 %v7454, %v7455
        %v7457 = vrot.slane %v7456, 1
        %v7458 = vadd.f32 %v7456, %v7457
        %v7459 = vrot.slane %v7450, 4
        %v7460 = vadd.f32 %v7450, %v7459
        %v7461 = vrot.slane %v7460, 2
        %v7462 = vadd.f32 %v7460, %v7461
        %v7463 = vrot.slane %v7462, 1
        %v7464 = vadd.f32 %v7462, %v7463
        %v7465 = vrot.slane %v7451, 4
        %v7466 = vadd.f32 %v7451, %v7465
        %v7467 = vrot.slane %v7466, 2
        %v7468 = vadd.f32 %v7466, %v7467
        %v7469 = vrot.slane %v7468, 1
        %v7470 = vadd.f32 %v7468, %v7469
        %v7471 = vrot.slane %v7452, 4
        %v7472 = vadd.f32 %v7452, %v7471
        %v7473 = vrot.slane %v7472, 2
        %v7474 = vadd.f32 %v7472, %v7473
        %v7475 = vrot.slane %v7474, 1
        %v7476 = vadd.f32 %v7474, %v7475
        %v7481 = vrot.slane %v7464, 7
        %v7482 = vrot.slane %v7470, 6
        %v7483 = vrot.slane %v7476, 5
        %v7484 = vsel %vm5634, %v7458, %v7481
        %v7485 = vsel %vm5636, %v7482, %v7483
        %v7486 = vsel %vm5638, %v7484, %v7485
        %v7488 = vsub.f32 %v7446, %v7486
        %v7489 = vmul.f32 %v7488, %v7448
        %v7491 = vperm.slane %v7489, 0
        %v7492 = vperm.slane %v7489, 1
        %v7493 = vperm.slane %v7489, 2
        %v7494 = vperm.slane %v7489, 3
        %v7499 = vmul.f32 %v7441, %v7491
        %v7500 = vmul.f32 %v7442, %v7492
        %v7501 = vmul.f32 %v7443, %v7493
        %v7502 = vmul.f32 %v7444, %v7494
        %v7503 = vadd.f32 %v7382, %v7499
        %v7504 = vadd.f32 %v7383, %v7500
        %v7505 = vadd.f32 %v7384, %v7501
        %v7506 = vadd.f32 %v7385, %v7502
        %v7507 = vmul.f32 %v7503, %v7434
        %v7508 = vmul.f32 %v7504, %v7435
        %v7509 = vmul.f32 %v7505, %v7436
        %v7510 = vmul.f32 %v7506, %v7437
        %v7511 = vrot.slane %v7507, 4
        %v7512 = vadd.f32 %v7507, %v7511
        %v7513 = vrot.slane %v7512, 2
        %v7514 = vadd.f32 %v7512, %v7513
        %v7515 = vrot.slane %v7514, 1
        %v7516 = vadd.f32 %v7514, %v7515
        %v7517 = vrot.slane %v7508, 4
        %v7518 = vadd.f32 %v7508, %v7517
        %v7519 = vrot.slane %v7518, 2
        %v7520 = vadd.f32 %v7518, %v7519
        %v7521 = vrot.slane %v7520, 1
        %v7522 = vadd.f32 %v7520, %v7521
        %v7523 = vrot.slane %v7509, 4
        %v7524 = vadd.f32 %v7509, %v7523
        %v7525 = vrot.slane %v7524, 2
        %v7526 = vadd.f32 %v7524, %v7525
        %v7527 = vrot.slane %v7526, 1
        %v7528 = vadd.f32 %v7526, %v7527
        %v7529 = vrot.slane %v7510, 4
        %v7530 = vadd.f32 %v7510, %v7529
        %v7531 = vrot.slane %v7530, 2
        %v7532 = vadd.f32 %v7530, %v7531
        %v7533 = vrot.slane %v7532, 1
        %v7534 = vadd.f32 %v7532, %v7533
        %v7539 = vrot.slane %v7522, 7
        %v7540 = vrot.slane %v7528, 6
        %v7541 = vrot.slane %v7534, 5
        %v7542 = vsel %vm5634, %v7516, %v7539
        %v7543 = vsel %vm5636, %v7540, %v7541
        %v7544 = vsel %vm5638, %v7542, %v7543
        %s7546 = scalar_lea.vmem [#allocation5], 1
        %7547 = vst.msk [vmem:[%s7546] ss:$8 sm:$0xf] %vm7428, %v7544
        %7548 = vst.msk [vmem:[%s7546] ss:$8 sm:$0x0] %vm7428, %v7544
        %s7549 = smul.u32 2, 4
        %s7550 = smul.addr %s7549, 8
        %s7551 = scalar_lea.vmem [#allocation2], %s7550
        %v7552 = vld [vmem:[%s7551] sm:$0xff]
        %v7553 = vld [vmem:[%s7551 + $0x8] sm:$0xff]
        %v7554 = vld [vmem:[%s7551 + $0x10] sm:$0xff]
        %v7555 = vld [vmem:[%s7551 + $0x18] sm:$0xff]
        %s7556 = smul.u32 10, 4
        %s7557 = smul.addr %s7556, 8
        %s7558 = scalar_lea.vmem [#allocation2], %s7557
        %v7559 = vld [vmem:[%s7558] sm:$0xff]
        %v7560 = vld [vmem:[%s7558 + $0x8] sm:$0xff]
        %v7561 = vld [vmem:[%s7558 + $0x10] sm:$0xff]
        %v7562 = vld [vmem:[%s7558 + $0x18] sm:$0xff]
        %s7563 = scalar_lea.vmem [#allocation3], 2
        %v7564 = vld [vmem:[%s7563] ss:$8 sm:$0xf]
        %s7565 = scalar_lea.vmem [#allocation4], 2
        %v7566 = vld [vmem:[%s7565] ss:$8 sm:$0xf]
        %v7567 = vmul.f32 %v7503, %v7559
        %v7568 = vmul.f32 %v7504, %v7560
        %v7569 = vmul.f32 %v7505, %v7561
        %v7570 = vmul.f32 %v7506, %v7562
        %v7571 = vrot.slane %v7567, 4
        %v7572 = vadd.f32 %v7567, %v7571
        %v7573 = vrot.slane %v7572, 2
        %v7574 = vadd.f32 %v7572, %v7573
        %v7575 = vrot.slane %v7574, 1
        %v7576 = vadd.f32 %v7574, %v7575
        %v7577 = vrot.slane %v7568, 4
        %v7578 = vadd.f32 %v7568, %v7577
        %v7579 = vrot.slane %v7578, 2
        %v7580 = vadd.f32 %v7578, %v7579
        %v7581 = vrot.slane %v7580, 1
        %v7582 = vadd.f32 %v7580, %v7581
        %v7583 = vrot.slane %v7569, 4
        %v7584 = vadd.f32 %v7569, %v7583
        %v7585 = vrot.slane %v7584, 2
        %v7586 = vadd.f32 %v7584, %v7585
        %v7587 = vrot.slane %v7586, 1
        %v7588 = vadd.f32 %v7586, %v7587
        %v7589 = vrot.slane %v7570, 4
        %v7590 = vadd.f32 %v7570, %v7589
        %v7591 = vrot.slane %v7590, 2
        %v7592 = vadd.f32 %v7590, %v7591
        %v7593 = vrot.slane %v7592, 1
        %v7594 = vadd.f32 %v7592, %v7593
        %v7599 = vrot.slane %v7582, 7
        %v7600 = vrot.slane %v7588, 6
        %v7601 = vrot.slane %v7594, 5
        %v7602 = vsel %vm5634, %v7576, %v7599
        %v7603 = vsel %vm5636, %v7600, %v7601
        %v7604 = vsel %vm5638, %v7602, %v7603
        %v7606 = vsub.f32 %v7564, %v7604
        %v7607 = vmul.f32 %v7606, %v7566
        %v7609 = vperm.slane %v7607, 0
        %v7610 = vperm.slane %v7607, 1
        %v7611 = vperm.slane %v7607, 2
        %v7612 = vperm.slane %v7607, 3
        %v7617 = vmul.f32 %v7559, %v7609
        %v7618 = vmul.f32 %v7560, %v7610
        %v7619 = vmul.f32 %v7561, %v7611
        %v7620 = vmul.f32 %v7562, %v7612
        %v7621 = vadd.f32 %v7503, %v7617
        %v7622 = vadd.f32 %v7504, %v7618
        %v7623 = vadd.f32 %v7505, %v7619
        %v7624 = vadd.f32 %v7506, %v7620
        %v7625 = vmul.f32 %v7621, %v7552
        %v7626 = vmul.f32 %v7622, %v7553
        %v7627 = vmul.f32 %v7623, %v7554
        %v7628 = vmul.f32 %v7624, %v7555
        %v7629 = vrot.slane %v7625, 4
        %v7630 = vadd.f32 %v7625, %v7629
        %v7631 = vrot.slane %v7630, 2
        %v7632 = vadd.f32 %v7630, %v7631
        %v7633 = vrot.slane %v7632, 1
        %v7634 = vadd.f32 %v7632, %v7633
        %v7635 = vrot.slane %v7626, 4
        %v7636 = vadd.f32 %v7626, %v7635
        %v7637 = vrot.slane %v7636, 2
        %v7638 = vadd.f32 %v7636, %v7637
        %v7639 = vrot.slane %v7638, 1
        %v7640 = vadd.f32 %v7638, %v7639
        %v7641 = vrot.slane %v7627, 4
        %v7642 = vadd.f32 %v7627, %v7641
        %v7643 = vrot.slane %v7642, 2
        %v7644 = vadd.f32 %v7642, %v7643
        %v7645 = vrot.slane %v7644, 1
        %v7646 = vadd.f32 %v7644, %v7645
        %v7647 = vrot.slane %v7628, 4
        %v7648 = vadd.f32 %v7628, %v7647
        %v7649 = vrot.slane %v7648, 2
        %v7650 = vadd.f32 %v7648, %v7649
        %v7651 = vrot.slane %v7650, 1
        %v7652 = vadd.f32 %v7650, %v7651
        %v7657 = vrot.slane %v7640, 7
        %v7658 = vrot.slane %v7646, 6
        %v7659 = vrot.slane %v7652, 5
        %v7660 = vsel %vm5634, %v7634, %v7657
        %v7661 = vsel %vm5636, %v7658, %v7659
        %v7662 = vsel %vm5638, %v7660, %v7661
        %s7664 = scalar_lea.vmem [#allocation5], 2
        %7665 = vst.msk [vmem:[%s7664] ss:$8 sm:$0xf] %vm7428, %v7662
        %7666 = vst.msk [vmem:[%s7664] ss:$8 sm:$0x0] %vm7428, %v7662
        %s7667 = smul.u32 3, 4
        %s7668 = smul.addr %s7667, 8
        %s7669 = scalar_lea.vmem [#allocation2], %s7668
        %v7670 = vld [vmem:[%s7669] sm:$0xff]
        %v7671 = vld [vmem:[%s7669 + $0x8] sm:$0xff]
        %v7672 = vld [vmem:[%s7669 + $0x10] sm:$0xff]
        %v7673 = vld [vmem:[%s7669 + $0x18] sm:$0xff]
        %s7674 = smul.u32 11, 4
        %s7675 = smul.addr %s7674, 8
        %s7676 = scalar_lea.vmem [#allocation2], %s7675
        %v7677 = vld [vmem:[%s7676] sm:$0xff]
        %v7678 = vld [vmem:[%s7676 + $0x8] sm:$0xff]
        %v7679 = vld [vmem:[%s7676 + $0x10] sm:$0xff]
        %v7680 = vld [vmem:[%s7676 + $0x18] sm:$0xff]
        %s7681 = scalar_lea.vmem [#allocation3], 3
        %v7682 = vld [vmem:[%s7681] ss:$8 sm:$0xf]
        %s7683 = scalar_lea.vmem [#allocation4], 3
        %v7684 = vld [vmem:[%s7683] ss:$8 sm:$0xf]
        %v7685 = vmul.f32 %v7621, %v7677
        %v7686 = vmul.f32 %v7622, %v7678
        %v7687 = vmul.f32 %v7623, %v7679
        %v7688 = vmul.f32 %v7624, %v7680
        %v7689 = vrot.slane %v7685, 4
        %v7690 = vadd.f32 %v7685, %v7689
        %v7691 = vrot.slane %v7690, 2
        %v7692 = vadd.f32 %v7690, %v7691
        %v7693 = vrot.slane %v7692, 1
        %v7694 = vadd.f32 %v7692, %v7693
        %v7695 = vrot.slane %v7686, 4
        %v7696 = vadd.f32 %v7686, %v7695
        %v7697 = vrot.slane %v7696, 2
        %v7698 = vadd.f32 %v7696, %v7697
        %v7699 = vrot.slane %v7698, 1
        %v7700 = vadd.f32 %v7698, %v7699
        %v7701 = vrot.slane %v7687, 4
        %v7702 = vadd.f32 %v7687, %v7701
        %v7703 = vrot.slane %v7702, 2
        %v7704 = vadd.f32 %v7702, %v7703
        %v7705 = vrot.slane %v7704, 1
        %v7706 = vadd.f32 %v7704, %v7705
        %v7707 = vrot.slane %v7688, 4
        %v7708 = vadd.f32 %v7688, %v7707
        %v7709 = vrot.slane %v7708, 2
        %v7710 = vadd.f32 %v7708, %v7709
        %v7711 = vrot.slane %v7710, 1
        %v7712 = vadd.f32 %v7710, %v7711
        %v7717 = vrot.slane %v7700, 7
        %v7718 = vrot.slane %v7706, 6
        %v7719 = vrot.slane %v7712, 5
        %v7720 = vsel %vm5634, %v7694, %v7717
        %v7721 = vsel %vm5636, %v7718, %v7719
        %v7722 = vsel %vm5638, %v7720, %v7721
        %v7724 = vsub.f32 %v7682, %v7722
        %v7725 = vmul.f32 %v7724, %v7684
        %v7727 = vperm.slane %v7725, 0
        %v7728 = vperm.slane %v7725, 1
        %v7729 = vperm.slane %v7725, 2
        %v7730 = vperm.slane %v7725, 3
        %v7735 = vmul.f32 %v7677, %v7727
        %v7736 = vmul.f32 %v7678, %v7728
        %v7737 = vmul.f32 %v7679, %v7729
        %v7738 = vmul.f32 %v7680, %v7730
        %v7739 = vadd.f32 %v7621, %v7735
        %v7740 = vadd.f32 %v7622, %v7736
        %v7741 = vadd.f32 %v7623, %v7737
        %v7742 = vadd.f32 %v7624, %v7738
        %v7743 = vmul.f32 %v7739, %v7670
        %v7744 = vmul.f32 %v7740, %v7671
        %v7745 = vmul.f32 %v7741, %v7672
        %v7746 = vmul.f32 %v7742, %v7673
        %v7747 = vrot.slane %v7743, 4
        %v7748 = vadd.f32 %v7743, %v7747
        %v7749 = vrot.slane %v7748, 2
        %v7750 = vadd.f32 %v7748, %v7749
        %v7751 = vrot.slane %v7750, 1
        %v7752 = vadd.f32 %v7750, %v7751
        %v7753 = vrot.slane %v7744, 4
        %v7754 = vadd.f32 %v7744, %v7753
        %v7755 = vrot.slane %v7754, 2
        %v7756 = vadd.f32 %v7754, %v7755
        %v7757 = vrot.slane %v7756, 1
        %v7758 = vadd.f32 %v7756, %v7757
        %v7759 = vrot.slane %v7745, 4
        %v7760 = vadd.f32 %v7745, %v7759
        %v7761 = vrot.slane %v7760, 2
        %v7762 = vadd.f32 %v7760, %v7761
        %v7763 = vrot.slane %v7762, 1
        %v7764 = vadd.f32 %v7762, %v7763
        %v7765 = vrot.slane %v7746, 4
        %v7766 = vadd.f32 %v7746, %v7765
        %v7767 = vrot.slane %v7766, 2
        %v7768 = vadd.f32 %v7766, %v7767
        %v7769 = vrot.slane %v7768, 1
        %v7770 = vadd.f32 %v7768, %v7769
        %v7775 = vrot.slane %v7758, 7
        %v7776 = vrot.slane %v7764, 6
        %v7777 = vrot.slane %v7770, 5
        %v7778 = vsel %vm5634, %v7752, %v7775
        %v7779 = vsel %vm5636, %v7776, %v7777
        %v7780 = vsel %vm5638, %v7778, %v7779
        %s7782 = scalar_lea.vmem [#allocation5], 3
        %7783 = vst.msk [vmem:[%s7782] ss:$8 sm:$0xf] %vm7428, %v7780
        %7784 = vst.msk [vmem:[%s7782] ss:$8 sm:$0x0] %vm7428, %v7780
        %s7785 = smul.u32 4, 4
        %s7786 = smul.addr %s7785, 8
        %s7787 = scalar_lea.vmem [#allocation2], %s7786
        %v7788 = vld [vmem:[%s7787] sm:$0xff]
        %v7789 = vld [vmem:[%s7787 + $0x8] sm:$0xff]
        %v7790 = vld [vmem:[%s7787 + $0x10] sm:$0xff]
        %v7791 = vld [vmem:[%s7787 + $0x18] sm:$0xff]
        %s7792 = smul.u32 12, 4
        %s7793 = smul.addr %s7792, 8
        %s7794 = scalar_lea.vmem [#allocation2], %s7793
        %v7795 = vld [vmem:[%s7794] sm:$0xff]
        %v7796 = vld [vmem:[%s7794 + $0x8] sm:$0xff]
        %v7797 = vld [vmem:[%s7794 + $0x10] sm:$0xff]
        %v7798 = vld [vmem:[%s7794 + $0x18] sm:$0xff]
        %s7799 = scalar_lea.vmem [#allocation3], 4
        %v7800 = vld [vmem:[%s7799] ss:$8 sm:$0xf]
        %s7801 = scalar_lea.vmem [#allocation4], 4
        %v7802 = vld [vmem:[%s7801] ss:$8 sm:$0xf]
        %v7803 = vmul.f32 %v7739, %v7795
        %v7804 = vmul.f32 %v7740, %v7796
        %v7805 = vmul.f32 %v7741, %v7797
        %v7806 = vmul.f32 %v7742, %v7798
        %v7807 = vrot.slane %v7803, 4
        %v7808 = vadd.f32 %v7803, %v7807
        %v7809 = vrot.slane %v7808, 2
        %v7810 = vadd.f32 %v7808, %v7809
        %v7811 = vrot.slane %v7810, 1
        %v7812 = vadd.f32 %v7810, %v7811
        %v7813 = vrot.slane %v7804, 4
        %v7814 = vadd.f32 %v7804, %v7813
        %v7815 = vrot.slane %v7814, 2
        %v7816 = vadd.f32 %v7814, %v7815
        %v7817 = vrot.slane %v7816, 1
        %v7818 = vadd.f32 %v7816, %v7817
        %v7819 = vrot.slane %v7805, 4
        %v7820 = vadd.f32 %v7805, %v7819
        %v7821 = vrot.slane %v7820, 2
        %v7822 = vadd.f32 %v7820, %v7821
        %v7823 = vrot.slane %v7822, 1
        %v7824 = vadd.f32 %v7822, %v7823
        %v7825 = vrot.slane %v7806, 4
        %v7826 = vadd.f32 %v7806, %v7825
        %v7827 = vrot.slane %v7826, 2
        %v7828 = vadd.f32 %v7826, %v7827
        %v7829 = vrot.slane %v7828, 1
        %v7830 = vadd.f32 %v7828, %v7829
        %v7835 = vrot.slane %v7818, 7
        %v7836 = vrot.slane %v7824, 6
        %v7837 = vrot.slane %v7830, 5
        %v7838 = vsel %vm5634, %v7812, %v7835
        %v7839 = vsel %vm5636, %v7836, %v7837
        %v7840 = vsel %vm5638, %v7838, %v7839
        %v7842 = vsub.f32 %v7800, %v7840
        %v7843 = vmul.f32 %v7842, %v7802
        %v7845 = vperm.slane %v7843, 0
        %v7846 = vperm.slane %v7843, 1
        %v7847 = vperm.slane %v7843, 2
        %v7848 = vperm.slane %v7843, 3
        %v7853 = vmul.f32 %v7795, %v7845
        %v7854 = vmul.f32 %v7796, %v7846
        %v7855 = vmul.f32 %v7797, %v7847
        %v7856 = vmul.f32 %v7798, %v7848
        %v7857 = vadd.f32 %v7739, %v7853
        %v7858 = vadd.f32 %v7740, %v7854
        %v7859 = vadd.f32 %v7741, %v7855
        %v7860 = vadd.f32 %v7742, %v7856
        %v7861 = vmul.f32 %v7857, %v7788
        %v7862 = vmul.f32 %v7858, %v7789
        %v7863 = vmul.f32 %v7859, %v7790
        %v7864 = vmul.f32 %v7860, %v7791
        %v7865 = vrot.slane %v7861, 4
        %v7866 = vadd.f32 %v7861, %v7865
        %v7867 = vrot.slane %v7866, 2
        %v7868 = vadd.f32 %v7866, %v7867
        %v7869 = vrot.slane %v7868, 1
        %v7870 = vadd.f32 %v7868, %v7869
        %v7871 = vrot.slane %v7862, 4
        %v7872 = vadd.f32 %v7862, %v7871
        %v7873 = vrot.slane %v7872, 2
        %v7874 = vadd.f32 %v7872, %v7873
        %v7875 = vrot.slane %v7874, 1
        %v7876 = vadd.f32 %v7874, %v7875
        %v7877 = vrot.slane %v7863, 4
        %v7878 = vadd.f32 %v7863, %v7877
        %v7879 = vrot.slane %v7878, 2
        %v7880 = vadd.f32 %v7878, %v7879
        %v7881 = vrot.slane %v7880, 1
        %v7882 = vadd.f32 %v7880, %v7881
        %v7883 = vrot.slane %v7864, 4
        %v7884 = vadd.f32 %v7864, %v7883
        %v7885 = vrot.slane %v7884, 2
        %v7886 = vadd.f32 %v7884, %v7885
        %v7887 = vrot.slane %v7886, 1
        %v7888 = vadd.f32 %v7886, %v7887
        %v7893 = vrot.slane %v7876, 7
        %v7894 = vrot.slane %v7882, 6
        %v7895 = vrot.slane %v7888, 5
        %v7896 = vsel %vm5634, %v7870, %v7893
        %v7897 = vsel %vm5636, %v7894, %v7895
        %v7898 = vsel %vm5638, %v7896, %v7897
        %s7900 = scalar_lea.vmem [#allocation5], 4
        %7901 = vst.msk [vmem:[%s7900] ss:$8 sm:$0xf] %vm7428, %v7898
        %7902 = vst.msk [vmem:[%s7900] ss:$8 sm:$0x0] %vm7428, %v7898
        %s7903 = smul.u32 5, 4
        %s7904 = smul.addr %s7903, 8
        %s7905 = scalar_lea.vmem [#allocation2], %s7904
        %v7906 = vld [vmem:[%s7905] sm:$0xff]
        %v7907 = vld [vmem:[%s7905 + $0x8] sm:$0xff]
        %v7908 = vld [vmem:[%s7905 + $0x10] sm:$0xff]
        %v7909 = vld [vmem:[%s7905 + $0x18] sm:$0xff]
        %s7910 = smul.u32 13, 4
        %s7911 = smul.addr %s7910, 8
        %s7912 = scalar_lea.vmem [#allocation2], %s7911
        %v7913 = vld [vmem:[%s7912] sm:$0xff]
        %v7914 = vld [vmem:[%s7912 + $0x8] sm:$0xff]
        %v7915 = vld [vmem:[%s7912 + $0x10] sm:$0xff]
        %v7916 = vld [vmem:[%s7912 + $0x18] sm:$0xff]
        %s7917 = scalar_lea.vmem [#allocation3], 5
        %v7918 = vld [vmem:[%s7917] ss:$8 sm:$0xf]
        %s7919 = scalar_lea.vmem [#allocation4], 5
        %v7920 = vld [vmem:[%s7919] ss:$8 sm:$0xf]
        %v7921 = vmul.f32 %v7857, %v7913
        %v7922 = vmul.f32 %v7858, %v7914
        %v7923 = vmul.f32 %v7859, %v7915
        %v7924 = vmul.f32 %v7860, %v7916
        %v7925 = vrot.slane %v7921, 4
        %v7926 = vadd.f32 %v7921, %v7925
        %v7927 = vrot.slane %v7926, 2
        %v7928 = vadd.f32 %v7926, %v7927
        %v7929 = vrot.slane %v7928, 1
        %v7930 = vadd.f32 %v7928, %v7929
        %v7931 = vrot.slane %v7922, 4
        %v7932 = vadd.f32 %v7922, %v7931
        %v7933 = vrot.slane %v7932, 2
        %v7934 = vadd.f32 %v7932, %v7933
        %v7935 = vrot.slane %v7934, 1
        %v7936 = vadd.f32 %v7934, %v7935
        %v7937 = vrot.slane %v7923, 4
        %v7938 = vadd.f32 %v7923, %v7937
        %v7939 = vrot.slane %v7938, 2
        %v7940 = vadd.f32 %v7938, %v7939
        %v7941 = vrot.slane %v7940, 1
        %v7942 = vadd.f32 %v7940, %v7941
        %v7943 = vrot.slane %v7924, 4
        %v7944 = vadd.f32 %v7924, %v7943
        %v7945 = vrot.slane %v7944, 2
        %v7946 = vadd.f32 %v7944, %v7945
        %v7947 = vrot.slane %v7946, 1
        %v7948 = vadd.f32 %v7946, %v7947
        %v7953 = vrot.slane %v7936, 7
        %v7954 = vrot.slane %v7942, 6
        %v7955 = vrot.slane %v7948, 5
        %v7956 = vsel %vm5634, %v7930, %v7953
        %v7957 = vsel %vm5636, %v7954, %v7955
        %v7958 = vsel %vm5638, %v7956, %v7957
        %v7960 = vsub.f32 %v7918, %v7958
        %v7961 = vmul.f32 %v7960, %v7920
        %v7963 = vperm.slane %v7961, 0
        %v7964 = vperm.slane %v7961, 1
        %v7965 = vperm.slane %v7961, 2
        %v7966 = vperm.slane %v7961, 3
        %v7971 = vmul.f32 %v7913, %v7963
        %v7972 = vmul.f32 %v7914, %v7964
        %v7973 = vmul.f32 %v7915, %v7965
        %v7974 = vmul.f32 %v7916, %v7966
        %v7975 = vadd.f32 %v7857, %v7971
        %v7976 = vadd.f32 %v7858, %v7972
        %v7977 = vadd.f32 %v7859, %v7973
        %v7978 = vadd.f32 %v7860, %v7974
        %v7979 = vmul.f32 %v7975, %v7906
        %v7980 = vmul.f32 %v7976, %v7907
        %v7981 = vmul.f32 %v7977, %v7908
        %v7982 = vmul.f32 %v7978, %v7909
        %v7983 = vrot.slane %v7979, 4
        %v7984 = vadd.f32 %v7979, %v7983
        %v7985 = vrot.slane %v7984, 2
        %v7986 = vadd.f32 %v7984, %v7985
        %v7987 = vrot.slane %v7986, 1
        %v7988 = vadd.f32 %v7986, %v7987
        %v7989 = vrot.slane %v7980, 4
        %v7990 = vadd.f32 %v7980, %v7989
        %v7991 = vrot.slane %v7990, 2
        %v7992 = vadd.f32 %v7990, %v7991
        %v7993 = vrot.slane %v7992, 1
        %v7994 = vadd.f32 %v7992, %v7993
        %v7995 = vrot.slane %v7981, 4
        %v7996 = vadd.f32 %v7981, %v7995
        %v7997 = vrot.slane %v7996, 2
        %v7998 = vadd.f32 %v7996, %v7997
        %v7999 = vrot.slane %v7998, 1
        %v8000 = vadd.f32 %v7998, %v7999
        %v8001 = vrot.slane %v7982, 4
        %v8002 = vadd.f32 %v7982, %v8001
        %v8003 = vrot.slane %v8002, 2
        %v8004 = vadd.f32 %v8002, %v8003
        %v8005 = vrot.slane %v8004, 1
        %v8006 = vadd.f32 %v8004, %v8005
        %v8011 = vrot.slane %v7994, 7
        %v8012 = vrot.slane %v8000, 6
        %v8013 = vrot.slane %v8006, 5
        %v8014 = vsel %vm5634, %v7988, %v8011
        %v8015 = vsel %vm5636, %v8012, %v8013
        %v8016 = vsel %vm5638, %v8014, %v8015
        %s8018 = scalar_lea.vmem [#allocation5], 5
        %8019 = vst.msk [vmem:[%s8018] ss:$8 sm:$0xf] %vm7428, %v8016
        %8020 = vst.msk [vmem:[%s8018] ss:$8 sm:$0x0] %vm7428, %v8016
        %s8021 = smul.u32 6, 4
        %s8022 = smul.addr %s8021, 8
        %s8023 = scalar_lea.vmem [#allocation2], %s8022
        %v8024 = vld [vmem:[%s8023] sm:$0xff]
        %v8025 = vld [vmem:[%s8023 + $0x8] sm:$0xff]
        %v8026 = vld [vmem:[%s8023 + $0x10] sm:$0xff]
        %v8027 = vld [vmem:[%s8023 + $0x18] sm:$0xff]
        %s8028 = smul.u32 14, 4
        %s8029 = smul.addr %s8028, 8
        %s8030 = scalar_lea.vmem [#allocation2], %s8029
        %v8031 = vld [vmem:[%s8030] sm:$0xff]
        %v8032 = vld [vmem:[%s8030 + $0x8] sm:$0xff]
        %v8033 = vld [vmem:[%s8030 + $0x10] sm:$0xff]
        %v8034 = vld [vmem:[%s8030 + $0x18] sm:$0xff]
        %s8035 = scalar_lea.vmem [#allocation3], 6
        %v8036 = vld [vmem:[%s8035] ss:$8 sm:$0xf]
        %s8037 = scalar_lea.vmem [#allocation4], 6
        %v8038 = vld [vmem:[%s8037] ss:$8 sm:$0xf]
        %v8039 = vmul.f32 %v7975, %v8031
        %v8040 = vmul.f32 %v7976, %v8032
        %v8041 = vmul.f32 %v7977, %v8033
        %v8042 = vmul.f32 %v7978, %v8034
        %v8043 = vrot.slane %v8039, 4
        %v8044 = vadd.f32 %v8039, %v8043
        %v8045 = vrot.slane %v8044, 2
        %v8046 = vadd.f32 %v8044, %v8045
        %v8047 = vrot.slane %v8046, 1
        %v8048 = vadd.f32 %v8046, %v8047
        %v8049 = vrot.slane %v8040, 4
        %v8050 = vadd.f32 %v8040, %v8049
        %v8051 = vrot.slane %v8050, 2
        %v8052 = vadd.f32 %v8050, %v8051
        %v8053 = vrot.slane %v8052, 1
        %v8054 = vadd.f32 %v8052, %v8053
        %v8055 = vrot.slane %v8041, 4
        %v8056 = vadd.f32 %v8041, %v8055
        %v8057 = vrot.slane %v8056, 2
        %v8058 = vadd.f32 %v8056, %v8057
        %v8059 = vrot.slane %v8058, 1
        %v8060 = vadd.f32 %v8058, %v8059
        %v8061 = vrot.slane %v8042, 4
        %v8062 = vadd.f32 %v8042, %v8061
        %v8063 = vrot.slane %v8062, 2
        %v8064 = vadd.f32 %v8062, %v8063
        %v8065 = vrot.slane %v8064, 1
        %v8066 = vadd.f32 %v8064, %v8065
        %v8071 = vrot.slane %v8054, 7
        %v8072 = vrot.slane %v8060, 6
        %v8073 = vrot.slane %v8066, 5
        %v8074 = vsel %vm5634, %v8048, %v8071
        %v8075 = vsel %vm5636, %v8072, %v8073
        %v8076 = vsel %vm5638, %v8074, %v8075
        %v8078 = vsub.f32 %v8036, %v8076
        %v8079 = vmul.f32 %v8078, %v8038
        %v8081 = vperm.slane %v8079, 0
        %v8082 = vperm.slane %v8079, 1
        %v8083 = vperm.slane %v8079, 2
        %v8084 = vperm.slane %v8079, 3
        %v8089 = vmul.f32 %v8031, %v8081
        %v8090 = vmul.f32 %v8032, %v8082
        %v8091 = vmul.f32 %v8033, %v8083
        %v8092 = vmul.f32 %v8034, %v8084
        %v8093 = vadd.f32 %v7975, %v8089
        %v8094 = vadd.f32 %v7976, %v8090
        %v8095 = vadd.f32 %v7977, %v8091
        %v8096 = vadd.f32 %v7978, %v8092
        %v8097 = vmul.f32 %v8093, %v8024
        %v8098 = vmul.f32 %v8094, %v8025
        %v8099 = vmul.f32 %v8095, %v8026
        %v8100 = vmul.f32 %v8096, %v8027
        %v8101 = vrot.slane %v8097, 4
        %v8102 = vadd.f32 %v8097, %v8101
        %v8103 = vrot.slane %v8102, 2
        %v8104 = vadd.f32 %v8102, %v8103
        %v8105 = vrot.slane %v8104, 1
        %v8106 = vadd.f32 %v8104, %v8105
        %v8107 = vrot.slane %v8098, 4
        %v8108 = vadd.f32 %v8098, %v8107
        %v8109 = vrot.slane %v8108, 2
        %v8110 = vadd.f32 %v8108, %v8109
        %v8111 = vrot.slane %v8110, 1
        %v8112 = vadd.f32 %v8110, %v8111
        %v8113 = vrot.slane %v8099, 4
        %v8114 = vadd.f32 %v8099, %v8113
        %v8115 = vrot.slane %v8114, 2
        %v8116 = vadd.f32 %v8114, %v8115
        %v8117 = vrot.slane %v8116, 1
        %v8118 = vadd.f32 %v8116, %v8117
        %v8119 = vrot.slane %v8100, 4
        %v8120 = vadd.f32 %v8100, %v8119
        %v8121 = vrot.slane %v8120, 2
        %v8122 = vadd.f32 %v8120, %v8121
        %v8123 = vrot.slane %v8122, 1
        %v8124 = vadd.f32 %v8122, %v8123
        %v8129 = vrot.slane %v8112, 7
        %v8130 = vrot.slane %v8118, 6
        %v8131 = vrot.slane %v8124, 5
        %v8132 = vsel %vm5634, %v8106, %v8129
        %v8133 = vsel %vm5636, %v8130, %v8131
        %v8134 = vsel %vm5638, %v8132, %v8133
        %s8136 = scalar_lea.vmem [#allocation5], 6
        %8137 = vst.msk [vmem:[%s8136] ss:$8 sm:$0xf] %vm7428, %v8134
        %8138 = vst.msk [vmem:[%s8136] ss:$8 sm:$0x0] %vm7428, %v8134
        %s8139 = smul.u32 7, 4
        %s8140 = smul.addr %s8139, 8
        %s8141 = scalar_lea.vmem [#allocation2], %s8140
        %v8142 = vld [vmem:[%s8141] sm:$0xff]
        %v8143 = vld [vmem:[%s8141 + $0x8] sm:$0xff]
        %v8144 = vld [vmem:[%s8141 + $0x10] sm:$0xff]
        %v8145 = vld [vmem:[%s8141 + $0x18] sm:$0xff]
        %s8146 = smul.u32 15, 4
        %s8147 = smul.addr %s8146, 8
        %s8148 = scalar_lea.vmem [#allocation2], %s8147
        %v8149 = vld [vmem:[%s8148] sm:$0xff]
        %v8150 = vld [vmem:[%s8148 + $0x8] sm:$0xff]
        %v8151 = vld [vmem:[%s8148 + $0x10] sm:$0xff]
        %v8152 = vld [vmem:[%s8148 + $0x18] sm:$0xff]
        %s8153 = scalar_lea.vmem [#allocation3], 7
        %v8154 = vld [vmem:[%s8153] ss:$8 sm:$0xf]
        %s8155 = scalar_lea.vmem [#allocation4], 7
        %v8156 = vld [vmem:[%s8155] ss:$8 sm:$0xf]
        %v8157 = vmul.f32 %v8093, %v8149
        %v8158 = vmul.f32 %v8094, %v8150
        %v8159 = vmul.f32 %v8095, %v8151
        %v8160 = vmul.f32 %v8096, %v8152
        %v8161 = vrot.slane %v8157, 4
        %v8162 = vadd.f32 %v8157, %v8161
        %v8163 = vrot.slane %v8162, 2
        %v8164 = vadd.f32 %v8162, %v8163
        %v8165 = vrot.slane %v8164, 1
        %v8166 = vadd.f32 %v8164, %v8165
        %v8167 = vrot.slane %v8158, 4
        %v8168 = vadd.f32 %v8158, %v8167
        %v8169 = vrot.slane %v8168, 2
        %v8170 = vadd.f32 %v8168, %v8169
        %v8171 = vrot.slane %v8170, 1
        %v8172 = vadd.f32 %v8170, %v8171
        %v8173 = vrot.slane %v8159, 4
        %v8174 = vadd.f32 %v8159, %v8173
        %v8175 = vrot.slane %v8174, 2
        %v8176 = vadd.f32 %v8174, %v8175
        %v8177 = vrot.slane %v8176, 1
        %v8178 = vadd.f32 %v8176, %v8177
        %v8179 = vrot.slane %v8160, 4
        %v8180 = vadd.f32 %v8160, %v8179
        %v8181 = vrot.slane %v8180, 2
        %v8182 = vadd.f32 %v8180, %v8181
        %v8183 = vrot.slane %v8182, 1
        %v8184 = vadd.f32 %v8182, %v8183
        %v8189 = vrot.slane %v8172, 7
        %v8190 = vrot.slane %v8178, 6
        %v8191 = vrot.slane %v8184, 5
        %v8192 = vsel %vm5634, %v8166, %v8189
        %v8193 = vsel %vm5636, %v8190, %v8191
        %v8194 = vsel %vm5638, %v8192, %v8193
        %v8196 = vsub.f32 %v8154, %v8194
        %v8197 = vmul.f32 %v8196, %v8156
        %v8199 = vperm.slane %v8197, 0
        %v8200 = vperm.slane %v8197, 1
        %v8201 = vperm.slane %v8197, 2
        %v8202 = vperm.slane %v8197, 3
        %v8207 = vmul.f32 %v8149, %v8199
        %v8208 = vmul.f32 %v8150, %v8200
        %v8209 = vmul.f32 %v8151, %v8201
        %v8210 = vmul.f32 %v8152, %v8202
        %v8211 = vadd.f32 %v8093, %v8207
        %v8212 = vadd.f32 %v8094, %v8208
        %v8213 = vadd.f32 %v8095, %v8209
        %v8214 = vadd.f32 %v8096, %v8210
        %v8215 = vmul.f32 %v8211, %v8142
        %v8216 = vmul.f32 %v8212, %v8143
        %v8217 = vmul.f32 %v8213, %v8144
        %v8218 = vmul.f32 %v8214, %v8145
        %v8219 = vrot.slane %v8215, 4
        %v8220 = vadd.f32 %v8215, %v8219
        %v8221 = vrot.slane %v8220, 2
        %v8222 = vadd.f32 %v8220, %v8221
        %v8223 = vrot.slane %v8222, 1
        %v8224 = vadd.f32 %v8222, %v8223
        %v8225 = vrot.slane %v8216, 4
        %v8226 = vadd.f32 %v8216, %v8225
        %v8227 = vrot.slane %v8226, 2
        %v8228 = vadd.f32 %v8226, %v8227
        %v8229 = vrot.slane %v8228, 1
        %v8230 = vadd.f32 %v8228, %v8229
        %v8231 = vrot.slane %v8217, 4
        %v8232 = vadd.f32 %v8217, %v8231
        %v8233 = vrot.slane %v8232, 2
        %v8234 = vadd.f32 %v8232, %v8233
        %v8235 = vrot.slane %v8234, 1
        %v8236 = vadd.f32 %v8234, %v8235
        %v8237 = vrot.slane %v8218, 4
        %v8238 = vadd.f32 %v8218, %v8237
        %v8239 = vrot.slane %v8238, 2
        %v8240 = vadd.f32 %v8238, %v8239
        %v8241 = vrot.slane %v8240, 1
        %v8242 = vadd.f32 %v8240, %v8241
        %v8247 = vrot.slane %v8230, 7
        %v8248 = vrot.slane %v8236, 6
        %v8249 = vrot.slane %v8242, 5
        %v8250 = vsel %vm5634, %v8224, %v8247
        %v8251 = vsel %vm5636, %v8248, %v8249
        %v8252 = vsel %vm5638, %v8250, %v8251
        %s8254 = scalar_lea.vmem [#allocation5], 7
        %8255 = vst.msk [vmem:[%s8254] ss:$8 sm:$0xf] %vm7428, %v8252
        %8256 = vst.msk [vmem:[%s8254] ss:$8 sm:$0x0] %vm7428, %v8252
        %v8257 = vld [vmem:[#allocation5] sm:$0xff]
        %v8258 = vld [vmem:[#allocation5 + $0x8] sm:$0xff]
        %v8259 = vld [vmem:[#allocation5 + $0x10] sm:$0xff]
        %v8260 = vld [vmem:[#allocation5 + $0x18] sm:$0xff]
        %v8261 = vmul.f32 %v8257, %v8257
        %v8262 = vmul.f32 %v8258, %v8258
        %v8263 = vmul.f32 %v8259, %v8259
        %v8264 = vmul.f32 %v8260, %v8260
        %8265 = vmatpush.msra.mxu0 %v4922
        %8266 = vmatpush.msra.mxu0 %v4918
        %8267 = vmatpush.msra.mxu0 %v4914
        %8268 = vmatpush.msra.mxu0 %v4910
        %8269 = vmatpush.msra.mxu0 %v4906
        %8270 = vmatpush.msra.mxu0 %v4902
        %8271 = vmatpush.msra.mxu0 %v4898
        %8272 = vmatpush.msra.mxu0 %v4894
        %8273 = vmatpush.msra.mxu0 %v4890
        %8274 = vmatpush.msra.mxu0 %v4886
        %8275 = vmatpush.msra.mxu0 %v4882
        %8276 = vmatpush.msra.mxu0 %v4878
        %8277 = vmatpush.msra.mxu0 %v4874
        %8278 = vmatpush.msra.mxu0 %v4870
        %8279 = vmatpush.msra.mxu0 %v4866
        %8280 = vmatpush.msra.mxu0 %v4862
        %8281 = vmatmul.f32.gmra.mxu0 %v8261
        %v8282 = vpop.f32.mrf.mxu0
        %v8283 = vadd.f32 0.0, %v8282
        %8284 = vdwg.mxu0
        %8285 = vmatpush.msra.mxu0 %v4986
        %8286 = vmatpush.msra.mxu0 %v4982
        %8287 = vmatpush.msra.mxu0 %v4978
        %8288 = vmatpush.msra.mxu0 %v4974
        %8289 = vmatpush.msra.mxu0 %v4970
        %8290 = vmatpush.msra.mxu0 %v4966
        %8291 = vmatpush.msra.mxu0 %v4962
        %8292 = vmatpush.msra.mxu0 %v4958
        %8293 = vmatpush.msra.mxu0 %v4954
        %8294 = vmatpush.msra.mxu0 %v4950
        %8295 = vmatpush.msra.mxu0 %v4946
        %8296 = vmatpush.msra.mxu0 %v4942
        %8297 = vmatpush.msra.mxu0 %v4938
        %8298 = vmatpush.msra.mxu0 %v4934
        %8299 = vmatpush.msra.mxu0 %v4930
        %8300 = vmatpush.msra.mxu0 %v4926
        %8301 = vmatmul.f32.gmra.mxu0 %v8262
        %v8302 = vpop.f32.mrf.mxu0
        %v8303 = vadd.f32 %v8283, %v8302
        %8304 = vdwg.mxu0
        %8305 = vmatpush.msra.mxu0 %v5050
        %8306 = vmatpush.msra.mxu0 %v5046
        %8307 = vmatpush.msra.mxu0 %v5042
        %8308 = vmatpush.msra.mxu0 %v5038
        %8309 = vmatpush.msra.mxu0 %v5034
        %8310 = vmatpush.msra.mxu0 %v5030
        %8311 = vmatpush.msra.mxu0 %v5026
        %8312 = vmatpush.msra.mxu0 %v5022
        %8313 = vmatpush.msra.mxu0 %v5018
        %8314 = vmatpush.msra.mxu0 %v5014
        %8315 = vmatpush.msra.mxu0 %v5010
        %8316 = vmatpush.msra.mxu0 %v5006
        %8317 = vmatpush.msra.mxu0 %v5002
        %8318 = vmatpush.msra.mxu0 %v4998
        %8319 = vmatpush.msra.mxu0 %v4994
        %8320 = vmatpush.msra.mxu0 %v4990
        %8321 = vmatmul.f32.gmra.mxu0 %v8263
        %v8322 = vpop.f32.mrf.mxu0
        %v8323 = vadd.f32 %v8303, %v8322
        %8324 = vdwg.mxu0
        %8325 = vmatpush.msra.mxu0 %v5114
        %8326 = vmatpush.msra.mxu0 %v5110
        %8327 = vmatpush.msra.mxu0 %v5106
        %8328 = vmatpush.msra.mxu0 %v5102
        %8329 = vmatpush.msra.mxu0 %v5098
        %8330 = vmatpush.msra.mxu0 %v5094
        %8331 = vmatpush.msra.mxu0 %v5090
        %8332 = vmatpush.msra.mxu0 %v5086
        %8333 = vmatpush.msra.mxu0 %v5082
        %8334 = vmatpush.msra.mxu0 %v5078
        %8335 = vmatpush.msra.mxu0 %v5074
        %8336 = vmatpush.msra.mxu0 %v5070
        %8337 = vmatpush.msra.mxu0 %v5066
        %8338 = vmatpush.msra.mxu0 %v5062
        %8339 = vmatpush.msra.mxu0 %v5058
        %8340 = vmatpush.msra.mxu0 %v5054
        %8341 = vmatmul.f32.gmra.mxu0 %v8264
        %v8342 = vpop.f32.mrf.mxu0
        %v8343 = vadd.f32 %v8323, %v8342
        %8344 = vdwg.mxu0
        %8345 = vmatpush.msra.mxu0 %v4923
        %8346 = vmatpush.msra.mxu0 %v4919
        %8347 = vmatpush.msra.mxu0 %v4915
        %8348 = vmatpush.msra.mxu0 %v4911
        %8349 = vmatpush.msra.mxu0 %v4907
        %8350 = vmatpush.msra.mxu0 %v4903
        %8351 = vmatpush.msra.mxu0 %v4899
        %8352 = vmatpush.msra.mxu0 %v4895
        %8353 = vmatpush.msra.mxu0 %v4891
        %8354 = vmatpush.msra.mxu0 %v4887
        %8355 = vmatpush.msra.mxu0 %v4883
        %8356 = vmatpush.msra.mxu0 %v4879
        %8357 = vmatpush.msra.mxu0 %v4875
        %8358 = vmatpush.msra.mxu0 %v4871
        %8359 = vmatpush.msra.mxu0 %v4867
        %8360 = vmatpush.msra.mxu0 %v4863
        %8361 = vmatmul.f32.gmra.mxu0 %v8261
        %v8362 = vpop.f32.mrf.mxu0
        %v8363 = vadd.f32 0.0, %v8362
        %8364 = vdwg.mxu0
        %8365 = vmatpush.msra.mxu0 %v4987
        %8366 = vmatpush.msra.mxu0 %v4983
        %8367 = vmatpush.msra.mxu0 %v4979
        %8368 = vmatpush.msra.mxu0 %v4975
        %8369 = vmatpush.msra.mxu0 %v4971
        %8370 = vmatpush.msra.mxu0 %v4967
        %8371 = vmatpush.msra.mxu0 %v4963
        %8372 = vmatpush.msra.mxu0 %v4959
        %8373 = vmatpush.msra.mxu0 %v4955
        %8374 = vmatpush.msra.mxu0 %v4951
        %8375 = vmatpush.msra.mxu0 %v4947
        %8376 = vmatpush.msra.mxu0 %v4943
        %8377 = vmatpush.msra.mxu0 %v4939
        %8378 = vmatpush.msra.mxu0 %v4935
        %8379 = vmatpush.msra.mxu0 %v4931
        %8380 = vmatpush.msra.mxu0 %v4927
        %8381 = vmatmul.f32.gmra.mxu0 %v8262
        %v8382 = vpop.f32.mrf.mxu0
        %v8383 = vadd.f32 %v8363, %v8382
        %8384 = vdwg.mxu0
        %8385 = vmatpush.msra.mxu0 %v5051
        %8386 = vmatpush.msra.mxu0 %v5047
        %8387 = vmatpush.msra.mxu0 %v5043
        %8388 = vmatpush.msra.mxu0 %v5039
        %8389 = vmatpush.msra.mxu0 %v5035
        %8390 = vmatpush.msra.mxu0 %v5031
        %8391 = vmatpush.msra.mxu0 %v5027
        %8392 = vmatpush.msra.mxu0 %v5023
        %8393 = vmatpush.msra.mxu0 %v5019
        %8394 = vmatpush.msra.mxu0 %v5015
        %8395 = vmatpush.msra.mxu0 %v5011
        %8396 = vmatpush.msra.mxu0 %v5007
        %8397 = vmatpush.msra.mxu0 %v5003
        %8398 = vmatpush.msra.mxu0 %v4999
        %8399 = vmatpush.msra.mxu0 %v4995
        %8400 = vmatpush.msra.mxu0 %v4991
        %8401 = vmatmul.f32.gmra.mxu0 %v8263
        %v8402 = vpop.f32.mrf.mxu0
        %v8403 = vadd.f32 %v8383, %v8402
        %8404 = vdwg.mxu0
        %8405 = vmatpush.msra.mxu0 %v5115
        %8406 = vmatpush.msra.mxu0 %v5111
        %8407 = vmatpush.msra.mxu0 %v5107
        %8408 = vmatpush.msra.mxu0 %v5103
        %8409 = vmatpush.msra.mxu0 %v5099
        %8410 = vmatpush.msra.mxu0 %v5095
        %8411 = vmatpush.msra.mxu0 %v5091
        %8412 = vmatpush.msra.mxu0 %v5087
        %8413 = vmatpush.msra.mxu0 %v5083
        %8414 = vmatpush.msra.mxu0 %v5079
        %8415 = vmatpush.msra.mxu0 %v5075
        %8416 = vmatpush.msra.mxu0 %v5071
        %8417 = vmatpush.msra.mxu0 %v5067
        %8418 = vmatpush.msra.mxu0 %v5063
        %8419 = vmatpush.msra.mxu0 %v5059
        %8420 = vmatpush.msra.mxu0 %v5055
        %8421 = vmatmul.f32.gmra.mxu0 %v8264
        %v8422 = vpop.f32.mrf.mxu0
        %v8423 = vadd.f32 %v8403, %v8422
        %8424 = vdwg.mxu0
        %8425 = vmatpush.msra.mxu0 %v4924
        %8426 = vmatpush.msra.mxu0 %v4920
        %8427 = vmatpush.msra.mxu0 %v4916
        %8428 = vmatpush.msra.mxu0 %v4912
        %8429 = vmatpush.msra.mxu0 %v4908
        %8430 = vmatpush.msra.mxu0 %v4904
        %8431 = vmatpush.msra.mxu0 %v4900
        %8432 = vmatpush.msra.mxu0 %v4896
        %8433 = vmatpush.msra.mxu0 %v4892
        %8434 = vmatpush.msra.mxu0 %v4888
        %8435 = vmatpush.msra.mxu0 %v4884
        %8436 = vmatpush.msra.mxu0 %v4880
        %8437 = vmatpush.msra.mxu0 %v4876
        %8438 = vmatpush.msra.mxu0 %v4872
        %8439 = vmatpush.msra.mxu0 %v4868
        %8440 = vmatpush.msra.mxu0 %v4864
        %8441 = vmatmul.f32.gmra.mxu0 %v8261
        %v8442 = vpop.f32.mrf.mxu0
        %v8443 = vadd.f32 0.0, %v8442
        %8444 = vdwg.mxu0
        %8445 = vmatpush.msra.mxu0 %v4988
        %8446 = vmatpush.msra.mxu0 %v4984
        %8447 = vmatpush.msra.mxu0 %v4980
        %8448 = vmatpush.msra.mxu0 %v4976
        %8449 = vmatpush.msra.mxu0 %v4972
        %8450 = vmatpush.msra.mxu0 %v4968
        %8451 = vmatpush.msra.mxu0 %v4964
        %8452 = vmatpush.msra.mxu0 %v4960
        %8453 = vmatpush.msra.mxu0 %v4956
        %8454 = vmatpush.msra.mxu0 %v4952
        %8455 = vmatpush.msra.mxu0 %v4948
        %8456 = vmatpush.msra.mxu0 %v4944
        %8457 = vmatpush.msra.mxu0 %v4940
        %8458 = vmatpush.msra.mxu0 %v4936
        %8459 = vmatpush.msra.mxu0 %v4932
        %8460 = vmatpush.msra.mxu0 %v4928
        %8461 = vmatmul.f32.gmra.mxu0 %v8262
        %v8462 = vpop.f32.mrf.mxu0
        %v8463 = vadd.f32 %v8443, %v8462
        %8464 = vdwg.mxu0
        %8465 = vmatpush.msra.mxu0 %v5052
        %8466 = vmatpush.msra.mxu0 %v5048
        %8467 = vmatpush.msra.mxu0 %v5044
        %8468 = vmatpush.msra.mxu0 %v5040
        %8469 = vmatpush.msra.mxu0 %v5036
        %8470 = vmatpush.msra.mxu0 %v5032
        %8471 = vmatpush.msra.mxu0 %v5028
        %8472 = vmatpush.msra.mxu0 %v5024
        %8473 = vmatpush.msra.mxu0 %v5020
        %8474 = vmatpush.msra.mxu0 %v5016
        %8475 = vmatpush.msra.mxu0 %v5012
        %8476 = vmatpush.msra.mxu0 %v5008
        %8477 = vmatpush.msra.mxu0 %v5004
        %8478 = vmatpush.msra.mxu0 %v5000
        %8479 = vmatpush.msra.mxu0 %v4996
        %8480 = vmatpush.msra.mxu0 %v4992
        %8481 = vmatmul.f32.gmra.mxu0 %v8263
        %v8482 = vpop.f32.mrf.mxu0
        %v8483 = vadd.f32 %v8463, %v8482
        %8484 = vdwg.mxu0
        %8485 = vmatpush.msra.mxu0 %v5116
        %8486 = vmatpush.msra.mxu0 %v5112
        %8487 = vmatpush.msra.mxu0 %v5108
        %8488 = vmatpush.msra.mxu0 %v5104
        %8489 = vmatpush.msra.mxu0 %v5100
        %8490 = vmatpush.msra.mxu0 %v5096
        %8491 = vmatpush.msra.mxu0 %v5092
        %8492 = vmatpush.msra.mxu0 %v5088
        %8493 = vmatpush.msra.mxu0 %v5084
        %8494 = vmatpush.msra.mxu0 %v5080
        %8495 = vmatpush.msra.mxu0 %v5076
        %8496 = vmatpush.msra.mxu0 %v5072
        %8497 = vmatpush.msra.mxu0 %v5068
        %8498 = vmatpush.msra.mxu0 %v5064
        %8499 = vmatpush.msra.mxu0 %v5060
        %8500 = vmatpush.msra.mxu0 %v5056
        %8501 = vmatmul.f32.gmra.mxu0 %v8264
        %v8502 = vpop.f32.mrf.mxu0
        %v8503 = vadd.f32 %v8483, %v8502
        %8504 = vdwg.mxu0
        %8505 = vmatpush.msra.mxu0 %v4925
        %8506 = vmatpush.msra.mxu0 %v4921
        %8507 = vmatpush.msra.mxu0 %v4917
        %8508 = vmatpush.msra.mxu0 %v4913
        %8509 = vmatpush.msra.mxu0 %v4909
        %8510 = vmatpush.msra.mxu0 %v4905
        %8511 = vmatpush.msra.mxu0 %v4901
        %8512 = vmatpush.msra.mxu0 %v4897
        %8513 = vmatpush.msra.mxu0 %v4893
        %8514 = vmatpush.msra.mxu0 %v4889
        %8515 = vmatpush.msra.mxu0 %v4885
        %8516 = vmatpush.msra.mxu0 %v4881
        %8517 = vmatpush.msra.mxu0 %v4877
        %8518 = vmatpush.msra.mxu0 %v4873
        %8519 = vmatpush.msra.mxu0 %v4869
        %8520 = vmatpush.msra.mxu0 %v4865
        %8521 = vmatmul.f32.gmra.mxu0 %v8261
        %v8522 = vpop.f32.mrf.mxu0
        %v8523 = vadd.f32 0.0, %v8522
        %8524 = vdwg.mxu0
        %8525 = vmatpush.msra.mxu0 %v4989
        %8526 = vmatpush.msra.mxu0 %v4985
        %8527 = vmatpush.msra.mxu0 %v4981
        %8528 = vmatpush.msra.mxu0 %v4977
        %8529 = vmatpush.msra.mxu0 %v4973
        %8530 = vmatpush.msra.mxu0 %v4969
        %8531 = vmatpush.msra.mxu0 %v4965
        %8532 = vmatpush.msra.mxu0 %v4961
        %8533 = vmatpush.msra.mxu0 %v4957
        %8534 = vmatpush.msra.mxu0 %v4953
        %8535 = vmatpush.msra.mxu0 %v4949
        %8536 = vmatpush.msra.mxu0 %v4945
        %8537 = vmatpush.msra.mxu0 %v4941
        %8538 = vmatpush.msra.mxu0 %v4937
        %8539 = vmatpush.msra.mxu0 %v4933
        %8540 = vmatpush.msra.mxu0 %v4929
        %8541 = vmatmul.f32.gmra.mxu0 %v8262
        %v8542 = vpop.f32.mrf.mxu0
        %v8543 = vadd.f32 %v8523, %v8542
        %8544 = vdwg.mxu0
        %8545 = vmatpush.msra.mxu0 %v5053
        %8546 = vmatpush.msra.mxu0 %v5049
        %8547 = vmatpush.msra.mxu0 %v5045
        %8548 = vmatpush.msra.mxu0 %v5041
        %8549 = vmatpush.msra.mxu0 %v5037
        %8550 = vmatpush.msra.mxu0 %v5033
        %8551 = vmatpush.msra.mxu0 %v5029
        %8552 = vmatpush.msra.mxu0 %v5025
        %8553 = vmatpush.msra.mxu0 %v5021
        %8554 = vmatpush.msra.mxu0 %v5017
        %8555 = vmatpush.msra.mxu0 %v5013
        %8556 = vmatpush.msra.mxu0 %v5009
        %8557 = vmatpush.msra.mxu0 %v5005
        %8558 = vmatpush.msra.mxu0 %v5001
        %8559 = vmatpush.msra.mxu0 %v4997
        %8560 = vmatpush.msra.mxu0 %v4993
        %8561 = vmatmul.f32.gmra.mxu0 %v8263
        %v8562 = vpop.f32.mrf.mxu0
        %v8563 = vadd.f32 %v8543, %v8562
        %8564 = vdwg.mxu0
        %8565 = vmatpush.msra.mxu0 %v5117
        %8566 = vmatpush.msra.mxu0 %v5113
        %8567 = vmatpush.msra.mxu0 %v5109
        %8568 = vmatpush.msra.mxu0 %v5105
        %8569 = vmatpush.msra.mxu0 %v5101
        %8570 = vmatpush.msra.mxu0 %v5097
        %8571 = vmatpush.msra.mxu0 %v5093
        %8572 = vmatpush.msra.mxu0 %v5089
        %8573 = vmatpush.msra.mxu0 %v5085
        %8574 = vmatpush.msra.mxu0 %v5081
        %8575 = vmatpush.msra.mxu0 %v5077
        %8576 = vmatpush.msra.mxu0 %v5073
        %8577 = vmatpush.msra.mxu0 %v5069
        %8578 = vmatpush.msra.mxu0 %v5065
        %8579 = vmatpush.msra.mxu0 %v5061
        %8580 = vmatpush.msra.mxu0 %v5057
        %8581 = vmatmul.f32.gmra.mxu0 %v8264
        %v8582 = vpop.f32.mrf.mxu0
        %v8583 = vadd.f32 %v8563, %v8582
        %8584 = vdwg.mxu0
        %v8585 = vmul.f32 %v8343, 0.125
        %v8586 = vmul.f32 %v8423, 0.125
        %v8587 = vmul.f32 %v8503, 0.125
        %v8588 = vmul.f32 %v8583, 0.125
        %v8589 = vadd.f32 %v8585, 1e-05
        %v8590 = vadd.f32 %v8586, 1e-05
        %v8591 = vadd.f32 %v8587, 1e-05
        %v8592 = vadd.f32 %v8588, 1e-05
        %v8593 = vrsqrt.pop %v8589
        %v8594 = vmul.f32 %v8593, %v8589
        %v8595 = vmul.f32 %v8594, %v8593
        %v8596 = vmul.f32 0.5, %v8595
        %v8597 = vsub.f32 1.5, %v8596
        %v8598 = vmul.f32 %v8593, %v8597
        %vm8599 = vweird.f32 %v8589
        %vm8600 = vweird.f32 %v8593
        %vm8601 = vmor %vm8599, %vm8600
        %v8602 = vsel %vm8601, %v8593, %v8598
        %v8603 = vrsqrt.pop %v8590
        %v8604 = vmul.f32 %v8603, %v8590
        %v8605 = vmul.f32 %v8604, %v8603
        %v8606 = vmul.f32 0.5, %v8605
        %v8607 = vsub.f32 1.5, %v8606
        %v8608 = vmul.f32 %v8603, %v8607
        %vm8609 = vweird.f32 %v8590
        %vm8610 = vweird.f32 %v8603
        %vm8611 = vmor %vm8609, %vm8610
        %v8612 = vsel %vm8611, %v8603, %v8608
        %v8613 = vrsqrt.pop %v8591
        %v8614 = vmul.f32 %v8613, %v8591
        %v8615 = vmul.f32 %v8614, %v8613
        %v8616 = vmul.f32 0.5, %v8615
        %v8617 = vsub.f32 1.5, %v8616
        %v8618 = vmul.f32 %v8613, %v8617
        %vm8619 = vweird.f32 %v8591
        %vm8620 = vweird.f32 %v8613
        %vm8621 = vmor %vm8619, %vm8620
        %v8622 = vsel %vm8621, %v8613, %v8618
        %v8623 = vrsqrt.pop %v8592
        %v8624 = vmul.f32 %v8623, %v8592
        %v8625 = vmul.f32 %v8624, %v8623
        %v8626 = vmul.f32 0.5, %v8625
        %v8627 = vsub.f32 1.5, %v8626
        %v8628 = vmul.f32 %v8623, %v8627
        %vm8629 = vweird.f32 %v8592
        %vm8630 = vweird.f32 %v8623
        %vm8631 = vmor %vm8629, %vm8630
        %v8632 = vsel %vm8631, %v8623, %v8628
        %v8633 = vmul.f32 %v8257, %v8602
        %v8634 = vmul.f32 %v8258, %v8612
        %v8635 = vmul.f32 %v8259, %v8622
        %v8636 = vmul.f32 %v8260, %v8632
        %v8637 = vpack.c.bf16 %v8633, %v8633
        %v8638 = vpack.c.bf16 %v8634, %v8634
        %v8639 = vpack.c.bf16 %v8635, %v8635
        %v8640 = vpack.c.bf16 %v8636, %v8636
        %v8641 = vld [vmem:[#allocation14] sm:$0xff]
        %v8642 = vld [vmem:[#allocation14 + $0x8] sm:$0xff]
        %v8643 = vld [vmem:[#allocation14 + $0x10] sm:$0xff]
        %v8644 = vld [vmem:[#allocation14 + $0x18] sm:$0xff]
        %v8645 = vld [vmem:[#allocation14 + $0x20] sm:$0xff]
        %v8646 = vld [vmem:[#allocation14 + $0x28] sm:$0xff]
        %v8647 = vld [vmem:[#allocation14 + $0x30] sm:$0xff]
        %v8648 = vld [vmem:[#allocation14 + $0x38] sm:$0xff]
        %v8649 = vld [vmem:[#allocation14 + $0x40] sm:$0xff]
        %v8650 = vld [vmem:[#allocation14 + $0x48] sm:$0xff]
        %v8651 = vld [vmem:[#allocation14 + $0x50] sm:$0xff]
        %v8652 = vld [vmem:[#allocation14 + $0x58] sm:$0xff]
        %v8653 = vld [vmem:[#allocation14 + $0x60] sm:$0xff]
        %v8654 = vld [vmem:[#allocation14 + $0x68] sm:$0xff]
        %v8655 = vld [vmem:[#allocation14 + $0x70] sm:$0xff]
        %v8656 = vld [vmem:[#allocation14 + $0x78] sm:$0xff]
        %v8657 = vld [vmem:[#allocation14 + $0x80] sm:$0xff]
        %v8658 = vld [vmem:[#allocation14 + $0x88] sm:$0xff]
        %v8659 = vld [vmem:[#allocation14 + $0x90] sm:$0xff]
        %v8660 = vld [vmem:[#allocation14 + $0x98] sm:$0xff]
        %v8661 = vld [vmem:[#allocation14 + $0xa0] sm:$0xff]
        %v8662 = vld [vmem:[#allocation14 + $0xa8] sm:$0xff]
        %v8663 = vld [vmem:[#allocation14 + $0xb0] sm:$0xff]
        %v8664 = vld [vmem:[#allocation14 + $0xb8] sm:$0xff]
        %v8665 = vld [vmem:[#allocation14 + $0xc0] sm:$0xff]
        %v8666 = vld [vmem:[#allocation14 + $0xc8] sm:$0xff]
        %v8667 = vld [vmem:[#allocation14 + $0xd0] sm:$0xff]
        %v8668 = vld [vmem:[#allocation14 + $0xd8] sm:$0xff]
        %v8669 = vld [vmem:[#allocation14 + $0xe0] sm:$0xff]
        %v8670 = vld [vmem:[#allocation14 + $0xe8] sm:$0xff]
        %v8671 = vld [vmem:[#allocation14 + $0xf0] sm:$0xff]
        %v8672 = vld [vmem:[#allocation14 + $0xf8] sm:$0xff]
        %v8673 = vld [vmem:[#allocation14 + $0x100] sm:$0xff]
        %v8674 = vld [vmem:[#allocation14 + $0x108] sm:$0xff]
        %v8675 = vld [vmem:[#allocation14 + $0x110] sm:$0xff]
        %v8676 = vld [vmem:[#allocation14 + $0x118] sm:$0xff]
        %v8677 = vld [vmem:[#allocation14 + $0x120] sm:$0xff]
        %v8678 = vld [vmem:[#allocation14 + $0x128] sm:$0xff]
        %v8679 = vld [vmem:[#allocation14 + $0x130] sm:$0xff]
        %v8680 = vld [vmem:[#allocation14 + $0x138] sm:$0xff]
        %v8681 = vld [vmem:[#allocation14 + $0x140] sm:$0xff]
        %v8682 = vld [vmem:[#allocation14 + $0x148] sm:$0xff]
        %v8683 = vld [vmem:[#allocation14 + $0x150] sm:$0xff]
        %v8684 = vld [vmem:[#allocation14 + $0x158] sm:$0xff]
        %v8685 = vld [vmem:[#allocation14 + $0x160] sm:$0xff]
        %v8686 = vld [vmem:[#allocation14 + $0x168] sm:$0xff]
        %v8687 = vld [vmem:[#allocation14 + $0x170] sm:$0xff]
        %v8688 = vld [vmem:[#allocation14 + $0x178] sm:$0xff]
        %v8689 = vld [vmem:[#allocation14 + $0x180] sm:$0xff]
        %v8690 = vld [vmem:[#allocation14 + $0x188] sm:$0xff]
        %v8691 = vld [vmem:[#allocation14 + $0x190] sm:$0xff]
        %v8692 = vld [vmem:[#allocation14 + $0x198] sm:$0xff]
        %v8693 = vld [vmem:[#allocation14 + $0x1a0] sm:$0xff]
        %v8694 = vld [vmem:[#allocation14 + $0x1a8] sm:$0xff]
        %v8695 = vld [vmem:[#allocation14 + $0x1b0] sm:$0xff]
        %v8696 = vld [vmem:[#allocation14 + $0x1b8] sm:$0xff]
        %v8697 = vld [vmem:[#allocation14 + $0x1c0] sm:$0xff]
        %v8698 = vld [vmem:[#allocation14 + $0x1c8] sm:$0xff]
        %v8699 = vld [vmem:[#allocation14 + $0x1d0] sm:$0xff]
        %v8700 = vld [vmem:[#allocation14 + $0x1d8] sm:$0xff]
        %v8701 = vld [vmem:[#allocation14 + $0x1e0] sm:$0xff]
        %v8702 = vld [vmem:[#allocation14 + $0x1e8] sm:$0xff]
        %v8703 = vld [vmem:[#allocation14 + $0x1f0] sm:$0xff]
        %v8704 = vld [vmem:[#allocation14 + $0x1f8] sm:$0xff]
        %v8705 = vld [vmem:[#allocation14 + $0x200] sm:$0xff]
        %v8706 = vld [vmem:[#allocation14 + $0x208] sm:$0xff]
        %v8707 = vld [vmem:[#allocation14 + $0x210] sm:$0xff]
        %v8708 = vld [vmem:[#allocation14 + $0x218] sm:$0xff]
        %v8709 = vld [vmem:[#allocation14 + $0x220] sm:$0xff]
        %v8710 = vld [vmem:[#allocation14 + $0x228] sm:$0xff]
        %v8711 = vld [vmem:[#allocation14 + $0x230] sm:$0xff]
        %v8712 = vld [vmem:[#allocation14 + $0x238] sm:$0xff]
        %v8713 = vld [vmem:[#allocation14 + $0x240] sm:$0xff]
        %v8714 = vld [vmem:[#allocation14 + $0x248] sm:$0xff]
        %v8715 = vld [vmem:[#allocation14 + $0x250] sm:$0xff]
        %v8716 = vld [vmem:[#allocation14 + $0x258] sm:$0xff]
        %v8717 = vld [vmem:[#allocation14 + $0x260] sm:$0xff]
        %v8718 = vld [vmem:[#allocation14 + $0x268] sm:$0xff]
        %v8719 = vld [vmem:[#allocation14 + $0x270] sm:$0xff]
        %v8720 = vld [vmem:[#allocation14 + $0x278] sm:$0xff]
        %v8721 = vld [vmem:[#allocation14 + $0x280] sm:$0xff]
        %v8722 = vld [vmem:[#allocation14 + $0x288] sm:$0xff]
        %v8723 = vld [vmem:[#allocation14 + $0x290] sm:$0xff]
        %v8724 = vld [vmem:[#allocation14 + $0x298] sm:$0xff]
        %v8725 = vld [vmem:[#allocation14 + $0x2a0] sm:$0xff]
        %v8726 = vld [vmem:[#allocation14 + $0x2a8] sm:$0xff]
        %v8727 = vld [vmem:[#allocation14 + $0x2b0] sm:$0xff]
        %v8728 = vld [vmem:[#allocation14 + $0x2b8] sm:$0xff]
        %v8729 = vld [vmem:[#allocation14 + $0x2c0] sm:$0xff]
        %v8730 = vld [vmem:[#allocation14 + $0x2c8] sm:$0xff]
        %v8731 = vld [vmem:[#allocation14 + $0x2d0] sm:$0xff]
        %v8732 = vld [vmem:[#allocation14 + $0x2d8] sm:$0xff]
        %v8733 = vld [vmem:[#allocation14 + $0x2e0] sm:$0xff]
        %v8734 = vld [vmem:[#allocation14 + $0x2e8] sm:$0xff]
        %v8735 = vld [vmem:[#allocation14 + $0x2f0] sm:$0xff]
        %v8736 = vld [vmem:[#allocation14 + $0x2f8] sm:$0xff]
        %v8737 = vld [vmem:[#allocation14 + $0x300] sm:$0xff]
        %v8738 = vld [vmem:[#allocation14 + $0x308] sm:$0xff]
        %v8739 = vld [vmem:[#allocation14 + $0x310] sm:$0xff]
        %v8740 = vld [vmem:[#allocation14 + $0x318] sm:$0xff]
        %v8741 = vld [vmem:[#allocation14 + $0x320] sm:$0xff]
        %v8742 = vld [vmem:[#allocation14 + $0x328] sm:$0xff]
        %v8743 = vld [vmem:[#allocation14 + $0x330] sm:$0xff]
        %v8744 = vld [vmem:[#allocation14 + $0x338] sm:$0xff]
        %v8745 = vld [vmem:[#allocation14 + $0x340] sm:$0xff]
        %v8746 = vld [vmem:[#allocation14 + $0x348] sm:$0xff]
        %v8747 = vld [vmem:[#allocation14 + $0x350] sm:$0xff]
        %v8748 = vld [vmem:[#allocation14 + $0x358] sm:$0xff]
        %v8749 = vld [vmem:[#allocation14 + $0x360] sm:$0xff]
        %v8750 = vld [vmem:[#allocation14 + $0x368] sm:$0xff]
        %v8751 = vld [vmem:[#allocation14 + $0x370] sm:$0xff]
        %v8752 = vld [vmem:[#allocation14 + $0x378] sm:$0xff]
        %v8753 = vld [vmem:[#allocation14 + $0x380] sm:$0xff]
        %v8754 = vld [vmem:[#allocation14 + $0x388] sm:$0xff]
        %v8755 = vld [vmem:[#allocation14 + $0x390] sm:$0xff]
        %v8756 = vld [vmem:[#allocation14 + $0x398] sm:$0xff]
        %v8757 = vld [vmem:[#allocation14 + $0x3a0] sm:$0xff]
        %v8758 = vld [vmem:[#allocation14 + $0x3a8] sm:$0xff]
        %v8759 = vld [vmem:[#allocation14 + $0x3b0] sm:$0xff]
        %v8760 = vld [vmem:[#allocation14 + $0x3b8] sm:$0xff]
        %v8761 = vld [vmem:[#allocation14 + $0x3c0] sm:$0xff]
        %v8762 = vld [vmem:[#allocation14 + $0x3c8] sm:$0xff]
        %v8763 = vld [vmem:[#allocation14 + $0x3d0] sm:$0xff]
        %v8764 = vld [vmem:[#allocation14 + $0x3d8] sm:$0xff]
        %v8765 = vld [vmem:[#allocation14 + $0x3e0] sm:$0xff]
        %v8766 = vld [vmem:[#allocation14 + $0x3e8] sm:$0xff]
        %v8767 = vld [vmem:[#allocation14 + $0x3f0] sm:$0xff]
        %v8768 = vld [vmem:[#allocation14 + $0x3f8] sm:$0xff]
        %v8897 = vunpack.c.l.b16 %v8641
        %v8898 = vunpack.c.h.b16 %v8641
        %v8899 = vunpack.c.l.b16 %v8642
        %v8900 = vunpack.c.h.b16 %v8642
        %v8901 = vunpack.c.l.b16 %v8643
        %v8902 = vunpack.c.h.b16 %v8643
        %v8903 = vunpack.c.l.b16 %v8644
        %v8904 = vunpack.c.h.b16 %v8644
        %v8905 = vunpack.c.l.b16 %v8645
        %v8906 = vunpack.c.h.b16 %v8645
        %v8907 = vunpack.c.l.b16 %v8646
        %v8908 = vunpack.c.h.b16 %v8646
        %v8909 = vunpack.c.l.b16 %v8647
        %v8910 = vunpack.c.h.b16 %v8647
        %v8911 = vunpack.c.l.b16 %v8648
        %v8912 = vunpack.c.h.b16 %v8648
        %v8913 = vunpack.c.l.b16 %v8649
        %v8914 = vunpack.c.h.b16 %v8649
        %v8915 = vunpack.c.l.b16 %v8650
        %v8916 = vunpack.c.h.b16 %v8650
        %v8917 = vunpack.c.l.b16 %v8651
        %v8918 = vunpack.c.h.b16 %v8651
        %v8919 = vunpack.c.l.b16 %v8652
        %v8920 = vunpack.c.h.b16 %v8652
        %v8921 = vunpack.c.l.b16 %v8653
        %v8922 = vunpack.c.h.b16 %v8653
        %v8923 = vunpack.c.l.b16 %v8654
        %v8924 = vunpack.c.h.b16 %v8654
        %v8925 = vunpack.c.l.b16 %v8655
        %v8926 = vunpack.c.h.b16 %v8655
        %v8927 = vunpack.c.l.b16 %v8656
        %v8928 = vunpack.c.h.b16 %v8656
        %v8929 = vunpack.c.l.b16 %v8657
        %v8930 = vunpack.c.h.b16 %v8657
        %v8931 = vunpack.c.l.b16 %v8658
        %v8932 = vunpack.c.h.b16 %v8658
        %v8933 = vunpack.c.l.b16 %v8659
        %v8934 = vunpack.c.h.b16 %v8659
        %v8935 = vunpack.c.l.b16 %v8660
        %v8936 = vunpack.c.h.b16 %v8660
        %v8937 = vunpack.c.l.b16 %v8661
        %v8938 = vunpack.c.h.b16 %v8661
        %v8939 = vunpack.c.l.b16 %v8662
        %v8940 = vunpack.c.h.b16 %v8662
        %v8941 = vunpack.c.l.b16 %v8663
        %v8942 = vunpack.c.h.b16 %v8663
        %v8943 = vunpack.c.l.b16 %v8664
        %v8944 = vunpack.c.h.b16 %v8664
        %v8945 = vunpack.c.l.b16 %v8665
        %v8946 = vunpack.c.h.b16 %v8665
        %v8947 = vunpack.c.l.b16 %v8666
        %v8948 = vunpack.c.h.b16 %v8666
        %v8949 = vunpack.c.l.b16 %v8667
        %v8950 = vunpack.c.h.b16 %v8667
        %v8951 = vunpack.c.l.b16 %v8668
        %v8952 = vunpack.c.h.b16 %v8668
        %v8953 = vunpack.c.l.b16 %v8669
        %v8954 = vunpack.c.h.b16 %v8669
        %v8955 = vunpack.c.l.b16 %v8670
        %v8956 = vunpack.c.h.b16 %v8670
        %v8957 = vunpack.c.l.b16 %v8671
        %v8958 = vunpack.c.h.b16 %v8671
        %v8959 = vunpack.c.l.b16 %v8672
        %v8960 = vunpack.c.h.b16 %v8672
        %v8961 = vunpack.c.l.b16 %v8673
        %v8962 = vunpack.c.h.b16 %v8673
        %v8963 = vunpack.c.l.b16 %v8674
        %v8964 = vunpack.c.h.b16 %v8674
        %v8965 = vunpack.c.l.b16 %v8675
        %v8966 = vunpack.c.h.b16 %v8675
        %v8967 = vunpack.c.l.b16 %v8676
        %v8968 = vunpack.c.h.b16 %v8676
        %v8969 = vunpack.c.l.b16 %v8677
        %v8970 = vunpack.c.h.b16 %v8677
        %v8971 = vunpack.c.l.b16 %v8678
        %v8972 = vunpack.c.h.b16 %v8678
        %v8973 = vunpack.c.l.b16 %v8679
        %v8974 = vunpack.c.h.b16 %v8679
        %v8975 = vunpack.c.l.b16 %v8680
        %v8976 = vunpack.c.h.b16 %v8680
        %v8977 = vunpack.c.l.b16 %v8681
        %v8978 = vunpack.c.h.b16 %v8681
        %v8979 = vunpack.c.l.b16 %v8682
        %v8980 = vunpack.c.h.b16 %v8682
        %v8981 = vunpack.c.l.b16 %v8683
        %v8982 = vunpack.c.h.b16 %v8683
        %v8983 = vunpack.c.l.b16 %v8684
        %v8984 = vunpack.c.h.b16 %v8684
        %v8985 = vunpack.c.l.b16 %v8685
        %v8986 = vunpack.c.h.b16 %v8685
        %v8987 = vunpack.c.l.b16 %v8686
        %v8988 = vunpack.c.h.b16 %v8686
        %v8989 = vunpack.c.l.b16 %v8687
        %v8990 = vunpack.c.h.b16 %v8687
        %v8991 = vunpack.c.l.b16 %v8688
        %v8992 = vunpack.c.h.b16 %v8688
        %v8993 = vunpack.c.l.b16 %v8689
        %v8994 = vunpack.c.h.b16 %v8689
        %v8995 = vunpack.c.l.b16 %v8690
        %v8996 = vunpack.c.h.b16 %v8690
        %v8997 = vunpack.c.l.b16 %v8691
        %v8998 = vunpack.c.h.b16 %v8691
        %v8999 = vunpack.c.l.b16 %v8692
        %v9000 = vunpack.c.h.b16 %v8692
        %v9001 = vunpack.c.l.b16 %v8693
        %v9002 = vunpack.c.h.b16 %v8693
        %v9003 = vunpack.c.l.b16 %v8694
        %v9004 = vunpack.c.h.b16 %v8694
        %v9005 = vunpack.c.l.b16 %v8695
        %v9006 = vunpack.c.h.b16 %v8695
        %v9007 = vunpack.c.l.b16 %v8696
        %v9008 = vunpack.c.h.b16 %v8696
        %v9009 = vunpack.c.l.b16 %v8697
        %v9010 = vunpack.c.h.b16 %v8697
        %v9011 = vunpack.c.l.b16 %v8698
        %v9012 = vunpack.c.h.b16 %v8698
        %v9013 = vunpack.c.l.b16 %v8699
        %v9014 = vunpack.c.h.b16 %v8699
        %v9015 = vunpack.c.l.b16 %v8700
        %v9016 = vunpack.c.h.b16 %v8700
        %v9017 = vunpack.c.l.b16 %v8701
        %v9018 = vunpack.c.h.b16 %v8701
        %v9019 = vunpack.c.l.b16 %v8702
        %v9020 = vunpack.c.h.b16 %v8702
        %v9021 = vunpack.c.l.b16 %v8703
        %v9022 = vunpack.c.h.b16 %v8703
        %v9023 = vunpack.c.l.b16 %v8704
        %v9024 = vunpack.c.h.b16 %v8704
        %v9025 = vunpack.c.l.b16 %v8705
        %v9026 = vunpack.c.h.b16 %v8705
        %v9027 = vunpack.c.l.b16 %v8706
        %v9028 = vunpack.c.h.b16 %v8706
        %v9029 = vunpack.c.l.b16 %v8707
        %v9030 = vunpack.c.h.b16 %v8707
        %v9031 = vunpack.c.l.b16 %v8708
        %v9032 = vunpack.c.h.b16 %v8708
        %v9033 = vunpack.c.l.b16 %v8709
        %v9034 = vunpack.c.h.b16 %v8709
        %v9035 = vunpack.c.l.b16 %v8710
        %v9036 = vunpack.c.h.b16 %v8710
        %v9037 = vunpack.c.l.b16 %v8711
        %v9038 = vunpack.c.h.b16 %v8711
        %v9039 = vunpack.c.l.b16 %v8712
        %v9040 = vunpack.c.h.b16 %v8712
        %v9041 = vunpack.c.l.b16 %v8713
        %v9042 = vunpack.c.h.b16 %v8713
        %v9043 = vunpack.c.l.b16 %v8714
        %v9044 = vunpack.c.h.b16 %v8714
        %v9045 = vunpack.c.l.b16 %v8715
        %v9046 = vunpack.c.h.b16 %v8715
        %v9047 = vunpack.c.l.b16 %v8716
        %v9048 = vunpack.c.h.b16 %v8716
        %v9049 = vunpack.c.l.b16 %v8717
        %v9050 = vunpack.c.h.b16 %v8717
        %v9051 = vunpack.c.l.b16 %v8718
        %v9052 = vunpack.c.h.b16 %v8718
        %v9053 = vunpack.c.l.b16 %v8719
        %v9054 = vunpack.c.h.b16 %v8719
        %v9055 = vunpack.c.l.b16 %v8720
        %v9056 = vunpack.c.h.b16 %v8720
        %v9057 = vunpack.c.l.b16 %v8721
        %v9058 = vunpack.c.h.b16 %v8721
        %v9059 = vunpack.c.l.b16 %v8722
        %v9060 = vunpack.c.h.b16 %v8722
        %v9061 = vunpack.c.l.b16 %v8723
        %v9062 = vunpack.c.h.b16 %v8723
        %v9063 = vunpack.c.l.b16 %v8724
        %v9064 = vunpack.c.h.b16 %v8724
        %v9065 = vunpack.c.l.b16 %v8725
        %v9066 = vunpack.c.h.b16 %v8725
        %v9067 = vunpack.c.l.b16 %v8726
        %v9068 = vunpack.c.h.b16 %v8726
        %v9069 = vunpack.c.l.b16 %v8727
        %v9070 = vunpack.c.h.b16 %v8727
        %v9071 = vunpack.c.l.b16 %v8728
        %v9072 = vunpack.c.h.b16 %v8728
        %v9073 = vunpack.c.l.b16 %v8729
        %v9074 = vunpack.c.h.b16 %v8729
        %v9075 = vunpack.c.l.b16 %v8730
        %v9076 = vunpack.c.h.b16 %v8730
        %v9077 = vunpack.c.l.b16 %v8731
        %v9078 = vunpack.c.h.b16 %v8731
        %v9079 = vunpack.c.l.b16 %v8732
        %v9080 = vunpack.c.h.b16 %v8732
        %v9081 = vunpack.c.l.b16 %v8733
        %v9082 = vunpack.c.h.b16 %v8733
        %v9083 = vunpack.c.l.b16 %v8734
        %v9084 = vunpack.c.h.b16 %v8734
        %v9085 = vunpack.c.l.b16 %v8735
        %v9086 = vunpack.c.h.b16 %v8735
        %v9087 = vunpack.c.l.b16 %v8736
        %v9088 = vunpack.c.h.b16 %v8736
        %v9089 = vunpack.c.l.b16 %v8737
        %v9090 = vunpack.c.h.b16 %v8737
        %v9091 = vunpack.c.l.b16 %v8738
        %v9092 = vunpack.c.h.b16 %v8738
        %v9093 = vunpack.c.l.b16 %v8739
        %v9094 = vunpack.c.h.b16 %v8739
        %v9095 = vunpack.c.l.b16 %v8740
        %v9096 = vunpack.c.h.b16 %v8740
        %v9097 = vunpack.c.l.b16 %v8741
        %v9098 = vunpack.c.h.b16 %v8741
        %v9099 = vunpack.c.l.b16 %v8742
        %v9100 = vunpack.c.h.b16 %v8742
        %v9101 = vunpack.c.l.b16 %v8743
        %v9102 = vunpack.c.h.b16 %v8743
        %v9103 = vunpack.c.l.b16 %v8744
        %v9104 = vunpack.c.h.b16 %v8744
        %v9105 = vunpack.c.l.b16 %v8745
        %v9106 = vunpack.c.h.b16 %v8745
        %v9107 = vunpack.c.l.b16 %v8746
        %v9108 = vunpack.c.h.b16 %v8746
        %v9109 = vunpack.c.l.b16 %v8747
        %v9110 = vunpack.c.h.b16 %v8747
        %v9111 = vunpack.c.l.b16 %v8748
        %v9112 = vunpack.c.h.b16 %v8748
        %v9113 = vunpack.c.l.b16 %v8749
        %v9114 = vunpack.c.h.b16 %v8749
        %v9115 = vunpack.c.l.b16 %v8750
        %v9116 = vunpack.c.h.b16 %v8750
        %v9117 = vunpack.c.l.b16 %v8751
        %v9118 = vunpack.c.h.b16 %v8751
        %v9119 = vunpack.c.l.b16 %v8752
        %v9120 = vunpack.c.h.b16 %v8752
        %v9121 = vunpack.c.l.b16 %v8753
        %v9122 = vunpack.c.h.b16 %v8753
        %v9123 = vunpack.c.l.b16 %v8754
        %v9124 = vunpack.c.h.b16 %v8754
        %v9125 = vunpack.c.l.b16 %v8755
        %v9126 = vunpack.c.h.b16 %v8755
        %v9127 = vunpack.c.l.b16 %v8756
        %v9128 = vunpack.c.h.b16 %v8756
        %v9129 = vunpack.c.l.b16 %v8757
        %v9130 = vunpack.c.h.b16 %v8757
        %v9131 = vunpack.c.l.b16 %v8758
        %v9132 = vunpack.c.h.b16 %v8758
        %v9133 = vunpack.c.l.b16 %v8759
        %v9134 = vunpack.c.h.b16 %v8759
        %v9135 = vunpack.c.l.b16 %v8760
        %v9136 = vunpack.c.h.b16 %v8760
        %v9137 = vunpack.c.l.b16 %v8761
        %v9138 = vunpack.c.h.b16 %v8761
        %v9139 = vunpack.c.l.b16 %v8762
        %v9140 = vunpack.c.h.b16 %v8762
        %v9141 = vunpack.c.l.b16 %v8763
        %v9142 = vunpack.c.h.b16 %v8763
        %v9143 = vunpack.c.l.b16 %v8764
        %v9144 = vunpack.c.h.b16 %v8764
        %v9145 = vunpack.c.l.b16 %v8765
        %v9146 = vunpack.c.h.b16 %v8765
        %v9147 = vunpack.c.l.b16 %v8766
        %v9148 = vunpack.c.h.b16 %v8766
        %v9149 = vunpack.c.l.b16 %v8767
        %v9150 = vunpack.c.h.b16 %v8767
        %v9151 = vunpack.c.l.b16 %v8768
        %v9152 = vunpack.c.h.b16 %v8768
        %v9153 = vpack.c.b16 %v8901, %v8897
        %v9154 = vpack.c.b16 %v8902, %v8898
        %v9155 = vpack.c.b16 %v8903, %v8899
        %v9156 = vpack.c.b16 %v8904, %v8900
        %v9157 = vpack.c.b16 %v8909, %v8905
        %v9158 = vpack.c.b16 %v8910, %v8906
        %v9159 = vpack.c.b16 %v8911, %v8907
        %v9160 = vpack.c.b16 %v8912, %v8908
        %v9161 = vpack.c.b16 %v8917, %v8913
        %v9162 = vpack.c.b16 %v8918, %v8914
        %v9163 = vpack.c.b16 %v8919, %v8915
        %v9164 = vpack.c.b16 %v8920, %v8916
        %v9165 = vpack.c.b16 %v8925, %v8921
        %v9166 = vpack.c.b16 %v8926, %v8922
        %v9167 = vpack.c.b16 %v8927, %v8923
        %v9168 = vpack.c.b16 %v8928, %v8924
        %v9169 = vpack.c.b16 %v8933, %v8929
        %v9170 = vpack.c.b16 %v8934, %v8930
        %v9171 = vpack.c.b16 %v8935, %v8931
        %v9172 = vpack.c.b16 %v8936, %v8932
        %v9173 = vpack.c.b16 %v8941, %v8937
        %v9174 = vpack.c.b16 %v8942, %v8938
        %v9175 = vpack.c.b16 %v8943, %v8939
        %v9176 = vpack.c.b16 %v8944, %v8940
        %v9177 = vpack.c.b16 %v8949, %v8945
        %v9178 = vpack.c.b16 %v8950, %v8946
        %v9179 = vpack.c.b16 %v8951, %v8947
        %v9180 = vpack.c.b16 %v8952, %v8948
        %v9181 = vpack.c.b16 %v8957, %v8953
        %v9182 = vpack.c.b16 %v8958, %v8954
        %v9183 = vpack.c.b16 %v8959, %v8955
        %v9184 = vpack.c.b16 %v8960, %v8956
        %v9185 = vpack.c.b16 %v8965, %v8961
        %v9186 = vpack.c.b16 %v8966, %v8962
        %v9187 = vpack.c.b16 %v8967, %v8963
        %v9188 = vpack.c.b16 %v8968, %v8964
        %v9189 = vpack.c.b16 %v8973, %v8969
        %v9190 = vpack.c.b16 %v8974, %v8970
        %v9191 = vpack.c.b16 %v8975, %v8971
        %v9192 = vpack.c.b16 %v8976, %v8972
        %v9193 = vpack.c.b16 %v8981, %v8977
        %v9194 = vpack.c.b16 %v8982, %v8978
        %v9195 = vpack.c.b16 %v8983, %v8979
        %v9196 = vpack.c.b16 %v8984, %v8980
        %v9197 = vpack.c.b16 %v8989, %v8985
        %v9198 = vpack.c.b16 %v8990, %v8986
        %v9199 = vpack.c.b16 %v8991, %v8987
        %v9200 = vpack.c.b16 %v8992, %v8988
        %v9201 = vpack.c.b16 %v8997, %v8993
        %v9202 = vpack.c.b16 %v8998, %v8994
        %v9203 = vpack.c.b16 %v8999, %v8995
        %v9204 = vpack.c.b16 %v9000, %v8996
        %v9205 = vpack.c.b16 %v9005, %v9001
        %v9206 = vpack.c.b16 %v9006, %v9002
        %v9207 = vpack.c.b16 %v9007, %v9003
        %v9208 = vpack.c.b16 %v9008, %v9004
        %v9209 = vpack.c.b16 %v9013, %v9009
        %v9210 = vpack.c.b16 %v9014, %v9010
        %v9211 = vpack.c.b16 %v9015, %v9011
        %v9212 = vpack.c.b16 %v9016, %v9012
        %v9213 = vpack.c.b16 %v9021, %v9017
        %v9214 = vpack.c.b16 %v9022, %v9018
        %v9215 = vpack.c.b16 %v9023, %v9019
        %v9216 = vpack.c.b16 %v9024, %v9020
        %v9217 = vpack.c.b16 %v9029, %v9025
        %v9218 = vpack.c.b16 %v9030, %v9026
        %v9219 = vpack.c.b16 %v9031, %v9027
        %v9220 = vpack.c.b16 %v9032, %v9028
        %v9221 = vpack.c.b16 %v9037, %v9033
        %v9222 = vpack.c.b16 %v9038, %v9034
        %v9223 = vpack.c.b16 %v9039, %v9035
        %v9224 = vpack.c.b16 %v9040, %v9036
        %v9225 = vpack.c.b16 %v9045, %v9041
        %v9226 = vpack.c.b16 %v9046, %v9042
        %v9227 = vpack.c.b16 %v9047, %v9043
        %v9228 = vpack.c.b16 %v9048, %v9044
        %v9229 = vpack.c.b16 %v9053, %v9049
        %v9230 = vpack.c.b16 %v9054, %v9050
        %v9231 = vpack.c.b16 %v9055, %v9051
        %v9232 = vpack.c.b16 %v9056, %v9052
        %v9233 = vpack.c.b16 %v9061, %v9057
        %v9234 = vpack.c.b16 %v9062, %v9058
        %v9235 = vpack.c.b16 %v9063, %v9059
        %v9236 = vpack.c.b16 %v9064, %v9060
        %v9237 = vpack.c.b16 %v9069, %v9065
        %v9238 = vpack.c.b16 %v9070, %v9066
        %v9239 = vpack.c.b16 %v9071, %v9067
        %v9240 = vpack.c.b16 %v9072, %v9068
        %v9241 = vpack.c.b16 %v9077, %v9073
        %v9242 = vpack.c.b16 %v9078, %v9074
        %v9243 = vpack.c.b16 %v9079, %v9075
        %v9244 = vpack.c.b16 %v9080, %v9076
        %v9245 = vpack.c.b16 %v9085, %v9081
        %v9246 = vpack.c.b16 %v9086, %v9082
        %v9247 = vpack.c.b16 %v9087, %v9083
        %v9248 = vpack.c.b16 %v9088, %v9084
        %v9249 = vpack.c.b16 %v9093, %v9089
        %v9250 = vpack.c.b16 %v9094, %v9090
        %v9251 = vpack.c.b16 %v9095, %v9091
        %v9252 = vpack.c.b16 %v9096, %v9092
        %v9253 = vpack.c.b16 %v9101, %v9097
        %v9254 = vpack.c.b16 %v9102, %v9098
        %v9255 = vpack.c.b16 %v9103, %v9099
        %v9256 = vpack.c.b16 %v9104, %v9100
        %v9257 = vpack.c.b16 %v9109, %v9105
        %v9258 = vpack.c.b16 %v9110, %v9106
        %v9259 = vpack.c.b16 %v9111, %v9107
        %v9260 = vpack.c.b16 %v9112, %v9108
        %v9261 = vpack.c.b16 %v9117, %v9113
        %v9262 = vpack.c.b16 %v9118, %v9114
        %v9263 = vpack.c.b16 %v9119, %v9115
        %v9264 = vpack.c.b16 %v9120, %v9116
        %v9265 = vpack.c.b16 %v9125, %v9121
        %v9266 = vpack.c.b16 %v9126, %v9122
        %v9267 = vpack.c.b16 %v9127, %v9123
        %v9268 = vpack.c.b16 %v9128, %v9124
        %v9269 = vpack.c.b16 %v9133, %v9129
        %v9270 = vpack.c.b16 %v9134, %v9130
        %v9271 = vpack.c.b16 %v9135, %v9131
        %v9272 = vpack.c.b16 %v9136, %v9132
        %v9273 = vpack.c.b16 %v9141, %v9137
        %v9274 = vpack.c.b16 %v9142, %v9138
        %v9275 = vpack.c.b16 %v9143, %v9139
        %v9276 = vpack.c.b16 %v9144, %v9140
        %v9277 = vpack.c.b16 %v9149, %v9145
        %v9278 = vpack.c.b16 %v9150, %v9146
        %v9279 = vpack.c.b16 %v9151, %v9147
        %v9280 = vpack.c.b16 %v9152, %v9148
        %9409 = vmatpush.bf16.msra.mxu0 %v9181
        %9410 = vmatpush.bf16.msra.mxu0 %v9177
        %9411 = vmatpush.bf16.msra.mxu0 %v9173
        %9412 = vmatpush.bf16.msra.mxu0 %v9169
        %9413 = vmatpush.bf16.msra.mxu0 %v9165
        %9414 = vmatpush.bf16.msra.mxu0 %v9161
        %9415 = vmatpush.bf16.msra.mxu0 %v9157
        %9416 = vmatpush.bf16.msra.mxu0 %v9153
        %9417 = vmatmul.bf16.gmra.mxu0 %v8637
        %v9418 = vpop.f32.mrf.mxu0
        %v9419 = vadd.f32 0.0, %v9418
        %v9420 = vpop.f32.mrf.mxu0
        %9421 = vdwg.mxu0
        %9422 = vmatpush.bf16.msra.mxu0 %v9213
        %9423 = vmatpush.bf16.msra.mxu0 %v9209
        %9424 = vmatpush.bf16.msra.mxu0 %v9205
        %9425 = vmatpush.bf16.msra.mxu0 %v9201
        %9426 = vmatpush.bf16.msra.mxu0 %v9197
        %9427 = vmatpush.bf16.msra.mxu0 %v9193
        %9428 = vmatpush.bf16.msra.mxu0 %v9189
        %9429 = vmatpush.bf16.msra.mxu0 %v9185
        %9430 = vmatmul.bf16.gmra.mxu0 %v8638
        %v9431 = vpop.f32.mrf.mxu0
        %v9432 = vadd.f32 %v9419, %v9431
        %v9433 = vpop.f32.mrf.mxu0
        %9434 = vdwg.mxu0
        %9435 = vmatpush.bf16.msra.mxu0 %v9245
        %9436 = vmatpush.bf16.msra.mxu0 %v9241
        %9437 = vmatpush.bf16.msra.mxu0 %v9237
        %9438 = vmatpush.bf16.msra.mxu0 %v9233
        %9439 = vmatpush.bf16.msra.mxu0 %v9229
        %9440 = vmatpush.bf16.msra.mxu0 %v9225
        %9441 = vmatpush.bf16.msra.mxu0 %v9221
        %9442 = vmatpush.bf16.msra.mxu0 %v9217
        %9443 = vmatmul.bf16.gmra.mxu0 %v8639
        %v9444 = vpop.f32.mrf.mxu0
        %v9445 = vadd.f32 %v9432, %v9444
        %v9446 = vpop.f32.mrf.mxu0
        %9447 = vdwg.mxu0
        %9448 = vmatpush.bf16.msra.mxu0 %v9277
        %9449 = vmatpush.bf16.msra.mxu0 %v9273
        %9450 = vmatpush.bf16.msra.mxu0 %v9269
        %9451 = vmatpush.bf16.msra.mxu0 %v9265
        %9452 = vmatpush.bf16.msra.mxu0 %v9261
        %9453 = vmatpush.bf16.msra.mxu0 %v9257
        %9454 = vmatpush.bf16.msra.mxu0 %v9253
        %9455 = vmatpush.bf16.msra.mxu0 %v9249
        %9456 = vmatmul.bf16.gmra.mxu0 %v8640
        %v9457 = vpop.f32.mrf.mxu0
        %v9458 = vadd.f32 %v9445, %v9457
        %v9459 = vpop.f32.mrf.mxu0
        %9460 = vdwg.mxu0
        %9461 = vmatpush.bf16.msra.mxu0 %v9182
        %9462 = vmatpush.bf16.msra.mxu0 %v9178
        %9463 = vmatpush.bf16.msra.mxu0 %v9174
        %9464 = vmatpush.bf16.msra.mxu0 %v9170
        %9465 = vmatpush.bf16.msra.mxu0 %v9166
        %9466 = vmatpush.bf16.msra.mxu0 %v9162
        %9467 = vmatpush.bf16.msra.mxu0 %v9158
        %9468 = vmatpush.bf16.msra.mxu0 %v9154
        %9469 = vmatmul.bf16.gmra.mxu0 %v8637
        %v9470 = vpop.f32.mrf.mxu0
        %v9471 = vadd.f32 0.0, %v9470
        %v9472 = vpop.f32.mrf.mxu0
        %9473 = vdwg.mxu0
        %9474 = vmatpush.bf16.msra.mxu0 %v9214
        %9475 = vmatpush.bf16.msra.mxu0 %v9210
        %9476 = vmatpush.bf16.msra.mxu0 %v9206
        %9477 = vmatpush.bf16.msra.mxu0 %v9202
        %9478 = vmatpush.bf16.msra.mxu0 %v9198
        %9479 = vmatpush.bf16.msra.mxu0 %v9194
        %9480 = vmatpush.bf16.msra.mxu0 %v9190
        %9481 = vmatpush.bf16.msra.mxu0 %v9186
        %9482 = vmatmul.bf16.gmra.mxu0 %v8638
        %v9483 = vpop.f32.mrf.mxu0
        %v9484 = vadd.f32 %v9471, %v9483
        %v9485 = vpop.f32.mrf.mxu0
        %9486 = vdwg.mxu0
        %9487 = vmatpush.bf16.msra.mxu0 %v9246
        %9488 = vmatpush.bf16.msra.mxu0 %v9242
        %9489 = vmatpush.bf16.msra.mxu0 %v9238
        %9490 = vmatpush.bf16.msra.mxu0 %v9234
        %9491 = vmatpush.bf16.msra.mxu0 %v9230
        %9492 = vmatpush.bf16.msra.mxu0 %v9226
        %9493 = vmatpush.bf16.msra.mxu0 %v9222
        %9494 = vmatpush.bf16.msra.mxu0 %v9218
        %9495 = vmatmul.bf16.gmra.mxu0 %v8639
        %v9496 = vpop.f32.mrf.mxu0
        %v9497 = vadd.f32 %v9484, %v9496
        %v9498 = vpop.f32.mrf.mxu0
        %9499 = vdwg.mxu0
        %9500 = vmatpush.bf16.msra.mxu0 %v9278
        %9501 = vmatpush.bf16.msra.mxu0 %v9274
        %9502 = vmatpush.bf16.msra.mxu0 %v9270
        %9503 = vmatpush.bf16.msra.mxu0 %v9266
        %9504 = vmatpush.bf16.msra.mxu0 %v9262
        %9505 = vmatpush.bf16.msra.mxu0 %v9258
        %9506 = vmatpush.bf16.msra.mxu0 %v9254
        %9507 = vmatpush.bf16.msra.mxu0 %v9250
        %9508 = vmatmul.bf16.gmra.mxu0 %v8640
        %v9509 = vpop.f32.mrf.mxu0
        %v9510 = vadd.f32 %v9497, %v9509
        %v9511 = vpop.f32.mrf.mxu0
        %9512 = vdwg.mxu0
        %9513 = vmatpush.bf16.msra.mxu0 %v9183
        %9514 = vmatpush.bf16.msra.mxu0 %v9179
        %9515 = vmatpush.bf16.msra.mxu0 %v9175
        %9516 = vmatpush.bf16.msra.mxu0 %v9171
        %9517 = vmatpush.bf16.msra.mxu0 %v9167
        %9518 = vmatpush.bf16.msra.mxu0 %v9163
        %9519 = vmatpush.bf16.msra.mxu0 %v9159
        %9520 = vmatpush.bf16.msra.mxu0 %v9155
        %9521 = vmatmul.bf16.gmra.mxu0 %v8637
        %v9522 = vpop.f32.mrf.mxu0
        %v9523 = vadd.f32 0.0, %v9522
        %v9524 = vpop.f32.mrf.mxu0
        %9525 = vdwg.mxu0
        %9526 = vmatpush.bf16.msra.mxu0 %v9215
        %9527 = vmatpush.bf16.msra.mxu0 %v9211
        %9528 = vmatpush.bf16.msra.mxu0 %v9207
        %9529 = vmatpush.bf16.msra.mxu0 %v9203
        %9530 = vmatpush.bf16.msra.mxu0 %v9199
        %9531 = vmatpush.bf16.msra.mxu0 %v9195
        %9532 = vmatpush.bf16.msra.mxu0 %v9191
        %9533 = vmatpush.bf16.msra.mxu0 %v9187
        %9534 = vmatmul.bf16.gmra.mxu0 %v8638
        %v9535 = vpop.f32.mrf.mxu0
        %v9536 = vadd.f32 %v9523, %v9535
        %v9537 = vpop.f32.mrf.mxu0
        %9538 = vdwg.mxu0
        %9539 = vmatpush.bf16.msra.mxu0 %v9247
        %9540 = vmatpush.bf16.msra.mxu0 %v9243
        %9541 = vmatpush.bf16.msra.mxu0 %v9239
        %9542 = vmatpush.bf16.msra.mxu0 %v9235
        %9543 = vmatpush.bf16.msra.mxu0 %v9231
        %9544 = vmatpush.bf16.msra.mxu0 %v9227
        %9545 = vmatpush.bf16.msra.mxu0 %v9223
        %9546 = vmatpush.bf16.msra.mxu0 %v9219
        %9547 = vmatmul.bf16.gmra.mxu0 %v8639
        %v9548 = vpop.f32.mrf.mxu0
        %v9549 = vadd.f32 %v9536, %v9548
        %v9550 = vpop.f32.mrf.mxu0
        %9551 = vdwg.mxu0
        %9552 = vmatpush.bf16.msra.mxu0 %v9279
        %9553 = vmatpush.bf16.msra.mxu0 %v9275
        %9554 = vmatpush.bf16.msra.mxu0 %v9271
        %9555 = vmatpush.bf16.msra.mxu0 %v9267
        %9556 = vmatpush.bf16.msra.mxu0 %v9263
        %9557 = vmatpush.bf16.msra.mxu0 %v9259
        %9558 = vmatpush.bf16.msra.mxu0 %v9255
        %9559 = vmatpush.bf16.msra.mxu0 %v9251
        %9560 = vmatmul.bf16.gmra.mxu0 %v8640
        %v9561 = vpop.f32.mrf.mxu0
        %v9562 = vadd.f32 %v9549, %v9561
        %v9563 = vpop.f32.mrf.mxu0
        %9564 = vdwg.mxu0
        %9565 = vmatpush.bf16.msra.mxu0 %v9184
        %9566 = vmatpush.bf16.msra.mxu0 %v9180
        %9567 = vmatpush.bf16.msra.mxu0 %v9176
        %9568 = vmatpush.bf16.msra.mxu0 %v9172
        %9569 = vmatpush.bf16.msra.mxu0 %v9168
        %9570 = vmatpush.bf16.msra.mxu0 %v9164
        %9571 = vmatpush.bf16.msra.mxu0 %v9160
        %9572 = vmatpush.bf16.msra.mxu0 %v9156
        %9573 = vmatmul.bf16.gmra.mxu0 %v8637
        %v9574 = vpop.f32.mrf.mxu0
        %v9575 = vadd.f32 0.0, %v9574
        %v9576 = vpop.f32.mrf.mxu0
        %9577 = vdwg.mxu0
        %9578 = vmatpush.bf16.msra.mxu0 %v9216
        %9579 = vmatpush.bf16.msra.mxu0 %v9212
        %9580 = vmatpush.bf16.msra.mxu0 %v9208
        %9581 = vmatpush.bf16.msra.mxu0 %v9204
        %9582 = vmatpush.bf16.msra.mxu0 %v9200
        %9583 = vmatpush.bf16.msra.mxu0 %v9196
        %9584 = vmatpush.bf16.msra.mxu0 %v9192
        %9585 = vmatpush.bf16.msra.mxu0 %v9188
        %9586 = vmatmul.bf16.gmra.mxu0 %v8638
        %v9587 = vpop.f32.mrf.mxu0
        %v9588 = vadd.f32 %v9575, %v9587
        %v9589 = vpop.f32.mrf.mxu0
        %9590 = vdwg.mxu0
        %9591 = vmatpush.bf16.msra.mxu0 %v9248
        %9592 = vmatpush.bf16.msra.mxu0 %v9244
        %9593 = vmatpush.bf16.msra.mxu0 %v9240
        %9594 = vmatpush.bf16.msra.mxu0 %v9236
        %9595 = vmatpush.bf16.msra.mxu0 %v9232
        %9596 = vmatpush.bf16.msra.mxu0 %v9228
        %9597 = vmatpush.bf16.msra.mxu0 %v9224
        %9598 = vmatpush.bf16.msra.mxu0 %v9220
        %9599 = vmatmul.bf16.gmra.mxu0 %v8639
        %v9600 = vpop.f32.mrf.mxu0
        %v9601 = vadd.f32 %v9588, %v9600
        %v9602 = vpop.f32.mrf.mxu0
        %9603 = vdwg.mxu0
        %9604 = vmatpush.bf16.msra.mxu0 %v9280
        %9605 = vmatpush.bf16.msra.mxu0 %v9276
        %9606 = vmatpush.bf16.msra.mxu0 %v9272
        %9607 = vmatpush.bf16.msra.mxu0 %v9268
        %9608 = vmatpush.bf16.msra.mxu0 %v9264
        %9609 = vmatpush.bf16.msra.mxu0 %v9260
        %9610 = vmatpush.bf16.msra.mxu0 %v9256
        %9611 = vmatpush.bf16.msra.mxu0 %v9252
        %9612 = vmatmul.bf16.gmra.mxu0 %v8640
        %v9613 = vpop.f32.mrf.mxu0
        %v9614 = vadd.f32 %v9601, %v9613
        %v9615 = vpop.f32.mrf.mxu0
        %9616 = vdwg.mxu0
        %9617 = vst [vmem:[%s306] sm:$0xff] %v9458
        %9618 = vst [vmem:[%s306 + $0x8] sm:$0xff] %v9510
        %9619 = vst [vmem:[%s306 + $0x10] sm:$0xff] %v9562
        %9620 = vst [vmem:[%s306 + $0x18] sm:$0xff] %v9614
        %s9621 = sand.u32 %s142, 1
        %s9622 = scalar_lea.sflag [#allocation8], %s9621
        %s9623 = sand.u32 %s142, 1
        %s9624 = smul.addr %s9623, 32
        %s9625 = scalar_lea.vmem [#allocation15], %s9624
        // Predicated region
        $region61: #{tpu_custom_call.1} parent=39 // pred_check
          %p9626 = pneg %p152
        $region62: #{tpu_custom_call.1} parent=39 // pred_check_branch
          %9628 = sbr.rel (%p9626) target = $region64
        $region63: #{tpu_custom_call.1} parent=39 // pred_region
          %s9629 = smul.u32 4, %s24
          %9631 = vsyncadd %s9622, 0
          %s9632 = smul.addr %s9629, 8
          %s9633 = scalar_lea.hbm %s5, %s9632
          %s9635 = sshll.u32 %s9625, 4
          %s9636 = int_to_ptr.vmem [resolvable:$true] %s9635
          %s9637 = sshll.u32 %s9633, 4
          %s9638 = int_to_ptr.hbm [resolvable:$true] %s9637
          %9640 = dma.vmem_to_hbm [thread:$0]  %s9636, 512, %s9638, %s9622
        $region64: #{tpu_custom_call.1} parent=39 // pred_fallthru
          _
      $region40: #{tpu_custom_call.1} parent=5 // pred_fallthru
        _
      %p9641 = scmp.le.s32.totalorder 2, %s19
      // Predicated region
      $region65: #{tpu_custom_call.1} parent=5 // pred_check
        %p9642 = pneg %p9641
      $region66: #{tpu_custom_call.1} parent=5 // pred_check_branch
        %9644 = sbr.rel (%p9642) target = $region68
      $region67: #{tpu_custom_call.1} parent=5 // pred_region
        %s9645 = ssub.s32 %s19, 2
        // Predicated region
        $region69: #{tpu_custom_call.1} parent=67 // pred_check
          %p9646 = pneg %p158
        $region70: #{tpu_custom_call.1} parent=67 // pred_check_branch
          %9648 = sbr.rel (%p9646) target = $region72
        $region71: #{tpu_custom_call.1} parent=67 // pred_region
          %s9649 = sand.u32 %s143, 1
          %s9650 = scalar_lea.sflag [#allocation8], %s9649
          %s9651 = sand.u32 %s143, 1
          %s9652 = smul.addr %s9651, 32
          %s9653 = scalar_lea.vmem [#allocation15], %s9652
          %9655 = dma.done %s9650, 512
        $region72: #{tpu_custom_call.1} parent=67 // pred_fallthru
          _
      $region68: #{tpu_custom_call.1} parent=5 // pred_fallthru
        _
    $region6: #{tpu_custom_call.1} parent=1 // loop_footer
      %s23 = sadd.s32 1, %s19
    $region7: #{tpu_custom_call.1} parent=1 // loop_footer_branch
      %18 = sbr.rel target = $region3
    $region8: #{tpu_custom_call.1} parent=1 // loop_exit
      _
    %9656 = vsyncpa [#allocation7], 1
    %s9657 = scalar_lea.sflag [#allocation7], 1
    %9658 = vsyncpa %s9657, 1
    %9659 = vsyncpa [#allocation10], 1
    %9660 = vsyncpa [#allocation13], 1
    %9661 = vsyncpa [#allocation8], 1
    %s9662 = scalar_lea.sflag [#allocation8], 1
    %9663 = vsyncpa %s9662, 1

</llo_original>
